<compile_context>
chip_gen: v7x
topology: tpu7x:2x2x1
jax: 0.10.0
libtpu: 0.0.40
codegen_flags: <defaults>
</compile_context>

<pallas_src>
import jax
import jax.numpy as jnp
import numpy as np
from jax import lax
from jax.experimental import pallas as pl
from jax.experimental.pallas import tpu as pltpu

_BLOCK_B = 8  # images per grid step; must be a multiple of 8 (sublane tile)


# ----------------------------------------------------------------------------
# The fused kernel (one grid step = _BLOCK_B images, whole network)
# ----------------------------------------------------------------------------
def _cnn_fused_kernel(xe_ref, xo_ref, w1b_ref, b1_ref, w2b_ref, b2_ref,
                      w1fc_ref, b1fc_ref, w2fc_ref, b2fc_ref, out_ref):
    """Shapes (per grid step, B = _BLOCK_B):
      xe_ref/xo_ref: (14, B, 28) f32   even / odd image rows
      w1b_ref: (5, 28, 768)  bf16  banded conv1 weights, lanes = q*384+pw*32+co
      b1_ref:  (1, 384)      f32   conv1 bias tiled per pooled column
      w2b_ref: (5, 384, 512) bf16  banded conv2 weights, lanes = q*256+pw*64+co
      b2_ref:  (1, 256)      f32   conv2 bias tiled per pooled column
      w1fc_ref:(4, 256, 256) bf16  fc1 weights split per pooled row (K=1024 total)
      b1fc_ref:(1, 256)      f32
      w2fc_ref:(256, 128)    bf16  fc2 weights, outputs zero-padded 10 -> 128
      b2fc_ref:(1, 128)      f32
      out_ref: (B, 128)      f32   padded logits
    """
    B = _BLOCK_B
    f32, bf16 = jnp.float32, jnp.bfloat16

    def dot(a, w):
        return jnp.dot(a, w, preferred_element_type=f32)

    # ---------------- conv1 + 2x2 max-pool + bias + ReLU ----------------------
    # Banded-matmul formulation.  LHS rows = (spatial_row, batch); contiguous
    # 12-row slabs of the even/odd row arrays cover all 5 kernel-row taps for
    # both conv-output row parities.
    xe = [xe_ref[e:e + 12].reshape(12 * B, 28).astype(bf16) for e in range(3)]
    xo = [xo_ref[e:e + 12].reshape(12 * B, 28).astype(bf16) for e in range(3)]
    w1 = [w1b_ref[i] for i in range(5)]

    # conv output rows oh = 2*ph (even) and oh = 2*ph+1 (odd); rows = ph*B + b
    y1e = (dot(xe[0], w1[0]) + dot(xo[0], w1[1]) + dot(xe[1], w1[2]) +
           dot(xo[1], w1[3]) + dot(xe[2], w1[4]))                 # (96, 768) f32
    y1o = (dot(xo[0], w1[0]) + dot(xe[1], w1[1]) + dot(xo[1], w1[2]) +
           dot(xe[2], w1[3]) + dot(xo[2], w1[4]))                 # (96, 768) f32

    # pool: lane halves = ow parity, the two accumulators = oh parity.
    m1 = jnp.maximum(jnp.maximum(y1e[:, :384], y1e[:, 384:]),
                     jnp.maximum(y1o[:, :384], y1o[:, 384:]))      # (96, 384)
    # bias + ReLU commute with max-pool -> apply once, post-pool.
    p1 = jnp.maximum(m1 + b1_ref[...], 0.0)                        # f32, rows = ph*B+b

    # split pooled rows by parity (ph even / odd) for conv2's banded matmuls;
    # each piece is an aligned (8, 384) slab, so this is pure tile stacking.
    p1e = jnp.concatenate([p1[(2 * t) * B:(2 * t + 1) * B] for t in range(6)], axis=0)
    p1o = jnp.concatenate([p1[(2 * t + 1) * B:(2 * t + 2) * B] for t in range(6)], axis=0)

    # ---------------- conv2 + 2x2 max-pool + bias + ReLU ----------------------
    se = [p1e[m * B:(m + 4) * B].astype(bf16) for m in range(3)]   # p1 rows 2t + {0,2,4}
    so = [p1o[m * B:(m + 4) * B].astype(bf16) for m in range(3)]   # p1 rows 2t+1 + {0,2,4}
    w2 = [w2b_ref[i] for i in range(5)]

    y2e = (dot(se[0], w2[0]) + dot(so[0], w2[1]) + dot(se[1], w2[2]) +
           dot(so[1], w2[3]) + dot(se[2], w2[4]))                  # (32, 512) f32
    y2o = (dot(so[0], w2[0]) + dot(se[1], w2[1]) + dot(so[1], w2[2]) +
           dot(se[2], w2[3]) + dot(so[2], w2[4]))                  # (32, 512) f32

    m2 = jnp.maximum(jnp.maximum(y2e[:, :256], y2e[:, 256:]),
                     jnp.maximum(y2o[:, :256], y2o[:, 256:]))      # (32, 256)
    p2 = jnp.maximum(m2 + b2_ref[...], 0.0)                        # rows = ph2*B + b

    # ---------------- fc1 (K = 1024 via 4 contiguous row-slab matmuls) --------
    h = (dot(p2[0 * B:1 * B].astype(bf16), w1fc_ref[0]) +
         dot(p2[1 * B:2 * B].astype(bf16), w1fc_ref[1]) +
         dot(p2[2 * B:3 * B].astype(bf16), w1fc_ref[2]) +
         dot(p2[3 * B:4 * B].astype(bf16), w1fc_ref[3]))           # (B, 256) f32
    h = jnp.maximum(h + b1fc_ref[...], 0.0).astype(bf16)

    # ---------------- fc2 (lane-dense, zero-padded 10 -> 128 output) ----------
    out_ref[...] = dot(h, w2fc_ref[...]) + b2fc_ref[...]


# ----------------------------------------------------------------------------
# One-time weight repacking (outside the jitted forward)
# ----------------------------------------------------------------------------
def pack_params(params):
    w1 = np.asarray(params["conv1_w"], np.float32)     # (32, 1, 5, 5)
    b1 = np.asarray(params["conv1_b"], np.float32)
    w2 = np.asarray(params["conv2_w"], np.float32)     # (64, 32, 5, 5)
    b2 = np.asarray(params["conv2_b"], np.float32)
    f1w = np.asarray(params["fc1_w"], np.float32)      # (256, 1024)
    f1b = np.asarray(params["fc1_b"], np.float32)
    f2w = np.asarray(params["fc2_w"], np.float32)      # (10, 256)
    f2b = np.asarray(params["fc2_b"], np.float32)

    # conv1 banded weights: W1b[di][w_in, q*384 + pw*32 + co] = w1[co,0,di,dj],
    # dj = w_in - (2*pw + q) in [0,4].
    w1b = np.zeros((5, 28, 768), np.float32)
    for di in range(5):
        for q in range(2):
            for pw in range(12):
                ow = 2 * pw + q
                for dj in range(5):
                    w1b[di, ow + dj, q * 384 + pw * 32: q * 384 + (pw + 1) * 32] = \
                        w1[:, 0, di, dj]

    # conv2 banded weights: W2b[di][pw1*32+ci, q*256 + pw2*64 + co] = w2[co,ci,di,dj],
    # dj = pw1 - (2*pw2 + q) in [0,4].
    w2b = np.zeros((5, 384, 512), np.float32)
    for di in range(5):
        for q in range(2):
            for pw2 in range(4):
                ow = 2 * pw2 + q
                for dj in range(5):
                    w2b[di, (ow + dj) * 32:(ow + dj + 1) * 32,
                        q * 256 + pw2 * 64: q * 256 + (pw2 + 1) * 64] = w2[:, :, di, dj].T

    # fc1: torch flatten index k = c*16 + h*4 + w  ->  per-pooled-row (h) blocks
    # of shape (w*64 + c, out), matching the kernel's (pw2*64 + co) lane order.
    w1fc = np.transpose(f1w.reshape(256, 64, 4, 4), (2, 3, 1, 0)).reshape(4, 256, 256)

    # fc2: zero-pad 10 output columns to 128 (lane-dense final store).
    w2fc = np.zeros((256, 128), np.float32)
    w2fc[:, :10] = f2w.T
    b2fc = np.zeros((1, 128), np.float32)
    b2fc[0, :10] = f2b

    bf16, f32 = jnp.bfloat16, jnp.float32
    return {
        "w1b": jnp.asarray(w1b, bf16),
        "b1t": jnp.asarray(np.tile(b1, 12).reshape(1, 384), f32),
        "w2b": jnp.asarray(w2b, bf16),
        "b2t": jnp.asarray(np.tile(b2, 4).reshape(1, 256), f32),
        "w1fc": jnp.asarray(w1fc, bf16),
        "b1fc": jnp.asarray(f1b.reshape(1, 256), f32),
        "w2fc": jnp.asarray(w2fc, bf16),
        "b2fc": jnp.asarray(b2fc, f32),
    }


# ----------------------------------------------------------------------------
# Forward (mirrors CNNModel.forward)
# ----------------------------------------------------------------------------
def cnn_forward(x_nchw, packed):
    N = x_nchw.shape[0]
    B = _BLOCK_B
    npad = ((N + B - 1) // B) * B

    x = x_nchw.reshape(N, 28, 28).astype(jnp.float32)   # Cin == 1
    x = jnp.transpose(x, (1, 0, 2))                      # (28, N, 28): row, batch, col
    if npad != N:
        x = jnp.pad(x, ((0, 0), (0, npad - N), (0, 0)))
    xe = x[0::2]                                         # (14, npad, 28) even rows
    xo = x[1::2]                                         # (14, npad, 28) odd rows

    out = pl.pallas_call(
        _cnn_fused_kernel,
        out_shape=jax.ShapeDtypeStruct((npad, 128), jnp.float32),
        grid=(npad // B,),
        in_specs=[
            pl.BlockSpec((14, B, 28), lambda n: (0, n, 0)),       # xe
            pl.BlockSpec((14, B, 28), lambda n: (0, n, 0)),       # xo
            pl.BlockSpec((5, 28, 768), lambda n: (0, 0, 0)),      # w1b
            pl.BlockSpec((1, 384), lambda n: (0, 0)),             # b1t
            pl.BlockSpec((5, 384, 512), lambda n: (0, 0, 0)),     # w2b
            pl.BlockSpec((1, 256), lambda n: (0, 0)),             # b2t
            pl.BlockSpec((4, 256, 256), lambda n: (0, 0, 0)),     # w1fc
            pl.BlockSpec((1, 256), lambda n: (0, 0)),             # b1fc
            pl.BlockSpec((256, 128), lambda n: (0, 0)),           # w2fc
            pl.BlockSpec((1, 128), lambda n: (0, 0)),             # b2fc
        ],
        out_specs=pl.BlockSpec((B, 128), lambda n: (n, 0)),
        compiler_params=pltpu.CompilerParams(
            dimension_semantics=("parallel",)),
    )(xe, xo, packed["w1b"], packed["b1t"], packed["w2b"], packed["b2t"],
      packed["w1fc"], packed["b1fc"], packed["w2fc"], packed["b2fc"])

    return out[:N, :10]


# ----------------------------------------------------------------------------
# Deterministic parameter init (PyTorch-style shapes, uniform(-1/sqrt(fan_in)))
# ----------------------------------------------------------------------------
def init_params(key):
    ks = jax.random.split(key, 8)

    def u(k, shape, fan_in):
        bound = 1.0 / np.sqrt(fan_in)
        return jax.random.uniform(k, shape, jnp.float32, -bound, bound)

    return {
        "conv1_w": u(ks[0], (32, 1, 5, 5), 1 * 5 * 5),
        "conv1_b": u(ks[1], (32,), 1 * 5 * 5),
        "conv2_w": u(ks[2], (64, 32, 5, 5), 32 * 5 * 5),
        "conv2_b": u(ks[3], (64,), 32 * 5 * 5),
        "fc1_w": u(ks[4], (256, 1024), 1024),
        "fc1_b": u(ks[5], (256,), 1024),
        "fc2_w": u(ks[6], (10, 256), 256),
        "fc2_b": u(ks[7], (10,), 256),
    }


# ----------------------------------------------------------------------------
# Pure-JAX f32 reference (correctness check)
# ----------------------------------------------------------------------------
def cnn_forward_ref(x_nchw, params):
    def conv(x, w, b):
        y = lax.conv_general_dilated(
            x, w, (1, 1), "VALID", dimension_numbers=("NCHW", "OIHW", "NCHW"))
        return y + b[None, :, None, None]

    x = jnp.maximum(conv(x_nchw, params["conv1_w"], params["conv1_b"]), 0.0)
    x = lax.reduce_window(x, -jnp.inf, lax.max, (1, 1, 2, 2), (1, 1, 2, 2), "VALID")
    x = jnp.maximum(conv(x, params["conv2_w"], params["conv2_b"]), 0.0)
    x = lax.reduce_window(x, -jnp.inf, lax.max, (1, 1, 2, 2), (1, 1, 2, 2), "VALID")
    x = x.reshape(x.shape[0], -1)
    x = jnp.maximum(x @ params["fc1_w"].T + params["fc1_b"], 0.0)
    return x @ params["fc2_w"].T + params["fc2_b"]


if __name__ == "__main__":
    key = jax.random.PRNGKey(0)
    k_x, k_p = jax.random.split(key)

    # Input shape implied by fc1(1024): 28x28x1 -> conv5 -> pool2 -> conv5 -> pool2
    # gives 64*4*4 = 1024.  N=12 exercises both batch padding (12 -> 16) and a
    # multi-step grid (2 steps -> both v7x TensorCores).
    N = 12
    x = jax.random.normal(k_x, (N, 1, 28, 28), dtype=jnp.float32)
    params = init_params(k_p)

    packed = pack_params(params)          # one-time repack, outside the jit
    fwd = jax.jit(cnn_forward)
    out = jax.block_until_ready(fwd(x, packed))
    assert out.shape == (N, 10), out.shape

    ref = jax.block_until_ready(cnn_forward_ref(x, params))
    max_err = float(jnp.max(jnp.abs(out - ref)))
    # bf16 matmul operands (f32 accumulation) vs the pure-f32 reference leave a
    # few 1e-3 of absolute error on O(0.1) logits; 3e-2 still catches any
    # packing/layout bug.
    assert max_err < 3e-2, f"mismatch vs reference, max abs err={max_err}"

    print("KERNEL_OK")
</pallas_src>

<mosaic_0001>
module attributes {stable_mosaic.version = 11 : i64} {
  func.func @_cnn_fused_kernel(%arg0: i32, %arg1: memref<14x8x28xf32, #tpu.memory_space<vmem>>, %arg2: memref<14x8x28xf32, #tpu.memory_space<vmem>>, %arg3: memref<5x28x768xbf16, #tpu.memory_space<vmem>>, %arg4: memref<1x384xf32, #tpu.memory_space<vmem>>, %arg5: memref<5x384x512xbf16, #tpu.memory_space<vmem>>, %arg6: memref<1x256xf32, #tpu.memory_space<vmem>>, %arg7: memref<4x256x256xbf16, #tpu.memory_space<vmem>>, %arg8: memref<1x256xf32, #tpu.memory_space<vmem>>, %arg9: memref<256x128xbf16, #tpu.memory_space<vmem>>, %arg10: memref<1x128xf32, #tpu.memory_space<vmem>>, %arg11: memref<8x128xf32, #tpu.memory_space<vmem>>) attributes {dimension_semantics = [#tpu.dimension_semantics<parallel>], iteration_bounds = array<i64: 2>, scalar_prefetch = 0 : i64, scratch_operands = 0 : i64, tpu.core_type = #tpu.core_type<tc>, window_params = [{transform_indices = @transform_0, window_bounds = array<i64: 14, 8, 28>}, {transform_indices = @transform_1, window_bounds = array<i64: 14, 8, 28>}, {pipeline_mode = #tpu.pipeline_mode<synchronous>, transform_indices = @transform_2, window_bounds = array<i64: 5, 28, 768>}, {pipeline_mode = #tpu.pipeline_mode<synchronous>, transform_indices = @transform_3, window_bounds = array<i64: 1, 384>}, {pipeline_mode = #tpu.pipeline_mode<synchronous>, transform_indices = @transform_4, window_bounds = array<i64: 5, 384, 512>}, {pipeline_mode = #tpu.pipeline_mode<synchronous>, transform_indices = @transform_5, window_bounds = array<i64: 1, 256>}, {pipeline_mode = #tpu.pipeline_mode<synchronous>, transform_indices = @transform_6, window_bounds = array<i64: 4, 256, 256>}, {pipeline_mode = #tpu.pipeline_mode<synchronous>, transform_indices = @transform_7, window_bounds = array<i64: 1, 256>}, {pipeline_mode = #tpu.pipeline_mode<synchronous>, transform_indices = @transform_8, window_bounds = array<i64: 256, 128>}, {pipeline_mode = #tpu.pipeline_mode<synchronous>, transform_indices = @transform_9, window_bounds = array<i64: 1, 128>}, {transform_indices = @transform_10, window_bounds = array<i64: 8, 128>}]} {
    %c0 = arith.constant 0 : index
    %c0_0 = arith.constant 0 : index
    %c0_1 = arith.constant 0 : index
    %0 = vector.load %arg1[%c0, %c0_0, %c0_1] : memref<14x8x28xf32, #tpu.memory_space<vmem>>, vector<12x8x28xf32>
    %1 = vector.shape_cast %0 : vector<12x8x28xf32> to vector<96x28xf32>
    %2 = arith.truncf %1 : vector<96x28xf32> to vector<96x28xbf16>
    %c1 = arith.constant 1 : index
    %c0_2 = arith.constant 0 : index
    %c0_3 = arith.constant 0 : index
    %3 = vector.load %arg1[%c1, %c0_2, %c0_3] : memref<14x8x28xf32, #tpu.memory_space<vmem>>, vector<12x8x28xf32>
    %4 = vector.shape_cast %3 : vector<12x8x28xf32> to vector<96x28xf32>
    %5 = arith.truncf %4 : vector<96x28xf32> to vector<96x28xbf16>
    %c2 = arith.constant 2 : index
    %c0_4 = arith.constant 0 : index
    %c0_5 = arith.constant 0 : index
    %6 = vector.load %arg1[%c2, %c0_4, %c0_5] : memref<14x8x28xf32, #tpu.memory_space<vmem>>, vector<12x8x28xf32>
    %7 = vector.shape_cast %6 : vector<12x8x28xf32> to vector<96x28xf32>
    %8 = arith.truncf %7 : vector<96x28xf32> to vector<96x28xbf16>
    %c0_6 = arith.constant 0 : index
    %c0_7 = arith.constant 0 : index
    %c0_8 = arith.constant 0 : index
    %9 = vector.load %arg2[%c0_6, %c0_7, %c0_8] : memref<14x8x28xf32, #tpu.memory_space<vmem>>, vector<12x8x28xf32>
    %10 = vector.shape_cast %9 : vector<12x8x28xf32> to vector<96x28xf32>
    %11 = arith.truncf %10 : vector<96x28xf32> to vector<96x28xbf16>
    %c1_9 = arith.constant 1 : index
    %c0_10 = arith.constant 0 : index
    %c0_11 = arith.constant 0 : index
    %12 = vector.load %arg2[%c1_9, %c0_10, %c0_11] : memref<14x8x28xf32, #tpu.memory_space<vmem>>, vector<12x8x28xf32>
    %13 = vector.shape_cast %12 : vector<12x8x28xf32> to vector<96x28xf32>
    %14 = arith.truncf %13 : vector<96x28xf32> to vector<96x28xbf16>
    %c2_12 = arith.constant 2 : index
    %c0_13 = arith.constant 0 : index
    %c0_14 = arith.constant 0 : index
    %15 = vector.load %arg2[%c2_12, %c0_13, %c0_14] : memref<14x8x28xf32, #tpu.memory_space<vmem>>, vector<12x8x28xf32>
    %16 = vector.shape_cast %15 : vector<12x8x28xf32> to vector<96x28xf32>
    %17 = arith.truncf %16 : vector<96x28xf32> to vector<96x28xbf16>
    %c0_15 = arith.constant 0 : index
    %c0_16 = arith.constant 0 : index
    %c0_17 = arith.constant 0 : index
    %18 = vector.load %arg3[%c0_15, %c0_16, %c0_17] : memref<5x28x768xbf16, #tpu.memory_space<vmem>>, vector<1x28x768xbf16>
    %19 = vector.shape_cast %18 : vector<1x28x768xbf16> to vector<28x768xbf16>
    %c1_18 = arith.constant 1 : index
    %c0_19 = arith.constant 0 : index
    %c0_20 = arith.constant 0 : index
    %20 = vector.load %arg3[%c1_18, %c0_19, %c0_20] : memref<5x28x768xbf16, #tpu.memory_space<vmem>>, vector<1x28x768xbf16>
    %21 = vector.shape_cast %20 : vector<1x28x768xbf16> to vector<28x768xbf16>
    %c2_21 = arith.constant 2 : index
    %c0_22 = arith.constant 0 : index
    %c0_23 = arith.constant 0 : index
    %22 = vector.load %arg3[%c2_21, %c0_22, %c0_23] : memref<5x28x768xbf16, #tpu.memory_space<vmem>>, vector<1x28x768xbf16>
    %23 = vector.shape_cast %22 : vector<1x28x768xbf16> to vector<28x768xbf16>
    %c3 = arith.constant 3 : index
    %c0_24 = arith.constant 0 : index
    %c0_25 = arith.constant 0 : index
    %24 = vector.load %arg3[%c3, %c0_24, %c0_25] : memref<5x28x768xbf16, #tpu.memory_space<vmem>>, vector<1x28x768xbf16>
    %25 = vector.shape_cast %24 : vector<1x28x768xbf16> to vector<28x768xbf16>
    %c4 = arith.constant 4 : index
    %c0_26 = arith.constant 0 : index
    %c0_27 = arith.constant 0 : index
    %26 = vector.load %arg3[%c4, %c0_26, %c0_27] : memref<5x28x768xbf16, #tpu.memory_space<vmem>>, vector<1x28x768xbf16>
    %27 = vector.shape_cast %26 : vector<1x28x768xbf16> to vector<28x768xbf16>
    %cst = arith.constant dense<0.000000e+00> : vector<96x768xf32>
    %28 = tpu.matmul %2, %19, %cst {dimension_numbers = #tpu.dot_dimension_numbers<[1], [0], [0], [1], [0, 0, 1, 1], [], []>} : vector<96x28xbf16>, vector<28x768xbf16>, vector<96x768xf32> -> vector<96x768xf32>
    %cst_28 = arith.constant dense<0.000000e+00> : vector<96x768xf32>
    %29 = tpu.matmul %11, %21, %cst_28 {dimension_numbers = #tpu.dot_dimension_numbers<[1], [0], [0], [1], [0, 0, 1, 1], [], []>} : vector<96x28xbf16>, vector<28x768xbf16>, vector<96x768xf32> -> vector<96x768xf32>
    %30 = arith.addf %28, %29 : vector<96x768xf32>
    %cst_29 = arith.constant dense<0.000000e+00> : vector<96x768xf32>
    %31 = tpu.matmul %5, %23, %cst_29 {dimension_numbers = #tpu.dot_dimension_numbers<[1], [0], [0], [1], [0, 0, 1, 1], [], []>} : vector<96x28xbf16>, vector<28x768xbf16>, vector<96x768xf32> -> vector<96x768xf32>
    %32 = arith.addf %30, %31 : vector<96x768xf32>
    %cst_30 = arith.constant dense<0.000000e+00> : vector<96x768xf32>
    %33 = tpu.matmul %14, %25, %cst_30 {dimension_numbers = #tpu.dot_dimension_numbers<[1], [0], [0], [1], [0, 0, 1, 1], [], []>} : vector<96x28xbf16>, vector<28x768xbf16>, vector<96x768xf32> -> vector<96x768xf32>
    %34 = arith.addf %32, %33 : vector<96x768xf32>
    %cst_31 = arith.constant dense<0.000000e+00> : vector<96x768xf32>
    %35 = tpu.matmul %8, %27, %cst_31 {dimension_numbers = #tpu.dot_dimension_numbers<[1], [0], [0], [1], [0, 0, 1, 1], [], []>} : vector<96x28xbf16>, vector<28x768xbf16>, vector<96x768xf32> -> vector<96x768xf32>
    %36 = arith.addf %34, %35 : vector<96x768xf32>
    %cst_32 = arith.constant dense<0.000000e+00> : vector<96x768xf32>
    %37 = tpu.matmul %11, %19, %cst_32 {dimension_numbers = #tpu.dot_dimension_numbers<[1], [0], [0], [1], [0, 0, 1, 1], [], []>} : vector<96x28xbf16>, vector<28x768xbf16>, vector<96x768xf32> -> vector<96x768xf32>
    %cst_33 = arith.constant dense<0.000000e+00> : vector<96x768xf32>
    %38 = tpu.matmul %5, %21, %cst_33 {dimension_numbers = #tpu.dot_dimension_numbers<[1], [0], [0], [1], [0, 0, 1, 1], [], []>} : vector<96x28xbf16>, vector<28x768xbf16>, vector<96x768xf32> -> vector<96x768xf32>
    %39 = arith.addf %37, %38 : vector<96x768xf32>
    %cst_34 = arith.constant dense<0.000000e+00> : vector<96x768xf32>
    %40 = tpu.matmul %14, %23, %cst_34 {dimension_numbers = #tpu.dot_dimension_numbers<[1], [0], [0], [1], [0, 0, 1, 1], [], []>} : vector<96x28xbf16>, vector<28x768xbf16>, vector<96x768xf32> -> vector<96x768xf32>
    %41 = arith.addf %39, %40 : vector<96x768xf32>
    %cst_35 = arith.constant dense<0.000000e+00> : vector<96x768xf32>
    %42 = tpu.matmul %8, %25, %cst_35 {dimension_numbers = #tpu.dot_dimension_numbers<[1], [0], [0], [1], [0, 0, 1, 1], [], []>} : vector<96x28xbf16>, vector<28x768xbf16>, vector<96x768xf32> -> vector<96x768xf32>
    %43 = arith.addf %41, %42 : vector<96x768xf32>
    %cst_36 = arith.constant dense<0.000000e+00> : vector<96x768xf32>
    %44 = tpu.matmul %17, %27, %cst_36 {dimension_numbers = #tpu.dot_dimension_numbers<[1], [0], [0], [1], [0, 0, 1, 1], [], []>} : vector<96x28xbf16>, vector<28x768xbf16>, vector<96x768xf32> -> vector<96x768xf32>
    %45 = arith.addf %43, %44 : vector<96x768xf32>
    %46 = vector.extract_strided_slice %36 {offsets = [0, 0], sizes = [96, 384], strides = [1, 1]} : vector<96x768xf32> to vector<96x384xf32>
    %47 = vector.extract_strided_slice %36 {offsets = [0, 384], sizes = [96, 384], strides = [1, 1]} : vector<96x768xf32> to vector<96x384xf32>
    %48 = arith.maximumf %46, %47 : vector<96x384xf32>
    %49 = vector.extract_strided_slice %45 {offsets = [0, 0], sizes = [96, 384], strides = [1, 1]} : vector<96x768xf32> to vector<96x384xf32>
    %50 = vector.extract_strided_slice %45 {offsets = [0, 384], sizes = [96, 384], strides = [1, 1]} : vector<96x768xf32> to vector<96x384xf32>
    %51 = arith.maximumf %49, %50 : vector<96x384xf32>
    %52 = arith.maximumf %48, %51 : vector<96x384xf32>
    %c0_37 = arith.constant 0 : index
    %c0_38 = arith.constant 0 : index
    %53 = vector.load %arg4[%c0_37, %c0_38] : memref<1x384xf32, #tpu.memory_space<vmem>>, vector<1x384xf32>
    %54 = vector.broadcast %53 : vector<1x384xf32> to vector<96x384xf32>
    %55 = arith.addf %52, %54 : vector<96x384xf32>
    %cst_39 = arith.constant 0.000000e+00 : f32
    %56 = vector.broadcast %cst_39 : f32 to vector<96x384xf32>
    %57 = arith.maximumf %55, %56 : vector<96x384xf32>
    %58 = vector.extract_strided_slice %57 {offsets = [0, 0], sizes = [8, 384], strides = [1, 1]} : vector<96x384xf32> to vector<8x384xf32>
    %59 = vector.extract_strided_slice %57 {offsets = [16, 0], sizes = [8, 384], strides = [1, 1]} : vector<96x384xf32> to vector<8x384xf32>
    %60 = vector.extract_strided_slice %57 {offsets = [32, 0], sizes = [8, 384], strides = [1, 1]} : vector<96x384xf32> to vector<8x384xf32>
    %61 = vector.extract_strided_slice %57 {offsets = [48, 0], sizes = [8, 384], strides = [1, 1]} : vector<96x384xf32> to vector<8x384xf32>
    %62 = vector.extract_strided_slice %57 {offsets = [64, 0], sizes = [8, 384], strides = [1, 1]} : vector<96x384xf32> to vector<8x384xf32>
    %63 = vector.extract_strided_slice %57 {offsets = [80, 0], sizes = [8, 384], strides = [1, 1]} : vector<96x384xf32> to vector<8x384xf32>
    %64 = tpu.concatenate %58, %59, %60, %61, %62, %63 in 0 : vector<8x384xf32>, vector<8x384xf32>, vector<8x384xf32>, vector<8x384xf32>, vector<8x384xf32>, vector<8x384xf32> -> vector<48x384xf32>
    %65 = vector.extract_strided_slice %57 {offsets = [8, 0], sizes = [8, 384], strides = [1, 1]} : vector<96x384xf32> to vector<8x384xf32>
    %66 = vector.extract_strided_slice %57 {offsets = [24, 0], sizes = [8, 384], strides = [1, 1]} : vector<96x384xf32> to vector<8x384xf32>
    %67 = vector.extract_strided_slice %57 {offsets = [40, 0], sizes = [8, 384], strides = [1, 1]} : vector<96x384xf32> to vector<8x384xf32>
    %68 = vector.extract_strided_slice %57 {offsets = [56, 0], sizes = [8, 384], strides = [1, 1]} : vector<96x384xf32> to vector<8x384xf32>
    %69 = vector.extract_strided_slice %57 {offsets = [72, 0], sizes = [8, 384], strides = [1, 1]} : vector<96x384xf32> to vector<8x384xf32>
    %70 = vector.extract_strided_slice %57 {offsets = [88, 0], sizes = [8, 384], strides = [1, 1]} : vector<96x384xf32> to vector<8x384xf32>
    %71 = tpu.concatenate %65, %66, %67, %68, %69, %70 in 0 : vector<8x384xf32>, vector<8x384xf32>, vector<8x384xf32>, vector<8x384xf32>, vector<8x384xf32>, vector<8x384xf32> -> vector<48x384xf32>
    %72 = vector.extract_strided_slice %64 {offsets = [0, 0], sizes = [32, 384], strides = [1, 1]} : vector<48x384xf32> to vector<32x384xf32>
    %73 = arith.truncf %72 : vector<32x384xf32> to vector<32x384xbf16>
    %74 = vector.extract_strided_slice %64 {offsets = [8, 0], sizes = [32, 384], strides = [1, 1]} : vector<48x384xf32> to vector<32x384xf32>
    %75 = arith.truncf %74 : vector<32x384xf32> to vector<32x384xbf16>
    %76 = vector.extract_strided_slice %64 {offsets = [16, 0], sizes = [32, 384], strides = [1, 1]} : vector<48x384xf32> to vector<32x384xf32>
    %77 = arith.truncf %76 : vector<32x384xf32> to vector<32x384xbf16>
    %78 = vector.extract_strided_slice %71 {offsets = [0, 0], sizes = [32, 384], strides = [1, 1]} : vector<48x384xf32> to vector<32x384xf32>
    %79 = arith.truncf %78 : vector<32x384xf32> to vector<32x384xbf16>
    %80 = vector.extract_strided_slice %71 {offsets = [8, 0], sizes = [32, 384], strides = [1, 1]} : vector<48x384xf32> to vector<32x384xf32>
    %81 = arith.truncf %80 : vector<32x384xf32> to vector<32x384xbf16>
    %82 = vector.extract_strided_slice %71 {offsets = [16, 0], sizes = [32, 384], strides = [1, 1]} : vector<48x384xf32> to vector<32x384xf32>
    %83 = arith.truncf %82 : vector<32x384xf32> to vector<32x384xbf16>
    %c0_40 = arith.constant 0 : index
    %c0_41 = arith.constant 0 : index
    %c0_42 = arith.constant 0 : index
    %84 = vector.load %arg5[%c0_40, %c0_41, %c0_42] : memref<5x384x512xbf16, #tpu.memory_space<vmem>>, vector<1x384x512xbf16>
    %85 = vector.shape_cast %84 : vector<1x384x512xbf16> to vector<384x512xbf16>
    %c1_43 = arith.constant 1 : index
    %c0_44 = arith.constant 0 : index
    %c0_45 = arith.constant 0 : index
    %86 = vector.load %arg5[%c1_43, %c0_44, %c0_45] : memref<5x384x512xbf16, #tpu.memory_space<vmem>>, vector<1x384x512xbf16>
    %87 = vector.shape_cast %86 : vector<1x384x512xbf16> to vector<384x512xbf16>
    %c2_46 = arith.constant 2 : index
    %c0_47 = arith.constant 0 : index
    %c0_48 = arith.constant 0 : index
    %88 = vector.load %arg5[%c2_46, %c0_47, %c0_48] : memref<5x384x512xbf16, #tpu.memory_space<vmem>>, vector<1x384x512xbf16>
    %89 = vector.shape_cast %88 : vector<1x384x512xbf16> to vector<384x512xbf16>
    %c3_49 = arith.constant 3 : index
    %c0_50 = arith.constant 0 : index
    %c0_51 = arith.constant 0 : index
    %90 = vector.load %arg5[%c3_49, %c0_50, %c0_51] : memref<5x384x512xbf16, #tpu.memory_space<vmem>>, vector<1x384x512xbf16>
    %91 = vector.shape_cast %90 : vector<1x384x512xbf16> to vector<384x512xbf16>
    %c4_52 = arith.constant 4 : index
    %c0_53 = arith.constant 0 : index
    %c0_54 = arith.constant 0 : index
    %92 = vector.load %arg5[%c4_52, %c0_53, %c0_54] : memref<5x384x512xbf16, #tpu.memory_space<vmem>>, vector<1x384x512xbf16>
    %93 = vector.shape_cast %92 : vector<1x384x512xbf16> to vector<384x512xbf16>
    %cst_55 = arith.constant dense<0.000000e+00> : vector<32x512xf32>
    %94 = tpu.matmul %73, %85, %cst_55 {dimension_numbers = #tpu.dot_dimension_numbers<[1], [0], [0], [1], [0, 0, 1, 1], [], []>} : vector<32x384xbf16>, vector<384x512xbf16>, vector<32x512xf32> -> vector<32x512xf32>
    %cst_56 = arith.constant dense<0.000000e+00> : vector<32x512xf32>
    %95 = tpu.matmul %79, %87, %cst_56 {dimension_numbers = #tpu.dot_dimension_numbers<[1], [0], [0], [1], [0, 0, 1, 1], [], []>} : vector<32x384xbf16>, vector<384x512xbf16>, vector<32x512xf32> -> vector<32x512xf32>
    %96 = arith.addf %94, %95 : vector<32x512xf32>
    %cst_57 = arith.constant dense<0.000000e+00> : vector<32x512xf32>
    %97 = tpu.matmul %75, %89, %cst_57 {dimension_numbers = #tpu.dot_dimension_numbers<[1], [0], [0], [1], [0, 0, 1, 1], [], []>} : vector<32x384xbf16>, vector<384x512xbf16>, vector<32x512xf32> -> vector<32x512xf32>
    %98 = arith.addf %96, %97 : vector<32x512xf32>
    %cst_58 = arith.constant dense<0.000000e+00> : vector<32x512xf32>
    %99 = tpu.matmul %81, %91, %cst_58 {dimension_numbers = #tpu.dot_dimension_numbers<[1], [0], [0], [1], [0, 0, 1, 1], [], []>} : vector<32x384xbf16>, vector<384x512xbf16>, vector<32x512xf32> -> vector<32x512xf32>
    %100 = arith.addf %98, %99 : vector<32x512xf32>
    %cst_59 = arith.constant dense<0.000000e+00> : vector<32x512xf32>
    %101 = tpu.matmul %77, %93, %cst_59 {dimension_numbers = #tpu.dot_dimension_numbers<[1], [0], [0], [1], [0, 0, 1, 1], [], []>} : vector<32x384xbf16>, vector<384x512xbf16>, vector<32x512xf32> -> vector<32x512xf32>
    %102 = arith.addf %100, %101 : vector<32x512xf32>
    %cst_60 = arith.constant dense<0.000000e+00> : vector<32x512xf32>
    %103 = tpu.matmul %79, %85, %cst_60 {dimension_numbers = #tpu.dot_dimension_numbers<[1], [0], [0], [1], [0, 0, 1, 1], [], []>} : vector<32x384xbf16>, vector<384x512xbf16>, vector<32x512xf32> -> vector<32x512xf32>
    %cst_61 = arith.constant dense<0.000000e+00> : vector<32x512xf32>
    %104 = tpu.matmul %75, %87, %cst_61 {dimension_numbers = #tpu.dot_dimension_numbers<[1], [0], [0], [1], [0, 0, 1, 1], [], []>} : vector<32x384xbf16>, vector<384x512xbf16>, vector<32x512xf32> -> vector<32x512xf32>
    %105 = arith.addf %103, %104 : vector<32x512xf32>
    %cst_62 = arith.constant dense<0.000000e+00> : vector<32x512xf32>
    %106 = tpu.matmul %81, %89, %cst_62 {dimension_numbers = #tpu.dot_dimension_numbers<[1], [0], [0], [1], [0, 0, 1, 1], [], []>} : vector<32x384xbf16>, vector<384x512xbf16>, vector<32x512xf32> -> vector<32x512xf32>
    %107 = arith.addf %105, %106 : vector<32x512xf32>
    %cst_63 = arith.constant dense<0.000000e+00> : vector<32x512xf32>
    %108 = tpu.matmul %77, %91, %cst_63 {dimension_numbers = #tpu.dot_dimension_numbers<[1], [0], [0], [1], [0, 0, 1, 1], [], []>} : vector<32x384xbf16>, vector<384x512xbf16>, vector<32x512xf32> -> vector<32x512xf32>
    %109 = arith.addf %107, %108 : vector<32x512xf32>
    %cst_64 = arith.constant dense<0.000000e+00> : vector<32x512xf32>
    %110 = tpu.matmul %83, %93, %cst_64 {dimension_numbers = #tpu.dot_dimension_numbers<[1], [0], [0], [1], [0, 0, 1, 1], [], []>} : vector<32x384xbf16>, vector<384x512xbf16>, vector<32x512xf32> -> vector<32x512xf32>
    %111 = arith.addf %109, %110 : vector<32x512xf32>
    %112 = vector.extract_strided_slice %102 {offsets = [0, 0], sizes = [32, 256], strides = [1, 1]} : vector<32x512xf32> to vector<32x256xf32>
    %113 = vector.extract_strided_slice %102 {offsets = [0, 256], sizes = [32, 256], strides = [1, 1]} : vector<32x512xf32> to vector<32x256xf32>
    %114 = arith.maximumf %112, %113 : vector<32x256xf32>
    %115 = vector.extract_strided_slice %111 {offsets = [0, 0], sizes = [32, 256], strides = [1, 1]} : vector<32x512xf32> to vector<32x256xf32>
    %116 = vector.extract_strided_slice %111 {offsets = [0, 256], sizes = [32, 256], strides = [1, 1]} : vector<32x512xf32> to vector<32x256xf32>
    %117 = arith.maximumf %115, %116 : vector<32x256xf32>
    %118 = arith.maximumf %114, %117 : vector<32x256xf32>
    %c0_65 = arith.constant 0 : index
    %c0_66 = arith.constant 0 : index
    %119 = vector.load %arg6[%c0_65, %c0_66] : memref<1x256xf32, #tpu.memory_space<vmem>>, vector<1x256xf32>
    %120 = vector.broadcast %119 : vector<1x256xf32> to vector<32x256xf32>
    %121 = arith.addf %118, %120 : vector<32x256xf32>
    %cst_67 = arith.constant 0.000000e+00 : f32
    %122 = vector.broadcast %cst_67 : f32 to vector<32x256xf32>
    %123 = arith.maximumf %121, %122 : vector<32x256xf32>
    %124 = vector.extract_strided_slice %123 {offsets = [0, 0], sizes = [8, 256], strides = [1, 1]} : vector<32x256xf32> to vector<8x256xf32>
    %125 = arith.truncf %124 : vector<8x256xf32> to vector<8x256xbf16>
    %c0_68 = arith.constant 0 : index
    %c0_69 = arith.constant 0 : index
    %c0_70 = arith.constant 0 : index
    %126 = vector.load %arg7[%c0_68, %c0_69, %c0_70] : memref<4x256x256xbf16, #tpu.memory_space<vmem>>, vector<1x256x256xbf16>
    %127 = vector.shape_cast %126 : vector<1x256x256xbf16> to vector<256x256xbf16>
    %cst_71 = arith.constant dense<0.000000e+00> : vector<8x256xf32>
    %128 = tpu.matmul %125, %127, %cst_71 {dimension_numbers = #tpu.dot_dimension_numbers<[1], [0], [0], [1], [0, 0, 1, 1], [], []>} : vector<8x256xbf16>, vector<256x256xbf16>, vector<8x256xf32> -> vector<8x256xf32>
    %129 = vector.extract_strided_slice %123 {offsets = [8, 0], sizes = [8, 256], strides = [1, 1]} : vector<32x256xf32> to vector<8x256xf32>
    %130 = arith.truncf %129 : vector<8x256xf32> to vector<8x256xbf16>
    %c1_72 = arith.constant 1 : index
    %c0_73 = arith.constant 0 : index
    %c0_74 = arith.constant 0 : index
    %131 = vector.load %arg7[%c1_72, %c0_73, %c0_74] : memref<4x256x256xbf16, #tpu.memory_space<vmem>>, vector<1x256x256xbf16>
    %132 = vector.shape_cast %131 : vector<1x256x256xbf16> to vector<256x256xbf16>
    %cst_75 = arith.constant dense<0.000000e+00> : vector<8x256xf32>
    %133 = tpu.matmul %130, %132, %cst_75 {dimension_numbers = #tpu.dot_dimension_numbers<[1], [0], [0], [1], [0, 0, 1, 1], [], []>} : vector<8x256xbf16>, vector<256x256xbf16>, vector<8x256xf32> -> vector<8x256xf32>
    %134 = arith.addf %128, %133 : vector<8x256xf32>
    %135 = vector.extract_strided_slice %123 {offsets = [16, 0], sizes = [8, 256], strides = [1, 1]} : vector<32x256xf32> to vector<8x256xf32>
    %136 = arith.truncf %135 : vector<8x256xf32> to vector<8x256xbf16>
    %c2_76 = arith.constant 2 : index
    %c0_77 = arith.constant 0 : index
    %c0_78 = arith.constant 0 : index
    %137 = vector.load %arg7[%c2_76, %c0_77, %c0_78] : memref<4x256x256xbf16, #tpu.memory_space<vmem>>, vector<1x256x256xbf16>
    %138 = vector.shape_cast %137 : vector<1x256x256xbf16> to vector<256x256xbf16>
    %cst_79 = arith.constant dense<0.000000e+00> : vector<8x256xf32>
    %139 = tpu.matmul %136, %138, %cst_79 {dimension_numbers = #tpu.dot_dimension_numbers<[1], [0], [0], [1], [0, 0, 1, 1], [], []>} : vector<8x256xbf16>, vector<256x256xbf16>, vector<8x256xf32> -> vector<8x256xf32>
    %140 = arith.addf %134, %139 : vector<8x256xf32>
    %141 = vector.extract_strided_slice %123 {offsets = [24, 0], sizes = [8, 256], strides = [1, 1]} : vector<32x256xf32> to vector<8x256xf32>
    %142 = arith.truncf %141 : vector<8x256xf32> to vector<8x256xbf16>
    %c3_80 = arith.constant 3 : index
    %c0_81 = arith.constant 0 : index
    %c0_82 = arith.constant 0 : index
    %143 = vector.load %arg7[%c3_80, %c0_81, %c0_82] : memref<4x256x256xbf16, #tpu.memory_space<vmem>>, vector<1x256x256xbf16>
    %144 = vector.shape_cast %143 : vector<1x256x256xbf16> to vector<256x256xbf16>
    %cst_83 = arith.constant dense<0.000000e+00> : vector<8x256xf32>
    %145 = tpu.matmul %142, %144, %cst_83 {dimension_numbers = #tpu.dot_dimension_numbers<[1], [0], [0], [1], [0, 0, 1, 1], [], []>} : vector<8x256xbf16>, vector<256x256xbf16>, vector<8x256xf32> -> vector<8x256xf32>
    %146 = arith.addf %140, %145 : vector<8x256xf32>
    %c0_84 = arith.constant 0 : index
    %c0_85 = arith.constant 0 : index
    %147 = vector.load %arg8[%c0_84, %c0_85] : memref<1x256xf32, #tpu.memory_space<vmem>>, vector<1x256xf32>
    %148 = vector.broadcast %147 : vector<1x256xf32> to vector<8x256xf32>
    %149 = arith.addf %146, %148 : vector<8x256xf32>
    %cst_86 = arith.constant 0.000000e+00 : f32
    %150 = vector.broadcast %cst_86 : f32 to vector<8x256xf32>
    %151 = arith.maximumf %149, %150 : vector<8x256xf32>
    %152 = arith.truncf %151 : vector<8x256xf32> to vector<8x256xbf16>
    %c0_87 = arith.constant 0 : index
    %c0_88 = arith.constant 0 : index
    %153 = vector.load %arg9[%c0_87, %c0_88] : memref<256x128xbf16, #tpu.memory_space<vmem>>, vector<256x128xbf16>
    %cst_89 = arith.constant dense<0.000000e+00> : vector<8x128xf32>
    %154 = tpu.matmul %152, %153, %cst_89 {dimension_numbers = #tpu.dot_dimension_numbers<[1], [0], [0], [1], [0, 0, 1, 1], [], []>} : vector<8x256xbf16>, vector<256x128xbf16>, vector<8x128xf32> -> vector<8x128xf32>
    %c0_90 = arith.constant 0 : index
    %c0_91 = arith.constant 0 : index
    %155 = vector.load %arg10[%c0_90, %c0_91] : memref<1x128xf32, #tpu.memory_space<vmem>>, vector<1x128xf32>
    %156 = vector.broadcast %155 : vector<1x128xf32> to vector<8x128xf32>
    %157 = arith.addf %154, %156 : vector<8x128xf32>
    %c0_92 = arith.constant 0 : index
    %c0_93 = arith.constant 0 : index
    %158 = vector.load %arg11[%c0_92, %c0_93] : memref<8x128xf32, #tpu.memory_space<vmem>>, vector<8x128xf32>
    tpu.vector_store %arg11[%c0_92, %c0_93], %157 {strides = array<i32>} : memref<8x128xf32, #tpu.memory_space<vmem>>, vector<8x128xf32>,
    return
  }
  func.func @transform_0(%arg0: i32) -> (i32, i32, i32) {
    %c0_i32 = arith.constant 0 : i32
    %c0_i32_0 = arith.constant 0 : i32
    %c0_i32_1 = arith.constant 0 : i32
    return %c0_i32, %arg0, %c0_i32_0 : i32, i32, i32
  }
  func.func @transform_1(%arg0: i32) -> (i32, i32, i32) {
    %c0_i32 = arith.constant 0 : i32
    %c0_i32_0 = arith.constant 0 : i32
    %c0_i32_1 = arith.constant 0 : i32
    return %c0_i32, %arg0, %c0_i32_0 : i32, i32, i32
  }
  func.func @transform_2(%arg0: i32) -> (i32, i32, i32) {
    %c0_i32 = arith.constant 0 : i32
    %c0_i32_0 = arith.constant 0 : i32
    %c0_i32_1 = arith.constant 0 : i32
    %c0_i32_2 = arith.constant 0 : i32
    return %c0_i32, %c0_i32_0, %c0_i32_1 : i32, i32, i32
  }
  func.func @transform_3(%arg0: i32) -> (i32, i32) {
    %c0_i32 = arith.constant 0 : i32
    %c0_i32_0 = arith.constant 0 : i32
    %c0_i32_1 = arith.constant 0 : i32
    return %c0_i32, %c0_i32_0 : i32, i32
  }
  func.func @transform_4(%arg0: i32) -> (i32, i32, i32) {
    %c0_i32 = arith.constant 0 : i32
    %c0_i32_0 = arith.constant 0 : i32
    %c0_i32_1 = arith.constant 0 : i32
    %c0_i32_2 = arith.constant 0 : i32
    return %c0_i32, %c0_i32_0, %c0_i32_1 : i32, i32, i32
  }
  func.func @transform_5(%arg0: i32) -> (i32, i32) {
    %c0_i32 = arith.constant 0 : i32
    %c0_i32_0 = arith.constant 0 : i32
    %c0_i32_1 = arith.constant 0 : i32
    return %c0_i32, %c0_i32_0 : i32, i32
  }
  func.func @transform_6(%arg0: i32) -> (i32, i32, i32) {
    %c0_i32 = arith.constant 0 : i32
    %c0_i32_0 = arith.constant 0 : i32
    %c0_i32_1 = arith.constant 0 : i32
    %c0_i32_2 = arith.constant 0 : i32
    return %c0_i32, %c0_i32_0, %c0_i32_1 : i32, i32, i32
  }
  func.func @transform_7(%arg0: i32) -> (i32, i32) {
    %c0_i32 = arith.constant 0 : i32
    %c0_i32_0 = arith.constant 0 : i32
    %c0_i32_1 = arith.constant 0 : i32
    return %c0_i32, %c0_i32_0 : i32, i32
  }
  func.func @transform_8(%arg0: i32) -> (i32, i32) {
    %c0_i32 = arith.constant 0 : i32
    %c0_i32_0 = arith.constant 0 : i32
    %c0_i32_1 = arith.constant 0 : i32
    return %c0_i32, %c0_i32_0 : i32, i32
  }
  func.func @transform_9(%arg0: i32) -> (i32, i32) {
    %c0_i32 = arith.constant 0 : i32
    %c0_i32_0 = arith.constant 0 : i32
    %c0_i32_1 = arith.constant 0 : i32
    return %c0_i32, %c0_i32_0 : i32, i32
  }
  func.func @transform_10(%arg0: i32) -> (i32, i32) {
    %c0_i32 = arith.constant 0 : i32
    %c0_i32_0 = arith.constant 0 : i32
    return %arg0, %c0_i32 : i32, i32
  }
}

</mosaic_0001>

<llo_original>
// kernel: cnn_forward.1
$region0: #{cnn_forward.1}
  #allocation0 [shape = 'u32[]', space=smem, size = 0x4, offset = 0x4, fixed_abs, tag = 'smem constant byte address 0x4 - core index']
  #allocation1 [shape = 'u32[144,128]{1,0:T(1,128)}', space=vmem, size = 0x12000, scoped, tag = 'internal scratch']
  %s0 = inlined_call_operand.vmem [shape: f32[14,16,28], index: 0, kind: input, shape index: {}]
  %s1 = inlined_call_operand.vmem [shape: f32[14,16,28], index: 1, kind: input, shape index: {}]
  %s2 = inlined_call_operand.hbm [shape: bf16[5,28,768], index: 2, kind: input, shape index: {}]
  %s3 = inlined_call_operand.hbm [shape: f32[1,384], index: 3, kind: input, shape index: {}]
  %s4 = inlined_call_operand.hbm [shape: bf16[5,384,512], index: 4, kind: input, shape index: {}]
  %s5 = inlined_call_operand.hbm [shape: f32[1,256], index: 5, kind: input, shape index: {}]
  %s6 = inlined_call_operand.hbm [shape: bf16[4,256,256], index: 6, kind: input, shape index: {}]
  %s7 = inlined_call_operand.hbm [shape: f32[1,256], index: 7, kind: input, shape index: {}]
  %s8 = inlined_call_operand.hbm [shape: bf16[256,128], index: 8, kind: input, shape index: {}]
  %s9 = inlined_call_operand.hbm [shape: f32[1,128], index: 9, kind: input, shape index: {}]
  %s10 = inlined_call_operand.hbm [shape: f32[16,128], index: 10, kind: output, shape index: {}]
  %s11 = sld [smem:[#allocation0]]
  $region181: #{cnn_forward.1} parent=0
    _
  %s13 = ssub.s32 1, %s11
  %s14 = scalar_select 0, %s13, %s11
  $region1: #{cnn_forward.1} parent=0
    #allocation2 [shape = 'u8[114688]{0}', space=vmem, size = 0x1c000, scoped, tag = 'input window, operand 0']
    #allocation3 [shape = 'u8[114688]{0}', space=vmem, size = 0x1c000, scoped, tag = 'input window, operand 1']
    #allocation4 [shape = 'u8[245760]{0}', space=vmem, size = 0x3c000, scoped, tag = 'input window, operand 2, single buffered']
    #allocation5 [shape = 's32[2]{0}', space=sflag, size = 0x8, scoped, tag = 'scoped memory for cnn_forward.1']
    #allocation6 [shape = 's32[2]{0}', space=sflag, size = 0x8, scoped, tag = 'scoped memory for cnn_forward.1']
    #allocation7 [shape = 'u8[1536]{0}', space=vmem, size = 0x800, scoped, tag = 'input window, operand 3, single buffered']
    #allocation8 [shape = 's32[1]{0}', space=sflag, size = 0x4, scoped, tag = 'scoped memory for cnn_forward.1']
    #allocation9 [shape = 'u8[1966080]{0}', space=vmem, size = 0x1e0000, scoped, tag = 'input window, operand 4, single buffered']
    #allocation10 [shape = 'u8[1024]{0}', space=vmem, size = 0x400, scoped, tag = 'input window, operand 5, single buffered']
    #allocation11 [shape = 's32[1]{0}', space=sflag, size = 0x4, scoped, tag = 'scoped memory for cnn_forward.1']
    #allocation12 [shape = 'u8[524288]{0}', space=vmem, size = 0x80000, scoped, tag = 'input window, operand 6, single buffered']
    #allocation13 [shape = 'u8[1024]{0}', space=vmem, size = 0x400, scoped, tag = 'input window, operand 7, single buffered']
    #allocation14 [shape = 's32[1]{0}', space=sflag, size = 0x4, scoped, tag = 'scoped memory for cnn_forward.1']
    #allocation15 [shape = 'u8[65536]{0}', space=vmem, size = 0x10000, scoped, tag = 'input window, operand 8, single buffered']
    #allocation16 [shape = 'u8[512]{0}', space=vmem, size = 0x400, scoped, tag = 'input window, operand 9, single buffered']
    #allocation17 [shape = 's32[1]{0}', space=sflag, size = 0x4, scoped, tag = 'scoped memory for cnn_forward.1']
    #allocation18 [shape = 'u8[8192]{0}', space=vmem, size = 0x2000, scoped, tag = 'output window, operand 0']
    %15 = vsyncpa [#allocation5], 0
    %16 = vsyncpa [#allocation8], 0
    %17 = vsyncpa [#allocation11], 0
    %18 = vsyncpa [#allocation14], 0
    %19 = vsyncpa [#allocation17], 0
    %20 = vsyncpa [#allocation6], 0
    %s21 = scalar_lea.sflag [#allocation6], 1
    %22 = vsyncpa %s21, 0
    loop: start=0, step=1, limit=4
    $region2: #{cnn_forward.1} parent=1 // loop_pre_header
      _
    $region3: #{cnn_forward.1} parent=1 // loop_header
      %s24 = sphi 0, %s28
      %p25 = scmp.ge.s32.totalorder %s24, 4
      %s34 = sphi 0, %s36
      %s37 = sphi 0, %s34
      %s38 = sphi 0, %s37
      %s54 = sphi 0, %s38
      %s60 = sphi 0, %s62
      %s63 = sphi 0, %s60
      %s64 = sphi 0, %s63
      %s80 = sphi 0, %s64
      %s84 = sphi 0, %s84
      %s86 = sphi 0, %s84
      %s87 = sphi 0, %s86
      %s101 = sphi 0, %s87
      %s105 = sphi 0, %s105
      %s107 = sphi 0, %s105
      %s108 = sphi 0, %s107
      %s122 = sphi 0, %s108
      %s126 = sphi 0, %s126
      %s128 = sphi 0, %s126
      %s129 = sphi 0, %s128
      %s143 = sphi 0, %s129
      %s147 = sphi 0, %s147
      %s149 = sphi 0, %s147
      %s150 = sphi 0, %s149
      %s164 = sphi 0, %s150
      %s168 = sphi 0, %s168
      %s170 = sphi 0, %s168
      %s171 = sphi 0, %s170
      %s185 = sphi 0, %s171
      %s189 = sphi 0, %s189
      %s191 = sphi 0, %s189
      %s192 = sphi 0, %s191
      %s206 = sphi 0, %s192
      %s210 = sphi 0, %s210
      %s212 = sphi 0, %s210
      %s213 = sphi 0, %s212
      %s227 = sphi 0, %s213
      %s231 = sphi 0, %s231
      %s233 = sphi 0, %s231
      %s234 = sphi 0, %s233
      %s248 = sphi 0, %s234
      %s254 = sphi 0, %s256
      %s257 = sphi 0, %s254
      %s258 = sphi 0, %s257
      %s274 = sphi 0, %s258
    $region4: #{cnn_forward.1} parent=1 // loop_header_branch
      %27 = sbr.rel (%p25) target = $region8
    $region5: #{cnn_forward.1} parent=1 // loop_body
      %s29 = ssub.s32 %s24, 1
      %s30 = ssub.s32 %s24, 2
      %s31 = sadd.s32 %s24, 1
      %s32 = ssub.s32 %s24, %s31
      %p33 = scmp.eq.s32.totalorder %s32, 0
      %s35 = sadd.s32 %s34, 1
      %s36 = scalar_select %p33, %s34, %s35
      %p39 = pneg %p33
      %p40 = scmp.eq.s32.totalorder %s24, 1
      %p41 = por %p39, %p40
      %p42 = scmp.ne.s32.totalorder %s34, %s37
      %p43 = scmp.eq.s32.totalorder %s24, 0
      %p44 = por %p42, %p43
      %p45 = scmp.ne.s32.totalorder %s34, %s37
      %p46 = scmp.eq.s32.totalorder %s29, 1
      %p47 = por %p45, %p46
      %p48 = scmp.ne.s32.totalorder %s37, %s38
      %p49 = scmp.eq.s32.totalorder %s29, 0
      %p50 = por %p48, %p49
      %p51 = scmp.ne.s32.totalorder %s37, %s38
      %p52 = scmp.eq.s32.totalorder %s30, 1
      %p53 = por %p51, %p52
      %p55 = scmp.ne.s32.totalorder %s38, %s54
      %p56 = scmp.eq.s32.totalorder %s30, 0
      %p57 = por %p55, %p56
      %s58 = ssub.s32 %s24, %s31
      %p59 = scmp.eq.s32.totalorder %s58, 0
      %s61 = sadd.s32 %s60, 1
      %s62 = scalar_select %p59, %s60, %s61
      %p65 = pneg %p59
      %p66 = scmp.eq.s32.totalorder %s24, 1
      %p67 = por %p65, %p66
      %p68 = scmp.ne.s32.totalorder %s60, %s63
      %p69 = scmp.eq.s32.totalorder %s24, 0
      %p70 = por %p68, %p69
      %p71 = scmp.ne.s32.totalorder %s60, %s63
      %p72 = scmp.eq.s32.totalorder %s29, 1
      %p73 = por %p71, %p72
      %p74 = scmp.ne.s32.totalorder %s63, %s64
      %p75 = scmp.eq.s32.totalorder %s29, 0
      %p76 = por %p74, %p75
      %p77 = scmp.ne.s32.totalorder %s63, %s64
      %p78 = scmp.eq.s32.totalorder %s30, 1
      %p79 = por %p77, %p78
      %p81 = scmp.ne.s32.totalorder %s64, %s80
      %p82 = scmp.eq.s32.totalorder %s30, 0
      %p83 = por %p81, %p82
      %s85 = sadd.s32 %s84, 1
      %p88 = scmp.eq.s32.totalorder %s24, 1
      %p89 = scmp.ne.s32.totalorder %s84, %s86
      %p90 = scmp.eq.s32.totalorder %s24, 0
      %p91 = por %p89, %p90
      %p92 = scmp.ne.s32.totalorder %s84, %s86
      %p93 = scmp.eq.s32.totalorder %s29, 1
      %p94 = por %p92, %p93
      %p95 = scmp.ne.s32.totalorder %s86, %s87
      %p96 = scmp.eq.s32.totalorder %s29, 0
      %p97 = por %p95, %p96
      %p98 = scmp.ne.s32.totalorder %s86, %s87
      %p99 = scmp.eq.s32.totalorder %s30, 1
      %p100 = por %p98, %p99
      %p102 = scmp.ne.s32.totalorder %s87, %s101
      %p103 = scmp.eq.s32.totalorder %s30, 0
      %p104 = por %p102, %p103
      %s106 = sadd.s32 %s105, 1
      %p109 = scmp.eq.s32.totalorder %s24, 1
      %p110 = scmp.ne.s32.totalorder %s105, %s107
      %p111 = scmp.eq.s32.totalorder %s24, 0
      %p112 = por %p110, %p111
      %p113 = scmp.ne.s32.totalorder %s105, %s107
      %p114 = scmp.eq.s32.totalorder %s29, 1
      %p115 = por %p113, %p114
      %p116 = scmp.ne.s32.totalorder %s107, %s108
      %p117 = scmp.eq.s32.totalorder %s29, 0
      %p118 = por %p116, %p117
      %p119 = scmp.ne.s32.totalorder %s107, %s108
      %p120 = scmp.eq.s32.totalorder %s30, 1
      %p121 = por %p119, %p120
      %p123 = scmp.ne.s32.totalorder %s108, %s122
      %p124 = scmp.eq.s32.totalorder %s30, 0
      %p125 = por %p123, %p124
      %s127 = sadd.s32 %s126, 1
      %p130 = scmp.eq.s32.totalorder %s24, 1
      %p131 = scmp.ne.s32.totalorder %s126, %s128
      %p132 = scmp.eq.s32.totalorder %s24, 0
      %p133 = por %p131, %p132
      %p134 = scmp.ne.s32.totalorder %s126, %s128
      %p135 = scmp.eq.s32.totalorder %s29, 1
      %p136 = por %p134, %p135
      %p137 = scmp.ne.s32.totalorder %s128, %s129
      %p138 = scmp.eq.s32.totalorder %s29, 0
      %p139 = por %p137, %p138
      %p140 = scmp.ne.s32.totalorder %s128, %s129
      %p141 = scmp.eq.s32.totalorder %s30, 1
      %p142 = por %p140, %p141
      %p144 = scmp.ne.s32.totalorder %s129, %s143
      %p145 = scmp.eq.s32.totalorder %s30, 0
      %p146 = por %p144, %p145
      %s148 = sadd.s32 %s147, 1
      %p151 = scmp.eq.s32.totalorder %s24, 1
      %p152 = scmp.ne.s32.totalorder %s147, %s149
      %p153 = scmp.eq.s32.totalorder %s24, 0
      %p154 = por %p152, %p153
      %p155 = scmp.ne.s32.totalorder %s147, %s149
      %p156 = scmp.eq.s32.totalorder %s29, 1
      %p157 = por %p155, %p156
      %p158 = scmp.ne.s32.totalorder %s149, %s150
      %p159 = scmp.eq.s32.totalorder %s29, 0
      %p160 = por %p158, %p159
      %p161 = scmp.ne.s32.totalorder %s149, %s150
      %p162 = scmp.eq.s32.totalorder %s30, 1
      %p163 = por %p161, %p162
      %p165 = scmp.ne.s32.totalorder %s150, %s164
      %p166 = scmp.eq.s32.totalorder %s30, 0
      %p167 = por %p165, %p166
      %s169 = sadd.s32 %s168, 1
      %p172 = scmp.eq.s32.totalorder %s24, 1
      %p173 = scmp.ne.s32.totalorder %s168, %s170
      %p174 = scmp.eq.s32.totalorder %s24, 0
      %p175 = por %p173, %p174
      %p176 = scmp.ne.s32.totalorder %s168, %s170
      %p177 = scmp.eq.s32.totalorder %s29, 1
      %p178 = por %p176, %p177
      %p179 = scmp.ne.s32.totalorder %s170, %s171
      %p180 = scmp.eq.s32.totalorder %s29, 0
      %p181 = por %p179, %p180
      %p182 = scmp.ne.s32.totalorder %s170, %s171
      %p183 = scmp.eq.s32.totalorder %s30, 1
      %p184 = por %p182, %p183
      %p186 = scmp.ne.s32.totalorder %s171, %s185
      %p187 = scmp.eq.s32.totalorder %s30, 0
      %p188 = por %p186, %p187
      %s190 = sadd.s32 %s189, 1
      %p193 = scmp.eq.s32.totalorder %s24, 1
      %p194 = scmp.ne.s32.totalorder %s189, %s191
      %p195 = scmp.eq.s32.totalorder %s24, 0
      %p196 = por %p194, %p195
      %p197 = scmp.ne.s32.totalorder %s189, %s191
      %p198 = scmp.eq.s32.totalorder %s29, 1
      %p199 = por %p197, %p198
      %p200 = scmp.ne.s32.totalorder %s191, %s192
      %p201 = scmp.eq.s32.totalorder %s29, 0
      %p202 = por %p200, %p201
      %p203 = scmp.ne.s32.totalorder %s191, %s192
      %p204 = scmp.eq.s32.totalorder %s30, 1
      %p205 = por %p203, %p204
      %p207 = scmp.ne.s32.totalorder %s192, %s206
      %p208 = scmp.eq.s32.totalorder %s30, 0
      %p209 = por %p207, %p208
      %s211 = sadd.s32 %s210, 1
      %p214 = scmp.eq.s32.totalorder %s24, 1
      %p215 = scmp.ne.s32.totalorder %s210, %s212
      %p216 = scmp.eq.s32.totalorder %s24, 0
      %p217 = por %p215, %p216
      %p218 = scmp.ne.s32.totalorder %s210, %s212
      %p219 = scmp.eq.s32.totalorder %s29, 1
      %p220 = por %p218, %p219
      %p221 = scmp.ne.s32.totalorder %s212, %s213
      %p222 = scmp.eq.s32.totalorder %s29, 0
      %p223 = por %p221, %p222
      %p224 = scmp.ne.s32.totalorder %s212, %s213
      %p225 = scmp.eq.s32.totalorder %s30, 1
      %p226 = por %p224, %p225
      %p228 = scmp.ne.s32.totalorder %s213, %s227
      %p229 = scmp.eq.s32.totalorder %s30, 0
      %p230 = por %p228, %p229
      %s232 = sadd.s32 %s231, 1
      %p235 = scmp.eq.s32.totalorder %s24, 1
      %p236 = scmp.ne.s32.totalorder %s231, %s233
      %p237 = scmp.eq.s32.totalorder %s24, 0
      %p238 = por %p236, %p237
      %p239 = scmp.ne.s32.totalorder %s231, %s233
      %p240 = scmp.eq.s32.totalorder %s29, 1
      %p241 = por %p239, %p240
      %p242 = scmp.ne.s32.totalorder %s233, %s234
      %p243 = scmp.eq.s32.totalorder %s29, 0
      %p244 = por %p242, %p243
      %p245 = scmp.ne.s32.totalorder %s233, %s234
      %p246 = scmp.eq.s32.totalorder %s30, 1
      %p247 = por %p245, %p246
      %p249 = scmp.ne.s32.totalorder %s234, %s248
      %p250 = scmp.eq.s32.totalorder %s30, 0
      %p251 = por %p249, %p250
      %s252 = ssub.s32 %s24, %s31
      %p253 = scmp.eq.s32.totalorder %s252, 0
      %s255 = sadd.s32 %s254, 1
      %s256 = scalar_select %p253, %s254, %s255
      %p259 = pneg %p253
      %p260 = scmp.eq.s32.totalorder %s24, 1
      %p261 = por %p259, %p260
      %p262 = scmp.ne.s32.totalorder %s254, %s257
      %p263 = scmp.eq.s32.totalorder %s24, 0
      %p264 = por %p262, %p263
      %p265 = scmp.ne.s32.totalorder %s254, %s257
      %p266 = scmp.eq.s32.totalorder %s29, 1
      %p267 = por %p265, %p266
      %p268 = scmp.ne.s32.totalorder %s257, %s258
      %p269 = scmp.eq.s32.totalorder %s29, 0
      %p270 = por %p268, %p269
      %p271 = scmp.ne.s32.totalorder %s257, %s258
      %p272 = scmp.eq.s32.totalorder %s30, 1
      %p273 = por %p271, %p272
      %p275 = scmp.ne.s32.totalorder %s258, %s274
      %p276 = scmp.eq.s32.totalorder %s30, 0
      %p277 = por %p275, %p276
      %p278 = scmp.le.s32.totalorder 1, %s24
      %p279 = scmp.lt.s32.totalorder %s24, 3
      %p280 = pnand %p278, %p279
      %p281 = pneg %p280
      // Predicated region
      $region9: #{cnn_forward.1} parent=5 // pred_check
        _
      $region10: #{cnn_forward.1} parent=5 // pred_check_branch
        %283 = sbr.rel (%p280) target = $region12
      $region11: #{cnn_forward.1} parent=5 // pred_region
        %s284 = ssub.s32 %s24, 1
        // Predicated region
        $region13: #{cnn_forward.1} parent=11 // pred_check
          %p285 = pneg %p97
        $region14: #{cnn_forward.1} parent=11 // pred_check_branch
          %287 = sbr.rel (%p285) target = $region16
        $region15: #{cnn_forward.1} parent=11 // pred_region
          %s289 = ssub.s32 7680, 7680
          %290 = vsyncadd [#allocation5], %s289
          %s291 = sshll.u32 [#allocation4], 4
          %s292 = int_to_ptr.vmem [resolvable:$true] %s291
          %297 = dma.hbm_to_vmem [thread:$0]  %s2, 7680, %s292, [#allocation5], 384, 384, 24
        $region16: #{cnn_forward.1} parent=11 // pred_fallthru
          _
        // Predicated region
        $region17: #{cnn_forward.1} parent=11 // pred_check
          %p298 = pneg %p118
        $region18: #{cnn_forward.1} parent=11 // pred_check_branch
          %300 = sbr.rel (%p298) target = $region20
        $region19: #{cnn_forward.1} parent=11 // pred_region
          %s302 = ssub.s32 48, 48
          %303 = vsyncadd [#allocation8], %s302
          %s305 = sshll.u32 [#allocation7], 4
          %s306 = int_to_ptr.vmem [resolvable:$true] %s305
          %308 = dma.hbm_to_vmem [thread:$0]  %s3, 48, %s306, [#allocation8]
        $region20: #{cnn_forward.1} parent=11 // pred_fallthru
          _
        // Predicated region
        $region21: #{cnn_forward.1} parent=11 // pred_check
          %p309 = pneg %p139
        $region22: #{cnn_forward.1} parent=11 // pred_check_branch
          %311 = sbr.rel (%p309) target = $region24
        $region23: #{cnn_forward.1} parent=11 // pred_region
          %s313 = ssub.s32 61440, 61440
          %314 = vsyncadd [#allocation8], %s313
          %s315 = sshll.u32 [#allocation9], 4
          %s316 = int_to_ptr.vmem [resolvable:$true] %s315
          %321 = dma.hbm_to_vmem [thread:$0]  %s4, 61440, %s316, [#allocation8], 256, 256, 16
        $region24: #{cnn_forward.1} parent=11 // pred_fallthru
          _
        // Predicated region
        $region25: #{cnn_forward.1} parent=11 // pred_check
          %p322 = pneg %p160
        $region26: #{cnn_forward.1} parent=11 // pred_check_branch
          %324 = sbr.rel (%p322) target = $region28
        $region27: #{cnn_forward.1} parent=11 // pred_region
          %s326 = ssub.s32 32, 32
          %327 = vsyncadd [#allocation11], %s326
          %s329 = sshll.u32 [#allocation10], 4
          %s330 = int_to_ptr.vmem [resolvable:$true] %s329
          %332 = dma.hbm_to_vmem [thread:$0]  %s5, 32, %s330, [#allocation11]
        $region28: #{cnn_forward.1} parent=11 // pred_fallthru
          _
        // Predicated region
        $region29: #{cnn_forward.1} parent=11 // pred_check
          %p333 = pneg %p181
        $region30: #{cnn_forward.1} parent=11 // pred_check_branch
          %335 = sbr.rel (%p333) target = $region32
        $region31: #{cnn_forward.1} parent=11 // pred_region
          %s337 = ssub.s32 16384, 16384
          %338 = vsyncadd [#allocation11], %s337
          %s339 = sshll.u32 [#allocation12], 4
          %s340 = int_to_ptr.vmem [resolvable:$true] %s339
          %345 = dma.hbm_to_vmem [thread:$0]  %s6, 16384, %s340, [#allocation11], 128, 128, 8
        $region32: #{cnn_forward.1} parent=11 // pred_fallthru
          _
        // Predicated region
        $region33: #{cnn_forward.1} parent=11 // pred_check
          %p346 = pneg %p202
        $region34: #{cnn_forward.1} parent=11 // pred_check_branch
          %348 = sbr.rel (%p346) target = $region36
        $region35: #{cnn_forward.1} parent=11 // pred_region
          %s350 = ssub.s32 32, 32
          %351 = vsyncadd [#allocation14], %s350
          %s353 = sshll.u32 [#allocation13], 4
          %s354 = int_to_ptr.vmem [resolvable:$true] %s353
          %356 = dma.hbm_to_vmem [thread:$0]  %s7, 32, %s354, [#allocation14]
        $region36: #{cnn_forward.1} parent=11 // pred_fallthru
          _
        // Predicated region
        $region37: #{cnn_forward.1} parent=11 // pred_check
          %p357 = pneg %p223
        $region38: #{cnn_forward.1} parent=11 // pred_check_branch
          %359 = sbr.rel (%p357) target = $region40
        $region39: #{cnn_forward.1} parent=11 // pred_region
          %s361 = ssub.s32 2048, 2048
          %362 = vsyncadd [#allocation14], %s361
          %s363 = sshll.u32 [#allocation15], 4
          %s364 = int_to_ptr.vmem [resolvable:$true] %s363
          %369 = dma.hbm_to_vmem [thread:$0]  %s8, 2048, %s364, [#allocation14], 64, 64, 4
        $region40: #{cnn_forward.1} parent=11 // pred_fallthru
          _
        // Predicated region
        $region41: #{cnn_forward.1} parent=11 // pred_check
          %p370 = pneg %p244
        $region42: #{cnn_forward.1} parent=11 // pred_check_branch
          %372 = sbr.rel (%p370) target = $region44
        $region43: #{cnn_forward.1} parent=11 // pred_region
          %s374 = ssub.s32 16, 16
          %375 = vsyncadd [#allocation17], %s374
          %s377 = sshll.u32 [#allocation16], 4
          %s378 = int_to_ptr.vmem [resolvable:$true] %s377
          %380 = dma.hbm_to_vmem [thread:$0]  %s9, 16, %s378, [#allocation17]
        $region44: #{cnn_forward.1} parent=11 // pred_fallthru
          _
      $region12: #{cnn_forward.1} parent=5 // pred_fallthru
        _
      %p381 = scmp.lt.s32.totalorder %s24, 2
      // Predicated region
      $region45: #{cnn_forward.1} parent=5 // pred_check
        %p382 = pneg %p381
      $region46: #{cnn_forward.1} parent=5 // pred_check_branch
        %384 = sbr.rel (%p382) target = $region48
      $region47: #{cnn_forward.1} parent=5 // pred_region
        // Predicated region
        $region49: #{cnn_forward.1} parent=47 // pred_check
          %p385 = pneg %p44
        $region50: #{cnn_forward.1} parent=47 // pred_check_branch
          %387 = sbr.rel (%p385) target = $region52
        $region51: #{cnn_forward.1} parent=47 // pred_region
          %s388 = sand.u32 %s34, 1
          %s389 = sand.u32 %s34, 1
          %s390 = smul.addr %s389, 112
          %s391 = scalar_lea.vmem [#allocation2], %s390
          %s392 = smul.addr %s24, 8
          %s393 = scalar_lea.vmem %s0, %s392
          // Predicated region
          $region53: #{cnn_forward.1} parent=51 // pred_check
            _
          $region54: #{cnn_forward.1} parent=51 // pred_check_branch
            %395 = sbr.rel (0) target = $region56
          $region55: #{cnn_forward.1} parent=51 // pred_region
            // Predicated region
            $region57: #{cnn_forward.1} parent=55 // pred_check
              _
            $region58: #{cnn_forward.1} parent=55 // pred_check_branch
              %397 = sbr.rel (0) target = $region60
            $region59: #{cnn_forward.1} parent=55 // pred_region
              // Predicated region
              $region72: #{cnn_forward.1} parent=59 // pred_check
                _
              $region73: #{cnn_forward.1} parent=59 // pred_check_branch
                %438 = sbr.rel (0) target = $region75
              $region74: #{cnn_forward.1} parent=59 // pred_region
                loop: start=0, step=1, limit=1
                $region76: #{cnn_forward.1} parent=74 // loop_pre_header
                  _
                $region77: #{cnn_forward.1} parent=74 // loop_header
                  %s440 = sphi 0, %s444
                  %p441 = scmp.ge.s32.totalorder %s440, 1
                  %s445 = sphi %s393, %s393
                  %s446 = sphi %s391, %s391
                $region78: #{cnn_forward.1} parent=74 // loop_header_branch
                  %443 = sbr.rel (%p441) target = $region82
                $region79: #{cnn_forward.1} parent=74 // loop_body
                  %v447 = vld [vmem:[%s445] sm:$0xff]
                  %448 = vst [vmem:[%s446] sm:$0xff] %v447
                  %v449 = vld [vmem:[%s445 + $0x10] sm:$0xff]
                  %450 = vst [vmem:[%s446 + $0x8] sm:$0xff] %v449
                  %v451 = vld [vmem:[%s445 + $0x20] sm:$0xff]
                  %452 = vst [vmem:[%s446 + $0x10] sm:$0xff] %v451
                  %v453 = vld [vmem:[%s445 + $0x30] sm:$0xff]
                  %454 = vst [vmem:[%s446 + $0x18] sm:$0xff] %v453
                  %v455 = vld [vmem:[%s445 + $0x40] sm:$0xff]
                  %456 = vst [vmem:[%s446 + $0x20] sm:$0xff] %v455
                  %v457 = vld [vmem:[%s445 + $0x50] sm:$0xff]
                  %458 = vst [vmem:[%s446 + $0x28] sm:$0xff] %v457
                  %v459 = vld [vmem:[%s445 + $0x60] sm:$0xff]
                  %460 = vst [vmem:[%s446 + $0x30] sm:$0xff] %v459
                  %v461 = vld [vmem:[%s445 + $0x70] sm:$0xff]
                  %462 = vst [vmem:[%s446 + $0x38] sm:$0xff] %v461
                  %v463 = vld [vmem:[%s445 + $0x80] sm:$0xff]
                  %464 = vst [vmem:[%s446 + $0x40] sm:$0xff] %v463
                  %v465 = vld [vmem:[%s445 + $0x90] sm:$0xff]
                  %466 = vst [vmem:[%s446 + $0x48] sm:$0xff] %v465
                  %v467 = vld [vmem:[%s445 + $0xa0] sm:$0xff]
                  %468 = vst [vmem:[%s446 + $0x50] sm:$0xff] %v467
                  %v469 = vld [vmem:[%s445 + $0xb0] sm:$0xff]
                  %470 = vst [vmem:[%s446 + $0x58] sm:$0xff] %v469
                  %v471 = vld [vmem:[%s445 + $0xc0] sm:$0xff]
                  %472 = vst [vmem:[%s446 + $0x60] sm:$0xff] %v471
                  %v473 = vld [vmem:[%s445 + $0xd0] sm:$0xff]
                  %474 = vst [vmem:[%s446 + $0x68] sm:$0xff] %v473
                $region80: #{cnn_forward.1} parent=74 // loop_footer
                  %s444 = sadd.s32 1, %s440
                $region81: #{cnn_forward.1} parent=74 // loop_footer_branch
                  %439 = sbr.rel target = $region77
                $region82: #{cnn_forward.1} parent=74 // loop_exit
                  _
              $region75: #{cnn_forward.1} parent=59 // pred_fallthru
                _
              // Predicated region
              $region83: #{cnn_forward.1} parent=59 // pred_check
                _
              $region84: #{cnn_forward.1} parent=59 // pred_check_branch
                %476 = sbr.rel target = $region86
              $region85: #{cnn_forward.1} parent=59 // pred_region
                _
              $region86: #{cnn_forward.1} parent=59 // pred_fallthru
                _
            $region60: #{cnn_forward.1} parent=55 // pred_fallthru
              _
            // Predicated region
            $region61: #{cnn_forward.1} parent=55 // pred_check
              _
            $region62: #{cnn_forward.1} parent=55 // pred_check_branch
              %399 = sbr.rel target = $region64
            $region63: #{cnn_forward.1} parent=55 // pred_region
              loop: start=0, step=1, limit=1
              $region65: #{cnn_forward.1} parent=63 // loop_pre_header
                _
              $region66: #{cnn_forward.1} parent=63 // loop_header
                %s402 = sphi 0, %s406
                %p403 = scmp.ge.s32.totalorder %s402, 1
                %s407 = sphi %s393, %s393
                %s408 = sphi %s391, %s391
              $region67: #{cnn_forward.1} parent=63 // loop_header_branch
                %405 = sbr.rel (%p403) target = $region71
              $region68: #{cnn_forward.1} parent=63 // loop_body
                %v409 = vld [vmem:[%s407] sm:$0xff]
                %410 = vst [vmem:[%s408] sm:$0xff] %v409
                %v411 = vld [vmem:[%s407 + $0x10] sm:$0xff]
                %412 = vst [vmem:[%s408 + $0x8] sm:$0xff] %v411
                %v413 = vld [vmem:[%s407 + $0x20] sm:$0xff]
                %414 = vst [vmem:[%s408 + $0x10] sm:$0xff] %v413
                %v415 = vld [vmem:[%s407 + $0x30] sm:$0xff]
                %416 = vst [vmem:[%s408 + $0x18] sm:$0xff] %v415
                %v417 = vld [vmem:[%s407 + $0x40] sm:$0xff]
                %418 = vst [vmem:[%s408 + $0x20] sm:$0xff] %v417
                %v419 = vld [vmem:[%s407 + $0x50] sm:$0xff]
                %420 = vst [vmem:[%s408 + $0x28] sm:$0xff] %v419
                %v421 = vld [vmem:[%s407 + $0x60] sm:$0xff]
                %422 = vst [vmem:[%s408 + $0x30] sm:$0xff] %v421
                %v423 = vld [vmem:[%s407 + $0x70] sm:$0xff]
                %424 = vst [vmem:[%s408 + $0x38] sm:$0xff] %v423
                %v425 = vld [vmem:[%s407 + $0x80] sm:$0xff]
                %426 = vst [vmem:[%s408 + $0x40] sm:$0xff] %v425
                %v427 = vld [vmem:[%s407 + $0x90] sm:$0xff]
                %428 = vst [vmem:[%s408 + $0x48] sm:$0xff] %v427
                %v429 = vld [vmem:[%s407 + $0xa0] sm:$0xff]
                %430 = vst [vmem:[%s408 + $0x50] sm:$0xff] %v429
                %v431 = vld [vmem:[%s407 + $0xb0] sm:$0xff]
                %432 = vst [vmem:[%s408 + $0x58] sm:$0xff] %v431
                %v433 = vld [vmem:[%s407 + $0xc0] sm:$0xff]
                %434 = vst [vmem:[%s408 + $0x60] sm:$0xff] %v433
                %v435 = vld [vmem:[%s407 + $0xd0] sm:$0xff]
                %436 = vst [vmem:[%s408 + $0x68] sm:$0xff] %v435
              $region69: #{cnn_forward.1} parent=63 // loop_footer
                %s406 = sadd.s32 1, %s402
              $region70: #{cnn_forward.1} parent=63 // loop_footer_branch
                %401 = sbr.rel target = $region66
              $region71: #{cnn_forward.1} parent=63 // loop_exit
                _
            $region64: #{cnn_forward.1} parent=55 // pred_fallthru
              _
          $region56: #{cnn_forward.1} parent=51 // pred_fallthru
            _
          %477 = vnop
        $region52: #{cnn_forward.1} parent=47 // pred_fallthru
          _
        // Predicated region
        $region87: #{cnn_forward.1} parent=47 // pred_check
          %p478 = pneg %p70
        $region88: #{cnn_forward.1} parent=47 // pred_check_branch
          %480 = sbr.rel (%p478) target = $region90
        $region89: #{cnn_forward.1} parent=47 // pred_region
          %s481 = sand.u32 %s60, 1
          %s482 = sand.u32 %s60, 1
          %s483 = smul.addr %s482, 112
          %s484 = scalar_lea.vmem [#allocation3], %s483
          %s485 = smul.addr %s24, 8
          %s486 = scalar_lea.vmem %s1, %s485
          // Predicated region
          $region91: #{cnn_forward.1} parent=89 // pred_check
            _
          $region92: #{cnn_forward.1} parent=89 // pred_check_branch
            %488 = sbr.rel (0) target = $region94
          $region93: #{cnn_forward.1} parent=89 // pred_region
            // Predicated region
            $region95: #{cnn_forward.1} parent=93 // pred_check
              _
            $region96: #{cnn_forward.1} parent=93 // pred_check_branch
              %490 = sbr.rel (0) target = $region98
            $region97: #{cnn_forward.1} parent=93 // pred_region
              // Predicated region
              $region110: #{cnn_forward.1} parent=97 // pred_check
                _
              $region111: #{cnn_forward.1} parent=97 // pred_check_branch
                %531 = sbr.rel (0) target = $region113
              $region112: #{cnn_forward.1} parent=97 // pred_region
                loop: start=0, step=1, limit=1
                $region114: #{cnn_forward.1} parent=112 // loop_pre_header
                  _
                $region115: #{cnn_forward.1} parent=112 // loop_header
                  %s533 = sphi 0, %s537
                  %p534 = scmp.ge.s32.totalorder %s533, 1
                  %s538 = sphi %s486, %s486
                  %s539 = sphi %s484, %s484
                $region116: #{cnn_forward.1} parent=112 // loop_header_branch
                  %536 = sbr.rel (%p534) target = $region120
                $region117: #{cnn_forward.1} parent=112 // loop_body
                  %v540 = vld [vmem:[%s538] sm:$0xff]
                  %541 = vst [vmem:[%s539] sm:$0xff] %v540
                  %v542 = vld [vmem:[%s538 + $0x10] sm:$0xff]
                  %543 = vst [vmem:[%s539 + $0x8] sm:$0xff] %v542
                  %v544 = vld [vmem:[%s538 + $0x20] sm:$0xff]
                  %545 = vst [vmem:[%s539 + $0x10] sm:$0xff] %v544
                  %v546 = vld [vmem:[%s538 + $0x30] sm:$0xff]
                  %547 = vst [vmem:[%s539 + $0x18] sm:$0xff] %v546
                  %v548 = vld [vmem:[%s538 + $0x40] sm:$0xff]
                  %549 = vst [vmem:[%s539 + $0x20] sm:$0xff] %v548
                  %v550 = vld [vmem:[%s538 + $0x50] sm:$0xff]
                  %551 = vst [vmem:[%s539 + $0x28] sm:$0xff] %v550
                  %v552 = vld [vmem:[%s538 + $0x60] sm:$0xff]
                  %553 = vst [vmem:[%s539 + $0x30] sm:$0xff] %v552
                  %v554 = vld [vmem:[%s538 + $0x70] sm:$0xff]
                  %555 = vst [vmem:[%s539 + $0x38] sm:$0xff] %v554
                  %v556 = vld [vmem:[%s538 + $0x80] sm:$0xff]
                  %557 = vst [vmem:[%s539 + $0x40] sm:$0xff] %v556
                  %v558 = vld [vmem:[%s538 + $0x90] sm:$0xff]
                  %559 = vst [vmem:[%s539 + $0x48] sm:$0xff] %v558
                  %v560 = vld [vmem:[%s538 + $0xa0] sm:$0xff]
                  %561 = vst [vmem:[%s539 + $0x50] sm:$0xff] %v560
                  %v562 = vld [vmem:[%s538 + $0xb0] sm:$0xff]
                  %563 = vst [vmem:[%s539 + $0x58] sm:$0xff] %v562
                  %v564 = vld [vmem:[%s538 + $0xc0] sm:$0xff]
                  %565 = vst [vmem:[%s539 + $0x60] sm:$0xff] %v564
                  %v566 = vld [vmem:[%s538 + $0xd0] sm:$0xff]
                  %567 = vst [vmem:[%s539 + $0x68] sm:$0xff] %v566
                $region118: #{cnn_forward.1} parent=112 // loop_footer
                  %s537 = sadd.s32 1, %s533
                $region119: #{cnn_forward.1} parent=112 // loop_footer_branch
                  %532 = sbr.rel target = $region115
                $region120: #{cnn_forward.1} parent=112 // loop_exit
                  _
              $region113: #{cnn_forward.1} parent=97 // pred_fallthru
                _
              // Predicated region
              $region121: #{cnn_forward.1} parent=97 // pred_check
                _
              $region122: #{cnn_forward.1} parent=97 // pred_check_branch
                %569 = sbr.rel target = $region124
              $region123: #{cnn_forward.1} parent=97 // pred_region
                _
              $region124: #{cnn_forward.1} parent=97 // pred_fallthru
                _
            $region98: #{cnn_forward.1} parent=93 // pred_fallthru
              _
            // Predicated region
            $region99: #{cnn_forward.1} parent=93 // pred_check
              _
            $region100: #{cnn_forward.1} parent=93 // pred_check_branch
              %492 = sbr.rel target = $region102
            $region101: #{cnn_forward.1} parent=93 // pred_region
              loop: start=0, step=1, limit=1
              $region103: #{cnn_forward.1} parent=101 // loop_pre_header
                _
              $region104: #{cnn_forward.1} parent=101 // loop_header
                %s495 = sphi 0, %s499
                %p496 = scmp.ge.s32.totalorder %s495, 1
                %s500 = sphi %s486, %s486
                %s501 = sphi %s484, %s484
              $region105: #{cnn_forward.1} parent=101 // loop_header_branch
                %498 = sbr.rel (%p496) target = $region109
              $region106: #{cnn_forward.1} parent=101 // loop_body
                %v502 = vld [vmem:[%s500] sm:$0xff]
                %503 = vst [vmem:[%s501] sm:$0xff] %v502
                %v504 = vld [vmem:[%s500 + $0x10] sm:$0xff]
                %505 = vst [vmem:[%s501 + $0x8] sm:$0xff] %v504
                %v506 = vld [vmem:[%s500 + $0x20] sm:$0xff]
                %507 = vst [vmem:[%s501 + $0x10] sm:$0xff] %v506
                %v508 = vld [vmem:[%s500 + $0x30] sm:$0xff]
                %509 = vst [vmem:[%s501 + $0x18] sm:$0xff] %v508
                %v510 = vld [vmem:[%s500 + $0x40] sm:$0xff]
                %511 = vst [vmem:[%s501 + $0x20] sm:$0xff] %v510
                %v512 = vld [vmem:[%s500 + $0x50] sm:$0xff]
                %513 = vst [vmem:[%s501 + $0x28] sm:$0xff] %v512
                %v514 = vld [vmem:[%s500 + $0x60] sm:$0xff]
                %515 = vst [vmem:[%s501 + $0x30] sm:$0xff] %v514
                %v516 = vld [vmem:[%s500 + $0x70] sm:$0xff]
                %517 = vst [vmem:[%s501 + $0x38] sm:$0xff] %v516
                %v518 = vld [vmem:[%s500 + $0x80] sm:$0xff]
                %519 = vst [vmem:[%s501 + $0x40] sm:$0xff] %v518
                %v520 = vld [vmem:[%s500 + $0x90] sm:$0xff]
                %521 = vst [vmem:[%s501 + $0x48] sm:$0xff] %v520
                %v522 = vld [vmem:[%s500 + $0xa0] sm:$0xff]
                %523 = vst [vmem:[%s501 + $0x50] sm:$0xff] %v522
                %v524 = vld [vmem:[%s500 + $0xb0] sm:$0xff]
                %525 = vst [vmem:[%s501 + $0x58] sm:$0xff] %v524
                %v526 = vld [vmem:[%s500 + $0xc0] sm:$0xff]
                %527 = vst [vmem:[%s501 + $0x60] sm:$0xff] %v526
                %v528 = vld [vmem:[%s500 + $0xd0] sm:$0xff]
                %529 = vst [vmem:[%s501 + $0x68] sm:$0xff] %v528
              $region107: #{cnn_forward.1} parent=101 // loop_footer
                %s499 = sadd.s32 1, %s495
              $region108: #{cnn_forward.1} parent=101 // loop_footer_branch
                %494 = sbr.rel target = $region104
              $region109: #{cnn_forward.1} parent=101 // loop_exit
                _
            $region102: #{cnn_forward.1} parent=93 // pred_fallthru
              _
          $region94: #{cnn_forward.1} parent=89 // pred_fallthru
            _
          %570 = vnop
        $region90: #{cnn_forward.1} parent=47 // pred_fallthru
          _
      $region48: #{cnn_forward.1} parent=5 // pred_fallthru
        _
      %p571 = scmp.le.s32.totalorder 1, %s24
      %p572 = scmp.lt.s32.totalorder %s24, 3
      %p573 = pnand %p571, %p572
      %p574 = pneg %p573
      // Predicated region
      $region125: #{cnn_forward.1} parent=5 // pred_check
        _
      $region126: #{cnn_forward.1} parent=5 // pred_check_branch
        %576 = sbr.rel (%p573) target = $region128
      $region127: #{cnn_forward.1} parent=5 // pred_region
        %s577 = ssub.s32 %s24, 1
        %s578 = sand.u32 %s37, 1
        %s579 = sand.u32 %s37, 1
        %s580 = smul.addr %s579, 112
        %s581 = scalar_lea.vmem [#allocation2], %s580
        // Predicated region
        $region129: #{cnn_forward.1} parent=127 // pred_check
          %p582 = pneg %p50
        $region130: #{cnn_forward.1} parent=127 // pred_check_branch
          %584 = sbr.rel (%p582) target = $region132
        $region131: #{cnn_forward.1} parent=127 // pred_region
          _
        $region132: #{cnn_forward.1} parent=127 // pred_fallthru
          _
        %s585 = sand.u32 %s63, 1
        %s586 = sand.u32 %s63, 1
        %s587 = smul.addr %s586, 112
        %s588 = scalar_lea.vmem [#allocation3], %s587
        // Predicated region
        $region133: #{cnn_forward.1} parent=127 // pred_check
          %p589 = pneg %p76
        $region134: #{cnn_forward.1} parent=127 // pred_check_branch
          %591 = sbr.rel (%p589) target = $region136
        $region135: #{cnn_forward.1} parent=127 // pred_region
          _
        $region136: #{cnn_forward.1} parent=127 // pred_fallthru
          _
        // Predicated region
        $region137: #{cnn_forward.1} parent=127 // pred_check
          %p592 = pneg %p97
        $region138: #{cnn_forward.1} parent=127 // pred_check_branch
          %594 = sbr.rel (%p592) target = $region140
        $region139: #{cnn_forward.1} parent=127 // pred_region
          %595 = dma.done [#allocation5], 7680
        $region140: #{cnn_forward.1} parent=127 // pred_fallthru
          _
        // Predicated region
        $region141: #{cnn_forward.1} parent=127 // pred_check
          %p596 = pneg %p118
        $region142: #{cnn_forward.1} parent=127 // pred_check_branch
          %598 = sbr.rel (%p596) target = $region144
        $region143: #{cnn_forward.1} parent=127 // pred_region
          %599 = dma.done [#allocation8], 48
        $region144: #{cnn_forward.1} parent=127 // pred_fallthru
          _
        // Predicated region
        $region145: #{cnn_forward.1} parent=127 // pred_check
          %p600 = pneg %p139
        $region146: #{cnn_forward.1} parent=127 // pred_check_branch
          %602 = sbr.rel (%p600) target = $region148
        $region147: #{cnn_forward.1} parent=127 // pred_region
          %603 = dma.done [#allocation8], 61440
        $region148: #{cnn_forward.1} parent=127 // pred_fallthru
          _
        // Predicated region
        $region149: #{cnn_forward.1} parent=127 // pred_check
          %p604 = pneg %p160
        $region150: #{cnn_forward.1} parent=127 // pred_check_branch
          %606 = sbr.rel (%p604) target = $region152
        $region151: #{cnn_forward.1} parent=127 // pred_region
          %607 = dma.done [#allocation11], 32
        $region152: #{cnn_forward.1} parent=127 // pred_fallthru
          _
        // Predicated region
        $region153: #{cnn_forward.1} parent=127 // pred_check
          %p608 = pneg %p181
        $region154: #{cnn_forward.1} parent=127 // pred_check_branch
          %610 = sbr.rel (%p608) target = $region156
        $region155: #{cnn_forward.1} parent=127 // pred_region
          %611 = dma.done [#allocation11], 16384
        $region156: #{cnn_forward.1} parent=127 // pred_fallthru
          _
        // Predicated region
        $region157: #{cnn_forward.1} parent=127 // pred_check
          %p612 = pneg %p202
        $region158: #{cnn_forward.1} parent=127 // pred_check_branch
          %614 = sbr.rel (%p612) target = $region160
        $region159: #{cnn_forward.1} parent=127 // pred_region
          %615 = dma.done [#allocation14], 32
        $region160: #{cnn_forward.1} parent=127 // pred_fallthru
          _
        // Predicated region
        $region161: #{cnn_forward.1} parent=127 // pred_check
          %p616 = pneg %p223
        $region162: #{cnn_forward.1} parent=127 // pred_check_branch
          %618 = sbr.rel (%p616) target = $region164
        $region163: #{cnn_forward.1} parent=127 // pred_region
          %619 = dma.done [#allocation14], 2048
        $region164: #{cnn_forward.1} parent=127 // pred_fallthru
          _
        // Predicated region
        $region165: #{cnn_forward.1} parent=127 // pred_check
          %p620 = pneg %p244
        $region166: #{cnn_forward.1} parent=127 // pred_check_branch
          %622 = sbr.rel (%p620) target = $region168
        $region167: #{cnn_forward.1} parent=127 // pred_region
          %623 = dma.done [#allocation17], 16
        $region168: #{cnn_forward.1} parent=127 // pred_fallthru
          _
        %s624 = sand.u32 %s37, 1
        %s625 = sand.u32 %s37, 1
        %s626 = smul.addr %s625, 112
        %s627 = scalar_lea.vmem [#allocation2], %s626
        %p628 = pneg %p50
        %p629 = pneg %p47
        %s630 = sand.u32 %s63, 1
        %s631 = sand.u32 %s63, 1
        %s632 = smul.addr %s631, 112
        %s633 = scalar_lea.vmem [#allocation3], %s632
        %p634 = pneg %p76
        %p635 = pneg %p73
        %p636 = pneg %p97
        %p637 = pneg %p94
        %p638 = pneg %p118
        %p639 = pneg %p115
        %p640 = pneg %p139
        %p641 = pneg %p136
        %p642 = pneg %p160
        %p643 = pneg %p157
        %p644 = pneg %p181
        %p645 = pneg %p178
        %p646 = pneg %p202
        %p647 = pneg %p199
        %p648 = pneg %p223
        %p649 = pneg %p220
        %p650 = pneg %p244
        %p651 = pneg %p241
        %p652 = pneg %p270
        %p653 = pneg %p267
        %s654 = sand.u32 %s257, 1
        %s655 = scalar_lea.sflag [#allocation6], %s654
        %s656 = sand.u32 %s257, 1
        %s657 = smul.addr %s656, 8
        %s658 = scalar_lea.vmem [#allocation18], %s657
        %v660 = vld [vmem:[%s581] sm:$0xff]
        %v661 = vld [vmem:[%s581 + $0x8] sm:$0xff]
        %v662 = vld [vmem:[%s581 + $0x10] sm:$0xff]
        %v663 = vld [vmem:[%s581 + $0x18] sm:$0xff]
        %v664 = vld [vmem:[%s581 + $0x20] sm:$0xff]
        %v665 = vld [vmem:[%s581 + $0x28] sm:$0xff]
        %v666 = vld [vmem:[%s581 + $0x30] sm:$0xff]
        %v667 = vld [vmem:[%s581 + $0x38] sm:$0xff]
        %v668 = vld [vmem:[%s581 + $0x40] sm:$0xff]
        %v669 = vld [vmem:[%s581 + $0x48] sm:$0xff]
        %v670 = vld [vmem:[%s581 + $0x50] sm:$0xff]
        %v671 = vld [vmem:[%s581 + $0x58] sm:$0xff]
        %v672 = vpack.c.bf16 %v661, %v660
        %v673 = vpack.c.bf16 %v663, %v662
        %v674 = vpack.c.bf16 %v665, %v664
        %v675 = vpack.c.bf16 %v667, %v666
        %v676 = vpack.c.bf16 %v669, %v668
        %v677 = vpack.c.bf16 %v671, %v670
        %s678 = scalar_lea.vmem %s581, 8 [#allocation2]
        %v679 = vld [vmem:[%s678] sm:$0xff]
        %v680 = vld [vmem:[%s678 + $0x8] sm:$0xff]
        %v681 = vld [vmem:[%s678 + $0x10] sm:$0xff]
        %v682 = vld [vmem:[%s678 + $0x18] sm:$0xff]
        %v683 = vld [vmem:[%s678 + $0x20] sm:$0xff]
        %v684 = vld [vmem:[%s678 + $0x28] sm:$0xff]
        %v685 = vld [vmem:[%s678 + $0x30] sm:$0xff]
        %v686 = vld [vmem:[%s678 + $0x38] sm:$0xff]
        %v687 = vld [vmem:[%s678 + $0x40] sm:$0xff]
        %v688 = vld [vmem:[%s678 + $0x48] sm:$0xff]
        %v689 = vld [vmem:[%s678 + $0x50] sm:$0xff]
        %v690 = vld [vmem:[%s678 + $0x58] sm:$0xff]
        %v691 = vpack.c.bf16 %v680, %v679
        %v692 = vpack.c.bf16 %v682, %v681
        %v693 = vpack.c.bf16 %v684, %v683
        %v694 = vpack.c.bf16 %v686, %v685
        %v695 = vpack.c.bf16 %v688, %v687
        %v696 = vpack.c.bf16 %v690, %v689
        %s697 = scalar_lea.vmem %s581, 16 [#allocation2]
        %v698 = vld [vmem:[%s697] sm:$0xff]
        %v699 = vld [vmem:[%s697 + $0x8] sm:$0xff]
        %v700 = vld [vmem:[%s697 + $0x10] sm:$0xff]
        %v701 = vld [vmem:[%s697 + $0x18] sm:$0xff]
        %v702 = vld [vmem:[%s697 + $0x20] sm:$0xff]
        %v703 = vld [vmem:[%s697 + $0x28] sm:$0xff]
        %v704 = vld [vmem:[%s697 + $0x30] sm:$0xff]
        %v705 = vld [vmem:[%s697 + $0x38] sm:$0xff]
        %v706 = vld [vmem:[%s697 + $0x40] sm:$0xff]
        %v707 = vld [vmem:[%s697 + $0x48] sm:$0xff]
        %v708 = vld [vmem:[%s697 + $0x50] sm:$0xff]
        %v709 = vld [vmem:[%s697 + $0x58] sm:$0xff]
        %v710 = vpack.c.bf16 %v699, %v698
        %v711 = vpack.c.bf16 %v701, %v700
        %v712 = vpack.c.bf16 %v703, %v702
        %v713 = vpack.c.bf16 %v705, %v704
        %v714 = vpack.c.bf16 %v707, %v706
        %v715 = vpack.c.bf16 %v709, %v708
        %v716 = vld [vmem:[%s588] sm:$0xff]
        %v717 = vld [vmem:[%s588 + $0x8] sm:$0xff]
        %v718 = vld [vmem:[%s588 + $0x10] sm:$0xff]
        %v719 = vld [vmem:[%s588 + $0x18] sm:$0xff]
        %v720 = vld [vmem:[%s588 + $0x20] sm:$0xff]
        %v721 = vld [vmem:[%s588 + $0x28] sm:$0xff]
        %v722 = vld [vmem:[%s588 + $0x30] sm:$0xff]
        %v723 = vld [vmem:[%s588 + $0x38] sm:$0xff]
        %v724 = vld [vmem:[%s588 + $0x40] sm:$0xff]
        %v725 = vld [vmem:[%s588 + $0x48] sm:$0xff]
        %v726 = vld [vmem:[%s588 + $0x50] sm:$0xff]
        %v727 = vld [vmem:[%s588 + $0x58] sm:$0xff]
        %v728 = vpack.c.bf16 %v717, %v716
        %v729 = vpack.c.bf16 %v719, %v718
        %v730 = vpack.c.bf16 %v721, %v720
        %v731 = vpack.c.bf16 %v723, %v722
        %v732 = vpack.c.bf16 %v725, %v724
        %v733 = vpack.c.bf16 %v727, %v726
        %s734 = scalar_lea.vmem %s588, 8 [#allocation3]
        %v735 = vld [vmem:[%s734] sm:$0xff]
        %v736 = vld [vmem:[%s734 + $0x8] sm:$0xff]
        %v737 = vld [vmem:[%s734 + $0x10] sm:$0xff]
        %v738 = vld [vmem:[%s734 + $0x18] sm:$0xff]
        %v739 = vld [vmem:[%s734 + $0x20] sm:$0xff]
        %v740 = vld [vmem:[%s734 + $0x28] sm:$0xff]
        %v741 = vld [vmem:[%s734 + $0x30] sm:$0xff]
        %v742 = vld [vmem:[%s734 + $0x38] sm:$0xff]
        %v743 = vld [vmem:[%s734 + $0x40] sm:$0xff]
        %v744 = vld [vmem:[%s734 + $0x48] sm:$0xff]
        %v745 = vld [vmem:[%s734 + $0x50] sm:$0xff]
        %v746 = vld [vmem:[%s734 + $0x58] sm:$0xff]
        %v747 = vpack.c.bf16 %v736, %v735
        %v748 = vpack.c.bf16 %v738, %v737
        %v749 = vpack.c.bf16 %v740, %v739
        %v750 = vpack.c.bf16 %v742, %v741
        %v751 = vpack.c.bf16 %v744, %v743
        %v752 = vpack.c.bf16 %v746, %v745
        %s753 = scalar_lea.vmem %s588, 16 [#allocation3]
        %v754 = vld [vmem:[%s753] sm:$0xff]
        %v755 = vld [vmem:[%s753 + $0x8] sm:$0xff]
        %v756 = vld [vmem:[%s753 + $0x10] sm:$0xff]
        %v757 = vld [vmem:[%s753 + $0x18] sm:$0xff]
        %v758 = vld [vmem:[%s753 + $0x20] sm:$0xff]
        %v759 = vld [vmem:[%s753 + $0x28] sm:$0xff]
        %v760 = vld [vmem:[%s753 + $0x30] sm:$0xff]
        %v761 = vld [vmem:[%s753 + $0x38] sm:$0xff]
        %v762 = vld [vmem:[%s753 + $0x40] sm:$0xff]
        %v763 = vld [vmem:[%s753 + $0x48] sm:$0xff]
        %v764 = vld [vmem:[%s753 + $0x50] sm:$0xff]
        %v765 = vld [vmem:[%s753 + $0x58] sm:$0xff]
        %v766 = vpack.c.bf16 %v755, %v754
        %v767 = vpack.c.bf16 %v757, %v756
        %v768 = vpack.c.bf16 %v759, %v758
        %v769 = vpack.c.bf16 %v761, %v760
        %v770 = vpack.c.bf16 %v763, %v762
        %v771 = vpack.c.bf16 %v765, %v764
        %v772 = vld [vmem:[#allocation4] sm:$0xff]
        %v773 = vld [vmem:[#allocation4 + $0x8] sm:$0xff]
        %v774 = vld [vmem:[#allocation4 + $0x10] sm:$0xff]
        %v775 = vld [vmem:[#allocation4 + $0x18] sm:$0xff]
        %v776 = vld [vmem:[#allocation4 + $0x20] sm:$0xff]
        %v777 = vld [vmem:[#allocation4 + $0x28] sm:$0xff]
        %v778 = vld [vmem:[#allocation4 + $0x30] sm:$0xff]
        %v779 = vld [vmem:[#allocation4 + $0x38] sm:$0xff]
        %v780 = vld [vmem:[#allocation4 + $0x40] sm:$0xff]
        %v781 = vld [vmem:[#allocation4 + $0x48] sm:$0x33]
        %v782 = vld [vmem:[#allocation4 + $0x50] sm:$0x33]
        %v783 = vld [vmem:[#allocation4 + $0x58] sm:$0x33]
        %s784 = scalar_lea.vmem [#allocation4], 96
        %v785 = vld [vmem:[%s784] sm:$0xff]
        %v786 = vld [vmem:[%s784 + $0x8] sm:$0xff]
        %v787 = vld [vmem:[%s784 + $0x10] sm:$0xff]
        %v788 = vld [vmem:[%s784 + $0x18] sm:$0xff]
        %v789 = vld [vmem:[%s784 + $0x20] sm:$0xff]
        %v790 = vld [vmem:[%s784 + $0x28] sm:$0xff]
        %v791 = vld [vmem:[%s784 + $0x30] sm:$0xff]
        %v792 = vld [vmem:[%s784 + $0x38] sm:$0xff]
        %v793 = vld [vmem:[%s784 + $0x40] sm:$0xff]
        %v794 = vld [vmem:[%s784 + $0x48] sm:$0x33]
        %v795 = vld [vmem:[%s784 + $0x50] sm:$0x33]
        %v796 = vld [vmem:[%s784 + $0x58] sm:$0x33]
        %s797 = scalar_lea.vmem [#allocation4], 192
        %v798 = vld [vmem:[%s797] sm:$0xff]
        %v799 = vld [vmem:[%s797 + $0x8] sm:$0xff]
        %v800 = vld [vmem:[%s797 + $0x10] sm:$0xff]
        %v801 = vld [vmem:[%s797 + $0x18] sm:$0xff]
        %v802 = vld [vmem:[%s797 + $0x20] sm:$0xff]
        %v803 = vld [vmem:[%s797 + $0x28] sm:$0xff]
        %v804 = vld [vmem:[%s797 + $0x30] sm:$0xff]
        %v805 = vld [vmem:[%s797 + $0x38] sm:$0xff]
        %v806 = vld [vmem:[%s797 + $0x40] sm:$0xff]
        %v807 = vld [vmem:[%s797 + $0x48] sm:$0x33]
        %v808 = vld [vmem:[%s797 + $0x50] sm:$0x33]
        %v809 = vld [vmem:[%s797 + $0x58] sm:$0x33]
        %s810 = scalar_lea.vmem [#allocation4], 288
        %v811 = vld [vmem:[%s810] sm:$0xff]
        %v812 = vld [vmem:[%s810 + $0x8] sm:$0xff]
        %v813 = vld [vmem:[%s810 + $0x10] sm:$0xff]
        %v814 = vld [vmem:[%s810 + $0x18] sm:$0xff]
        %v815 = vld [vmem:[%s810 + $0x20] sm:$0xff]
        %v816 = vld [vmem:[%s810 + $0x28] sm:$0xff]
        %v817 = vld [vmem:[%s810 + $0x30] sm:$0xff]
        %v818 = vld [vmem:[%s810 + $0x38] sm:$0xff]
        %v819 = vld [vmem:[%s810 + $0x40] sm:$0xff]
        %v820 = vld [vmem:[%s810 + $0x48] sm:$0x33]
        %v821 = vld [vmem:[%s810 + $0x50] sm:$0x33]
        %v822 = vld [vmem:[%s810 + $0x58] sm:$0x33]
        %s823 = scalar_lea.vmem [#allocation4], 384
        %v824 = vld [vmem:[%s823] sm:$0xff]
        %v825 = vld [vmem:[%s823 + $0x8] sm:$0xff]
        %v826 = vld [vmem:[%s823 + $0x10] sm:$0xff]
        %v827 = vld [vmem:[%s823 + $0x18] sm:$0xff]
        %v828 = vld [vmem:[%s823 + $0x20] sm:$0xff]
        %v829 = vld [vmem:[%s823 + $0x28] sm:$0xff]
        %v830 = vld [vmem:[%s823 + $0x30] sm:$0xff]
        %v831 = vld [vmem:[%s823 + $0x38] sm:$0xff]
        %v832 = vld [vmem:[%s823 + $0x40] sm:$0xff]
        %v833 = vld [vmem:[%s823 + $0x48] sm:$0x33]
        %v834 = vld [vmem:[%s823 + $0x50] sm:$0x33]
        %v835 = vld [vmem:[%s823 + $0x58] sm:$0x33]
        %v848 = vunpack.c.l.b16 %v785
        %v849 = vunpack.c.h.b16 %v785
        %v850 = vunpack.c.l.b16 %v786
        %v851 = vunpack.c.h.b16 %v786
        %v852 = vunpack.c.l.b16 %v787
        %v853 = vunpack.c.h.b16 %v787
        %v854 = vunpack.c.l.b16 %v788
        %v855 = vunpack.c.h.b16 %v788
        %v856 = vunpack.c.l.b16 %v789
        %v857 = vunpack.c.h.b16 %v789
        %v858 = vunpack.c.l.b16 %v790
        %v859 = vunpack.c.h.b16 %v790
        %v860 = vunpack.c.l.b16 %v791
        %v861 = vunpack.c.h.b16 %v791
        %v862 = vunpack.c.l.b16 %v792
        %v863 = vunpack.c.h.b16 %v792
        %v864 = vunpack.c.l.b16 %v793
        %v865 = vunpack.c.h.b16 %v793
        %v866 = vunpack.c.l.b16 %v794
        %v867 = vunpack.c.h.b16 %v794
        %v868 = vunpack.c.l.b16 %v795
        %v869 = vunpack.c.h.b16 %v795
        %v870 = vunpack.c.l.b16 %v796
        %v871 = vunpack.c.h.b16 %v796
        %v872 = vpack.c.b16 %v854, %v848
        %v873 = vpack.c.b16 %v855, %v849
        %v874 = vpack.c.b16 %v856, %v850
        %v875 = vpack.c.b16 %v857, %v851
        %v876 = vpack.c.b16 %v858, %v852
        %v877 = vpack.c.b16 %v859, %v853
        %v878 = vpack.c.b16 %v866, %v860
        %v879 = vpack.c.b16 %v867, %v861
        %v880 = vpack.c.b16 %v868, %v862
        %v881 = vpack.c.b16 %v869, %v863
        %v882 = vpack.c.b16 %v870, %v864
        %v883 = vpack.c.b16 %v871, %v865
        %vm890 = vcmask 228352
        %v892 = vsel %vm890, %v728, 0
        %v895 = vsel %vm890, %v729, 0
        %v898 = vsel %vm890, %v730, 0
        %v901 = vsel %vm890, %v731, 0
        %v904 = vsel %vm890, %v732, 0
        %v907 = vsel %vm890, %v733, 0
        %vm909 = vcmask 1045504
        %v911 = vsel %vm909, %v878, 0
        %v914 = vsel %vm909, %v879, 0
        %v917 = vsel %vm909, %v880, 0
        %v920 = vsel %vm909, %v881, 0
        %v923 = vsel %vm909, %v882, 0
        %v926 = vsel %vm909, %v883, 0
        %928 = vmatprep.subr.bf16.mxu0 %v873
        %929 = vmatpush1.bf16.msra.mxu0 %v872
        %930 = vmatprep.subr.bf16.mxu0 %v914
        %931 = vmatpush1.bf16.msra.mxu0 %v911
        %932 = vmatprep.subr.bf16.mxu0 0
        %933 = vmatpush1.bf16.msra.mxu0 0
        %934 = vmatprep.subr.bf16.mxu0 0
        %935 = vmatpush1.bf16.msra.mxu0 0
        %936 = vmatprep.subr.bf16.mxu0 0
        %937 = vmatpush1.bf16.msra.mxu0 0
        %938 = vmatprep.subr.bf16.mxu0 0
        %939 = vmatpush1.bf16.msra.mxu0 0
        %940 = vmatprep.subr.bf16.mxu0 0
        %941 = vmatpush1.bf16.msra.mxu0 0
        %942 = vmatprep.subr.bf16.mxu0 0
        %943 = vmatpush1.bf16.msra.mxu0 0
        %944 = vmatprep.subr.bf16.mxu0 0
        %945 = vmatpush1.bf16.msra.mxu0 0
        %946 = vmatprep.subr.bf16.mxu0 0
        %947 = vmatpush1.bf16.msra.mxu0 0
        %948 = vmatprep.subr.bf16.mxu0 0
        %949 = vmatpush1.bf16.msra.mxu0 0
        %950 = vmatprep.subr.bf16.mxu0 0
        %951 = vmatpush1.bf16.msra.mxu0 0
        %952 = vmatprep.subr.bf16.mxu0 0
        %953 = vmatpush1.bf16.msra.mxu0 0
        %954 = vmatprep.subr.bf16.mxu0 0
        %955 = vmatpush1.bf16.msra.mxu0 0
        %956 = vmatprep.subr.bf16.mxu0 0
        %957 = vmatpush1.bf16.msra.mxu0 0
        %958 = vmatprep.subr.bf16.mxu0 0
        %959 = vmatpush1.bf16.msra.mxu0 0
        %960 = vmatprep.mubr.bf16.mxu0 0
        %961 = vmatmul.mubr.bf16.gmra.mrb[0].mxu0 %v892
        %v962 = vpop.f32.mrb[0].mxu0
        %v963 = vadd.f32 0.0, %v962
        %v964 = vpop.f32.mrb[0].mxu0
        %v965 = vadd.f32 0.0, %v964
        %v966 = vpop.f32.mrb[0].mxu0
        %v967 = vadd.f32 0.0, %v966
        %v968 = vpop.f32.mrb[0].mxu0
        %v969 = vadd.f32 0.0, %v968
        %970 = vmatprep.mubr.bf16.mxu0 0
        %971 = vmatmul.mubr.bf16.gmra.mrb[0].mxu0 %v895
        %v972 = vpop.f32.mrb[0].mxu0
        %v973 = vadd.f32 0.0, %v972
        %v974 = vpop.f32.mrb[0].mxu0
        %v975 = vadd.f32 0.0, %v974
        %v976 = vpop.f32.mrb[0].mxu0
        %v977 = vadd.f32 0.0, %v976
        %v978 = vpop.f32.mrb[0].mxu0
        %v979 = vadd.f32 0.0, %v978
        %980 = vmatprep.mubr.bf16.mxu0 0
        %981 = vmatmul.mubr.bf16.gmra.mrb[0].mxu0 %v898
        %v982 = vpop.f32.mrb[0].mxu0
        %v983 = vadd.f32 0.0, %v982
        %v984 = vpop.f32.mrb[0].mxu0
        %v985 = vadd.f32 0.0, %v984
        %v986 = vpop.f32.mrb[0].mxu0
        %v987 = vadd.f32 0.0, %v986
        %v988 = vpop.f32.mrb[0].mxu0
        %v989 = vadd.f32 0.0, %v988
        %990 = vmatprep.mubr.bf16.mxu0 0
        %991 = vmatmul.mubr.bf16.gmra.mrb[0].mxu0 %v901
        %v992 = vpop.f32.mrb[0].mxu0
        %v993 = vadd.f32 0.0, %v992
        %v994 = vpop.f32.mrb[0].mxu0
        %v995 = vadd.f32 0.0, %v994
        %v996 = vpop.f32.mrb[0].mxu0
        %v997 = vadd.f32 0.0, %v996
        %v998 = vpop.f32.mrb[0].mxu0
        %v999 = vadd.f32 0.0, %v998
        %1000 = vmatprep.mubr.bf16.mxu0 0
        %1001 = vmatmul.mubr.bf16.gmra.mrb[0].mxu0 %v904
        %v1002 = vpop.f32.mrb[0].mxu0
        %v1003 = vadd.f32 0.0, %v1002
        %v1004 = vpop.f32.mrb[0].mxu0
        %v1005 = vadd.f32 0.0, %v1004
        %v1006 = vpop.f32.mrb[0].mxu0
        %v1007 = vadd.f32 0.0, %v1006
        %v1008 = vpop.f32.mrb[0].mxu0
        %v1009 = vadd.f32 0.0, %v1008
        %1010 = vmatprep.mubr.bf16.mxu0 0
        %1011 = vmatmul.mubr.bf16.gmra.mrb[0].mxu0 %v907
        %v1012 = vpop.f32.mrb[0].mxu0
        %v1013 = vadd.f32 0.0, %v1012
        %v1014 = vpop.f32.mrb[0].mxu0
        %v1015 = vadd.f32 0.0, %v1014
        %v1016 = vpop.f32.mrb[0].mxu0
        %v1017 = vadd.f32 0.0, %v1016
        %v1018 = vpop.f32.mrb[0].mxu0
        %v1019 = vadd.f32 0.0, %v1018
        %1020 = vdwg.mxu0
        %1021 = vmatprep.subr.bf16.mxu0 %v875
        %1022 = vmatpush1.bf16.msra.mxu0 %v874
        %1023 = vmatprep.subr.bf16.mxu0 %v920
        %1024 = vmatpush1.bf16.msra.mxu0 %v917
        %1025 = vmatprep.subr.bf16.mxu0 0
        %1026 = vmatpush1.bf16.msra.mxu0 0
        %1027 = vmatprep.subr.bf16.mxu0 0
        %1028 = vmatpush1.bf16.msra.mxu0 0
        %1029 = vmatprep.subr.bf16.mxu0 0
        %1030 = vmatpush1.bf16.msra.mxu0 0
        %1031 = vmatprep.subr.bf16.mxu0 0
        %1032 = vmatpush1.bf16.msra.mxu0 0
        %1033 = vmatprep.subr.bf16.mxu0 0
        %1034 = vmatpush1.bf16.msra.mxu0 0
        %1035 = vmatprep.subr.bf16.mxu0 0
        %1036 = vmatpush1.bf16.msra.mxu0 0
        %1037 = vmatprep.subr.bf16.mxu0 0
        %1038 = vmatpush1.bf16.msra.mxu0 0
        %1039 = vmatprep.subr.bf16.mxu0 0
        %1040 = vmatpush1.bf16.msra.mxu0 0
        %1041 = vmatprep.subr.bf16.mxu0 0
        %1042 = vmatpush1.bf16.msra.mxu0 0
        %1043 = vmatprep.subr.bf16.mxu0 0
        %1044 = vmatpush1.bf16.msra.mxu0 0
        %1045 = vmatprep.subr.bf16.mxu0 0
        %1046 = vmatpush1.bf16.msra.mxu0 0
        %1047 = vmatprep.subr.bf16.mxu0 0
        %1048 = vmatpush1.bf16.msra.mxu0 0
        %1049 = vmatprep.subr.bf16.mxu0 0
        %1050 = vmatpush1.bf16.msra.mxu0 0
        %1051 = vmatprep.subr.bf16.mxu0 0
        %1052 = vmatpush1.bf16.msra.mxu0 0
        %1053 = vmatprep.mubr.bf16.mxu0 0
        %1054 = vmatmul.mubr.bf16.gmra.mrb[0].mxu0 %v892
        %v1055 = vpop.f32.mrb[0].mxu0
        %v1056 = vadd.f32 0.0, %v1055
        %v1057 = vpop.f32.mrb[0].mxu0
        %v1058 = vadd.f32 0.0, %v1057
        %v1059 = vpop.f32.mrb[0].mxu0
        %v1060 = vadd.f32 0.0, %v1059
        %v1061 = vpop.f32.mrb[0].mxu0
        %v1062 = vadd.f32 0.0, %v1061
        %1063 = vmatprep.mubr.bf16.mxu0 0
        %1064 = vmatmul.mubr.bf16.gmra.mrb[0].mxu0 %v895
        %v1065 = vpop.f32.mrb[0].mxu0
        %v1066 = vadd.f32 0.0, %v1065
        %v1067 = vpop.f32.mrb[0].mxu0
        %v1068 = vadd.f32 0.0, %v1067
        %v1069 = vpop.f32.mrb[0].mxu0
        %v1070 = vadd.f32 0.0, %v1069
        %v1071 = vpop.f32.mrb[0].mxu0
        %v1072 = vadd.f32 0.0, %v1071
        %1073 = vmatprep.mubr.bf16.mxu0 0
        %1074 = vmatmul.mubr.bf16.gmra.mrb[0].mxu0 %v898
        %v1075 = vpop.f32.mrb[0].mxu0
        %v1076 = vadd.f32 0.0, %v1075
        %v1077 = vpop.f32.mrb[0].mxu0
        %v1078 = vadd.f32 0.0, %v1077
        %v1079 = vpop.f32.mrb[0].mxu0
        %v1080 = vadd.f32 0.0, %v1079
        %v1081 = vpop.f32.mrb[0].mxu0
        %v1082 = vadd.f32 0.0, %v1081
        %1083 = vmatprep.mubr.bf16.mxu0 0
        %1084 = vmatmul.mubr.bf16.gmra.mrb[0].mxu0 %v901
        %v1085 = vpop.f32.mrb[0].mxu0
        %v1086 = vadd.f32 0.0, %v1085
        %v1087 = vpop.f32.mrb[0].mxu0
        %v1088 = vadd.f32 0.0, %v1087
        %v1089 = vpop.f32.mrb[0].mxu0
        %v1090 = vadd.f32 0.0, %v1089
        %v1091 = vpop.f32.mrb[0].mxu0
        %v1092 = vadd.f32 0.0, %v1091
        %1093 = vmatprep.mubr.bf16.mxu0 0
        %1094 = vmatmul.mubr.bf16.gmra.mrb[0].mxu0 %v904
        %v1095 = vpop.f32.mrb[0].mxu0
        %v1096 = vadd.f32 0.0, %v1095
        %v1097 = vpop.f32.mrb[0].mxu0
        %v1098 = vadd.f32 0.0, %v1097
        %v1099 = vpop.f32.mrb[0].mxu0
        %v1100 = vadd.f32 0.0, %v1099
        %v1101 = vpop.f32.mrb[0].mxu0
        %v1102 = vadd.f32 0.0, %v1101
        %1103 = vmatprep.mubr.bf16.mxu0 0
        %1104 = vmatmul.mubr.bf16.gmra.mrb[0].mxu0 %v907
        %v1105 = vpop.f32.mrb[0].mxu0
        %v1106 = vadd.f32 0.0, %v1105
        %v1107 = vpop.f32.mrb[0].mxu0
        %v1108 = vadd.f32 0.0, %v1107
        %v1109 = vpop.f32.mrb[0].mxu0
        %v1110 = vadd.f32 0.0, %v1109
        %v1111 = vpop.f32.mrb[0].mxu0
        %v1112 = vadd.f32 0.0, %v1111
        %1113 = vdwg.mxu0
        %1114 = vmatprep.subr.bf16.mxu0 %v877
        %1115 = vmatpush1.bf16.msra.mxu0 %v876
        %1116 = vmatprep.subr.bf16.mxu0 %v926
        %1117 = vmatpush1.bf16.msra.mxu0 %v923
        %1118 = vmatprep.subr.bf16.mxu0 0
        %1119 = vmatpush1.bf16.msra.mxu0 0
        %1120 = vmatprep.subr.bf16.mxu0 0
        %1121 = vmatpush1.bf16.msra.mxu0 0
        %1122 = vmatprep.subr.bf16.mxu0 0
        %1123 = vmatpush1.bf16.msra.mxu0 0
        %1124 = vmatprep.subr.bf16.mxu0 0
        %1125 = vmatpush1.bf16.msra.mxu0 0
        %1126 = vmatprep.subr.bf16.mxu0 0
        %1127 = vmatpush1.bf16.msra.mxu0 0
        %1128 = vmatprep.subr.bf16.mxu0 0
        %1129 = vmatpush1.bf16.msra.mxu0 0
        %1130 = vmatprep.subr.bf16.mxu0 0
        %1131 = vmatpush1.bf16.msra.mxu0 0
        %1132 = vmatprep.subr.bf16.mxu0 0
        %1133 = vmatpush1.bf16.msra.mxu0 0
        %1134 = vmatprep.subr.bf16.mxu0 0
        %1135 = vmatpush1.bf16.msra.mxu0 0
        %1136 = vmatprep.subr.bf16.mxu0 0
        %1137 = vmatpush1.bf16.msra.mxu0 0
        %1138 = vmatprep.subr.bf16.mxu0 0
        %1139 = vmatpush1.bf16.msra.mxu0 0
        %1140 = vmatprep.subr.bf16.mxu0 0
        %1141 = vmatpush1.bf16.msra.mxu0 0
        %1142 = vmatprep.subr.bf16.mxu0 0
        %1143 = vmatpush1.bf16.msra.mxu0 0
        %1144 = vmatprep.subr.bf16.mxu0 0
        %1145 = vmatpush1.bf16.msra.mxu0 0
        %1146 = vmatprep.mubr.bf16.mxu0 0
        %1147 = vmatmul.mubr.bf16.gmra.mrb[0].mxu0 %v892
        %v1148 = vpop.f32.mrb[0].mxu0
        %v1149 = vadd.f32 0.0, %v1148
        %v1150 = vpop.f32.mrb[0].mxu0
        %v1151 = vadd.f32 0.0, %v1150
        %v1152 = vpop.f32.mrb[0].mxu0
        %v1153 = vadd.f32 0.0, %v1152
        %v1154 = vpop.f32.mrb[0].mxu0
        %v1155 = vadd.f32 0.0, %v1154
        %1156 = vmatprep.mubr.bf16.mxu0 0
        %1157 = vmatmul.mubr.bf16.gmra.mrb[0].mxu0 %v895
        %v1158 = vpop.f32.mrb[0].mxu0
        %v1159 = vadd.f32 0.0, %v1158
        %v1160 = vpop.f32.mrb[0].mxu0
        %v1161 = vadd.f32 0.0, %v1160
        %v1162 = vpop.f32.mrb[0].mxu0
        %v1163 = vadd.f32 0.0, %v1162
        %v1164 = vpop.f32.mrb[0].mxu0
        %v1165 = vadd.f32 0.0, %v1164
        %1166 = vmatprep.mubr.bf16.mxu0 0
        %1167 = vmatmul.mubr.bf16.gmra.mrb[0].mxu0 %v898
        %v1168 = vpop.f32.mrb[0].mxu0
        %v1169 = vadd.f32 0.0, %v1168
        %v1170 = vpop.f32.mrb[0].mxu0
        %v1171 = vadd.f32 0.0, %v1170
        %v1172 = vpop.f32.mrb[0].mxu0
        %v1173 = vadd.f32 0.0, %v1172
        %v1174 = vpop.f32.mrb[0].mxu0
        %v1175 = vadd.f32 0.0, %v1174
        %1176 = vmatprep.mubr.bf16.mxu0 0
        %1177 = vmatmul.mubr.bf16.gmra.mrb[0].mxu0 %v901
        %v1178 = vpop.f32.mrb[0].mxu0
        %v1179 = vadd.f32 0.0, %v1178
        %v1180 = vpop.f32.mrb[0].mxu0
        %v1181 = vadd.f32 0.0, %v1180
        %v1182 = vpop.f32.mrb[0].mxu0
        %v1183 = vadd.f32 0.0, %v1182
        %v1184 = vpop.f32.mrb[0].mxu0
        %v1185 = vadd.f32 0.0, %v1184
        %1186 = vmatprep.mubr.bf16.mxu0 0
        %1187 = vmatmul.mubr.bf16.gmra.mrb[0].mxu0 %v904
        %v1188 = vpop.f32.mrb[0].mxu0
        %v1189 = vadd.f32 0.0, %v1188
        %v1190 = vpop.f32.mrb[0].mxu0
        %v1191 = vadd.f32 0.0, %v1190
        %v1192 = vpop.f32.mrb[0].mxu0
        %v1193 = vadd.f32 0.0, %v1192
        %v1194 = vpop.f32.mrb[0].mxu0
        %v1195 = vadd.f32 0.0, %v1194
        %1196 = vmatprep.mubr.bf16.mxu0 0
        %1197 = vmatmul.mubr.bf16.gmra.mrb[0].mxu0 %v907
        %v1198 = vpop.f32.mrb[0].mxu0
        %v1199 = vadd.f32 0.0, %v1198
        %v1200 = vpop.f32.mrb[0].mxu0
        %v1201 = vadd.f32 0.0, %v1200
        %v1202 = vpop.f32.mrb[0].mxu0
        %v1203 = vadd.f32 0.0, %v1202
        %v1204 = vpop.f32.mrb[0].mxu0
        %v1205 = vadd.f32 0.0, %v1204
        %1206 = vdwg.mxu0
        %v1219 = vunpack.c.l.b16 %v772
        %v1220 = vunpack.c.h.b16 %v772
        %v1221 = vunpack.c.l.b16 %v773
        %v1222 = vunpack.c.h.b16 %v773
        %v1223 = vunpack.c.l.b16 %v774
        %v1224 = vunpack.c.h.b16 %v774
        %v1225 = vunpack.c.l.b16 %v775
        %v1226 = vunpack.c.h.b16 %v775
        %v1227 = vunpack.c.l.b16 %v776
        %v1228 = vunpack.c.h.b16 %v776
        %v1229 = vunpack.c.l.b16 %v777
        %v1230 = vunpack.c.h.b16 %v777
        %v1231 = vunpack.c.l.b16 %v778
        %v1232 = vunpack.c.h.b16 %v778
        %v1233 = vunpack.c.l.b16 %v779
        %v1234 = vunpack.c.h.b16 %v779
        %v1235 = vunpack.c.l.b16 %v780
        %v1236 = vunpack.c.h.b16 %v780
        %v1237 = vunpack.c.l.b16 %v781
        %v1238 = vunpack.c.h.b16 %v781
        %v1239 = vunpack.c.l.b16 %v782
        %v1240 = vunpack.c.h.b16 %v782
        %v1241 = vunpack.c.l.b16 %v783
        %v1242 = vunpack.c.h.b16 %v783
        %v1243 = vpack.c.b16 %v1225, %v1219
        %v1244 = vpack.c.b16 %v1226, %v1220
        %v1245 = vpack.c.b16 %v1227, %v1221
        %v1246 = vpack.c.b16 %v1228, %v1222
        %v1247 = vpack.c.b16 %v1229, %v1223
        %v1248 = vpack.c.b16 %v1230, %v1224
        %v1249 = vpack.c.b16 %v1237, %v1231
        %v1250 = vpack.c.b16 %v1238, %v1232
        %v1251 = vpack.c.b16 %v1239, %v1233
        %v1252 = vpack.c.b16 %v1240, %v1234
        %v1253 = vpack.c.b16 %v1241, %v1235
        %v1254 = vpack.c.b16 %v1242, %v1236
        %v1262 = vsel %vm890, %v672, 0
        %v1265 = vsel %vm890, %v673, 0
        %v1268 = vsel %vm890, %v674, 0
        %v1271 = vsel %vm890, %v675, 0
        %v1274 = vsel %vm890, %v676, 0
        %v1277 = vsel %vm890, %v677, 0
        %v1280 = vsel %vm909, %v1249, 0
        %v1283 = vsel %vm909, %v1250, 0
        %v1286 = vsel %vm909, %v1251, 0
        %v1289 = vsel %vm909, %v1252, 0
        %v1292 = vsel %vm909, %v1253, 0
        %v1295 = vsel %vm909, %v1254, 0
        %1297 = vmatprep.subr.bf16.mxu0 %v1244
        %1298 = vmatpush1.bf16.msra.mxu0 %v1243
        %1299 = vmatprep.subr.bf16.mxu0 %v1283
        %1300 = vmatpush1.bf16.msra.mxu0 %v1280
        %1301 = vmatprep.subr.bf16.mxu0 0
        %1302 = vmatpush1.bf16.msra.mxu0 0
        %1303 = vmatprep.subr.bf16.mxu0 0
        %1304 = vmatpush1.bf16.msra.mxu0 0
        %1305 = vmatprep.subr.bf16.mxu0 0
        %1306 = vmatpush1.bf16.msra.mxu0 0
        %1307 = vmatprep.subr.bf16.mxu0 0
        %1308 = vmatpush1.bf16.msra.mxu0 0
        %1309 = vmatprep.subr.bf16.mxu0 0
        %1310 = vmatpush1.bf16.msra.mxu0 0
        %1311 = vmatprep.subr.bf16.mxu0 0
        %1312 = vmatpush1.bf16.msra.mxu0 0
        %1313 = vmatprep.subr.bf16.mxu0 0
        %1314 = vmatpush1.bf16.msra.mxu0 0
        %1315 = vmatprep.subr.bf16.mxu0 0
        %1316 = vmatpush1.bf16.msra.mxu0 0
        %1317 = vmatprep.subr.bf16.mxu0 0
        %1318 = vmatpush1.bf16.msra.mxu0 0
        %1319 = vmatprep.subr.bf16.mxu0 0
        %1320 = vmatpush1.bf16.msra.mxu0 0
        %1321 = vmatprep.subr.bf16.mxu0 0
        %1322 = vmatpush1.bf16.msra.mxu0 0
        %1323 = vmatprep.subr.bf16.mxu0 0
        %1324 = vmatpush1.bf16.msra.mxu0 0
        %1325 = vmatprep.subr.bf16.mxu0 0
        %1326 = vmatpush1.bf16.msra.mxu0 0
        %1327 = vmatprep.subr.bf16.mxu0 0
        %1328 = vmatpush1.bf16.msra.mxu0 0
        %1329 = vmatprep.mubr.bf16.mxu0 0
        %1330 = vmatmul.mubr.bf16.gmra.mrb[0].mxu0 %v1262
        %v1331 = vpop.f32.mrb[0].mxu0
        %v1332 = vadd.f32 %v963, %v1331
        %v1333 = vpop.f32.mrb[0].mxu0
        %v1334 = vadd.f32 %v965, %v1333
        %v1335 = vpop.f32.mrb[0].mxu0
        %v1336 = vadd.f32 %v967, %v1335
        %v1337 = vpop.f32.mrb[0].mxu0
        %v1338 = vadd.f32 %v969, %v1337
        %1339 = vmatprep.mubr.bf16.mxu0 0
        %1340 = vmatmul.mubr.bf16.gmra.mrb[0].mxu0 %v1265
        %v1341 = vpop.f32.mrb[0].mxu0
        %v1342 = vadd.f32 %v973, %v1341
        %v1343 = vpop.f32.mrb[0].mxu0
        %v1344 = vadd.f32 %v975, %v1343
        %v1345 = vpop.f32.mrb[0].mxu0
        %v1346 = vadd.f32 %v977, %v1345
        %v1347 = vpop.f32.mrb[0].mxu0
        %v1348 = vadd.f32 %v979, %v1347
        %1349 = vmatprep.mubr.bf16.mxu0 0
        %1350 = vmatmul.mubr.bf16.gmra.mrb[0].mxu0 %v1268
        %v1351 = vpop.f32.mrb[0].mxu0
        %v1352 = vadd.f32 %v983, %v1351
        %v1353 = vpop.f32.mrb[0].mxu0
        %v1354 = vadd.f32 %v985, %v1353
        %v1355 = vpop.f32.mrb[0].mxu0
        %v1356 = vadd.f32 %v987, %v1355
        %v1357 = vpop.f32.mrb[0].mxu0
        %v1358 = vadd.f32 %v989, %v1357
        %1359 = vmatprep.mubr.bf16.mxu0 0
        %1360 = vmatmul.mubr.bf16.gmra.mrb[0].mxu0 %v1271
        %v1361 = vpop.f32.mrb[0].mxu0
        %v1362 = vadd.f32 %v993, %v1361
        %v1363 = vpop.f32.mrb[0].mxu0
        %v1364 = vadd.f32 %v995, %v1363
        %v1365 = vpop.f32.mrb[0].mxu0
        %v1366 = vadd.f32 %v997, %v1365
        %v1367 = vpop.f32.mrb[0].mxu0
        %v1368 = vadd.f32 %v999, %v1367
        %1369 = vmatprep.mubr.bf16.mxu0 0
        %1370 = vmatmul.mubr.bf16.gmra.mrb[0].mxu0 %v1274
        %v1371 = vpop.f32.mrb[0].mxu0
        %v1372 = vadd.f32 %v1003, %v1371
        %v1373 = vpop.f32.mrb[0].mxu0
        %v1374 = vadd.f32 %v1005, %v1373
        %v1375 = vpop.f32.mrb[0].mxu0
        %v1376 = vadd.f32 %v1007, %v1375
        %v1377 = vpop.f32.mrb[0].mxu0
        %v1378 = vadd.f32 %v1009, %v1377
        %1379 = vmatprep.mubr.bf16.mxu0 0
        %1380 = vmatmul.mubr.bf16.gmra.mrb[0].mxu0 %v1277
        %v1381 = vpop.f32.mrb[0].mxu0
        %v1382 = vadd.f32 %v1013, %v1381
        %v1383 = vpop.f32.mrb[0].mxu0
        %v1384 = vadd.f32 %v1015, %v1383
        %v1385 = vpop.f32.mrb[0].mxu0
        %v1386 = vadd.f32 %v1017, %v1385
        %v1387 = vpop.f32.mrb[0].mxu0
        %v1388 = vadd.f32 %v1019, %v1387
        %1389 = vdwg.mxu0
        %1390 = vmatprep.subr.bf16.mxu0 %v1246
        %1391 = vmatpush1.bf16.msra.mxu0 %v1245
        %1392 = vmatprep.subr.bf16.mxu0 %v1289
        %1393 = vmatpush1.bf16.msra.mxu0 %v1286
        %1394 = vmatprep.subr.bf16.mxu0 0
        %1395 = vmatpush1.bf16.msra.mxu0 0
        %1396 = vmatprep.subr.bf16.mxu0 0
        %1397 = vmatpush1.bf16.msra.mxu0 0
        %1398 = vmatprep.subr.bf16.mxu0 0
        %1399 = vmatpush1.bf16.msra.mxu0 0
        %1400 = vmatprep.subr.bf16.mxu0 0
        %1401 = vmatpush1.bf16.msra.mxu0 0
        %1402 = vmatprep.subr.bf16.mxu0 0
        %1403 = vmatpush1.bf16.msra.mxu0 0
        %1404 = vmatprep.subr.bf16.mxu0 0
        %1405 = vmatpush1.bf16.msra.mxu0 0
        %1406 = vmatprep.subr.bf16.mxu0 0
        %1407 = vmatpush1.bf16.msra.mxu0 0
        %1408 = vmatprep.subr.bf16.mxu0 0
        %1409 = vmatpush1.bf16.msra.mxu0 0
        %1410 = vmatprep.subr.bf16.mxu0 0
        %1411 = vmatpush1.bf16.msra.mxu0 0
        %1412 = vmatprep.subr.bf16.mxu0 0
        %1413 = vmatpush1.bf16.msra.mxu0 0
        %1414 = vmatprep.subr.bf16.mxu0 0
        %1415 = vmatpush1.bf16.msra.mxu0 0
        %1416 = vmatprep.subr.bf16.mxu0 0
        %1417 = vmatpush1.bf16.msra.mxu0 0
        %1418 = vmatprep.subr.bf16.mxu0 0
        %1419 = vmatpush1.bf16.msra.mxu0 0
        %1420 = vmatprep.subr.bf16.mxu0 0
        %1421 = vmatpush1.bf16.msra.mxu0 0
        %1422 = vmatprep.mubr.bf16.mxu0 0
        %1423 = vmatmul.mubr.bf16.gmra.mrb[0].mxu0 %v1262
        %v1424 = vpop.f32.mrb[0].mxu0
        %v1425 = vadd.f32 %v1056, %v1424
        %v1426 = vpop.f32.mrb[0].mxu0
        %v1427 = vadd.f32 %v1058, %v1426
        %v1428 = vpop.f32.mrb[0].mxu0
        %v1429 = vadd.f32 %v1060, %v1428
        %v1430 = vpop.f32.mrb[0].mxu0
        %v1431 = vadd.f32 %v1062, %v1430
        %1432 = vmatprep.mubr.bf16.mxu0 0
        %1433 = vmatmul.mubr.bf16.gmra.mrb[0].mxu0 %v1265
        %v1434 = vpop.f32.mrb[0].mxu0
        %v1435 = vadd.f32 %v1066, %v1434
        %v1436 = vpop.f32.mrb[0].mxu0
        %v1437 = vadd.f32 %v1068, %v1436
        %v1438 = vpop.f32.mrb[0].mxu0
        %v1439 = vadd.f32 %v1070, %v1438
        %v1440 = vpop.f32.mrb[0].mxu0
        %v1441 = vadd.f32 %v1072, %v1440
        %1442 = vmatprep.mubr.bf16.mxu0 0
        %1443 = vmatmul.mubr.bf16.gmra.mrb[0].mxu0 %v1268
        %v1444 = vpop.f32.mrb[0].mxu0
        %v1445 = vadd.f32 %v1076, %v1444
        %v1446 = vpop.f32.mrb[0].mxu0
        %v1447 = vadd.f32 %v1078, %v1446
        %v1448 = vpop.f32.mrb[0].mxu0
        %v1449 = vadd.f32 %v1080, %v1448
        %v1450 = vpop.f32.mrb[0].mxu0
        %v1451 = vadd.f32 %v1082, %v1450
        %1452 = vmatprep.mubr.bf16.mxu0 0
        %1453 = vmatmul.mubr.bf16.gmra.mrb[0].mxu0 %v1271
        %v1454 = vpop.f32.mrb[0].mxu0
        %v1455 = vadd.f32 %v1086, %v1454
        %v1456 = vpop.f32.mrb[0].mxu0
        %v1457 = vadd.f32 %v1088, %v1456
        %v1458 = vpop.f32.mrb[0].mxu0
        %v1459 = vadd.f32 %v1090, %v1458
        %v1460 = vpop.f32.mrb[0].mxu0
        %v1461 = vadd.f32 %v1092, %v1460
        %1462 = vmatprep.mubr.bf16.mxu0 0
        %1463 = vmatmul.mubr.bf16.gmra.mrb[0].mxu0 %v1274
        %v1464 = vpop.f32.mrb[0].mxu0
        %v1465 = vadd.f32 %v1096, %v1464
        %v1466 = vpop.f32.mrb[0].mxu0
        %v1467 = vadd.f32 %v1098, %v1466
        %v1468 = vpop.f32.mrb[0].mxu0
        %v1469 = vadd.f32 %v1100, %v1468
        %v1470 = vpop.f32.mrb[0].mxu0
        %v1471 = vadd.f32 %v1102, %v1470
        %1472 = vmatprep.mubr.bf16.mxu0 0
        %1473 = vmatmul.mubr.bf16.gmra.mrb[0].mxu0 %v1277
        %v1474 = vpop.f32.mrb[0].mxu0
        %v1475 = vadd.f32 %v1106, %v1474
        %v1476 = vpop.f32.mrb[0].mxu0
        %v1477 = vadd.f32 %v1108, %v1476
        %v1478 = vpop.f32.mrb[0].mxu0
        %v1479 = vadd.f32 %v1110, %v1478
        %v1480 = vpop.f32.mrb[0].mxu0
        %v1481 = vadd.f32 %v1112, %v1480
        %1482 = vdwg.mxu0
        %1483 = vmatprep.subr.bf16.mxu0 %v1248
        %1484 = vmatpush1.bf16.msra.mxu0 %v1247
        %1485 = vmatprep.subr.bf16.mxu0 %v1295
        %1486 = vmatpush1.bf16.msra.mxu0 %v1292
        %1487 = vmatprep.subr.bf16.mxu0 0
        %1488 = vmatpush1.bf16.msra.mxu0 0
        %1489 = vmatprep.subr.bf16.mxu0 0
        %1490 = vmatpush1.bf16.msra.mxu0 0
        %1491 = vmatprep.subr.bf16.mxu0 0
        %1492 = vmatpush1.bf16.msra.mxu0 0
        %1493 = vmatprep.subr.bf16.mxu0 0
        %1494 = vmatpush1.bf16.msra.mxu0 0
        %1495 = vmatprep.subr.bf16.mxu0 0
        %1496 = vmatpush1.bf16.msra.mxu0 0
        %1497 = vmatprep.subr.bf16.mxu0 0
        %1498 = vmatpush1.bf16.msra.mxu0 0
        %1499 = vmatprep.subr.bf16.mxu0 0
        %1500 = vmatpush1.bf16.msra.mxu0 0
        %1501 = vmatprep.subr.bf16.mxu0 0
        %1502 = vmatpush1.bf16.msra.mxu0 0
        %1503 = vmatprep.subr.bf16.mxu0 0
        %1504 = vmatpush1.bf16.msra.mxu0 0
        %1505 = vmatprep.subr.bf16.mxu0 0
        %1506 = vmatpush1.bf16.msra.mxu0 0
        %1507 = vmatprep.subr.bf16.mxu0 0
        %1508 = vmatpush1.bf16.msra.mxu0 0
        %1509 = vmatprep.subr.bf16.mxu0 0
        %1510 = vmatpush1.bf16.msra.mxu0 0
        %1511 = vmatprep.subr.bf16.mxu0 0
        %1512 = vmatpush1.bf16.msra.mxu0 0
        %1513 = vmatprep.subr.bf16.mxu0 0
        %1514 = vmatpush1.bf16.msra.mxu0 0
        %1515 = vmatprep.mubr.bf16.mxu0 0
        %1516 = vmatmul.mubr.bf16.gmra.mrb[0].mxu0 %v1262
        %v1517 = vpop.f32.mrb[0].mxu0
        %v1518 = vadd.f32 %v1149, %v1517
        %v1519 = vpop.f32.mrb[0].mxu0
        %v1520 = vadd.f32 %v1151, %v1519
        %v1521 = vpop.f32.mrb[0].mxu0
        %v1522 = vadd.f32 %v1153, %v1521
        %v1523 = vpop.f32.mrb[0].mxu0
        %v1524 = vadd.f32 %v1155, %v1523
        %1525 = vmatprep.mubr.bf16.mxu0 0
        %1526 = vmatmul.mubr.bf16.gmra.mrb[0].mxu0 %v1265
        %v1527 = vpop.f32.mrb[0].mxu0
        %v1528 = vadd.f32 %v1159, %v1527
        %v1529 = vpop.f32.mrb[0].mxu0
        %v1530 = vadd.f32 %v1161, %v1529
        %v1531 = vpop.f32.mrb[0].mxu0
        %v1532 = vadd.f32 %v1163, %v1531
        %v1533 = vpop.f32.mrb[0].mxu0
        %v1534 = vadd.f32 %v1165, %v1533
        %1535 = vmatprep.mubr.bf16.mxu0 0
        %1536 = vmatmul.mubr.bf16.gmra.mrb[0].mxu0 %v1268
        %v1537 = vpop.f32.mrb[0].mxu0
        %v1538 = vadd.f32 %v1169, %v1537
        %v1539 = vpop.f32.mrb[0].mxu0
        %v1540 = vadd.f32 %v1171, %v1539
        %v1541 = vpop.f32.mrb[0].mxu0
        %v1542 = vadd.f32 %v1173, %v1541
        %v1543 = vpop.f32.mrb[0].mxu0
        %v1544 = vadd.f32 %v1175, %v1543
        %1545 = vmatprep.mubr.bf16.mxu0 0
        %1546 = vmatmul.mubr.bf16.gmra.mrb[0].mxu0 %v1271
        %v1547 = vpop.f32.mrb[0].mxu0
        %v1548 = vadd.f32 %v1179, %v1547
        %v1549 = vpop.f32.mrb[0].mxu0
        %v1550 = vadd.f32 %v1181, %v1549
        %v1551 = vpop.f32.mrb[0].mxu0
        %v1552 = vadd.f32 %v1183, %v1551
        %v1553 = vpop.f32.mrb[0].mxu0
        %v1554 = vadd.f32 %v1185, %v1553
        %1555 = vmatprep.mubr.bf16.mxu0 0
        %1556 = vmatmul.mubr.bf16.gmra.mrb[0].mxu0 %v1274
        %v1557 = vpop.f32.mrb[0].mxu0
        %v1558 = vadd.f32 %v1189, %v1557
        %v1559 = vpop.f32.mrb[0].mxu0
        %v1560 = vadd.f32 %v1191, %v1559
        %v1561 = vpop.f32.mrb[0].mxu0
        %v1562 = vadd.f32 %v1193, %v1561
        %v1563 = vpop.f32.mrb[0].mxu0
        %v1564 = vadd.f32 %v1195, %v1563
        %1565 = vmatprep.mubr.bf16.mxu0 0
        %1566 = vmatmul.mubr.bf16.gmra.mrb[0].mxu0 %v1277
        %v1567 = vpop.f32.mrb[0].mxu0
        %v1568 = vadd.f32 %v1199, %v1567
        %v1569 = vpop.f32.mrb[0].mxu0
        %v1570 = vadd.f32 %v1201, %v1569
        %v1571 = vpop.f32.mrb[0].mxu0
        %v1572 = vadd.f32 %v1203, %v1571
        %v1573 = vpop.f32.mrb[0].mxu0
        %v1574 = vadd.f32 %v1205, %v1573
        %1575 = vdwg.mxu0
        %v1588 = vunpack.c.l.b16 %v798
        %v1589 = vunpack.c.h.b16 %v798
        %v1590 = vunpack.c.l.b16 %v799
        %v1591 = vunpack.c.h.b16 %v799
        %v1592 = vunpack.c.l.b16 %v800
        %v1593 = vunpack.c.h.b16 %v800
        %v1594 = vunpack.c.l.b16 %v801
        %v1595 = vunpack.c.h.b16 %v801
        %v1596 = vunpack.c.l.b16 %v802
        %v1597 = vunpack.c.h.b16 %v802
        %v1598 = vunpack.c.l.b16 %v803
        %v1599 = vunpack.c.h.b16 %v803
        %v1600 = vunpack.c.l.b16 %v804
        %v1601 = vunpack.c.h.b16 %v804
        %v1602 = vunpack.c.l.b16 %v805
        %v1603 = vunpack.c.h.b16 %v805
        %v1604 = vunpack.c.l.b16 %v806
        %v1605 = vunpack.c.h.b16 %v806
        %v1606 = vunpack.c.l.b16 %v807
        %v1607 = vunpack.c.h.b16 %v807
        %v1608 = vunpack.c.l.b16 %v808
        %v1609 = vunpack.c.h.b16 %v808
        %v1610 = vunpack.c.l.b16 %v809
        %v1611 = vunpack.c.h.b16 %v809
        %v1612 = vpack.c.b16 %v1594, %v1588
        %v1613 = vpack.c.b16 %v1595, %v1589
        %v1614 = vpack.c.b16 %v1596, %v1590
        %v1615 = vpack.c.b16 %v1597, %v1591
        %v1616 = vpack.c.b16 %v1598, %v1592
        %v1617 = vpack.c.b16 %v1599, %v1593
        %v1618 = vpack.c.b16 %v1606, %v1600
        %v1619 = vpack.c.b16 %v1607, %v1601
        %v1620 = vpack.c.b16 %v1608, %v1602
        %v1621 = vpack.c.b16 %v1609, %v1603
        %v1622 = vpack.c.b16 %v1610, %v1604
        %v1623 = vpack.c.b16 %v1611, %v1605
        %v1631 = vsel %vm890, %v691, 0
        %v1634 = vsel %vm890, %v692, 0
        %v1637 = vsel %vm890, %v693, 0
        %v1640 = vsel %vm890, %v694, 0
        %v1643 = vsel %vm890, %v695, 0
        %v1646 = vsel %vm890, %v696, 0
        %v1649 = vsel %vm909, %v1618, 0
        %v1652 = vsel %vm909, %v1619, 0
        %v1655 = vsel %vm909, %v1620, 0
        %v1658 = vsel %vm909, %v1621, 0
        %v1661 = vsel %vm909, %v1622, 0
        %v1664 = vsel %vm909, %v1623, 0
        %1666 = vmatprep.subr.bf16.mxu0 %v1613
        %1667 = vmatpush1.bf16.msra.mxu0 %v1612
        %1668 = vmatprep.subr.bf16.mxu0 %v1652
        %1669 = vmatpush1.bf16.msra.mxu0 %v1649
        %1670 = vmatprep.subr.bf16.mxu0 0
        %1671 = vmatpush1.bf16.msra.mxu0 0
        %1672 = vmatprep.subr.bf16.mxu0 0
        %1673 = vmatpush1.bf16.msra.mxu0 0
        %1674 = vmatprep.subr.bf16.mxu0 0
        %1675 = vmatpush1.bf16.msra.mxu0 0
        %1676 = vmatprep.subr.bf16.mxu0 0
        %1677 = vmatpush1.bf16.msra.mxu0 0
        %1678 = vmatprep.subr.bf16.mxu0 0
        %1679 = vmatpush1.bf16.msra.mxu0 0
        %1680 = vmatprep.subr.bf16.mxu0 0
        %1681 = vmatpush1.bf16.msra.mxu0 0
        %1682 = vmatprep.subr.bf16.mxu0 0
        %1683 = vmatpush1.bf16.msra.mxu0 0
        %1684 = vmatprep.subr.bf16.mxu0 0
        %1685 = vmatpush1.bf16.msra.mxu0 0
        %1686 = vmatprep.subr.bf16.mxu0 0
        %1687 = vmatpush1.bf16.msra.mxu0 0
        %1688 = vmatprep.subr.bf16.mxu0 0
        %1689 = vmatpush1.bf16.msra.mxu0 0
        %1690 = vmatprep.subr.bf16.mxu0 0
        %1691 = vmatpush1.bf16.msra.mxu0 0
        %1692 = vmatprep.subr.bf16.mxu0 0
        %1693 = vmatpush1.bf16.msra.mxu0 0
        %1694 = vmatprep.subr.bf16.mxu0 0
        %1695 = vmatpush1.bf16.msra.mxu0 0
        %1696 = vmatprep.subr.bf16.mxu0 0
        %1697 = vmatpush1.bf16.msra.mxu0 0
        %1698 = vmatprep.mubr.bf16.mxu0 0
        %1699 = vmatmul.mubr.bf16.gmra.mrb[0].mxu0 %v1631
        %v1700 = vpop.f32.mrb[0].mxu0
        %v1701 = vadd.f32 0.0, %v1700
        %v1702 = vpop.f32.mrb[0].mxu0
        %v1703 = vadd.f32 0.0, %v1702
        %v1704 = vpop.f32.mrb[0].mxu0
        %v1705 = vadd.f32 0.0, %v1704
        %v1706 = vpop.f32.mrb[0].mxu0
        %v1707 = vadd.f32 0.0, %v1706
        %1708 = vmatprep.mubr.bf16.mxu0 0
        %1709 = vmatmul.mubr.bf16.gmra.mrb[0].mxu0 %v1634
        %v1710 = vpop.f32.mrb[0].mxu0
        %v1711 = vadd.f32 0.0, %v1710
        %v1712 = vpop.f32.mrb[0].mxu0
        %v1713 = vadd.f32 0.0, %v1712
        %v1714 = vpop.f32.mrb[0].mxu0
        %v1715 = vadd.f32 0.0, %v1714
        %v1716 = vpop.f32.mrb[0].mxu0
        %v1717 = vadd.f32 0.0, %v1716
        %1718 = vmatprep.mubr.bf16.mxu0 0
        %1719 = vmatmul.mubr.bf16.gmra.mrb[0].mxu0 %v1637
        %v1720 = vpop.f32.mrb[0].mxu0
        %v1721 = vadd.f32 0.0, %v1720
        %v1722 = vpop.f32.mrb[0].mxu0
        %v1723 = vadd.f32 0.0, %v1722
        %v1724 = vpop.f32.mrb[0].mxu0
        %v1725 = vadd.f32 0.0, %v1724
        %v1726 = vpop.f32.mrb[0].mxu0
        %v1727 = vadd.f32 0.0, %v1726
        %1728 = vmatprep.mubr.bf16.mxu0 0
        %1729 = vmatmul.mubr.bf16.gmra.mrb[0].mxu0 %v1640
        %v1730 = vpop.f32.mrb[0].mxu0
        %v1731 = vadd.f32 0.0, %v1730
        %v1732 = vpop.f32.mrb[0].mxu0
        %v1733 = vadd.f32 0.0, %v1732
        %v1734 = vpop.f32.mrb[0].mxu0
        %v1735 = vadd.f32 0.0, %v1734
        %v1736 = vpop.f32.mrb[0].mxu0
        %v1737 = vadd.f32 0.0, %v1736
        %1738 = vmatprep.mubr.bf16.mxu0 0
        %1739 = vmatmul.mubr.bf16.gmra.mrb[0].mxu0 %v1643
        %v1740 = vpop.f32.mrb[0].mxu0
        %v1741 = vadd.f32 0.0, %v1740
        %v1742 = vpop.f32.mrb[0].mxu0
        %v1743 = vadd.f32 0.0, %v1742
        %v1744 = vpop.f32.mrb[0].mxu0
        %v1745 = vadd.f32 0.0, %v1744
        %v1746 = vpop.f32.mrb[0].mxu0
        %v1747 = vadd.f32 0.0, %v1746
        %1748 = vmatprep.mubr.bf16.mxu0 0
        %1749 = vmatmul.mubr.bf16.gmra.mrb[0].mxu0 %v1646
        %v1750 = vpop.f32.mrb[0].mxu0
        %v1751 = vadd.f32 0.0, %v1750
        %v1752 = vpop.f32.mrb[0].mxu0
        %v1753 = vadd.f32 0.0, %v1752
        %v1754 = vpop.f32.mrb[0].mxu0
        %v1755 = vadd.f32 0.0, %v1754
        %v1756 = vpop.f32.mrb[0].mxu0
        %v1757 = vadd.f32 0.0, %v1756
        %1758 = vdwg.mxu0
        %1759 = vmatprep.subr.bf16.mxu0 %v1615
        %1760 = vmatpush1.bf16.msra.mxu0 %v1614
        %1761 = vmatprep.subr.bf16.mxu0 %v1658
        %1762 = vmatpush1.bf16.msra.mxu0 %v1655
        %1763 = vmatprep.subr.bf16.mxu0 0
        %1764 = vmatpush1.bf16.msra.mxu0 0
        %1765 = vmatprep.subr.bf16.mxu0 0
        %1766 = vmatpush1.bf16.msra.mxu0 0
        %1767 = vmatprep.subr.bf16.mxu0 0
        %1768 = vmatpush1.bf16.msra.mxu0 0
        %1769 = vmatprep.subr.bf16.mxu0 0
        %1770 = vmatpush1.bf16.msra.mxu0 0
        %1771 = vmatprep.subr.bf16.mxu0 0
        %1772 = vmatpush1.bf16.msra.mxu0 0
        %1773 = vmatprep.subr.bf16.mxu0 0
        %1774 = vmatpush1.bf16.msra.mxu0 0
        %1775 = vmatprep.subr.bf16.mxu0 0
        %1776 = vmatpush1.bf16.msra.mxu0 0
        %1777 = vmatprep.subr.bf16.mxu0 0
        %1778 = vmatpush1.bf16.msra.mxu0 0
        %1779 = vmatprep.subr.bf16.mxu0 0
        %1780 = vmatpush1.bf16.msra.mxu0 0
        %1781 = vmatprep.subr.bf16.mxu0 0
        %1782 = vmatpush1.bf16.msra.mxu0 0
        %1783 = vmatprep.subr.bf16.mxu0 0
        %1784 = vmatpush1.bf16.msra.mxu0 0
        %1785 = vmatprep.subr.bf16.mxu0 0
        %1786 = vmatpush1.bf16.msra.mxu0 0
        %1787 = vmatprep.subr.bf16.mxu0 0
        %1788 = vmatpush1.bf16.msra.mxu0 0
        %1789 = vmatprep.subr.bf16.mxu0 0
        %1790 = vmatpush1.bf16.msra.mxu0 0
        %1791 = vmatprep.mubr.bf16.mxu0 0
        %1792 = vmatmul.mubr.bf16.gmra.mrb[0].mxu0 %v1631
        %v1793 = vpop.f32.mrb[0].mxu0
        %v1794 = vadd.f32 0.0, %v1793
        %v1795 = vpop.f32.mrb[0].mxu0
        %v1796 = vadd.f32 0.0, %v1795
        %v1797 = vpop.f32.mrb[0].mxu0
        %v1798 = vadd.f32 0.0, %v1797
        %v1799 = vpop.f32.mrb[0].mxu0
        %v1800 = vadd.f32 0.0, %v1799
        %1801 = vmatprep.mubr.bf16.mxu0 0
        %1802 = vmatmul.mubr.bf16.gmra.mrb[0].mxu0 %v1634
        %v1803 = vpop.f32.mrb[0].mxu0
        %v1804 = vadd.f32 0.0, %v1803
        %v1805 = vpop.f32.mrb[0].mxu0
        %v1806 = vadd.f32 0.0, %v1805
        %v1807 = vpop.f32.mrb[0].mxu0
        %v1808 = vadd.f32 0.0, %v1807
        %v1809 = vpop.f32.mrb[0].mxu0
        %v1810 = vadd.f32 0.0, %v1809
        %1811 = vmatprep.mubr.bf16.mxu0 0
        %1812 = vmatmul.mubr.bf16.gmra.mrb[0].mxu0 %v1637
        %v1813 = vpop.f32.mrb[0].mxu0
        %v1814 = vadd.f32 0.0, %v1813
        %v1815 = vpop.f32.mrb[0].mxu0
        %v1816 = vadd.f32 0.0, %v1815
        %v1817 = vpop.f32.mrb[0].mxu0
        %v1818 = vadd.f32 0.0, %v1817
        %v1819 = vpop.f32.mrb[0].mxu0
        %v1820 = vadd.f32 0.0, %v1819
        %1821 = vmatprep.mubr.bf16.mxu0 0
        %1822 = vmatmul.mubr.bf16.gmra.mrb[0].mxu0 %v1640
        %v1823 = vpop.f32.mrb[0].mxu0
        %v1824 = vadd.f32 0.0, %v1823
        %v1825 = vpop.f32.mrb[0].mxu0
        %v1826 = vadd.f32 0.0, %v1825
        %v1827 = vpop.f32.mrb[0].mxu0
        %v1828 = vadd.f32 0.0, %v1827
        %v1829 = vpop.f32.mrb[0].mxu0
        %v1830 = vadd.f32 0.0, %v1829
        %1831 = vmatprep.mubr.bf16.mxu0 0
        %1832 = vmatmul.mubr.bf16.gmra.mrb[0].mxu0 %v1643
        %v1833 = vpop.f32.mrb[0].mxu0
        %v1834 = vadd.f32 0.0, %v1833
        %v1835 = vpop.f32.mrb[0].mxu0
        %v1836 = vadd.f32 0.0, %v1835
        %v1837 = vpop.f32.mrb[0].mxu0
        %v1838 = vadd.f32 0.0, %v1837
        %v1839 = vpop.f32.mrb[0].mxu0
        %v1840 = vadd.f32 0.0, %v1839
        %1841 = vmatprep.mubr.bf16.mxu0 0
        %1842 = vmatmul.mubr.bf16.gmra.mrb[0].mxu0 %v1646
        %v1843 = vpop.f32.mrb[0].mxu0
        %v1844 = vadd.f32 0.0, %v1843
        %v1845 = vpop.f32.mrb[0].mxu0
        %v1846 = vadd.f32 0.0, %v1845
        %v1847 = vpop.f32.mrb[0].mxu0
        %v1848 = vadd.f32 0.0, %v1847
        %v1849 = vpop.f32.mrb[0].mxu0
        %v1850 = vadd.f32 0.0, %v1849
        %1851 = vdwg.mxu0
        %1852 = vmatprep.subr.bf16.mxu0 %v1617
        %1853 = vmatpush1.bf16.msra.mxu0 %v1616
        %1854 = vmatprep.subr.bf16.mxu0 %v1664
        %1855 = vmatpush1.bf16.msra.mxu0 %v1661
        %1856 = vmatprep.subr.bf16.mxu0 0
        %1857 = vmatpush1.bf16.msra.mxu0 0
        %1858 = vmatprep.subr.bf16.mxu0 0
        %1859 = vmatpush1.bf16.msra.mxu0 0
        %1860 = vmatprep.subr.bf16.mxu0 0
        %1861 = vmatpush1.bf16.msra.mxu0 0
        %1862 = vmatprep.subr.bf16.mxu0 0
        %1863 = vmatpush1.bf16.msra.mxu0 0
        %1864 = vmatprep.subr.bf16.mxu0 0
        %1865 = vmatpush1.bf16.msra.mxu0 0
        %1866 = vmatprep.subr.bf16.mxu0 0
        %1867 = vmatpush1.bf16.msra.mxu0 0
        %1868 = vmatprep.subr.bf16.mxu0 0
        %1869 = vmatpush1.bf16.msra.mxu0 0
        %1870 = vmatprep.subr.bf16.mxu0 0
        %1871 = vmatpush1.bf16.msra.mxu0 0
        %1872 = vmatprep.subr.bf16.mxu0 0
        %1873 = vmatpush1.bf16.msra.mxu0 0
        %1874 = vmatprep.subr.bf16.mxu0 0
        %1875 = vmatpush1.bf16.msra.mxu0 0
        %1876 = vmatprep.subr.bf16.mxu0 0
        %1877 = vmatpush1.bf16.msra.mxu0 0
        %1878 = vmatprep.subr.bf16.mxu0 0
        %1879 = vmatpush1.bf16.msra.mxu0 0
        %1880 = vmatprep.subr.bf16.mxu0 0
        %1881 = vmatpush1.bf16.msra.mxu0 0
        %1882 = vmatprep.subr.bf16.mxu0 0
        %1883 = vmatpush1.bf16.msra.mxu0 0
        %1884 = vmatprep.mubr.bf16.mxu0 0
        %1885 = vmatmul.mubr.bf16.gmra.mrb[0].mxu0 %v1631
        %v1886 = vpop.f32.mrb[0].mxu0
        %v1887 = vadd.f32 0.0, %v1886
        %v1888 = vpop.f32.mrb[0].mxu0
        %v1889 = vadd.f32 0.0, %v1888
        %v1890 = vpop.f32.mrb[0].mxu0
        %v1891 = vadd.f32 0.0, %v1890
        %v1892 = vpop.f32.mrb[0].mxu0
        %v1893 = vadd.f32 0.0, %v1892
        %1894 = vmatprep.mubr.bf16.mxu0 0
        %1895 = vmatmul.mubr.bf16.gmra.mrb[0].mxu0 %v1634
        %v1896 = vpop.f32.mrb[0].mxu0
        %v1897 = vadd.f32 0.0, %v1896
        %v1898 = vpop.f32.mrb[0].mxu0
        %v1899 = vadd.f32 0.0, %v1898
        %v1900 = vpop.f32.mrb[0].mxu0
        %v1901 = vadd.f32 0.0, %v1900
        %v1902 = vpop.f32.mrb[0].mxu0
        %v1903 = vadd.f32 0.0, %v1902
        %1904 = vmatprep.mubr.bf16.mxu0 0
        %1905 = vmatmul.mubr.bf16.gmra.mrb[0].mxu0 %v1637
        %v1906 = vpop.f32.mrb[0].mxu0
        %v1907 = vadd.f32 0.0, %v1906
        %v1908 = vpop.f32.mrb[0].mxu0
        %v1909 = vadd.f32 0.0, %v1908
        %v1910 = vpop.f32.mrb[0].mxu0
        %v1911 = vadd.f32 0.0, %v1910
        %v1912 = vpop.f32.mrb[0].mxu0
        %v1913 = vadd.f32 0.0, %v1912
        %1914 = vmatprep.mubr.bf16.mxu0 0
        %1915 = vmatmul.mubr.bf16.gmra.mrb[0].mxu0 %v1640
        %v1916 = vpop.f32.mrb[0].mxu0
        %v1917 = vadd.f32 0.0, %v1916
        %v1918 = vpop.f32.mrb[0].mxu0
        %v1919 = vadd.f32 0.0, %v1918
        %v1920 = vpop.f32.mrb[0].mxu0
        %v1921 = vadd.f32 0.0, %v1920
        %v1922 = vpop.f32.mrb[0].mxu0
        %v1923 = vadd.f32 0.0, %v1922
        %1924 = vmatprep.mubr.bf16.mxu0 0
        %1925 = vmatmul.mubr.bf16.gmra.mrb[0].mxu0 %v1643
        %v1926 = vpop.f32.mrb[0].mxu0
        %v1927 = vadd.f32 0.0, %v1926
        %v1928 = vpop.f32.mrb[0].mxu0
        %v1929 = vadd.f32 0.0, %v1928
        %v1930 = vpop.f32.mrb[0].mxu0
        %v1931 = vadd.f32 0.0, %v1930
        %v1932 = vpop.f32.mrb[0].mxu0
        %v1933 = vadd.f32 0.0, %v1932
        %1934 = vmatprep.mubr.bf16.mxu0 0
        %1935 = vmatmul.mubr.bf16.gmra.mrb[0].mxu0 %v1646
        %v1936 = vpop.f32.mrb[0].mxu0
        %v1937 = vadd.f32 0.0, %v1936
        %v1938 = vpop.f32.mrb[0].mxu0
        %v1939 = vadd.f32 0.0, %v1938
        %v1940 = vpop.f32.mrb[0].mxu0
        %v1941 = vadd.f32 0.0, %v1940
        %v1942 = vpop.f32.mrb[0].mxu0
        %v1943 = vadd.f32 0.0, %v1942
        %1944 = vdwg.mxu0
        %v1945 = vadd.f32 %v1332, %v1701
        %v1946 = vadd.f32 %v1334, %v1703
        %v1947 = vadd.f32 %v1425, %v1794
        %v1948 = vadd.f32 %v1427, %v1796
        %v1949 = vadd.f32 %v1518, %v1887
        %v1950 = vadd.f32 %v1520, %v1889
        %v1951 = vadd.f32 %v1336, %v1705
        %v1952 = vadd.f32 %v1338, %v1707
        %v1953 = vadd.f32 %v1429, %v1798
        %v1954 = vadd.f32 %v1431, %v1800
        %v1955 = vadd.f32 %v1522, %v1891
        %v1956 = vadd.f32 %v1524, %v1893
        %v1957 = vadd.f32 %v1342, %v1711
        %v1958 = vadd.f32 %v1344, %v1713
        %v1959 = vadd.f32 %v1435, %v1804
        %v1960 = vadd.f32 %v1437, %v1806
        %v1961 = vadd.f32 %v1528, %v1897
        %v1962 = vadd.f32 %v1530, %v1899
        %v1963 = vadd.f32 %v1346, %v1715
        %v1964 = vadd.f32 %v1348, %v1717
        %v1965 = vadd.f32 %v1439, %v1808
        %v1966 = vadd.f32 %v1441, %v1810
        %v1967 = vadd.f32 %v1532, %v1901
        %v1968 = vadd.f32 %v1534, %v1903
        %v1969 = vadd.f32 %v1352, %v1721
        %v1970 = vadd.f32 %v1354, %v1723
        %v1971 = vadd.f32 %v1445, %v1814
        %v1972 = vadd.f32 %v1447, %v1816
        %v1973 = vadd.f32 %v1538, %v1907
        %v1974 = vadd.f32 %v1540, %v1909
        %v1975 = vadd.f32 %v1356, %v1725
        %v1976 = vadd.f32 %v1358, %v1727
        %v1977 = vadd.f32 %v1449, %v1818
        %v1978 = vadd.f32 %v1451, %v1820
        %v1979 = vadd.f32 %v1542, %v1911
        %v1980 = vadd.f32 %v1544, %v1913
        %v1981 = vadd.f32 %v1362, %v1731
        %v1982 = vadd.f32 %v1364, %v1733
        %v1983 = vadd.f32 %v1455, %v1824
        %v1984 = vadd.f32 %v1457, %v1826
        %v1985 = vadd.f32 %v1548, %v1917
        %v1986 = vadd.f32 %v1550, %v1919
        %v1987 = vadd.f32 %v1366, %v1735
        %v1988 = vadd.f32 %v1368, %v1737
        %v1989 = vadd.f32 %v1459, %v1828
        %v1990 = vadd.f32 %v1461, %v1830
        %v1991 = vadd.f32 %v1552, %v1921
        %v1992 = vadd.f32 %v1554, %v1923
        %v1993 = vadd.f32 %v1372, %v1741
        %v1994 = vadd.f32 %v1374, %v1743
        %v1995 = vadd.f32 %v1465, %v1834
        %v1996 = vadd.f32 %v1467, %v1836
        %v1997 = vadd.f32 %v1558, %v1927
        %v1998 = vadd.f32 %v1560, %v1929
        %v1999 = vadd.f32 %v1376, %v1745
        %v2000 = vadd.f32 %v1378, %v1747
        %v2001 = vadd.f32 %v1469, %v1838
        %v2002 = vadd.f32 %v1471, %v1840
        %v2003 = vadd.f32 %v1562, %v1931
        %v2004 = vadd.f32 %v1564, %v1933
        %v2005 = vadd.f32 %v1382, %v1751
        %v2006 = vadd.f32 %v1384, %v1753
        %v2007 = vadd.f32 %v1475, %v1844
        %v2008 = vadd.f32 %v1477, %v1846
        %v2009 = vadd.f32 %v1568, %v1937
        %v2010 = vadd.f32 %v1570, %v1939
        %v2011 = vadd.f32 %v1386, %v1755
        %v2012 = vadd.f32 %v1388, %v1757
        %v2013 = vadd.f32 %v1479, %v1848
        %v2014 = vadd.f32 %v1481, %v1850
        %v2015 = vadd.f32 %v1572, %v1941
        %v2016 = vadd.f32 %v1574, %v1943
        %v2029 = vunpack.c.l.b16 %v811
        %v2030 = vunpack.c.h.b16 %v811
        %v2031 = vunpack.c.l.b16 %v812
        %v2032 = vunpack.c.h.b16 %v812
        %v2033 = vunpack.c.l.b16 %v813
        %v2034 = vunpack.c.h.b16 %v813
        %v2035 = vunpack.c.l.b16 %v814
        %v2036 = vunpack.c.h.b16 %v814
        %v2037 = vunpack.c.l.b16 %v815
        %v2038 = vunpack.c.h.b16 %v815
        %v2039 = vunpack.c.l.b16 %v816
        %v2040 = vunpack.c.h.b16 %v816
        %v2041 = vunpack.c.l.b16 %v817
        %v2042 = vunpack.c.h.b16 %v817
        %v2043 = vunpack.c.l.b16 %v818
        %v2044 = vunpack.c.h.b16 %v818
        %v2045 = vunpack.c.l.b16 %v819
        %v2046 = vunpack.c.h.b16 %v819
        %v2047 = vunpack.c.l.b16 %v820
        %v2048 = vunpack.c.h.b16 %v820
        %v2049 = vunpack.c.l.b16 %v821
        %v2050 = vunpack.c.h.b16 %v821
        %v2051 = vunpack.c.l.b16 %v822
        %v2052 = vunpack.c.h.b16 %v822
        %v2053 = vpack.c.b16 %v2035, %v2029
        %v2054 = vpack.c.b16 %v2036, %v2030
        %v2055 = vpack.c.b16 %v2037, %v2031
        %v2056 = vpack.c.b16 %v2038, %v2032
        %v2057 = vpack.c.b16 %v2039, %v2033
        %v2058 = vpack.c.b16 %v2040, %v2034
        %v2059 = vpack.c.b16 %v2047, %v2041
        %v2060 = vpack.c.b16 %v2048, %v2042
        %v2061 = vpack.c.b16 %v2049, %v2043
        %v2062 = vpack.c.b16 %v2050, %v2044
        %v2063 = vpack.c.b16 %v2051, %v2045
        %v2064 = vpack.c.b16 %v2052, %v2046
        %v2072 = vsel %vm890, %v747, 0
        %v2075 = vsel %vm890, %v748, 0
        %v2078 = vsel %vm890, %v749, 0
        %v2081 = vsel %vm890, %v750, 0
        %v2084 = vsel %vm890, %v751, 0
        %v2087 = vsel %vm890, %v752, 0
        %v2090 = vsel %vm909, %v2059, 0
        %v2093 = vsel %vm909, %v2060, 0
        %v2096 = vsel %vm909, %v2061, 0
        %v2099 = vsel %vm909, %v2062, 0
        %v2102 = vsel %vm909, %v2063, 0
        %v2105 = vsel %vm909, %v2064, 0
        %2107 = vmatprep.subr.bf16.mxu0 %v2054
        %2108 = vmatpush1.bf16.msra.mxu0 %v2053
        %2109 = vmatprep.subr.bf16.mxu0 %v2093
        %2110 = vmatpush1.bf16.msra.mxu0 %v2090
        %2111 = vmatprep.subr.bf16.mxu0 0
        %2112 = vmatpush1.bf16.msra.mxu0 0
        %2113 = vmatprep.subr.bf16.mxu0 0
        %2114 = vmatpush1.bf16.msra.mxu0 0
        %2115 = vmatprep.subr.bf16.mxu0 0
        %2116 = vmatpush1.bf16.msra.mxu0 0
        %2117 = vmatprep.subr.bf16.mxu0 0
        %2118 = vmatpush1.bf16.msra.mxu0 0
        %2119 = vmatprep.subr.bf16.mxu0 0
        %2120 = vmatpush1.bf16.msra.mxu0 0
        %2121 = vmatprep.subr.bf16.mxu0 0
        %2122 = vmatpush1.bf16.msra.mxu0 0
        %2123 = vmatprep.subr.bf16.mxu0 0
        %2124 = vmatpush1.bf16.msra.mxu0 0
        %2125 = vmatprep.subr.bf16.mxu0 0
        %2126 = vmatpush1.bf16.msra.mxu0 0
        %2127 = vmatprep.subr.bf16.mxu0 0
        %2128 = vmatpush1.bf16.msra.mxu0 0
        %2129 = vmatprep.subr.bf16.mxu0 0
        %2130 = vmatpush1.bf16.msra.mxu0 0
        %2131 = vmatprep.subr.bf16.mxu0 0
        %2132 = vmatpush1.bf16.msra.mxu0 0
        %2133 = vmatprep.subr.bf16.mxu0 0
        %2134 = vmatpush1.bf16.msra.mxu0 0
        %2135 = vmatprep.subr.bf16.mxu0 0
        %2136 = vmatpush1.bf16.msra.mxu0 0
        %2137 = vmatprep.subr.bf16.mxu0 0
        %2138 = vmatpush1.bf16.msra.mxu0 0
        %2139 = vmatprep.mubr.bf16.mxu0 0
        %2140 = vmatmul.mubr.bf16.gmra.mrb[0].mxu0 %v2072
        %v2141 = vpop.f32.mrb[0].mxu0
        %v2142 = vadd.f32 0.0, %v2141
        %v2143 = vpop.f32.mrb[0].mxu0
        %v2144 = vadd.f32 0.0, %v2143
        %v2145 = vpop.f32.mrb[0].mxu0
        %v2146 = vadd.f32 0.0, %v2145
        %v2147 = vpop.f32.mrb[0].mxu0
        %v2148 = vadd.f32 0.0, %v2147
        %2149 = vmatprep.mubr.bf16.mxu0 0
        %2150 = vmatmul.mubr.bf16.gmra.mrb[0].mxu0 %v2075
        %v2151 = vpop.f32.mrb[0].mxu0
        %v2152 = vadd.f32 0.0, %v2151
        %v2153 = vpop.f32.mrb[0].mxu0
        %v2154 = vadd.f32 0.0, %v2153
        %v2155 = vpop.f32.mrb[0].mxu0
        %v2156 = vadd.f32 0.0, %v2155
        %v2157 = vpop.f32.mrb[0].mxu0
        %v2158 = vadd.f32 0.0, %v2157
        %2159 = vmatprep.mubr.bf16.mxu0 0
        %2160 = vmatmul.mubr.bf16.gmra.mrb[0].mxu0 %v2078
        %v2161 = vpop.f32.mrb[0].mxu0
        %v2162 = vadd.f32 0.0, %v2161
        %v2163 = vpop.f32.mrb[0].mxu0
        %v2164 = vadd.f32 0.0, %v2163
        %v2165 = vpop.f32.mrb[0].mxu0
        %v2166 = vadd.f32 0.0, %v2165
        %v2167 = vpop.f32.mrb[0].mxu0
        %v2168 = vadd.f32 0.0, %v2167
        %2169 = vmatprep.mubr.bf16.mxu0 0
        %2170 = vmatmul.mubr.bf16.gmra.mrb[0].mxu0 %v2081
        %v2171 = vpop.f32.mrb[0].mxu0
        %v2172 = vadd.f32 0.0, %v2171
        %v2173 = vpop.f32.mrb[0].mxu0
        %v2174 = vadd.f32 0.0, %v2173
        %v2175 = vpop.f32.mrb[0].mxu0
        %v2176 = vadd.f32 0.0, %v2175
        %v2177 = vpop.f32.mrb[0].mxu0
        %v2178 = vadd.f32 0.0, %v2177
        %2179 = vmatprep.mubr.bf16.mxu0 0
        %2180 = vmatmul.mubr.bf16.gmra.mrb[0].mxu0 %v2084
        %v2181 = vpop.f32.mrb[0].mxu0
        %v2182 = vadd.f32 0.0, %v2181
        %v2183 = vpop.f32.mrb[0].mxu0
        %v2184 = vadd.f32 0.0, %v2183
        %v2185 = vpop.f32.mrb[0].mxu0
        %v2186 = vadd.f32 0.0, %v2185
        %v2187 = vpop.f32.mrb[0].mxu0
        %v2188 = vadd.f32 0.0, %v2187
        %2189 = vmatprep.mubr.bf16.mxu0 0
        %2190 = vmatmul.mubr.bf16.gmra.mrb[0].mxu0 %v2087
        %v2191 = vpop.f32.mrb[0].mxu0
        %v2192 = vadd.f32 0.0, %v2191
        %v2193 = vpop.f32.mrb[0].mxu0
        %v2194 = vadd.f32 0.0, %v2193
        %v2195 = vpop.f32.mrb[0].mxu0
        %v2196 = vadd.f32 0.0, %v2195
        %v2197 = vpop.f32.mrb[0].mxu0
        %v2198 = vadd.f32 0.0, %v2197
        %2199 = vdwg.mxu0
        %2200 = vmatprep.subr.bf16.mxu0 %v2056
        %2201 = vmatpush1.bf16.msra.mxu0 %v2055
        %2202 = vmatprep.subr.bf16.mxu0 %v2099
        %2203 = vmatpush1.bf16.msra.mxu0 %v2096
        %2204 = vmatprep.subr.bf16.mxu0 0
        %2205 = vmatpush1.bf16.msra.mxu0 0
        %2206 = vmatprep.subr.bf16.mxu0 0
        %2207 = vmatpush1.bf16.msra.mxu0 0
        %2208 = vmatprep.subr.bf16.mxu0 0
        %2209 = vmatpush1.bf16.msra.mxu0 0
        %2210 = vmatprep.subr.bf16.mxu0 0
        %2211 = vmatpush1.bf16.msra.mxu0 0
        %2212 = vmatprep.subr.bf16.mxu0 0
        %2213 = vmatpush1.bf16.msra.mxu0 0
        %2214 = vmatprep.subr.bf16.mxu0 0
        %2215 = vmatpush1.bf16.msra.mxu0 0
        %2216 = vmatprep.subr.bf16.mxu0 0
        %2217 = vmatpush1.bf16.msra.mxu0 0
        %2218 = vmatprep.subr.bf16.mxu0 0
        %2219 = vmatpush1.bf16.msra.mxu0 0
        %2220 = vmatprep.subr.bf16.mxu0 0
        %2221 = vmatpush1.bf16.msra.mxu0 0
        %2222 = vmatprep.subr.bf16.mxu0 0
        %2223 = vmatpush1.bf16.msra.mxu0 0
        %2224 = vmatprep.subr.bf16.mxu0 0
        %2225 = vmatpush1.bf16.msra.mxu0 0
        %2226 = vmatprep.subr.bf16.mxu0 0
        %2227 = vmatpush1.bf16.msra.mxu0 0
        %2228 = vmatprep.subr.bf16.mxu0 0
        %2229 = vmatpush1.bf16.msra.mxu0 0
        %2230 = vmatprep.subr.bf16.mxu0 0
        %2231 = vmatpush1.bf16.msra.mxu0 0
        %2232 = vmatprep.mubr.bf16.mxu0 0
        %2233 = vmatmul.mubr.bf16.gmra.mrb[0].mxu0 %v2072
        %v2234 = vpop.f32.mrb[0].mxu0
        %v2235 = vadd.f32 0.0, %v2234
        %v2236 = vpop.f32.mrb[0].mxu0
        %v2237 = vadd.f32 0.0, %v2236
        %v2238 = vpop.f32.mrb[0].mxu0
        %v2239 = vadd.f32 0.0, %v2238
        %v2240 = vpop.f32.mrb[0].mxu0
        %v2241 = vadd.f32 0.0, %v2240
        %2242 = vmatprep.mubr.bf16.mxu0 0
        %2243 = vmatmul.mubr.bf16.gmra.mrb[0].mxu0 %v2075
        %v2244 = vpop.f32.mrb[0].mxu0
        %v2245 = vadd.f32 0.0, %v2244
        %v2246 = vpop.f32.mrb[0].mxu0
        %v2247 = vadd.f32 0.0, %v2246
        %v2248 = vpop.f32.mrb[0].mxu0
        %v2249 = vadd.f32 0.0, %v2248
        %v2250 = vpop.f32.mrb[0].mxu0
        %v2251 = vadd.f32 0.0, %v2250
        %2252 = vmatprep.mubr.bf16.mxu0 0
        %2253 = vmatmul.mubr.bf16.gmra.mrb[0].mxu0 %v2078
        %v2254 = vpop.f32.mrb[0].mxu0
        %v2255 = vadd.f32 0.0, %v2254
        %v2256 = vpop.f32.mrb[0].mxu0
        %v2257 = vadd.f32 0.0, %v2256
        %v2258 = vpop.f32.mrb[0].mxu0
        %v2259 = vadd.f32 0.0, %v2258
        %v2260 = vpop.f32.mrb[0].mxu0
        %v2261 = vadd.f32 0.0, %v2260
        %2262 = vmatprep.mubr.bf16.mxu0 0
        %2263 = vmatmul.mubr.bf16.gmra.mrb[0].mxu0 %v2081
        %v2264 = vpop.f32.mrb[0].mxu0
        %v2265 = vadd.f32 0.0, %v2264
        %v2266 = vpop.f32.mrb[0].mxu0
        %v2267 = vadd.f32 0.0, %v2266
        %v2268 = vpop.f32.mrb[0].mxu0
        %v2269 = vadd.f32 0.0, %v2268
        %v2270 = vpop.f32.mrb[0].mxu0
        %v2271 = vadd.f32 0.0, %v2270
        %2272 = vmatprep.mubr.bf16.mxu0 0
        %2273 = vmatmul.mubr.bf16.gmra.mrb[0].mxu0 %v2084
        %v2274 = vpop.f32.mrb[0].mxu0
        %v2275 = vadd.f32 0.0, %v2274
        %v2276 = vpop.f32.mrb[0].mxu0
        %v2277 = vadd.f32 0.0, %v2276
        %v2278 = vpop.f32.mrb[0].mxu0
        %v2279 = vadd.f32 0.0, %v2278
        %v2280 = vpop.f32.mrb[0].mxu0
        %v2281 = vadd.f32 0.0, %v2280
        %2282 = vmatprep.mubr.bf16.mxu0 0
        %2283 = vmatmul.mubr.bf16.gmra.mrb[0].mxu0 %v2087
        %v2284 = vpop.f32.mrb[0].mxu0
        %v2285 = vadd.f32 0.0, %v2284
        %v2286 = vpop.f32.mrb[0].mxu0
        %v2287 = vadd.f32 0.0, %v2286
        %v2288 = vpop.f32.mrb[0].mxu0
        %v2289 = vadd.f32 0.0, %v2288
        %v2290 = vpop.f32.mrb[0].mxu0
        %v2291 = vadd.f32 0.0, %v2290
        %2292 = vdwg.mxu0
        %2293 = vmatprep.subr.bf16.mxu0 %v2058
        %2294 = vmatpush1.bf16.msra.mxu0 %v2057
        %2295 = vmatprep.subr.bf16.mxu0 %v2105
        %2296 = vmatpush1.bf16.msra.mxu0 %v2102
        %2297 = vmatprep.subr.bf16.mxu0 0
        %2298 = vmatpush1.bf16.msra.mxu0 0
        %2299 = vmatprep.subr.bf16.mxu0 0
        %2300 = vmatpush1.bf16.msra.mxu0 0
        %2301 = vmatprep.subr.bf16.mxu0 0
        %2302 = vmatpush1.bf16.msra.mxu0 0
        %2303 = vmatprep.subr.bf16.mxu0 0
        %2304 = vmatpush1.bf16.msra.mxu0 0
        %2305 = vmatprep.subr.bf16.mxu0 0
        %2306 = vmatpush1.bf16.msra.mxu0 0
        %2307 = vmatprep.subr.bf16.mxu0 0
        %2308 = vmatpush1.bf16.msra.mxu0 0
        %2309 = vmatprep.subr.bf16.mxu0 0
        %2310 = vmatpush1.bf16.msra.mxu0 0
        %2311 = vmatprep.subr.bf16.mxu0 0
        %2312 = vmatpush1.bf16.msra.mxu0 0
        %2313 = vmatprep.subr.bf16.mxu0 0
        %2314 = vmatpush1.bf16.msra.mxu0 0
        %2315 = vmatprep.subr.bf16.mxu0 0
        %2316 = vmatpush1.bf16.msra.mxu0 0
        %2317 = vmatprep.subr.bf16.mxu0 0
        %2318 = vmatpush1.bf16.msra.mxu0 0
        %2319 = vmatprep.subr.bf16.mxu0 0
        %2320 = vmatpush1.bf16.msra.mxu0 0
        %2321 = vmatprep.subr.bf16.mxu0 0
        %2322 = vmatpush1.bf16.msra.mxu0 0
        %2323 = vmatprep.subr.bf16.mxu0 0
        %2324 = vmatpush1.bf16.msra.mxu0 0
        %2325 = vmatprep.mubr.bf16.mxu0 0
        %2326 = vmatmul.mubr.bf16.gmra.mrb[0].mxu0 %v2072
        %v2327 = vpop.f32.mrb[0].mxu0
        %v2328 = vadd.f32 0.0, %v2327
        %v2329 = vpop.f32.mrb[0].mxu0
        %v2330 = vadd.f32 0.0, %v2329
        %v2331 = vpop.f32.mrb[0].mxu0
        %v2332 = vadd.f32 0.0, %v2331
        %v2333 = vpop.f32.mrb[0].mxu0
        %v2334 = vadd.f32 0.0, %v2333
        %2335 = vmatprep.mubr.bf16.mxu0 0
        %2336 = vmatmul.mubr.bf16.gmra.mrb[0].mxu0 %v2075
        %v2337 = vpop.f32.mrb[0].mxu0
        %v2338 = vadd.f32 0.0, %v2337
        %v2339 = vpop.f32.mrb[0].mxu0
        %v2340 = vadd.f32 0.0, %v2339
        %v2341 = vpop.f32.mrb[0].mxu0
        %v2342 = vadd.f32 0.0, %v2341
        %v2343 = vpop.f32.mrb[0].mxu0
        %v2344 = vadd.f32 0.0, %v2343
        %2345 = vmatprep.mubr.bf16.mxu0 0
        %2346 = vmatmul.mubr.bf16.gmra.mrb[0].mxu0 %v2078
        %v2347 = vpop.f32.mrb[0].mxu0
        %v2348 = vadd.f32 0.0, %v2347
        %v2349 = vpop.f32.mrb[0].mxu0
        %v2350 = vadd.f32 0.0, %v2349
        %v2351 = vpop.f32.mrb[0].mxu0
        %v2352 = vadd.f32 0.0, %v2351
        %v2353 = vpop.f32.mrb[0].mxu0
        %v2354 = vadd.f32 0.0, %v2353
        %2355 = vmatprep.mubr.bf16.mxu0 0
        %2356 = vmatmul.mubr.bf16.gmra.mrb[0].mxu0 %v2081
        %v2357 = vpop.f32.mrb[0].mxu0
        %v2358 = vadd.f32 0.0, %v2357
        %v2359 = vpop.f32.mrb[0].mxu0
        %v2360 = vadd.f32 0.0, %v2359
        %v2361 = vpop.f32.mrb[0].mxu0
        %v2362 = vadd.f32 0.0, %v2361
        %v2363 = vpop.f32.mrb[0].mxu0
        %v2364 = vadd.f32 0.0, %v2363
        %2365 = vmatprep.mubr.bf16.mxu0 0
        %2366 = vmatmul.mubr.bf16.gmra.mrb[0].mxu0 %v2084
        %v2367 = vpop.f32.mrb[0].mxu0
        %v2368 = vadd.f32 0.0, %v2367
        %v2369 = vpop.f32.mrb[0].mxu0
        %v2370 = vadd.f32 0.0, %v2369
        %v2371 = vpop.f32.mrb[0].mxu0
        %v2372 = vadd.f32 0.0, %v2371
        %v2373 = vpop.f32.mrb[0].mxu0
        %v2374 = vadd.f32 0.0, %v2373
        %2375 = vmatprep.mubr.bf16.mxu0 0
        %2376 = vmatmul.mubr.bf16.gmra.mrb[0].mxu0 %v2087
        %v2377 = vpop.f32.mrb[0].mxu0
        %v2378 = vadd.f32 0.0, %v2377
        %v2379 = vpop.f32.mrb[0].mxu0
        %v2380 = vadd.f32 0.0, %v2379
        %v2381 = vpop.f32.mrb[0].mxu0
        %v2382 = vadd.f32 0.0, %v2381
        %v2383 = vpop.f32.mrb[0].mxu0
        %v2384 = vadd.f32 0.0, %v2383
        %2385 = vdwg.mxu0
        %v2386 = vadd.f32 %v1945, %v2142
        %v2387 = vadd.f32 %v1946, %v2144
        %v2388 = vadd.f32 %v1947, %v2235
        %v2389 = vadd.f32 %v1948, %v2237
        %v2390 = vadd.f32 %v1949, %v2328
        %v2391 = vadd.f32 %v1950, %v2330
        %v2392 = vadd.f32 %v1951, %v2146
        %v2393 = vadd.f32 %v1952, %v2148
        %v2394 = vadd.f32 %v1953, %v2239
        %v2395 = vadd.f32 %v1954, %v2241
        %v2396 = vadd.f32 %v1955, %v2332
        %v2397 = vadd.f32 %v1956, %v2334
        %v2398 = vadd.f32 %v1957, %v2152
        %v2399 = vadd.f32 %v1958, %v2154
        %v2400 = vadd.f32 %v1959, %v2245
        %v2401 = vadd.f32 %v1960, %v2247
        %v2402 = vadd.f32 %v1961, %v2338
        %v2403 = vadd.f32 %v1962, %v2340
        %v2404 = vadd.f32 %v1963, %v2156
        %v2405 = vadd.f32 %v1964, %v2158
        %v2406 = vadd.f32 %v1965, %v2249
        %v2407 = vadd.f32 %v1966, %v2251
        %v2408 = vadd.f32 %v1967, %v2342
        %v2409 = vadd.f32 %v1968, %v2344
        %v2410 = vadd.f32 %v1969, %v2162
        %v2411 = vadd.f32 %v1970, %v2164
        %v2412 = vadd.f32 %v1971, %v2255
        %v2413 = vadd.f32 %v1972, %v2257
        %v2414 = vadd.f32 %v1973, %v2348
        %v2415 = vadd.f32 %v1974, %v2350
        %v2416 = vadd.f32 %v1975, %v2166
        %v2417 = vadd.f32 %v1976, %v2168
        %v2418 = vadd.f32 %v1977, %v2259
        %v2419 = vadd.f32 %v1978, %v2261
        %v2420 = vadd.f32 %v1979, %v2352
        %v2421 = vadd.f32 %v1980, %v2354
        %v2422 = vadd.f32 %v1981, %v2172
        %v2423 = vadd.f32 %v1982, %v2174
        %v2424 = vadd.f32 %v1983, %v2265
        %v2425 = vadd.f32 %v1984, %v2267
        %v2426 = vadd.f32 %v1985, %v2358
        %v2427 = vadd.f32 %v1986, %v2360
        %v2428 = vadd.f32 %v1987, %v2176
        %v2429 = vadd.f32 %v1988, %v2178
        %v2430 = vadd.f32 %v1989, %v2269
        %v2431 = vadd.f32 %v1990, %v2271
        %v2432 = vadd.f32 %v1991, %v2362
        %v2433 = vadd.f32 %v1992, %v2364
        %v2434 = vadd.f32 %v1993, %v2182
        %v2435 = vadd.f32 %v1994, %v2184
        %v2436 = vadd.f32 %v1995, %v2275
        %v2437 = vadd.f32 %v1996, %v2277
        %v2438 = vadd.f32 %v1997, %v2368
        %v2439 = vadd.f32 %v1998, %v2370
        %v2440 = vadd.f32 %v1999, %v2186
        %v2441 = vadd.f32 %v2000, %v2188
        %v2442 = vadd.f32 %v2001, %v2279
        %v2443 = vadd.f32 %v2002, %v2281
        %v2444 = vadd.f32 %v2003, %v2372
        %v2445 = vadd.f32 %v2004, %v2374
        %v2446 = vadd.f32 %v2005, %v2192
        %v2447 = vadd.f32 %v2006, %v2194
        %v2448 = vadd.f32 %v2007, %v2285
        %v2449 = vadd.f32 %v2008, %v2287
        %v2450 = vadd.f32 %v2009, %v2378
        %v2451 = vadd.f32 %v2010, %v2380
        %v2452 = vadd.f32 %v2011, %v2196
        %v2453 = vadd.f32 %v2012, %v2198
        %v2454 = vadd.f32 %v2013, %v2289
        %v2455 = vadd.f32 %v2014, %v2291
        %v2456 = vadd.f32 %v2015, %v2382
        %v2457 = vadd.f32 %v2016, %v2384
        %v2470 = vunpack.c.l.b16 %v824
        %v2471 = vunpack.c.h.b16 %v824
        %v2472 = vunpack.c.l.b16 %v825
        %v2473 = vunpack.c.h.b16 %v825
        %v2474 = vunpack.c.l.b16 %v826
        %v2475 = vunpack.c.h.b16 %v826
        %v2476 = vunpack.c.l.b16 %v827
        %v2477 = vunpack.c.h.b16 %v827
        %v2478 = vunpack.c.l.b16 %v828
        %v2479 = vunpack.c.h.b16 %v828
        %v2480 = vunpack.c.l.b16 %v829
        %v2481 = vunpack.c.h.b16 %v829
        %v2482 = vunpack.c.l.b16 %v830
        %v2483 = vunpack.c.h.b16 %v830
        %v2484 = vunpack.c.l.b16 %v831
        %v2485 = vunpack.c.h.b16 %v831
        %v2486 = vunpack.c.l.b16 %v832
        %v2487 = vunpack.c.h.b16 %v832
        %v2488 = vunpack.c.l.b16 %v833
        %v2489 = vunpack.c.h.b16 %v833
        %v2490 = vunpack.c.l.b16 %v834
        %v2491 = vunpack.c.h.b16 %v834
        %v2492 = vunpack.c.l.b16 %v835
        %v2493 = vunpack.c.h.b16 %v835
        %v2494 = vpack.c.b16 %v2476, %v2470
        %v2495 = vpack.c.b16 %v2477, %v2471
        %v2496 = vpack.c.b16 %v2478, %v2472
        %v2497 = vpack.c.b16 %v2479, %v2473
        %v2498 = vpack.c.b16 %v2480, %v2474
        %v2499 = vpack.c.b16 %v2481, %v2475
        %v2500 = vpack.c.b16 %v2488, %v2482
        %v2501 = vpack.c.b16 %v2489, %v2483
        %v2502 = vpack.c.b16 %v2490, %v2484
        %v2503 = vpack.c.b16 %v2491, %v2485
        %v2504 = vpack.c.b16 %v2492, %v2486
        %v2505 = vpack.c.b16 %v2493, %v2487
        %v2513 = vsel %vm890, %v710, 0
        %v2516 = vsel %vm890, %v711, 0
        %v2519 = vsel %vm890, %v712, 0
        %v2522 = vsel %vm890, %v713, 0
        %v2525 = vsel %vm890, %v714, 0
        %v2528 = vsel %vm890, %v715, 0
        %v2531 = vsel %vm909, %v2500, 0
        %v2534 = vsel %vm909, %v2501, 0
        %v2537 = vsel %vm909, %v2502, 0
        %v2540 = vsel %vm909, %v2503, 0
        %v2543 = vsel %vm909, %v2504, 0
        %v2546 = vsel %vm909, %v2505, 0
        %2548 = vmatprep.subr.bf16.mxu0 %v2495
        %2549 = vmatpush1.bf16.msra.mxu0 %v2494
        %2550 = vmatprep.subr.bf16.mxu0 %v2534
        %2551 = vmatpush1.bf16.msra.mxu0 %v2531
        %2552 = vmatprep.subr.bf16.mxu0 0
        %2553 = vmatpush1.bf16.msra.mxu0 0
        %2554 = vmatprep.subr.bf16.mxu0 0
        %2555 = vmatpush1.bf16.msra.mxu0 0
        %2556 = vmatprep.subr.bf16.mxu0 0
        %2557 = vmatpush1.bf16.msra.mxu0 0
        %2558 = vmatprep.subr.bf16.mxu0 0
        %2559 = vmatpush1.bf16.msra.mxu0 0
        %2560 = vmatprep.subr.bf16.mxu0 0
        %2561 = vmatpush1.bf16.msra.mxu0 0
        %2562 = vmatprep.subr.bf16.mxu0 0
        %2563 = vmatpush1.bf16.msra.mxu0 0
        %2564 = vmatprep.subr.bf16.mxu0 0
        %2565 = vmatpush1.bf16.msra.mxu0 0
        %2566 = vmatprep.subr.bf16.mxu0 0
        %2567 = vmatpush1.bf16.msra.mxu0 0
        %2568 = vmatprep.subr.bf16.mxu0 0
        %2569 = vmatpush1.bf16.msra.mxu0 0
        %2570 = vmatprep.subr.bf16.mxu0 0
        %2571 = vmatpush1.bf16.msra.mxu0 0
        %2572 = vmatprep.subr.bf16.mxu0 0
        %2573 = vmatpush1.bf16.msra.mxu0 0
        %2574 = vmatprep.subr.bf16.mxu0 0
        %2575 = vmatpush1.bf16.msra.mxu0 0
        %2576 = vmatprep.subr.bf16.mxu0 0
        %2577 = vmatpush1.bf16.msra.mxu0 0
        %2578 = vmatprep.subr.bf16.mxu0 0
        %2579 = vmatpush1.bf16.msra.mxu0 0
        %2580 = vmatprep.mubr.bf16.mxu0 0
        %2581 = vmatmul.mubr.bf16.gmra.mrb[0].mxu0 %v2513
        %v2582 = vpop.f32.mrb[0].mxu0
        %v2583 = vadd.f32 0.0, %v2582
        %v2584 = vpop.f32.mrb[0].mxu0
        %v2585 = vadd.f32 0.0, %v2584
        %v2586 = vpop.f32.mrb[0].mxu0
        %v2587 = vadd.f32 0.0, %v2586
        %v2588 = vpop.f32.mrb[0].mxu0
        %v2589 = vadd.f32 0.0, %v2588
        %2590 = vmatprep.mubr.bf16.mxu0 0
        %2591 = vmatmul.mubr.bf16.gmra.mrb[0].mxu0 %v2516
        %v2592 = vpop.f32.mrb[0].mxu0
        %v2593 = vadd.f32 0.0, %v2592
        %v2594 = vpop.f32.mrb[0].mxu0
        %v2595 = vadd.f32 0.0, %v2594
        %v2596 = vpop.f32.mrb[0].mxu0
        %v2597 = vadd.f32 0.0, %v2596
        %v2598 = vpop.f32.mrb[0].mxu0
        %v2599 = vadd.f32 0.0, %v2598
        %2600 = vmatprep.mubr.bf16.mxu0 0
        %2601 = vmatmul.mubr.bf16.gmra.mrb[0].mxu0 %v2519
        %v2602 = vpop.f32.mrb[0].mxu0
        %v2603 = vadd.f32 0.0, %v2602
        %v2604 = vpop.f32.mrb[0].mxu0
        %v2605 = vadd.f32 0.0, %v2604
        %v2606 = vpop.f32.mrb[0].mxu0
        %v2607 = vadd.f32 0.0, %v2606
        %v2608 = vpop.f32.mrb[0].mxu0
        %v2609 = vadd.f32 0.0, %v2608
        %2610 = vmatprep.mubr.bf16.mxu0 0
        %2611 = vmatmul.mubr.bf16.gmra.mrb[0].mxu0 %v2522
        %v2612 = vpop.f32.mrb[0].mxu0
        %v2613 = vadd.f32 0.0, %v2612
        %v2614 = vpop.f32.mrb[0].mxu0
        %v2615 = vadd.f32 0.0, %v2614
        %v2616 = vpop.f32.mrb[0].mxu0
        %v2617 = vadd.f32 0.0, %v2616
        %v2618 = vpop.f32.mrb[0].mxu0
        %v2619 = vadd.f32 0.0, %v2618
        %2620 = vmatprep.mubr.bf16.mxu0 0
        %2621 = vmatmul.mubr.bf16.gmra.mrb[0].mxu0 %v2525
        %v2622 = vpop.f32.mrb[0].mxu0
        %v2623 = vadd.f32 0.0, %v2622
        %v2624 = vpop.f32.mrb[0].mxu0
        %v2625 = vadd.f32 0.0, %v2624
        %v2626 = vpop.f32.mrb[0].mxu0
        %v2627 = vadd.f32 0.0, %v2626
        %v2628 = vpop.f32.mrb[0].mxu0
        %v2629 = vadd.f32 0.0, %v2628
        %2630 = vmatprep.mubr.bf16.mxu0 0
        %2631 = vmatmul.mubr.bf16.gmra.mrb[0].mxu0 %v2528
        %v2632 = vpop.f32.mrb[0].mxu0
        %v2633 = vadd.f32 0.0, %v2632
        %v2634 = vpop.f32.mrb[0].mxu0
        %v2635 = vadd.f32 0.0, %v2634
        %v2636 = vpop.f32.mrb[0].mxu0
        %v2637 = vadd.f32 0.0, %v2636
        %v2638 = vpop.f32.mrb[0].mxu0
        %v2639 = vadd.f32 0.0, %v2638
        %2640 = vdwg.mxu0
        %2641 = vmatprep.subr.bf16.mxu0 %v2497
        %2642 = vmatpush1.bf16.msra.mxu0 %v2496
        %2643 = vmatprep.subr.bf16.mxu0 %v2540
        %2644 = vmatpush1.bf16.msra.mxu0 %v2537
        %2645 = vmatprep.subr.bf16.mxu0 0
        %2646 = vmatpush1.bf16.msra.mxu0 0
        %2647 = vmatprep.subr.bf16.mxu0 0
        %2648 = vmatpush1.bf16.msra.mxu0 0
        %2649 = vmatprep.subr.bf16.mxu0 0
        %2650 = vmatpush1.bf16.msra.mxu0 0
        %2651 = vmatprep.subr.bf16.mxu0 0
        %2652 = vmatpush1.bf16.msra.mxu0 0
        %2653 = vmatprep.subr.bf16.mxu0 0
        %2654 = vmatpush1.bf16.msra.mxu0 0
        %2655 = vmatprep.subr.bf16.mxu0 0
        %2656 = vmatpush1.bf16.msra.mxu0 0
        %2657 = vmatprep.subr.bf16.mxu0 0
        %2658 = vmatpush1.bf16.msra.mxu0 0
        %2659 = vmatprep.subr.bf16.mxu0 0
        %2660 = vmatpush1.bf16.msra.mxu0 0
        %2661 = vmatprep.subr.bf16.mxu0 0
        %2662 = vmatpush1.bf16.msra.mxu0 0
        %2663 = vmatprep.subr.bf16.mxu0 0
        %2664 = vmatpush1.bf16.msra.mxu0 0
        %2665 = vmatprep.subr.bf16.mxu0 0
        %2666 = vmatpush1.bf16.msra.mxu0 0
        %2667 = vmatprep.subr.bf16.mxu0 0
        %2668 = vmatpush1.bf16.msra.mxu0 0
        %2669 = vmatprep.subr.bf16.mxu0 0
        %2670 = vmatpush1.bf16.msra.mxu0 0
        %2671 = vmatprep.subr.bf16.mxu0 0
        %2672 = vmatpush1.bf16.msra.mxu0 0
        %2673 = vmatprep.mubr.bf16.mxu0 0
        %2674 = vmatmul.mubr.bf16.gmra.mrb[0].mxu0 %v2513
        %v2675 = vpop.f32.mrb[0].mxu0
        %v2676 = vadd.f32 0.0, %v2675
        %v2677 = vpop.f32.mrb[0].mxu0
        %v2678 = vadd.f32 0.0, %v2677
        %v2679 = vpop.f32.mrb[0].mxu0
        %v2680 = vadd.f32 0.0, %v2679
        %v2681 = vpop.f32.mrb[0].mxu0
        %v2682 = vadd.f32 0.0, %v2681
        %2683 = vmatprep.mubr.bf16.mxu0 0
        %2684 = vmatmul.mubr.bf16.gmra.mrb[0].mxu0 %v2516
        %v2685 = vpop.f32.mrb[0].mxu0
        %v2686 = vadd.f32 0.0, %v2685
        %v2687 = vpop.f32.mrb[0].mxu0
        %v2688 = vadd.f32 0.0, %v2687
        %v2689 = vpop.f32.mrb[0].mxu0
        %v2690 = vadd.f32 0.0, %v2689
        %v2691 = vpop.f32.mrb[0].mxu0
        %v2692 = vadd.f32 0.0, %v2691
        %2693 = vmatprep.mubr.bf16.mxu0 0
        %2694 = vmatmul.mubr.bf16.gmra.mrb[0].mxu0 %v2519
        %v2695 = vpop.f32.mrb[0].mxu0
        %v2696 = vadd.f32 0.0, %v2695
        %v2697 = vpop.f32.mrb[0].mxu0
        %v2698 = vadd.f32 0.0, %v2697
        %v2699 = vpop.f32.mrb[0].mxu0
        %v2700 = vadd.f32 0.0, %v2699
        %v2701 = vpop.f32.mrb[0].mxu0
        %v2702 = vadd.f32 0.0, %v2701
        %2703 = vmatprep.mubr.bf16.mxu0 0
        %2704 = vmatmul.mubr.bf16.gmra.mrb[0].mxu0 %v2522
        %v2705 = vpop.f32.mrb[0].mxu0
        %v2706 = vadd.f32 0.0, %v2705
        %v2707 = vpop.f32.mrb[0].mxu0
        %v2708 = vadd.f32 0.0, %v2707
        %v2709 = vpop.f32.mrb[0].mxu0
        %v2710 = vadd.f32 0.0, %v2709
        %v2711 = vpop.f32.mrb[0].mxu0
        %v2712 = vadd.f32 0.0, %v2711
        %2713 = vmatprep.mubr.bf16.mxu0 0
        %2714 = vmatmul.mubr.bf16.gmra.mrb[0].mxu0 %v2525
        %v2715 = vpop.f32.mrb[0].mxu0
        %v2716 = vadd.f32 0.0, %v2715
        %v2717 = vpop.f32.mrb[0].mxu0
        %v2718 = vadd.f32 0.0, %v2717
        %v2719 = vpop.f32.mrb[0].mxu0
        %v2720 = vadd.f32 0.0, %v2719
        %v2721 = vpop.f32.mrb[0].mxu0
        %v2722 = vadd.f32 0.0, %v2721
        %2723 = vmatprep.mubr.bf16.mxu0 0
        %2724 = vmatmul.mubr.bf16.gmra.mrb[0].mxu0 %v2528
        %v2725 = vpop.f32.mrb[0].mxu0
        %v2726 = vadd.f32 0.0, %v2725
        %v2727 = vpop.f32.mrb[0].mxu0
        %v2728 = vadd.f32 0.0, %v2727
        %v2729 = vpop.f32.mrb[0].mxu0
        %v2730 = vadd.f32 0.0, %v2729
        %v2731 = vpop.f32.mrb[0].mxu0
        %v2732 = vadd.f32 0.0, %v2731
        %2733 = vdwg.mxu0
        %2734 = vmatprep.subr.bf16.mxu0 %v2499
        %2735 = vmatpush1.bf16.msra.mxu0 %v2498
        %2736 = vmatprep.subr.bf16.mxu0 %v2546
        %2737 = vmatpush1.bf16.msra.mxu0 %v2543
        %2738 = vmatprep.subr.bf16.mxu0 0
        %2739 = vmatpush1.bf16.msra.mxu0 0
        %2740 = vmatprep.subr.bf16.mxu0 0
        %2741 = vmatpush1.bf16.msra.mxu0 0
        %2742 = vmatprep.subr.bf16.mxu0 0
        %2743 = vmatpush1.bf16.msra.mxu0 0
        %2744 = vmatprep.subr.bf16.mxu0 0
        %2745 = vmatpush1.bf16.msra.mxu0 0
        %2746 = vmatprep.subr.bf16.mxu0 0
        %2747 = vmatpush1.bf16.msra.mxu0 0
        %2748 = vmatprep.subr.bf16.mxu0 0
        %2749 = vmatpush1.bf16.msra.mxu0 0
        %2750 = vmatprep.subr.bf16.mxu0 0
        %2751 = vmatpush1.bf16.msra.mxu0 0
        %2752 = vmatprep.subr.bf16.mxu0 0
        %2753 = vmatpush1.bf16.msra.mxu0 0
        %2754 = vmatprep.subr.bf16.mxu0 0
        %2755 = vmatpush1.bf16.msra.mxu0 0
        %2756 = vmatprep.subr.bf16.mxu0 0
        %2757 = vmatpush1.bf16.msra.mxu0 0
        %2758 = vmatprep.subr.bf16.mxu0 0
        %2759 = vmatpush1.bf16.msra.mxu0 0
        %2760 = vmatprep.subr.bf16.mxu0 0
        %2761 = vmatpush1.bf16.msra.mxu0 0
        %2762 = vmatprep.subr.bf16.mxu0 0
        %2763 = vmatpush1.bf16.msra.mxu0 0
        %2764 = vmatprep.subr.bf16.mxu0 0
        %2765 = vmatpush1.bf16.msra.mxu0 0
        %2766 = vmatprep.mubr.bf16.mxu0 0
        %2767 = vmatmul.mubr.bf16.gmra.mrb[0].mxu0 %v2513
        %v2768 = vpop.f32.mrb[0].mxu0
        %v2769 = vadd.f32 0.0, %v2768
        %v2770 = vpop.f32.mrb[0].mxu0
        %v2771 = vadd.f32 0.0, %v2770
        %v2772 = vpop.f32.mrb[0].mxu0
        %v2773 = vadd.f32 0.0, %v2772
        %v2774 = vpop.f32.mrb[0].mxu0
        %v2775 = vadd.f32 0.0, %v2774
        %2776 = vmatprep.mubr.bf16.mxu0 0
        %2777 = vmatmul.mubr.bf16.gmra.mrb[0].mxu0 %v2516
        %v2778 = vpop.f32.mrb[0].mxu0
        %v2779 = vadd.f32 0.0, %v2778
        %v2780 = vpop.f32.mrb[0].mxu0
        %v2781 = vadd.f32 0.0, %v2780
        %v2782 = vpop.f32.mrb[0].mxu0
        %v2783 = vadd.f32 0.0, %v2782
        %v2784 = vpop.f32.mrb[0].mxu0
        %v2785 = vadd.f32 0.0, %v2784
        %2786 = vmatprep.mubr.bf16.mxu0 0
        %2787 = vmatmul.mubr.bf16.gmra.mrb[0].mxu0 %v2519
        %v2788 = vpop.f32.mrb[0].mxu0
        %v2789 = vadd.f32 0.0, %v2788
        %v2790 = vpop.f32.mrb[0].mxu0
        %v2791 = vadd.f32 0.0, %v2790
        %v2792 = vpop.f32.mrb[0].mxu0
        %v2793 = vadd.f32 0.0, %v2792
        %v2794 = vpop.f32.mrb[0].mxu0
        %v2795 = vadd.f32 0.0, %v2794
        %2796 = vmatprep.mubr.bf16.mxu0 0
        %2797 = vmatmul.mubr.bf16.gmra.mrb[0].mxu0 %v2522
        %v2798 = vpop.f32.mrb[0].mxu0
        %v2799 = vadd.f32 0.0, %v2798
        %v2800 = vpop.f32.mrb[0].mxu0
        %v2801 = vadd.f32 0.0, %v2800
        %v2802 = vpop.f32.mrb[0].mxu0
        %v2803 = vadd.f32 0.0, %v2802
        %v2804 = vpop.f32.mrb[0].mxu0
        %v2805 = vadd.f32 0.0, %v2804
        %2806 = vmatprep.mubr.bf16.mxu0 0
        %2807 = vmatmul.mubr.bf16.gmra.mrb[0].mxu0 %v2525
        %v2808 = vpop.f32.mrb[0].mxu0
        %v2809 = vadd.f32 0.0, %v2808
        %v2810 = vpop.f32.mrb[0].mxu0
        %v2811 = vadd.f32 0.0, %v2810
        %v2812 = vpop.f32.mrb[0].mxu0
        %v2813 = vadd.f32 0.0, %v2812
        %v2814 = vpop.f32.mrb[0].mxu0
        %v2815 = vadd.f32 0.0, %v2814
        %2816 = vmatprep.mubr.bf16.mxu0 0
        %2817 = vmatmul.mubr.bf16.gmra.mrb[0].mxu0 %v2528
        %v2818 = vpop.f32.mrb[0].mxu0
        %v2819 = vadd.f32 0.0, %v2818
        %v2820 = vpop.f32.mrb[0].mxu0
        %v2821 = vadd.f32 0.0, %v2820
        %v2822 = vpop.f32.mrb[0].mxu0
        %v2823 = vadd.f32 0.0, %v2822
        %v2824 = vpop.f32.mrb[0].mxu0
        %v2825 = vadd.f32 0.0, %v2824
        %2826 = vdwg.mxu0
        %v2827 = vadd.f32 %v2386, %v2583
        %v2828 = vadd.f32 %v2387, %v2585
        %v2829 = vadd.f32 %v2388, %v2676
        %v2830 = vadd.f32 %v2389, %v2678
        %v2831 = vadd.f32 %v2390, %v2769
        %v2832 = vadd.f32 %v2391, %v2771
        %v2833 = vadd.f32 %v2392, %v2587
        %v2834 = vadd.f32 %v2393, %v2589
        %v2835 = vadd.f32 %v2394, %v2680
        %v2836 = vadd.f32 %v2395, %v2682
        %v2837 = vadd.f32 %v2396, %v2773
        %v2838 = vadd.f32 %v2397, %v2775
        %v2839 = vadd.f32 %v2398, %v2593
        %v2840 = vadd.f32 %v2399, %v2595
        %v2841 = vadd.f32 %v2400, %v2686
        %v2842 = vadd.f32 %v2401, %v2688
        %v2843 = vadd.f32 %v2402, %v2779
        %v2844 = vadd.f32 %v2403, %v2781
        %v2845 = vadd.f32 %v2404, %v2597
        %v2846 = vadd.f32 %v2405, %v2599
        %v2847 = vadd.f32 %v2406, %v2690
        %v2848 = vadd.f32 %v2407, %v2692
        %v2849 = vadd.f32 %v2408, %v2783
        %v2850 = vadd.f32 %v2409, %v2785
        %v2851 = vadd.f32 %v2410, %v2603
        %v2852 = vadd.f32 %v2411, %v2605
        %v2853 = vadd.f32 %v2412, %v2696
        %v2854 = vadd.f32 %v2413, %v2698
        %v2855 = vadd.f32 %v2414, %v2789
        %v2856 = vadd.f32 %v2415, %v2791
        %v2857 = vadd.f32 %v2416, %v2607
        %v2858 = vadd.f32 %v2417, %v2609
        %v2859 = vadd.f32 %v2418, %v2700
        %v2860 = vadd.f32 %v2419, %v2702
        %v2861 = vadd.f32 %v2420, %v2793
        %v2862 = vadd.f32 %v2421, %v2795
        %v2863 = vadd.f32 %v2422, %v2613
        %v2864 = vadd.f32 %v2423, %v2615
        %v2865 = vadd.f32 %v2424, %v2706
        %v2866 = vadd.f32 %v2425, %v2708
        %v2867 = vadd.f32 %v2426, %v2799
        %v2868 = vadd.f32 %v2427, %v2801
        %v2869 = vadd.f32 %v2428, %v2617
        %v2870 = vadd.f32 %v2429, %v2619
        %v2871 = vadd.f32 %v2430, %v2710
        %v2872 = vadd.f32 %v2431, %v2712
        %v2873 = vadd.f32 %v2432, %v2803
        %v2874 = vadd.f32 %v2433, %v2805
        %v2875 = vadd.f32 %v2434, %v2623
        %v2876 = vadd.f32 %v2435, %v2625
        %v2877 = vadd.f32 %v2436, %v2716
        %v2878 = vadd.f32 %v2437, %v2718
        %v2879 = vadd.f32 %v2438, %v2809
        %v2880 = vadd.f32 %v2439, %v2811
        %v2881 = vadd.f32 %v2440, %v2627
        %v2882 = vadd.f32 %v2441, %v2629
        %v2883 = vadd.f32 %v2442, %v2720
        %v2884 = vadd.f32 %v2443, %v2722
        %v2885 = vadd.f32 %v2444, %v2813
        %v2886 = vadd.f32 %v2445, %v2815
        %v2887 = vadd.f32 %v2446, %v2633
        %v2888 = vadd.f32 %v2447, %v2635
        %v2889 = vadd.f32 %v2448, %v2726
        %v2890 = vadd.f32 %v2449, %v2728
        %v2891 = vadd.f32 %v2450, %v2819
        %v2892 = vadd.f32 %v2451, %v2821
        %v2893 = vadd.f32 %v2452, %v2637
        %v2894 = vadd.f32 %v2453, %v2639
        %v2895 = vadd.f32 %v2454, %v2730
        %v2896 = vadd.f32 %v2455, %v2732
        %v2897 = vadd.f32 %v2456, %v2823
        %v2898 = vadd.f32 %v2457, %v2825
        %2899 = vmatprep.subr.bf16.mxu0 %v873
        %2900 = vmatpush1.bf16.msra.mxu0 %v872
        %2901 = vmatprep.subr.bf16.mxu0 %v914
        %2902 = vmatpush1.bf16.msra.mxu0 %v911
        %2903 = vmatprep.subr.bf16.mxu0 0
        %2904 = vmatpush1.bf16.msra.mxu0 0
        %2905 = vmatprep.subr.bf16.mxu0 0
        %2906 = vmatpush1.bf16.msra.mxu0 0
        %2907 = vmatprep.subr.bf16.mxu0 0
        %2908 = vmatpush1.bf16.msra.mxu0 0
        %2909 = vmatprep.subr.bf16.mxu0 0
        %2910 = vmatpush1.bf16.msra.mxu0 0
        %2911 = vmatprep.subr.bf16.mxu0 0
        %2912 = vmatpush1.bf16.msra.mxu0 0
        %2913 = vmatprep.subr.bf16.mxu0 0
        %2914 = vmatpush1.bf16.msra.mxu0 0
        %2915 = vmatprep.subr.bf16.mxu0 0
        %2916 = vmatpush1.bf16.msra.mxu0 0
        %2917 = vmatprep.subr.bf16.mxu0 0
        %2918 = vmatpush1.bf16.msra.mxu0 0
        %2919 = vmatprep.subr.bf16.mxu0 0
        %2920 = vmatpush1.bf16.msra.mxu0 0
        %2921 = vmatprep.subr.bf16.mxu0 0
        %2922 = vmatpush1.bf16.msra.mxu0 0
        %2923 = vmatprep.subr.bf16.mxu0 0
        %2924 = vmatpush1.bf16.msra.mxu0 0
        %2925 = vmatprep.subr.bf16.mxu0 0
        %2926 = vmatpush1.bf16.msra.mxu0 0
        %2927 = vmatprep.subr.bf16.mxu0 0
        %2928 = vmatpush1.bf16.msra.mxu0 0
        %2929 = vmatprep.subr.bf16.mxu0 0
        %2930 = vmatpush1.bf16.msra.mxu0 0
        %2931 = vmatprep.mubr.bf16.mxu0 0
        %2932 = vmatmul.mubr.bf16.gmra.mrb[0].mxu0 %v1631
        %v2933 = vpop.f32.mrb[0].mxu0
        %v2934 = vadd.f32 0.0, %v2933
        %v2935 = vpop.f32.mrb[0].mxu0
        %v2936 = vadd.f32 0.0, %v2935
        %v2937 = vpop.f32.mrb[0].mxu0
        %v2938 = vadd.f32 0.0, %v2937
        %v2939 = vpop.f32.mrb[0].mxu0
        %v2940 = vadd.f32 0.0, %v2939
        %2941 = vmatprep.mubr.bf16.mxu0 0
        %2942 = vmatmul.mubr.bf16.gmra.mrb[0].mxu0 %v1634
        %v2943 = vpop.f32.mrb[0].mxu0
        %v2944 = vadd.f32 0.0, %v2943
        %v2945 = vpop.f32.mrb[0].mxu0
        %v2946 = vadd.f32 0.0, %v2945
        %v2947 = vpop.f32.mrb[0].mxu0
        %v2948 = vadd.f32 0.0, %v2947
        %v2949 = vpop.f32.mrb[0].mxu0
        %v2950 = vadd.f32 0.0, %v2949
        %2951 = vmatprep.mubr.bf16.mxu0 0
        %2952 = vmatmul.mubr.bf16.gmra.mrb[0].mxu0 %v1637
        %v2953 = vpop.f32.mrb[0].mxu0
        %v2954 = vadd.f32 0.0, %v2953
        %v2955 = vpop.f32.mrb[0].mxu0
        %v2956 = vadd.f32 0.0, %v2955
        %v2957 = vpop.f32.mrb[0].mxu0
        %v2958 = vadd.f32 0.0, %v2957
        %v2959 = vpop.f32.mrb[0].mxu0
        %v2960 = vadd.f32 0.0, %v2959
        %2961 = vmatprep.mubr.bf16.mxu0 0
        %2962 = vmatmul.mubr.bf16.gmra.mrb[0].mxu0 %v1640
        %v2963 = vpop.f32.mrb[0].mxu0
        %v2964 = vadd.f32 0.0, %v2963
        %v2965 = vpop.f32.mrb[0].mxu0
        %v2966 = vadd.f32 0.0, %v2965
        %v2967 = vpop.f32.mrb[0].mxu0
        %v2968 = vadd.f32 0.0, %v2967
        %v2969 = vpop.f32.mrb[0].mxu0
        %v2970 = vadd.f32 0.0, %v2969
        %2971 = vmatprep.mubr.bf16.mxu0 0
        %2972 = vmatmul.mubr.bf16.gmra.mrb[0].mxu0 %v1643
        %v2973 = vpop.f32.mrb[0].mxu0
        %v2974 = vadd.f32 0.0, %v2973
        %v2975 = vpop.f32.mrb[0].mxu0
        %v2976 = vadd.f32 0.0, %v2975
        %v2977 = vpop.f32.mrb[0].mxu0
        %v2978 = vadd.f32 0.0, %v2977
        %v2979 = vpop.f32.mrb[0].mxu0
        %v2980 = vadd.f32 0.0, %v2979
        %2981 = vmatprep.mubr.bf16.mxu0 0
        %2982 = vmatmul.mubr.bf16.gmra.mrb[0].mxu0 %v1646
        %v2983 = vpop.f32.mrb[0].mxu0
        %v2984 = vadd.f32 0.0, %v2983
        %v2985 = vpop.f32.mrb[0].mxu0
        %v2986 = vadd.f32 0.0, %v2985
        %v2987 = vpop.f32.mrb[0].mxu0
        %v2988 = vadd.f32 0.0, %v2987
        %v2989 = vpop.f32.mrb[0].mxu0
        %v2990 = vadd.f32 0.0, %v2989
        %2991 = vdwg.mxu0
        %2992 = vmatprep.subr.bf16.mxu0 %v875
        %2993 = vmatpush1.bf16.msra.mxu0 %v874
        %2994 = vmatprep.subr.bf16.mxu0 %v920
        %2995 = vmatpush1.bf16.msra.mxu0 %v917
        %2996 = vmatprep.subr.bf16.mxu0 0
        %2997 = vmatpush1.bf16.msra.mxu0 0
        %2998 = vmatprep.subr.bf16.mxu0 0
        %2999 = vmatpush1.bf16.msra.mxu0 0
        %3000 = vmatprep.subr.bf16.mxu0 0
        %3001 = vmatpush1.bf16.msra.mxu0 0
        %3002 = vmatprep.subr.bf16.mxu0 0
        %3003 = vmatpush1.bf16.msra.mxu0 0
        %3004 = vmatprep.subr.bf16.mxu0 0
        %3005 = vmatpush1.bf16.msra.mxu0 0
        %3006 = vmatprep.subr.bf16.mxu0 0
        %3007 = vmatpush1.bf16.msra.mxu0 0
        %3008 = vmatprep.subr.bf16.mxu0 0
        %3009 = vmatpush1.bf16.msra.mxu0 0
        %3010 = vmatprep.subr.bf16.mxu0 0
        %3011 = vmatpush1.bf16.msra.mxu0 0
        %3012 = vmatprep.subr.bf16.mxu0 0
        %3013 = vmatpush1.bf16.msra.mxu0 0
        %3014 = vmatprep.subr.bf16.mxu0 0
        %3015 = vmatpush1.bf16.msra.mxu0 0
        %3016 = vmatprep.subr.bf16.mxu0 0
        %3017 = vmatpush1.bf16.msra.mxu0 0
        %3018 = vmatprep.subr.bf16.mxu0 0
        %3019 = vmatpush1.bf16.msra.mxu0 0
        %3020 = vmatprep.subr.bf16.mxu0 0
        %3021 = vmatpush1.bf16.msra.mxu0 0
        %3022 = vmatprep.subr.bf16.mxu0 0
        %3023 = vmatpush1.bf16.msra.mxu0 0
        %3024 = vmatprep.mubr.bf16.mxu0 0
        %3025 = vmatmul.mubr.bf16.gmra.mrb[0].mxu0 %v1631
        %v3026 = vpop.f32.mrb[0].mxu0
        %v3027 = vadd.f32 0.0, %v3026
        %v3028 = vpop.f32.mrb[0].mxu0
        %v3029 = vadd.f32 0.0, %v3028
        %v3030 = vpop.f32.mrb[0].mxu0
        %v3031 = vadd.f32 0.0, %v3030
        %v3032 = vpop.f32.mrb[0].mxu0
        %v3033 = vadd.f32 0.0, %v3032
        %3034 = vmatprep.mubr.bf16.mxu0 0
        %3035 = vmatmul.mubr.bf16.gmra.mrb[0].mxu0 %v1634
        %v3036 = vpop.f32.mrb[0].mxu0
        %v3037 = vadd.f32 0.0, %v3036
        %v3038 = vpop.f32.mrb[0].mxu0
        %v3039 = vadd.f32 0.0, %v3038
        %v3040 = vpop.f32.mrb[0].mxu0
        %v3041 = vadd.f32 0.0, %v3040
        %v3042 = vpop.f32.mrb[0].mxu0
        %v3043 = vadd.f32 0.0, %v3042
        %3044 = vmatprep.mubr.bf16.mxu0 0
        %3045 = vmatmul.mubr.bf16.gmra.mrb[0].mxu0 %v1637
        %v3046 = vpop.f32.mrb[0].mxu0
        %v3047 = vadd.f32 0.0, %v3046
        %v3048 = vpop.f32.mrb[0].mxu0
        %v3049 = vadd.f32 0.0, %v3048
        %v3050 = vpop.f32.mrb[0].mxu0
        %v3051 = vadd.f32 0.0, %v3050
        %v3052 = vpop.f32.mrb[0].mxu0
        %v3053 = vadd.f32 0.0, %v3052
        %3054 = vmatprep.mubr.bf16.mxu0 0
        %3055 = vmatmul.mubr.bf16.gmra.mrb[0].mxu0 %v1640
        %v3056 = vpop.f32.mrb[0].mxu0
        %v3057 = vadd.f32 0.0, %v3056
        %v3058 = vpop.f32.mrb[0].mxu0
        %v3059 = vadd.f32 0.0, %v3058
        %v3060 = vpop.f32.mrb[0].mxu0
        %v3061 = vadd.f32 0.0, %v3060
        %v3062 = vpop.f32.mrb[0].mxu0
        %v3063 = vadd.f32 0.0, %v3062
        %3064 = vmatprep.mubr.bf16.mxu0 0
        %3065 = vmatmul.mubr.bf16.gmra.mrb[0].mxu0 %v1643
        %v3066 = vpop.f32.mrb[0].mxu0
        %v3067 = vadd.f32 0.0, %v3066
        %v3068 = vpop.f32.mrb[0].mxu0
        %v3069 = vadd.f32 0.0, %v3068
        %v3070 = vpop.f32.mrb[0].mxu0
        %v3071 = vadd.f32 0.0, %v3070
        %v3072 = vpop.f32.mrb[0].mxu0
        %v3073 = vadd.f32 0.0, %v3072
        %3074 = vmatprep.mubr.bf16.mxu0 0
        %3075 = vmatmul.mubr.bf16.gmra.mrb[0].mxu0 %v1646
        %v3076 = vpop.f32.mrb[0].mxu0
        %v3077 = vadd.f32 0.0, %v3076
        %v3078 = vpop.f32.mrb[0].mxu0
        %v3079 = vadd.f32 0.0, %v3078
        %v3080 = vpop.f32.mrb[0].mxu0
        %v3081 = vadd.f32 0.0, %v3080
        %v3082 = vpop.f32.mrb[0].mxu0
        %v3083 = vadd.f32 0.0, %v3082
        %3084 = vdwg.mxu0
        %3085 = vmatprep.subr.bf16.mxu0 %v877
        %3086 = vmatpush1.bf16.msra.mxu0 %v876
        %3087 = vmatprep.subr.bf16.mxu0 %v926
        %3088 = vmatpush1.bf16.msra.mxu0 %v923
        %3089 = vmatprep.subr.bf16.mxu0 0
        %3090 = vmatpush1.bf16.msra.mxu0 0
        %3091 = vmatprep.subr.bf16.mxu0 0
        %3092 = vmatpush1.bf16.msra.mxu0 0
        %3093 = vmatprep.subr.bf16.mxu0 0
        %3094 = vmatpush1.bf16.msra.mxu0 0
        %3095 = vmatprep.subr.bf16.mxu0 0
        %3096 = vmatpush1.bf16.msra.mxu0 0
        %3097 = vmatprep.subr.bf16.mxu0 0
        %3098 = vmatpush1.bf16.msra.mxu0 0
        %3099 = vmatprep.subr.bf16.mxu0 0
        %3100 = vmatpush1.bf16.msra.mxu0 0
        %3101 = vmatprep.subr.bf16.mxu0 0
        %3102 = vmatpush1.bf16.msra.mxu0 0
        %3103 = vmatprep.subr.bf16.mxu0 0
        %3104 = vmatpush1.bf16.msra.mxu0 0
        %3105 = vmatprep.subr.bf16.mxu0 0
        %3106 = vmatpush1.bf16.msra.mxu0 0
        %3107 = vmatprep.subr.bf16.mxu0 0
        %3108 = vmatpush1.bf16.msra.mxu0 0
        %3109 = vmatprep.subr.bf16.mxu0 0
        %3110 = vmatpush1.bf16.msra.mxu0 0
        %3111 = vmatprep.subr.bf16.mxu0 0
        %3112 = vmatpush1.bf16.msra.mxu0 0
        %3113 = vmatprep.subr.bf16.mxu0 0
        %3114 = vmatpush1.bf16.msra.mxu0 0
        %3115 = vmatprep.subr.bf16.mxu0 0
        %3116 = vmatpush1.bf16.msra.mxu0 0
        %3117 = vmatprep.mubr.bf16.mxu0 0
        %3118 = vmatmul.mubr.bf16.gmra.mrb[0].mxu0 %v1631
        %v3119 = vpop.f32.mrb[0].mxu0
        %v3120 = vadd.f32 0.0, %v3119
        %v3121 = vpop.f32.mrb[0].mxu0
        %v3122 = vadd.f32 0.0, %v3121
        %v3123 = vpop.f32.mrb[0].mxu0
        %v3124 = vadd.f32 0.0, %v3123
        %v3125 = vpop.f32.mrb[0].mxu0
        %v3126 = vadd.f32 0.0, %v3125
        %3127 = vmatprep.mubr.bf16.mxu0 0
        %3128 = vmatmul.mubr.bf16.gmra.mrb[0].mxu0 %v1634
        %v3129 = vpop.f32.mrb[0].mxu0
        %v3130 = vadd.f32 0.0, %v3129
        %v3131 = vpop.f32.mrb[0].mxu0
        %v3132 = vadd.f32 0.0, %v3131
        %v3133 = vpop.f32.mrb[0].mxu0
        %v3134 = vadd.f32 0.0, %v3133
        %v3135 = vpop.f32.mrb[0].mxu0
        %v3136 = vadd.f32 0.0, %v3135
        %3137 = vmatprep.mubr.bf16.mxu0 0
        %3138 = vmatmul.mubr.bf16.gmra.mrb[0].mxu0 %v1637
        %v3139 = vpop.f32.mrb[0].mxu0
        %v3140 = vadd.f32 0.0, %v3139
        %v3141 = vpop.f32.mrb[0].mxu0
        %v3142 = vadd.f32 0.0, %v3141
        %v3143 = vpop.f32.mrb[0].mxu0
        %v3144 = vadd.f32 0.0, %v3143
        %v3145 = vpop.f32.mrb[0].mxu0
        %v3146 = vadd.f32 0.0, %v3145
        %3147 = vmatprep.mubr.bf16.mxu0 0
        %3148 = vmatmul.mubr.bf16.gmra.mrb[0].mxu0 %v1640
        %v3149 = vpop.f32.mrb[0].mxu0
        %v3150 = vadd.f32 0.0, %v3149
        %v3151 = vpop.f32.mrb[0].mxu0
        %v3152 = vadd.f32 0.0, %v3151
        %v3153 = vpop.f32.mrb[0].mxu0
        %v3154 = vadd.f32 0.0, %v3153
        %v3155 = vpop.f32.mrb[0].mxu0
        %v3156 = vadd.f32 0.0, %v3155
        %3157 = vmatprep.mubr.bf16.mxu0 0
        %3158 = vmatmul.mubr.bf16.gmra.mrb[0].mxu0 %v1643
        %v3159 = vpop.f32.mrb[0].mxu0
        %v3160 = vadd.f32 0.0, %v3159
        %v3161 = vpop.f32.mrb[0].mxu0
        %v3162 = vadd.f32 0.0, %v3161
        %v3163 = vpop.f32.mrb[0].mxu0
        %v3164 = vadd.f32 0.0, %v3163
        %v3165 = vpop.f32.mrb[0].mxu0
        %v3166 = vadd.f32 0.0, %v3165
        %3167 = vmatprep.mubr.bf16.mxu0 0
        %3168 = vmatmul.mubr.bf16.gmra.mrb[0].mxu0 %v1646
        %v3169 = vpop.f32.mrb[0].mxu0
        %v3170 = vadd.f32 0.0, %v3169
        %v3171 = vpop.f32.mrb[0].mxu0
        %v3172 = vadd.f32 0.0, %v3171
        %v3173 = vpop.f32.mrb[0].mxu0
        %v3174 = vadd.f32 0.0, %v3173
        %v3175 = vpop.f32.mrb[0].mxu0
        %v3176 = vadd.f32 0.0, %v3175
        %3177 = vdwg.mxu0
        %3178 = vmatprep.subr.bf16.mxu0 %v1244
        %3179 = vmatpush1.bf16.msra.mxu0 %v1243
        %3180 = vmatprep.subr.bf16.mxu0 %v1283
        %3181 = vmatpush1.bf16.msra.mxu0 %v1280
        %3182 = vmatprep.subr.bf16.mxu0 0
        %3183 = vmatpush1.bf16.msra.mxu0 0
        %3184 = vmatprep.subr.bf16.mxu0 0
        %3185 = vmatpush1.bf16.msra.mxu0 0
        %3186 = vmatprep.subr.bf16.mxu0 0
        %3187 = vmatpush1.bf16.msra.mxu0 0
        %3188 = vmatprep.subr.bf16.mxu0 0
        %3189 = vmatpush1.bf16.msra.mxu0 0
        %3190 = vmatprep.subr.bf16.mxu0 0
        %3191 = vmatpush1.bf16.msra.mxu0 0
        %3192 = vmatprep.subr.bf16.mxu0 0
        %3193 = vmatpush1.bf16.msra.mxu0 0
        %3194 = vmatprep.subr.bf16.mxu0 0
        %3195 = vmatpush1.bf16.msra.mxu0 0
        %3196 = vmatprep.subr.bf16.mxu0 0
        %3197 = vmatpush1.bf16.msra.mxu0 0
        %3198 = vmatprep.subr.bf16.mxu0 0
        %3199 = vmatpush1.bf16.msra.mxu0 0
        %3200 = vmatprep.subr.bf16.mxu0 0
        %3201 = vmatpush1.bf16.msra.mxu0 0
        %3202 = vmatprep.subr.bf16.mxu0 0
        %3203 = vmatpush1.bf16.msra.mxu0 0
        %3204 = vmatprep.subr.bf16.mxu0 0
        %3205 = vmatpush1.bf16.msra.mxu0 0
        %3206 = vmatprep.subr.bf16.mxu0 0
        %3207 = vmatpush1.bf16.msra.mxu0 0
        %3208 = vmatprep.subr.bf16.mxu0 0
        %3209 = vmatpush1.bf16.msra.mxu0 0
        %3210 = vmatprep.mubr.bf16.mxu0 0
        %3211 = vmatmul.mubr.bf16.gmra.mrb[0].mxu0 %v892
        %v3212 = vpop.f32.mrb[0].mxu0
        %v3213 = vadd.f32 %v2934, %v3212
        %v3214 = vpop.f32.mrb[0].mxu0
        %v3215 = vadd.f32 %v2936, %v3214
        %v3216 = vpop.f32.mrb[0].mxu0
        %v3217 = vadd.f32 %v2938, %v3216
        %v3218 = vpop.f32.mrb[0].mxu0
        %v3219 = vadd.f32 %v2940, %v3218
        %3220 = vmatprep.mubr.bf16.mxu0 0
        %3221 = vmatmul.mubr.bf16.gmra.mrb[0].mxu0 %v895
        %v3222 = vpop.f32.mrb[0].mxu0
        %v3223 = vadd.f32 %v2944, %v3222
        %v3224 = vpop.f32.mrb[0].mxu0
        %v3225 = vadd.f32 %v2946, %v3224
        %v3226 = vpop.f32.mrb[0].mxu0
        %v3227 = vadd.f32 %v2948, %v3226
        %v3228 = vpop.f32.mrb[0].mxu0
        %v3229 = vadd.f32 %v2950, %v3228
        %3230 = vmatprep.mubr.bf16.mxu0 0
        %3231 = vmatmul.mubr.bf16.gmra.mrb[0].mxu0 %v898
        %v3232 = vpop.f32.mrb[0].mxu0
        %v3233 = vadd.f32 %v2954, %v3232
        %v3234 = vpop.f32.mrb[0].mxu0
        %v3235 = vadd.f32 %v2956, %v3234
        %v3236 = vpop.f32.mrb[0].mxu0
        %v3237 = vadd.f32 %v2958, %v3236
        %v3238 = vpop.f32.mrb[0].mxu0
        %v3239 = vadd.f32 %v2960, %v3238
        %3240 = vmatprep.mubr.bf16.mxu0 0
        %3241 = vmatmul.mubr.bf16.gmra.mrb[0].mxu0 %v901
        %v3242 = vpop.f32.mrb[0].mxu0
        %v3243 = vadd.f32 %v2964, %v3242
        %v3244 = vpop.f32.mrb[0].mxu0
        %v3245 = vadd.f32 %v2966, %v3244
        %v3246 = vpop.f32.mrb[0].mxu0
        %v3247 = vadd.f32 %v2968, %v3246
        %v3248 = vpop.f32.mrb[0].mxu0
        %v3249 = vadd.f32 %v2970, %v3248
        %3250 = vmatprep.mubr.bf16.mxu0 0
        %3251 = vmatmul.mubr.bf16.gmra.mrb[0].mxu0 %v904
        %v3252 = vpop.f32.mrb[0].mxu0
        %v3253 = vadd.f32 %v2974, %v3252
        %v3254 = vpop.f32.mrb[0].mxu0
        %v3255 = vadd.f32 %v2976, %v3254
        %v3256 = vpop.f32.mrb[0].mxu0
        %v3257 = vadd.f32 %v2978, %v3256
        %v3258 = vpop.f32.mrb[0].mxu0
        %v3259 = vadd.f32 %v2980, %v3258
        %3260 = vmatprep.mubr.bf16.mxu0 0
        %3261 = vmatmul.mubr.bf16.gmra.mrb[0].mxu0 %v907
        %v3262 = vpop.f32.mrb[0].mxu0
        %v3263 = vadd.f32 %v2984, %v3262
        %v3264 = vpop.f32.mrb[0].mxu0
        %v3265 = vadd.f32 %v2986, %v3264
        %v3266 = vpop.f32.mrb[0].mxu0
        %v3267 = vadd.f32 %v2988, %v3266
        %v3268 = vpop.f32.mrb[0].mxu0
        %v3269 = vadd.f32 %v2990, %v3268
        %3270 = vdwg.mxu0
        %3271 = vmatprep.subr.bf16.mxu0 %v1246
        %3272 = vmatpush1.bf16.msra.mxu0 %v1245
        %3273 = vmatprep.subr.bf16.mxu0 %v1289
        %3274 = vmatpush1.bf16.msra.mxu0 %v1286
        %3275 = vmatprep.subr.bf16.mxu0 0
        %3276 = vmatpush1.bf16.msra.mxu0 0
        %3277 = vmatprep.subr.bf16.mxu0 0
        %3278 = vmatpush1.bf16.msra.mxu0 0
        %3279 = vmatprep.subr.bf16.mxu0 0
        %3280 = vmatpush1.bf16.msra.mxu0 0
        %3281 = vmatprep.subr.bf16.mxu0 0
        %3282 = vmatpush1.bf16.msra.mxu0 0
        %3283 = vmatprep.subr.bf16.mxu0 0
        %3284 = vmatpush1.bf16.msra.mxu0 0
        %3285 = vmatprep.subr.bf16.mxu0 0
        %3286 = vmatpush1.bf16.msra.mxu0 0
        %3287 = vmatprep.subr.bf16.mxu0 0
        %3288 = vmatpush1.bf16.msra.mxu0 0
        %3289 = vmatprep.subr.bf16.mxu0 0
        %3290 = vmatpush1.bf16.msra.mxu0 0
        %3291 = vmatprep.subr.bf16.mxu0 0
        %3292 = vmatpush1.bf16.msra.mxu0 0
        %3293 = vmatprep.subr.bf16.mxu0 0
        %3294 = vmatpush1.bf16.msra.mxu0 0
        %3295 = vmatprep.subr.bf16.mxu0 0
        %3296 = vmatpush1.bf16.msra.mxu0 0
        %3297 = vmatprep.subr.bf16.mxu0 0
        %3298 = vmatpush1.bf16.msra.mxu0 0
        %3299 = vmatprep.subr.bf16.mxu0 0
        %3300 = vmatpush1.bf16.msra.mxu0 0
        %3301 = vmatprep.subr.bf16.mxu0 0
        %3302 = vmatpush1.bf16.msra.mxu0 0
        %3303 = vmatprep.mubr.bf16.mxu0 0
        %3304 = vmatmul.mubr.bf16.gmra.mrb[0].mxu0 %v892
        %v3305 = vpop.f32.mrb[0].mxu0
        %v3306 = vadd.f32 %v3027, %v3305
        %v3307 = vpop.f32.mrb[0].mxu0
        %v3308 = vadd.f32 %v3029, %v3307
        %v3309 = vpop.f32.mrb[0].mxu0
        %v3310 = vadd.f32 %v3031, %v3309
        %v3311 = vpop.f32.mrb[0].mxu0
        %v3312 = vadd.f32 %v3033, %v3311
        %3313 = vmatprep.mubr.bf16.mxu0 0
        %3314 = vmatmul.mubr.bf16.gmra.mrb[0].mxu0 %v895
        %v3315 = vpop.f32.mrb[0].mxu0
        %v3316 = vadd.f32 %v3037, %v3315
        %v3317 = vpop.f32.mrb[0].mxu0
        %v3318 = vadd.f32 %v3039, %v3317
        %v3319 = vpop.f32.mrb[0].mxu0
        %v3320 = vadd.f32 %v3041, %v3319
        %v3321 = vpop.f32.mrb[0].mxu0
        %v3322 = vadd.f32 %v3043, %v3321
        %3323 = vmatprep.mubr.bf16.mxu0 0
        %3324 = vmatmul.mubr.bf16.gmra.mrb[0].mxu0 %v898
        %v3325 = vpop.f32.mrb[0].mxu0
        %v3326 = vadd.f32 %v3047, %v3325
        %v3327 = vpop.f32.mrb[0].mxu0
        %v3328 = vadd.f32 %v3049, %v3327
        %v3329 = vpop.f32.mrb[0].mxu0
        %v3330 = vadd.f32 %v3051, %v3329
        %v3331 = vpop.f32.mrb[0].mxu0
        %v3332 = vadd.f32 %v3053, %v3331
        %3333 = vmatprep.mubr.bf16.mxu0 0
        %3334 = vmatmul.mubr.bf16.gmra.mrb[0].mxu0 %v901
        %v3335 = vpop.f32.mrb[0].mxu0
        %v3336 = vadd.f32 %v3057, %v3335
        %v3337 = vpop.f32.mrb[0].mxu0
        %v3338 = vadd.f32 %v3059, %v3337
        %v3339 = vpop.f32.mrb[0].mxu0
        %v3340 = vadd.f32 %v3061, %v3339
        %v3341 = vpop.f32.mrb[0].mxu0
        %v3342 = vadd.f32 %v3063, %v3341
        %3343 = vmatprep.mubr.bf16.mxu0 0
        %3344 = vmatmul.mubr.bf16.gmra.mrb[0].mxu0 %v904
        %v3345 = vpop.f32.mrb[0].mxu0
        %v3346 = vadd.f32 %v3067, %v3345
        %v3347 = vpop.f32.mrb[0].mxu0
        %v3348 = vadd.f32 %v3069, %v3347
        %v3349 = vpop.f32.mrb[0].mxu0
        %v3350 = vadd.f32 %v3071, %v3349
        %v3351 = vpop.f32.mrb[0].mxu0
        %v3352 = vadd.f32 %v3073, %v3351
        %3353 = vmatprep.mubr.bf16.mxu0 0
        %3354 = vmatmul.mubr.bf16.gmra.mrb[0].mxu0 %v907
        %v3355 = vpop.f32.mrb[0].mxu0
        %v3356 = vadd.f32 %v3077, %v3355
        %v3357 = vpop.f32.mrb[0].mxu0
        %v3358 = vadd.f32 %v3079, %v3357
        %v3359 = vpop.f32.mrb[0].mxu0
        %v3360 = vadd.f32 %v3081, %v3359
        %v3361 = vpop.f32.mrb[0].mxu0
        %v3362 = vadd.f32 %v3083, %v3361
        %3363 = vdwg.mxu0
        %3364 = vmatprep.subr.bf16.mxu0 %v1248
        %3365 = vmatpush1.bf16.msra.mxu0 %v1247
        %3366 = vmatprep.subr.bf16.mxu0 %v1295
        %3367 = vmatpush1.bf16.msra.mxu0 %v1292
        %3368 = vmatprep.subr.bf16.mxu0 0
        %3369 = vmatpush1.bf16.msra.mxu0 0
        %3370 = vmatprep.subr.bf16.mxu0 0
        %3371 = vmatpush1.bf16.msra.mxu0 0
        %3372 = vmatprep.subr.bf16.mxu0 0
        %3373 = vmatpush1.bf16.msra.mxu0 0
        %3374 = vmatprep.subr.bf16.mxu0 0
        %3375 = vmatpush1.bf16.msra.mxu0 0
        %3376 = vmatprep.subr.bf16.mxu0 0
        %3377 = vmatpush1.bf16.msra.mxu0 0
        %3378 = vmatprep.subr.bf16.mxu0 0
        %3379 = vmatpush1.bf16.msra.mxu0 0
        %3380 = vmatprep.subr.bf16.mxu0 0
        %3381 = vmatpush1.bf16.msra.mxu0 0
        %3382 = vmatprep.subr.bf16.mxu0 0
        %3383 = vmatpush1.bf16.msra.mxu0 0
        %3384 = vmatprep.subr.bf16.mxu0 0
        %3385 = vmatpush1.bf16.msra.mxu0 0
        %3386 = vmatprep.subr.bf16.mxu0 0
        %3387 = vmatpush1.bf16.msra.mxu0 0
        %3388 = vmatprep.subr.bf16.mxu0 0
        %3389 = vmatpush1.bf16.msra.mxu0 0
        %3390 = vmatprep.subr.bf16.mxu0 0
        %3391 = vmatpush1.bf16.msra.mxu0 0
        %3392 = vmatprep.subr.bf16.mxu0 0
        %3393 = vmatpush1.bf16.msra.mxu0 0
        %3394 = vmatprep.subr.bf16.mxu0 0
        %3395 = vmatpush1.bf16.msra.mxu0 0
        %3396 = vmatprep.mubr.bf16.mxu0 0
        %3397 = vmatmul.mubr.bf16.gmra.mrb[0].mxu0 %v892
        %v3398 = vpop.f32.mrb[0].mxu0
        %v3399 = vadd.f32 %v3120, %v3398
        %v3400 = vpop.f32.mrb[0].mxu0
        %v3401 = vadd.f32 %v3122, %v3400
        %v3402 = vpop.f32.mrb[0].mxu0
        %v3403 = vadd.f32 %v3124, %v3402
        %v3404 = vpop.f32.mrb[0].mxu0
        %v3405 = vadd.f32 %v3126, %v3404
        %3406 = vmatprep.mubr.bf16.mxu0 0
        %3407 = vmatmul.mubr.bf16.gmra.mrb[0].mxu0 %v895
        %v3408 = vpop.f32.mrb[0].mxu0
        %v3409 = vadd.f32 %v3130, %v3408
        %v3410 = vpop.f32.mrb[0].mxu0
        %v3411 = vadd.f32 %v3132, %v3410
        %v3412 = vpop.f32.mrb[0].mxu0
        %v3413 = vadd.f32 %v3134, %v3412
        %v3414 = vpop.f32.mrb[0].mxu0
        %v3415 = vadd.f32 %v3136, %v3414
        %3416 = vmatprep.mubr.bf16.mxu0 0
        %3417 = vmatmul.mubr.bf16.gmra.mrb[0].mxu0 %v898
        %v3418 = vpop.f32.mrb[0].mxu0
        %v3419 = vadd.f32 %v3140, %v3418
        %v3420 = vpop.f32.mrb[0].mxu0
        %v3421 = vadd.f32 %v3142, %v3420
        %v3422 = vpop.f32.mrb[0].mxu0
        %v3423 = vadd.f32 %v3144, %v3422
        %v3424 = vpop.f32.mrb[0].mxu0
        %v3425 = vadd.f32 %v3146, %v3424
        %3426 = vmatprep.mubr.bf16.mxu0 0
        %3427 = vmatmul.mubr.bf16.gmra.mrb[0].mxu0 %v901
        %v3428 = vpop.f32.mrb[0].mxu0
        %v3429 = vadd.f32 %v3150, %v3428
        %v3430 = vpop.f32.mrb[0].mxu0
        %v3431 = vadd.f32 %v3152, %v3430
        %v3432 = vpop.f32.mrb[0].mxu0
        %v3433 = vadd.f32 %v3154, %v3432
        %v3434 = vpop.f32.mrb[0].mxu0
        %v3435 = vadd.f32 %v3156, %v3434
        %3436 = vmatprep.mubr.bf16.mxu0 0
        %3437 = vmatmul.mubr.bf16.gmra.mrb[0].mxu0 %v904
        %v3438 = vpop.f32.mrb[0].mxu0
        %v3439 = vadd.f32 %v3160, %v3438
        %v3440 = vpop.f32.mrb[0].mxu0
        %v3441 = vadd.f32 %v3162, %v3440
        %v3442 = vpop.f32.mrb[0].mxu0
        %v3443 = vadd.f32 %v3164, %v3442
        %v3444 = vpop.f32.mrb[0].mxu0
        %v3445 = vadd.f32 %v3166, %v3444
        %3446 = vmatprep.mubr.bf16.mxu0 0
        %3447 = vmatmul.mubr.bf16.gmra.mrb[0].mxu0 %v907
        %v3448 = vpop.f32.mrb[0].mxu0
        %v3449 = vadd.f32 %v3170, %v3448
        %v3450 = vpop.f32.mrb[0].mxu0
        %v3451 = vadd.f32 %v3172, %v3450
        %v3452 = vpop.f32.mrb[0].mxu0
        %v3453 = vadd.f32 %v3174, %v3452
        %v3454 = vpop.f32.mrb[0].mxu0
        %v3455 = vadd.f32 %v3176, %v3454
        %3456 = vdwg.mxu0
        %3457 = vmatprep.subr.bf16.mxu0 %v1613
        %3458 = vmatpush1.bf16.msra.mxu0 %v1612
        %3459 = vmatprep.subr.bf16.mxu0 %v1652
        %3460 = vmatpush1.bf16.msra.mxu0 %v1649
        %3461 = vmatprep.subr.bf16.mxu0 0
        %3462 = vmatpush1.bf16.msra.mxu0 0
        %3463 = vmatprep.subr.bf16.mxu0 0
        %3464 = vmatpush1.bf16.msra.mxu0 0
        %3465 = vmatprep.subr.bf16.mxu0 0
        %3466 = vmatpush1.bf16.msra.mxu0 0
        %3467 = vmatprep.subr.bf16.mxu0 0
        %3468 = vmatpush1.bf16.msra.mxu0 0
        %3469 = vmatprep.subr.bf16.mxu0 0
        %3470 = vmatpush1.bf16.msra.mxu0 0
        %3471 = vmatprep.subr.bf16.mxu0 0
        %3472 = vmatpush1.bf16.msra.mxu0 0
        %3473 = vmatprep.subr.bf16.mxu0 0
        %3474 = vmatpush1.bf16.msra.mxu0 0
        %3475 = vmatprep.subr.bf16.mxu0 0
        %3476 = vmatpush1.bf16.msra.mxu0 0
        %3477 = vmatprep.subr.bf16.mxu0 0
        %3478 = vmatpush1.bf16.msra.mxu0 0
        %3479 = vmatprep.subr.bf16.mxu0 0
        %3480 = vmatpush1.bf16.msra.mxu0 0
        %3481 = vmatprep.subr.bf16.mxu0 0
        %3482 = vmatpush1.bf16.msra.mxu0 0
        %3483 = vmatprep.subr.bf16.mxu0 0
        %3484 = vmatpush1.bf16.msra.mxu0 0
        %3485 = vmatprep.subr.bf16.mxu0 0
        %3486 = vmatpush1.bf16.msra.mxu0 0
        %3487 = vmatprep.subr.bf16.mxu0 0
        %3488 = vmatpush1.bf16.msra.mxu0 0
        %3489 = vmatprep.mubr.bf16.mxu0 0
        %3490 = vmatmul.mubr.bf16.gmra.mrb[0].mxu0 %v2072
        %v3491 = vpop.f32.mrb[0].mxu0
        %v3492 = vadd.f32 0.0, %v3491
        %v3493 = vpop.f32.mrb[0].mxu0
        %v3494 = vadd.f32 0.0, %v3493
        %v3495 = vpop.f32.mrb[0].mxu0
        %v3496 = vadd.f32 0.0, %v3495
        %v3497 = vpop.f32.mrb[0].mxu0
        %v3498 = vadd.f32 0.0, %v3497
        %3499 = vmatprep.mubr.bf16.mxu0 0
        %3500 = vmatmul.mubr.bf16.gmra.mrb[0].mxu0 %v2075
        %v3501 = vpop.f32.mrb[0].mxu0
        %v3502 = vadd.f32 0.0, %v3501
        %v3503 = vpop.f32.mrb[0].mxu0
        %v3504 = vadd.f32 0.0, %v3503
        %v3505 = vpop.f32.mrb[0].mxu0
        %v3506 = vadd.f32 0.0, %v3505
        %v3507 = vpop.f32.mrb[0].mxu0
        %v3508 = vadd.f32 0.0, %v3507
        %3509 = vmatprep.mubr.bf16.mxu0 0
        %3510 = vmatmul.mubr.bf16.gmra.mrb[0].mxu0 %v2078
        %v3511 = vpop.f32.mrb[0].mxu0
        %v3512 = vadd.f32 0.0, %v3511
        %v3513 = vpop.f32.mrb[0].mxu0
        %v3514 = vadd.f32 0.0, %v3513
        %v3515 = vpop.f32.mrb[0].mxu0
        %v3516 = vadd.f32 0.0, %v3515
        %v3517 = vpop.f32.mrb[0].mxu0
        %v3518 = vadd.f32 0.0, %v3517
        %3519 = vmatprep.mubr.bf16.mxu0 0
        %3520 = vmatmul.mubr.bf16.gmra.mrb[0].mxu0 %v2081
        %v3521 = vpop.f32.mrb[0].mxu0
        %v3522 = vadd.f32 0.0, %v3521
        %v3523 = vpop.f32.mrb[0].mxu0
        %v3524 = vadd.f32 0.0, %v3523
        %v3525 = vpop.f32.mrb[0].mxu0
        %v3526 = vadd.f32 0.0, %v3525
        %v3527 = vpop.f32.mrb[0].mxu0
        %v3528 = vadd.f32 0.0, %v3527
        %3529 = vmatprep.mubr.bf16.mxu0 0
        %3530 = vmatmul.mubr.bf16.gmra.mrb[0].mxu0 %v2084
        %v3531 = vpop.f32.mrb[0].mxu0
        %v3532 = vadd.f32 0.0, %v3531
        %v3533 = vpop.f32.mrb[0].mxu0
        %v3534 = vadd.f32 0.0, %v3533
        %v3535 = vpop.f32.mrb[0].mxu0
        %v3536 = vadd.f32 0.0, %v3535
        %v3537 = vpop.f32.mrb[0].mxu0
        %v3538 = vadd.f32 0.0, %v3537
        %3539 = vmatprep.mubr.bf16.mxu0 0
        %3540 = vmatmul.mubr.bf16.gmra.mrb[0].mxu0 %v2087
        %v3541 = vpop.f32.mrb[0].mxu0
        %v3542 = vadd.f32 0.0, %v3541
        %v3543 = vpop.f32.mrb[0].mxu0
        %v3544 = vadd.f32 0.0, %v3543
        %v3545 = vpop.f32.mrb[0].mxu0
        %v3546 = vadd.f32 0.0, %v3545
        %v3547 = vpop.f32.mrb[0].mxu0
        %v3548 = vadd.f32 0.0, %v3547
        %3549 = vdwg.mxu0
        %3550 = vmatprep.subr.bf16.mxu0 %v1615
        %3551 = vmatpush1.bf16.msra.mxu0 %v1614
        %3552 = vmatprep.subr.bf16.mxu0 %v1658
        %3553 = vmatpush1.bf16.msra.mxu0 %v1655
        %3554 = vmatprep.subr.bf16.mxu0 0
        %3555 = vmatpush1.bf16.msra.mxu0 0
        %3556 = vmatprep.subr.bf16.mxu0 0
        %3557 = vmatpush1.bf16.msra.mxu0 0
        %3558 = vmatprep.subr.bf16.mxu0 0
        %3559 = vmatpush1.bf16.msra.mxu0 0
        %3560 = vmatprep.subr.bf16.mxu0 0
        %3561 = vmatpush1.bf16.msra.mxu0 0
        %3562 = vmatprep.subr.bf16.mxu0 0
        %3563 = vmatpush1.bf16.msra.mxu0 0
        %3564 = vmatprep.subr.bf16.mxu0 0
        %3565 = vmatpush1.bf16.msra.mxu0 0
        %3566 = vmatprep.subr.bf16.mxu0 0
        %3567 = vmatpush1.bf16.msra.mxu0 0
        %3568 = vmatprep.subr.bf16.mxu0 0
        %3569 = vmatpush1.bf16.msra.mxu0 0
        %3570 = vmatprep.subr.bf16.mxu0 0
        %3571 = vmatpush1.bf16.msra.mxu0 0
        %3572 = vmatprep.subr.bf16.mxu0 0
        %3573 = vmatpush1.bf16.msra.mxu0 0
        %3574 = vmatprep.subr.bf16.mxu0 0
        %3575 = vmatpush1.bf16.msra.mxu0 0
        %3576 = vmatprep.subr.bf16.mxu0 0
        %3577 = vmatpush1.bf16.msra.mxu0 0
        %3578 = vmatprep.subr.bf16.mxu0 0
        %3579 = vmatpush1.bf16.msra.mxu0 0
        %3580 = vmatprep.subr.bf16.mxu0 0
        %3581 = vmatpush1.bf16.msra.mxu0 0
        %3582 = vmatprep.mubr.bf16.mxu0 0
        %3583 = vmatmul.mubr.bf16.gmra.mrb[0].mxu0 %v2072
        %v3584 = vpop.f32.mrb[0].mxu0
        %v3585 = vadd.f32 0.0, %v3584
        %v3586 = vpop.f32.mrb[0].mxu0
        %v3587 = vadd.f32 0.0, %v3586
        %v3588 = vpop.f32.mrb[0].mxu0
        %v3589 = vadd.f32 0.0, %v3588
        %v3590 = vpop.f32.mrb[0].mxu0
        %v3591 = vadd.f32 0.0, %v3590
        %3592 = vmatprep.mubr.bf16.mxu0 0
        %3593 = vmatmul.mubr.bf16.gmra.mrb[0].mxu0 %v2075
        %v3594 = vpop.f32.mrb[0].mxu0
        %v3595 = vadd.f32 0.0, %v3594
        %v3596 = vpop.f32.mrb[0].mxu0
        %v3597 = vadd.f32 0.0, %v3596
        %v3598 = vpop.f32.mrb[0].mxu0
        %v3599 = vadd.f32 0.0, %v3598
        %v3600 = vpop.f32.mrb[0].mxu0
        %v3601 = vadd.f32 0.0, %v3600
        %3602 = vmatprep.mubr.bf16.mxu0 0
        %3603 = vmatmul.mubr.bf16.gmra.mrb[0].mxu0 %v2078
        %v3604 = vpop.f32.mrb[0].mxu0
        %v3605 = vadd.f32 0.0, %v3604
        %v3606 = vpop.f32.mrb[0].mxu0
        %v3607 = vadd.f32 0.0, %v3606
        %v3608 = vpop.f32.mrb[0].mxu0
        %v3609 = vadd.f32 0.0, %v3608
        %v3610 = vpop.f32.mrb[0].mxu0
        %v3611 = vadd.f32 0.0, %v3610
        %3612 = vmatprep.mubr.bf16.mxu0 0
        %3613 = vmatmul.mubr.bf16.gmra.mrb[0].mxu0 %v2081
        %v3614 = vpop.f32.mrb[0].mxu0
        %v3615 = vadd.f32 0.0, %v3614
        %v3616 = vpop.f32.mrb[0].mxu0
        %v3617 = vadd.f32 0.0, %v3616
        %v3618 = vpop.f32.mrb[0].mxu0
        %v3619 = vadd.f32 0.0, %v3618
        %v3620 = vpop.f32.mrb[0].mxu0
        %v3621 = vadd.f32 0.0, %v3620
        %3622 = vmatprep.mubr.bf16.mxu0 0
        %3623 = vmatmul.mubr.bf16.gmra.mrb[0].mxu0 %v2084
        %v3624 = vpop.f32.mrb[0].mxu0
        %v3625 = vadd.f32 0.0, %v3624
        %v3626 = vpop.f32.mrb[0].mxu0
        %v3627 = vadd.f32 0.0, %v3626
        %v3628 = vpop.f32.mrb[0].mxu0
        %v3629 = vadd.f32 0.0, %v3628
        %v3630 = vpop.f32.mrb[0].mxu0
        %v3631 = vadd.f32 0.0, %v3630
        %3632 = vmatprep.mubr.bf16.mxu0 0
        %3633 = vmatmul.mubr.bf16.gmra.mrb[0].mxu0 %v2087
        %v3634 = vpop.f32.mrb[0].mxu0
        %v3635 = vadd.f32 0.0, %v3634
        %v3636 = vpop.f32.mrb[0].mxu0
        %v3637 = vadd.f32 0.0, %v3636
        %v3638 = vpop.f32.mrb[0].mxu0
        %v3639 = vadd.f32 0.0, %v3638
        %v3640 = vpop.f32.mrb[0].mxu0
        %v3641 = vadd.f32 0.0, %v3640
        %3642 = vdwg.mxu0
        %3643 = vmatprep.subr.bf16.mxu0 %v1617
        %3644 = vmatpush1.bf16.msra.mxu0 %v1616
        %3645 = vmatprep.subr.bf16.mxu0 %v1664
        %3646 = vmatpush1.bf16.msra.mxu0 %v1661
        %3647 = vmatprep.subr.bf16.mxu0 0
        %3648 = vmatpush1.bf16.msra.mxu0 0
        %3649 = vmatprep.subr.bf16.mxu0 0
        %3650 = vmatpush1.bf16.msra.mxu0 0
        %3651 = vmatprep.subr.bf16.mxu0 0
        %3652 = vmatpush1.bf16.msra.mxu0 0
        %3653 = vmatprep.subr.bf16.mxu0 0
        %3654 = vmatpush1.bf16.msra.mxu0 0
        %3655 = vmatprep.subr.bf16.mxu0 0
        %3656 = vmatpush1.bf16.msra.mxu0 0
        %3657 = vmatprep.subr.bf16.mxu0 0
        %3658 = vmatpush1.bf16.msra.mxu0 0
        %3659 = vmatprep.subr.bf16.mxu0 0
        %3660 = vmatpush1.bf16.msra.mxu0 0
        %3661 = vmatprep.subr.bf16.mxu0 0
        %3662 = vmatpush1.bf16.msra.mxu0 0
        %3663 = vmatprep.subr.bf16.mxu0 0
        %3664 = vmatpush1.bf16.msra.mxu0 0
        %3665 = vmatprep.subr.bf16.mxu0 0
        %3666 = vmatpush1.bf16.msra.mxu0 0
        %3667 = vmatprep.subr.bf16.mxu0 0
        %3668 = vmatpush1.bf16.msra.mxu0 0
        %3669 = vmatprep.subr.bf16.mxu0 0
        %3670 = vmatpush1.bf16.msra.mxu0 0
        %3671 = vmatprep.subr.bf16.mxu0 0
        %3672 = vmatpush1.bf16.msra.mxu0 0
        %3673 = vmatprep.subr.bf16.mxu0 0
        %3674 = vmatpush1.bf16.msra.mxu0 0
        %3675 = vmatprep.mubr.bf16.mxu0 0
        %3676 = vmatmul.mubr.bf16.gmra.mrb[0].mxu0 %v2072
        %v3677 = vpop.f32.mrb[0].mxu0
        %v3678 = vadd.f32 0.0, %v3677
        %v3679 = vpop.f32.mrb[0].mxu0
        %v3680 = vadd.f32 0.0, %v3679
        %v3681 = vpop.f32.mrb[0].mxu0
        %v3682 = vadd.f32 0.0, %v3681
        %v3683 = vpop.f32.mrb[0].mxu0
        %v3684 = vadd.f32 0.0, %v3683
        %3685 = vmatprep.mubr.bf16.mxu0 0
        %3686 = vmatmul.mubr.bf16.gmra.mrb[0].mxu0 %v2075
        %v3687 = vpop.f32.mrb[0].mxu0
        %v3688 = vadd.f32 0.0, %v3687
        %v3689 = vpop.f32.mrb[0].mxu0
        %v3690 = vadd.f32 0.0, %v3689
        %v3691 = vpop.f32.mrb[0].mxu0
        %v3692 = vadd.f32 0.0, %v3691
        %v3693 = vpop.f32.mrb[0].mxu0
        %v3694 = vadd.f32 0.0, %v3693
        %3695 = vmatprep.mubr.bf16.mxu0 0
        %3696 = vmatmul.mubr.bf16.gmra.mrb[0].mxu0 %v2078
        %v3697 = vpop.f32.mrb[0].mxu0
        %v3698 = vadd.f32 0.0, %v3697
        %v3699 = vpop.f32.mrb[0].mxu0
        %v3700 = vadd.f32 0.0, %v3699
        %v3701 = vpop.f32.mrb[0].mxu0
        %v3702 = vadd.f32 0.0, %v3701
        %v3703 = vpop.f32.mrb[0].mxu0
        %v3704 = vadd.f32 0.0, %v3703
        %3705 = vmatprep.mubr.bf16.mxu0 0
        %3706 = vmatmul.mubr.bf16.gmra.mrb[0].mxu0 %v2081
        %v3707 = vpop.f32.mrb[0].mxu0
        %v3708 = vadd.f32 0.0, %v3707
        %v3709 = vpop.f32.mrb[0].mxu0
        %v3710 = vadd.f32 0.0, %v3709
        %v3711 = vpop.f32.mrb[0].mxu0
        %v3712 = vadd.f32 0.0, %v3711
        %v3713 = vpop.f32.mrb[0].mxu0
        %v3714 = vadd.f32 0.0, %v3713
        %3715 = vmatprep.mubr.bf16.mxu0 0
        %3716 = vmatmul.mubr.bf16.gmra.mrb[0].mxu0 %v2084
        %v3717 = vpop.f32.mrb[0].mxu0
        %v3718 = vadd.f32 0.0, %v3717
        %v3719 = vpop.f32.mrb[0].mxu0
        %v3720 = vadd.f32 0.0, %v3719
        %v3721 = vpop.f32.mrb[0].mxu0
        %v3722 = vadd.f32 0.0, %v3721
        %v3723 = vpop.f32.mrb[0].mxu0
        %v3724 = vadd.f32 0.0, %v3723
        %3725 = vmatprep.mubr.bf16.mxu0 0
        %3726 = vmatmul.mubr.bf16.gmra.mrb[0].mxu0 %v2087
        %v3727 = vpop.f32.mrb[0].mxu0
        %v3728 = vadd.f32 0.0, %v3727
        %v3729 = vpop.f32.mrb[0].mxu0
        %v3730 = vadd.f32 0.0, %v3729
        %v3731 = vpop.f32.mrb[0].mxu0
        %v3732 = vadd.f32 0.0, %v3731
        %v3733 = vpop.f32.mrb[0].mxu0
        %v3734 = vadd.f32 0.0, %v3733
        %3735 = vdwg.mxu0
        %v3736 = vadd.f32 %v3213, %v3492
        %v3737 = vadd.f32 %v3215, %v3494
        %v3738 = vadd.f32 %v3306, %v3585
        %v3739 = vadd.f32 %v3308, %v3587
        %v3740 = vadd.f32 %v3399, %v3678
        %v3741 = vadd.f32 %v3401, %v3680
        %v3742 = vadd.f32 %v3217, %v3496
        %v3743 = vadd.f32 %v3219, %v3498
        %v3744 = vadd.f32 %v3310, %v3589
        %v3745 = vadd.f32 %v3312, %v3591
        %v3746 = vadd.f32 %v3403, %v3682
        %v3747 = vadd.f32 %v3405, %v3684
        %v3748 = vadd.f32 %v3223, %v3502
        %v3749 = vadd.f32 %v3225, %v3504
        %v3750 = vadd.f32 %v3316, %v3595
        %v3751 = vadd.f32 %v3318, %v3597
        %v3752 = vadd.f32 %v3409, %v3688
        %v3753 = vadd.f32 %v3411, %v3690
        %v3754 = vadd.f32 %v3227, %v3506
        %v3755 = vadd.f32 %v3229, %v3508
        %v3756 = vadd.f32 %v3320, %v3599
        %v3757 = vadd.f32 %v3322, %v3601
        %v3758 = vadd.f32 %v3413, %v3692
        %v3759 = vadd.f32 %v3415, %v3694
        %v3760 = vadd.f32 %v3233, %v3512
        %v3761 = vadd.f32 %v3235, %v3514
        %v3762 = vadd.f32 %v3326, %v3605
        %v3763 = vadd.f32 %v3328, %v3607
        %v3764 = vadd.f32 %v3419, %v3698
        %v3765 = vadd.f32 %v3421, %v3700
        %v3766 = vadd.f32 %v3237, %v3516
        %v3767 = vadd.f32 %v3239, %v3518
        %v3768 = vadd.f32 %v3330, %v3609
        %v3769 = vadd.f32 %v3332, %v3611
        %v3770 = vadd.f32 %v3423, %v3702
        %v3771 = vadd.f32 %v3425, %v3704
        %v3772 = vadd.f32 %v3243, %v3522
        %v3773 = vadd.f32 %v3245, %v3524
        %v3774 = vadd.f32 %v3336, %v3615
        %v3775 = vadd.f32 %v3338, %v3617
        %v3776 = vadd.f32 %v3429, %v3708
        %v3777 = vadd.f32 %v3431, %v3710
        %v3778 = vadd.f32 %v3247, %v3526
        %v3779 = vadd.f32 %v3249, %v3528
        %v3780 = vadd.f32 %v3340, %v3619
        %v3781 = vadd.f32 %v3342, %v3621
        %v3782 = vadd.f32 %v3433, %v3712
        %v3783 = vadd.f32 %v3435, %v3714
        %v3784 = vadd.f32 %v3253, %v3532
        %v3785 = vadd.f32 %v3255, %v3534
        %v3786 = vadd.f32 %v3346, %v3625
        %v3787 = vadd.f32 %v3348, %v3627
        %v3788 = vadd.f32 %v3439, %v3718
        %v3789 = vadd.f32 %v3441, %v3720
        %v3790 = vadd.f32 %v3257, %v3536
        %v3791 = vadd.f32 %v3259, %v3538
        %v3792 = vadd.f32 %v3350, %v3629
        %v3793 = vadd.f32 %v3352, %v3631
        %v3794 = vadd.f32 %v3443, %v3722
        %v3795 = vadd.f32 %v3445, %v3724
        %v3796 = vadd.f32 %v3263, %v3542
        %v3797 = vadd.f32 %v3265, %v3544
        %v3798 = vadd.f32 %v3356, %v3635
        %v3799 = vadd.f32 %v3358, %v3637
        %v3800 = vadd.f32 %v3449, %v3728
        %v3801 = vadd.f32 %v3451, %v3730
        %v3802 = vadd.f32 %v3267, %v3546
        %v3803 = vadd.f32 %v3269, %v3548
        %v3804 = vadd.f32 %v3360, %v3639
        %v3805 = vadd.f32 %v3362, %v3641
        %v3806 = vadd.f32 %v3453, %v3732
        %v3807 = vadd.f32 %v3455, %v3734
        %3808 = vmatprep.subr.bf16.mxu0 %v2054
        %3809 = vmatpush1.bf16.msra.mxu0 %v2053
        %3810 = vmatprep.subr.bf16.mxu0 %v2093
        %3811 = vmatpush1.bf16.msra.mxu0 %v2090
        %3812 = vmatprep.subr.bf16.mxu0 0
        %3813 = vmatpush1.bf16.msra.mxu0 0
        %3814 = vmatprep.subr.bf16.mxu0 0
        %3815 = vmatpush1.bf16.msra.mxu0 0
        %3816 = vmatprep.subr.bf16.mxu0 0
        %3817 = vmatpush1.bf16.msra.mxu0 0
        %3818 = vmatprep.subr.bf16.mxu0 0
        %3819 = vmatpush1.bf16.msra.mxu0 0
        %3820 = vmatprep.subr.bf16.mxu0 0
        %3821 = vmatpush1.bf16.msra.mxu0 0
        %3822 = vmatprep.subr.bf16.mxu0 0
        %3823 = vmatpush1.bf16.msra.mxu0 0
        %3824 = vmatprep.subr.bf16.mxu0 0
        %3825 = vmatpush1.bf16.msra.mxu0 0
        %3826 = vmatprep.subr.bf16.mxu0 0
        %3827 = vmatpush1.bf16.msra.mxu0 0
        %3828 = vmatprep.subr.bf16.mxu0 0
        %3829 = vmatpush1.bf16.msra.mxu0 0
        %3830 = vmatprep.subr.bf16.mxu0 0
        %3831 = vmatpush1.bf16.msra.mxu0 0
        %3832 = vmatprep.subr.bf16.mxu0 0
        %3833 = vmatpush1.bf16.msra.mxu0 0
        %3834 = vmatprep.subr.bf16.mxu0 0
        %3835 = vmatpush1.bf16.msra.mxu0 0
        %3836 = vmatprep.subr.bf16.mxu0 0
        %3837 = vmatpush1.bf16.msra.mxu0 0
        %3838 = vmatprep.subr.bf16.mxu0 0
        %3839 = vmatpush1.bf16.msra.mxu0 0
        %3840 = vmatprep.mubr.bf16.mxu0 0
        %3841 = vmatmul.mubr.bf16.gmra.mrb[0].mxu0 %v2513
        %v3842 = vpop.f32.mrb[0].mxu0
        %v3843 = vadd.f32 0.0, %v3842
        %v3844 = vpop.f32.mrb[0].mxu0
        %v3845 = vadd.f32 0.0, %v3844
        %v3846 = vpop.f32.mrb[0].mxu0
        %v3847 = vadd.f32 0.0, %v3846
        %v3848 = vpop.f32.mrb[0].mxu0
        %v3849 = vadd.f32 0.0, %v3848
        %3850 = vmatprep.mubr.bf16.mxu0 0
        %3851 = vmatmul.mubr.bf16.gmra.mrb[0].mxu0 %v2516
        %v3852 = vpop.f32.mrb[0].mxu0
        %v3853 = vadd.f32 0.0, %v3852
        %v3854 = vpop.f32.mrb[0].mxu0
        %v3855 = vadd.f32 0.0, %v3854
        %v3856 = vpop.f32.mrb[0].mxu0
        %v3857 = vadd.f32 0.0, %v3856
        %v3858 = vpop.f32.mrb[0].mxu0
        %v3859 = vadd.f32 0.0, %v3858
        %3860 = vmatprep.mubr.bf16.mxu0 0
        %3861 = vmatmul.mubr.bf16.gmra.mrb[0].mxu0 %v2519
        %v3862 = vpop.f32.mrb[0].mxu0
        %v3863 = vadd.f32 0.0, %v3862
        %v3864 = vpop.f32.mrb[0].mxu0
        %v3865 = vadd.f32 0.0, %v3864
        %v3866 = vpop.f32.mrb[0].mxu0
        %v3867 = vadd.f32 0.0, %v3866
        %v3868 = vpop.f32.mrb[0].mxu0
        %v3869 = vadd.f32 0.0, %v3868
        %3870 = vmatprep.mubr.bf16.mxu0 0
        %3871 = vmatmul.mubr.bf16.gmra.mrb[0].mxu0 %v2522
        %v3872 = vpop.f32.mrb[0].mxu0
        %v3873 = vadd.f32 0.0, %v3872
        %v3874 = vpop.f32.mrb[0].mxu0
        %v3875 = vadd.f32 0.0, %v3874
        %v3876 = vpop.f32.mrb[0].mxu0
        %v3877 = vadd.f32 0.0, %v3876
        %v3878 = vpop.f32.mrb[0].mxu0
        %v3879 = vadd.f32 0.0, %v3878
        %3880 = vmatprep.mubr.bf16.mxu0 0
        %3881 = vmatmul.mubr.bf16.gmra.mrb[0].mxu0 %v2525
        %v3882 = vpop.f32.mrb[0].mxu0
        %v3883 = vadd.f32 0.0, %v3882
        %v3884 = vpop.f32.mrb[0].mxu0
        %v3885 = vadd.f32 0.0, %v3884
        %v3886 = vpop.f32.mrb[0].mxu0
        %v3887 = vadd.f32 0.0, %v3886
        %v3888 = vpop.f32.mrb[0].mxu0
        %v3889 = vadd.f32 0.0, %v3888
        %3890 = vmatprep.mubr.bf16.mxu0 0
        %3891 = vmatmul.mubr.bf16.gmra.mrb[0].mxu0 %v2528
        %v3892 = vpop.f32.mrb[0].mxu0
        %v3893 = vadd.f32 0.0, %v3892
        %v3894 = vpop.f32.mrb[0].mxu0
        %v3895 = vadd.f32 0.0, %v3894
        %v3896 = vpop.f32.mrb[0].mxu0
        %v3897 = vadd.f32 0.0, %v3896
        %v3898 = vpop.f32.mrb[0].mxu0
        %v3899 = vadd.f32 0.0, %v3898
        %3900 = vdwg.mxu0
        %3901 = vmatprep.subr.bf16.mxu0 %v2056
        %3902 = vmatpush1.bf16.msra.mxu0 %v2055
        %3903 = vmatprep.subr.bf16.mxu0 %v2099
        %3904 = vmatpush1.bf16.msra.mxu0 %v2096
        %3905 = vmatprep.subr.bf16.mxu0 0
        %3906 = vmatpush1.bf16.msra.mxu0 0
        %3907 = vmatprep.subr.bf16.mxu0 0
        %3908 = vmatpush1.bf16.msra.mxu0 0
        %3909 = vmatprep.subr.bf16.mxu0 0
        %3910 = vmatpush1.bf16.msra.mxu0 0
        %3911 = vmatprep.subr.bf16.mxu0 0
        %3912 = vmatpush1.bf16.msra.mxu0 0
        %3913 = vmatprep.subr.bf16.mxu0 0
        %3914 = vmatpush1.bf16.msra.mxu0 0
        %3915 = vmatprep.subr.bf16.mxu0 0
        %3916 = vmatpush1.bf16.msra.mxu0 0
        %3917 = vmatprep.subr.bf16.mxu0 0
        %3918 = vmatpush1.bf16.msra.mxu0 0
        %3919 = vmatprep.subr.bf16.mxu0 0
        %3920 = vmatpush1.bf16.msra.mxu0 0
        %3921 = vmatprep.subr.bf16.mxu0 0
        %3922 = vmatpush1.bf16.msra.mxu0 0
        %3923 = vmatprep.subr.bf16.mxu0 0
        %3924 = vmatpush1.bf16.msra.mxu0 0
        %3925 = vmatprep.subr.bf16.mxu0 0
        %3926 = vmatpush1.bf16.msra.mxu0 0
        %3927 = vmatprep.subr.bf16.mxu0 0
        %3928 = vmatpush1.bf16.msra.mxu0 0
        %3929 = vmatprep.subr.bf16.mxu0 0
        %3930 = vmatpush1.bf16.msra.mxu0 0
        %3931 = vmatprep.subr.bf16.mxu0 0
        %3932 = vmatpush1.bf16.msra.mxu0 0
        %3933 = vmatprep.mubr.bf16.mxu0 0
        %3934 = vmatmul.mubr.bf16.gmra.mrb[0].mxu0 %v2513
        %v3935 = vpop.f32.mrb[0].mxu0
        %v3936 = vadd.f32 0.0, %v3935
        %v3937 = vpop.f32.mrb[0].mxu0
        %v3938 = vadd.f32 0.0, %v3937
        %v3939 = vpop.f32.mrb[0].mxu0
        %v3940 = vadd.f32 0.0, %v3939
        %v3941 = vpop.f32.mrb[0].mxu0
        %v3942 = vadd.f32 0.0, %v3941
        %3943 = vmatprep.mubr.bf16.mxu0 0
        %3944 = vmatmul.mubr.bf16.gmra.mrb[0].mxu0 %v2516
        %v3945 = vpop.f32.mrb[0].mxu0
        %v3946 = vadd.f32 0.0, %v3945
        %v3947 = vpop.f32.mrb[0].mxu0
        %v3948 = vadd.f32 0.0, %v3947
        %v3949 = vpop.f32.mrb[0].mxu0
        %v3950 = vadd.f32 0.0, %v3949
        %v3951 = vpop.f32.mrb[0].mxu0
        %v3952 = vadd.f32 0.0, %v3951
        %3953 = vmatprep.mubr.bf16.mxu0 0
        %3954 = vmatmul.mubr.bf16.gmra.mrb[0].mxu0 %v2519
        %v3955 = vpop.f32.mrb[0].mxu0
        %v3956 = vadd.f32 0.0, %v3955
        %v3957 = vpop.f32.mrb[0].mxu0
        %v3958 = vadd.f32 0.0, %v3957
        %v3959 = vpop.f32.mrb[0].mxu0
        %v3960 = vadd.f32 0.0, %v3959
        %v3961 = vpop.f32.mrb[0].mxu0
        %v3962 = vadd.f32 0.0, %v3961
        %3963 = vmatprep.mubr.bf16.mxu0 0
        %3964 = vmatmul.mubr.bf16.gmra.mrb[0].mxu0 %v2522
        %v3965 = vpop.f32.mrb[0].mxu0
        %v3966 = vadd.f32 0.0, %v3965
        %v3967 = vpop.f32.mrb[0].mxu0
        %v3968 = vadd.f32 0.0, %v3967
        %v3969 = vpop.f32.mrb[0].mxu0
        %v3970 = vadd.f32 0.0, %v3969
        %v3971 = vpop.f32.mrb[0].mxu0
        %v3972 = vadd.f32 0.0, %v3971
        %3973 = vmatprep.mubr.bf16.mxu0 0
        %3974 = vmatmul.mubr.bf16.gmra.mrb[0].mxu0 %v2525
        %v3975 = vpop.f32.mrb[0].mxu0
        %v3976 = vadd.f32 0.0, %v3975
        %v3977 = vpop.f32.mrb[0].mxu0
        %v3978 = vadd.f32 0.0, %v3977
        %v3979 = vpop.f32.mrb[0].mxu0
        %v3980 = vadd.f32 0.0, %v3979
        %v3981 = vpop.f32.mrb[0].mxu0
        %v3982 = vadd.f32 0.0, %v3981
        %3983 = vmatprep.mubr.bf16.mxu0 0
        %3984 = vmatmul.mubr.bf16.gmra.mrb[0].mxu0 %v2528
        %v3985 = vpop.f32.mrb[0].mxu0
        %v3986 = vadd.f32 0.0, %v3985
        %v3987 = vpop.f32.mrb[0].mxu0
        %v3988 = vadd.f32 0.0, %v3987
        %v3989 = vpop.f32.mrb[0].mxu0
        %v3990 = vadd.f32 0.0, %v3989
        %v3991 = vpop.f32.mrb[0].mxu0
        %v3992 = vadd.f32 0.0, %v3991
        %3993 = vdwg.mxu0
        %3994 = vmatprep.subr.bf16.mxu0 %v2058
        %3995 = vmatpush1.bf16.msra.mxu0 %v2057
        %3996 = vmatprep.subr.bf16.mxu0 %v2105
        %3997 = vmatpush1.bf16.msra.mxu0 %v2102
        %3998 = vmatprep.subr.bf16.mxu0 0
        %3999 = vmatpush1.bf16.msra.mxu0 0
        %4000 = vmatprep.subr.bf16.mxu0 0
        %4001 = vmatpush1.bf16.msra.mxu0 0
        %4002 = vmatprep.subr.bf16.mxu0 0
        %4003 = vmatpush1.bf16.msra.mxu0 0
        %4004 = vmatprep.subr.bf16.mxu0 0
        %4005 = vmatpush1.bf16.msra.mxu0 0
        %4006 = vmatprep.subr.bf16.mxu0 0
        %4007 = vmatpush1.bf16.msra.mxu0 0
        %4008 = vmatprep.subr.bf16.mxu0 0
        %4009 = vmatpush1.bf16.msra.mxu0 0
        %4010 = vmatprep.subr.bf16.mxu0 0
        %4011 = vmatpush1.bf16.msra.mxu0 0
        %4012 = vmatprep.subr.bf16.mxu0 0
        %4013 = vmatpush1.bf16.msra.mxu0 0
        %4014 = vmatprep.subr.bf16.mxu0 0
        %4015 = vmatpush1.bf16.msra.mxu0 0
        %4016 = vmatprep.subr.bf16.mxu0 0
        %4017 = vmatpush1.bf16.msra.mxu0 0
        %4018 = vmatprep.subr.bf16.mxu0 0
        %4019 = vmatpush1.bf16.msra.mxu0 0
        %4020 = vmatprep.subr.bf16.mxu0 0
        %4021 = vmatpush1.bf16.msra.mxu0 0
        %4022 = vmatprep.subr.bf16.mxu0 0
        %4023 = vmatpush1.bf16.msra.mxu0 0
        %4024 = vmatprep.subr.bf16.mxu0 0
        %4025 = vmatpush1.bf16.msra.mxu0 0
        %4026 = vmatprep.mubr.bf16.mxu0 0
        %4027 = vmatmul.mubr.bf16.gmra.mrb[0].mxu0 %v2513
        %v4028 = vpop.f32.mrb[0].mxu0
        %v4029 = vadd.f32 0.0, %v4028
        %v4030 = vpop.f32.mrb[0].mxu0
        %v4031 = vadd.f32 0.0, %v4030
        %v4032 = vpop.f32.mrb[0].mxu0
        %v4033 = vadd.f32 0.0, %v4032
        %v4034 = vpop.f32.mrb[0].mxu0
        %v4035 = vadd.f32 0.0, %v4034
        %4036 = vmatprep.mubr.bf16.mxu0 0
        %4037 = vmatmul.mubr.bf16.gmra.mrb[0].mxu0 %v2516
        %v4038 = vpop.f32.mrb[0].mxu0
        %v4039 = vadd.f32 0.0, %v4038
        %v4040 = vpop.f32.mrb[0].mxu0
        %v4041 = vadd.f32 0.0, %v4040
        %v4042 = vpop.f32.mrb[0].mxu0
        %v4043 = vadd.f32 0.0, %v4042
        %v4044 = vpop.f32.mrb[0].mxu0
        %v4045 = vadd.f32 0.0, %v4044
        %4046 = vmatprep.mubr.bf16.mxu0 0
        %4047 = vmatmul.mubr.bf16.gmra.mrb[0].mxu0 %v2519
        %v4048 = vpop.f32.mrb[0].mxu0
        %v4049 = vadd.f32 0.0, %v4048
        %v4050 = vpop.f32.mrb[0].mxu0
        %v4051 = vadd.f32 0.0, %v4050
        %v4052 = vpop.f32.mrb[0].mxu0
        %v4053 = vadd.f32 0.0, %v4052
        %v4054 = vpop.f32.mrb[0].mxu0
        %v4055 = vadd.f32 0.0, %v4054
        %4056 = vmatprep.mubr.bf16.mxu0 0
        %4057 = vmatmul.mubr.bf16.gmra.mrb[0].mxu0 %v2522
        %v4058 = vpop.f32.mrb[0].mxu0
        %v4059 = vadd.f32 0.0, %v4058
        %v4060 = vpop.f32.mrb[0].mxu0
        %v4061 = vadd.f32 0.0, %v4060
        %v4062 = vpop.f32.mrb[0].mxu0
        %v4063 = vadd.f32 0.0, %v4062
        %v4064 = vpop.f32.mrb[0].mxu0
        %v4065 = vadd.f32 0.0, %v4064
        %4066 = vmatprep.mubr.bf16.mxu0 0
        %4067 = vmatmul.mubr.bf16.gmra.mrb[0].mxu0 %v2525
        %v4068 = vpop.f32.mrb[0].mxu0
        %v4069 = vadd.f32 0.0, %v4068
        %v4070 = vpop.f32.mrb[0].mxu0
        %v4071 = vadd.f32 0.0, %v4070
        %v4072 = vpop.f32.mrb[0].mxu0
        %v4073 = vadd.f32 0.0, %v4072
        %v4074 = vpop.f32.mrb[0].mxu0
        %v4075 = vadd.f32 0.0, %v4074
        %4076 = vmatprep.mubr.bf16.mxu0 0
        %4077 = vmatmul.mubr.bf16.gmra.mrb[0].mxu0 %v2528
        %v4078 = vpop.f32.mrb[0].mxu0
        %v4079 = vadd.f32 0.0, %v4078
        %v4080 = vpop.f32.mrb[0].mxu0
        %v4081 = vadd.f32 0.0, %v4080
        %v4082 = vpop.f32.mrb[0].mxu0
        %v4083 = vadd.f32 0.0, %v4082
        %v4084 = vpop.f32.mrb[0].mxu0
        %v4085 = vadd.f32 0.0, %v4084
        %4086 = vdwg.mxu0
        %v4087 = vadd.f32 %v3736, %v3843
        %v4088 = vadd.f32 %v3737, %v3845
        %v4089 = vadd.f32 %v3738, %v3936
        %v4090 = vadd.f32 %v3739, %v3938
        %v4091 = vadd.f32 %v3740, %v4029
        %v4092 = vadd.f32 %v3741, %v4031
        %v4093 = vadd.f32 %v3742, %v3847
        %v4094 = vadd.f32 %v3743, %v3849
        %v4095 = vadd.f32 %v3744, %v3940
        %v4096 = vadd.f32 %v3745, %v3942
        %v4097 = vadd.f32 %v3746, %v4033
        %v4098 = vadd.f32 %v3747, %v4035
        %v4099 = vadd.f32 %v3748, %v3853
        %v4100 = vadd.f32 %v3749, %v3855
        %v4101 = vadd.f32 %v3750, %v3946
        %v4102 = vadd.f32 %v3751, %v3948
        %v4103 = vadd.f32 %v3752, %v4039
        %v4104 = vadd.f32 %v3753, %v4041
        %v4105 = vadd.f32 %v3754, %v3857
        %v4106 = vadd.f32 %v3755, %v3859
        %v4107 = vadd.f32 %v3756, %v3950
        %v4108 = vadd.f32 %v3757, %v3952
        %v4109 = vadd.f32 %v3758, %v4043
        %v4110 = vadd.f32 %v3759, %v4045
        %v4111 = vadd.f32 %v3760, %v3863
        %v4112 = vadd.f32 %v3761, %v3865
        %v4113 = vadd.f32 %v3762, %v3956
        %v4114 = vadd.f32 %v3763, %v3958
        %v4115 = vadd.f32 %v3764, %v4049
        %v4116 = vadd.f32 %v3765, %v4051
        %v4117 = vadd.f32 %v3766, %v3867
        %v4118 = vadd.f32 %v3767, %v3869
        %v4119 = vadd.f32 %v3768, %v3960
        %v4120 = vadd.f32 %v3769, %v3962
        %v4121 = vadd.f32 %v3770, %v4053
        %v4122 = vadd.f32 %v3771, %v4055
        %v4123 = vadd.f32 %v3772, %v3873
        %v4124 = vadd.f32 %v3773, %v3875
        %v4125 = vadd.f32 %v3774, %v3966
        %v4126 = vadd.f32 %v3775, %v3968
        %v4127 = vadd.f32 %v3776, %v4059
        %v4128 = vadd.f32 %v3777, %v4061
        %v4129 = vadd.f32 %v3778, %v3877
        %v4130 = vadd.f32 %v3779, %v3879
        %v4131 = vadd.f32 %v3780, %v3970
        %v4132 = vadd.f32 %v3781, %v3972
        %v4133 = vadd.f32 %v3782, %v4063
        %v4134 = vadd.f32 %v3783, %v4065
        %v4135 = vadd.f32 %v3784, %v3883
        %v4136 = vadd.f32 %v3785, %v3885
        %v4137 = vadd.f32 %v3786, %v3976
        %v4138 = vadd.f32 %v3787, %v3978
        %v4139 = vadd.f32 %v3788, %v4069
        %v4140 = vadd.f32 %v3789, %v4071
        %v4141 = vadd.f32 %v3790, %v3887
        %v4142 = vadd.f32 %v3791, %v3889
        %v4143 = vadd.f32 %v3792, %v3980
        %v4144 = vadd.f32 %v3793, %v3982
        %v4145 = vadd.f32 %v3794, %v4073
        %v4146 = vadd.f32 %v3795, %v4075
        %v4147 = vadd.f32 %v3796, %v3893
        %v4148 = vadd.f32 %v3797, %v3895
        %v4149 = vadd.f32 %v3798, %v3986
        %v4150 = vadd.f32 %v3799, %v3988
        %v4151 = vadd.f32 %v3800, %v4079
        %v4152 = vadd.f32 %v3801, %v4081
        %v4153 = vadd.f32 %v3802, %v3897
        %v4154 = vadd.f32 %v3803, %v3899
        %v4155 = vadd.f32 %v3804, %v3990
        %v4156 = vadd.f32 %v3805, %v3992
        %v4157 = vadd.f32 %v3806, %v4083
        %v4158 = vadd.f32 %v3807, %v4085
        %v4160 = vsel %vm890, %v766, 0
        %v4163 = vsel %vm890, %v767, 0
        %v4166 = vsel %vm890, %v768, 0
        %v4169 = vsel %vm890, %v769, 0
        %v4172 = vsel %vm890, %v770, 0
        %v4175 = vsel %vm890, %v771, 0
        %4177 = vmatprep.subr.bf16.mxu0 %v2495
        %4178 = vmatpush1.bf16.msra.mxu0 %v2494
        %4179 = vmatprep.subr.bf16.mxu0 %v2534
        %4180 = vmatpush1.bf16.msra.mxu0 %v2531
        %4181 = vmatprep.subr.bf16.mxu0 0
        %4182 = vmatpush1.bf16.msra.mxu0 0
        %4183 = vmatprep.subr.bf16.mxu0 0
        %4184 = vmatpush1.bf16.msra.mxu0 0
        %4185 = vmatprep.subr.bf16.mxu0 0
        %4186 = vmatpush1.bf16.msra.mxu0 0
        %4187 = vmatprep.subr.bf16.mxu0 0
        %4188 = vmatpush1.bf16.msra.mxu0 0
        %4189 = vmatprep.subr.bf16.mxu0 0
        %4190 = vmatpush1.bf16.msra.mxu0 0
        %4191 = vmatprep.subr.bf16.mxu0 0
        %4192 = vmatpush1.bf16.msra.mxu0 0
        %4193 = vmatprep.subr.bf16.mxu0 0
        %4194 = vmatpush1.bf16.msra.mxu0 0
        %4195 = vmatprep.subr.bf16.mxu0 0
        %4196 = vmatpush1.bf16.msra.mxu0 0
        %4197 = vmatprep.subr.bf16.mxu0 0
        %4198 = vmatpush1.bf16.msra.mxu0 0
        %4199 = vmatprep.subr.bf16.mxu0 0
        %4200 = vmatpush1.bf16.msra.mxu0 0
        %4201 = vmatprep.subr.bf16.mxu0 0
        %4202 = vmatpush1.bf16.msra.mxu0 0
        %4203 = vmatprep.subr.bf16.mxu0 0
        %4204 = vmatpush1.bf16.msra.mxu0 0
        %4205 = vmatprep.subr.bf16.mxu0 0
        %4206 = vmatpush1.bf16.msra.mxu0 0
        %4207 = vmatprep.subr.bf16.mxu0 0
        %4208 = vmatpush1.bf16.msra.mxu0 0
        %4209 = vmatprep.mubr.bf16.mxu0 0
        %4210 = vmatmul.mubr.bf16.gmra.mrb[0].mxu0 %v4160
        %v4211 = vpop.f32.mrb[0].mxu0
        %v4212 = vadd.f32 0.0, %v4211
        %v4213 = vpop.f32.mrb[0].mxu0
        %v4214 = vadd.f32 0.0, %v4213
        %v4215 = vpop.f32.mrb[0].mxu0
        %v4216 = vadd.f32 0.0, %v4215
        %v4217 = vpop.f32.mrb[0].mxu0
        %v4218 = vadd.f32 0.0, %v4217
        %4219 = vmatprep.mubr.bf16.mxu0 0
        %4220 = vmatmul.mubr.bf16.gmra.mrb[0].mxu0 %v4163
        %v4221 = vpop.f32.mrb[0].mxu0
        %v4222 = vadd.f32 0.0, %v4221
        %v4223 = vpop.f32.mrb[0].mxu0
        %v4224 = vadd.f32 0.0, %v4223
        %v4225 = vpop.f32.mrb[0].mxu0
        %v4226 = vadd.f32 0.0, %v4225
        %v4227 = vpop.f32.mrb[0].mxu0
        %v4228 = vadd.f32 0.0, %v4227
        %4229 = vmatprep.mubr.bf16.mxu0 0
        %4230 = vmatmul.mubr.bf16.gmra.mrb[0].mxu0 %v4166
        %v4231 = vpop.f32.mrb[0].mxu0
        %v4232 = vadd.f32 0.0, %v4231
        %v4233 = vpop.f32.mrb[0].mxu0
        %v4234 = vadd.f32 0.0, %v4233
        %v4235 = vpop.f32.mrb[0].mxu0
        %v4236 = vadd.f32 0.0, %v4235
        %v4237 = vpop.f32.mrb[0].mxu0
        %v4238 = vadd.f32 0.0, %v4237
        %4239 = vmatprep.mubr.bf16.mxu0 0
        %4240 = vmatmul.mubr.bf16.gmra.mrb[0].mxu0 %v4169
        %v4241 = vpop.f32.mrb[0].mxu0
        %v4242 = vadd.f32 0.0, %v4241
        %v4243 = vpop.f32.mrb[0].mxu0
        %v4244 = vadd.f32 0.0, %v4243
        %v4245 = vpop.f32.mrb[0].mxu0
        %v4246 = vadd.f32 0.0, %v4245
        %v4247 = vpop.f32.mrb[0].mxu0
        %v4248 = vadd.f32 0.0, %v4247
        %4249 = vmatprep.mubr.bf16.mxu0 0
        %4250 = vmatmul.mubr.bf16.gmra.mrb[0].mxu0 %v4172
        %v4251 = vpop.f32.mrb[0].mxu0
        %v4252 = vadd.f32 0.0, %v4251
        %v4253 = vpop.f32.mrb[0].mxu0
        %v4254 = vadd.f32 0.0, %v4253
        %v4255 = vpop.f32.mrb[0].mxu0
        %v4256 = vadd.f32 0.0, %v4255
        %v4257 = vpop.f32.mrb[0].mxu0
        %v4258 = vadd.f32 0.0, %v4257
        %4259 = vmatprep.mubr.bf16.mxu0 0
        %4260 = vmatmul.mubr.bf16.gmra.mrb[0].mxu0 %v4175
        %v4261 = vpop.f32.mrb[0].mxu0
        %v4262 = vadd.f32 0.0, %v4261
        %v4263 = vpop.f32.mrb[0].mxu0
        %v4264 = vadd.f32 0.0, %v4263
        %v4265 = vpop.f32.mrb[0].mxu0
        %v4266 = vadd.f32 0.0, %v4265
        %v4267 = vpop.f32.mrb[0].mxu0
        %v4268 = vadd.f32 0.0, %v4267
        %4269 = vdwg.mxu0
        %4270 = vmatprep.subr.bf16.mxu0 %v2497
        %4271 = vmatpush1.bf16.msra.mxu0 %v2496
        %4272 = vmatprep.subr.bf16.mxu0 %v2540
        %4273 = vmatpush1.bf16.msra.mxu0 %v2537
        %4274 = vmatprep.subr.bf16.mxu0 0
        %4275 = vmatpush1.bf16.msra.mxu0 0
        %4276 = vmatprep.subr.bf16.mxu0 0
        %4277 = vmatpush1.bf16.msra.mxu0 0
        %4278 = vmatprep.subr.bf16.mxu0 0
        %4279 = vmatpush1.bf16.msra.mxu0 0
        %4280 = vmatprep.subr.bf16.mxu0 0
        %4281 = vmatpush1.bf16.msra.mxu0 0
        %4282 = vmatprep.subr.bf16.mxu0 0
        %4283 = vmatpush1.bf16.msra.mxu0 0
        %4284 = vmatprep.subr.bf16.mxu0 0
        %4285 = vmatpush1.bf16.msra.mxu0 0
        %4286 = vmatprep.subr.bf16.mxu0 0
        %4287 = vmatpush1.bf16.msra.mxu0 0
        %4288 = vmatprep.subr.bf16.mxu0 0
        %4289 = vmatpush1.bf16.msra.mxu0 0
        %4290 = vmatprep.subr.bf16.mxu0 0
        %4291 = vmatpush1.bf16.msra.mxu0 0
        %4292 = vmatprep.subr.bf16.mxu0 0
        %4293 = vmatpush1.bf16.msra.mxu0 0
        %4294 = vmatprep.subr.bf16.mxu0 0
        %4295 = vmatpush1.bf16.msra.mxu0 0
        %4296 = vmatprep.subr.bf16.mxu0 0
        %4297 = vmatpush1.bf16.msra.mxu0 0
        %4298 = vmatprep.subr.bf16.mxu0 0
        %4299 = vmatpush1.bf16.msra.mxu0 0
        %4300 = vmatprep.subr.bf16.mxu0 0
        %4301 = vmatpush1.bf16.msra.mxu0 0
        %4302 = vmatprep.mubr.bf16.mxu0 0
        %4303 = vmatmul.mubr.bf16.gmra.mrb[0].mxu0 %v4160
        %v4304 = vpop.f32.mrb[0].mxu0
        %v4305 = vadd.f32 0.0, %v4304
        %v4306 = vpop.f32.mrb[0].mxu0
        %v4307 = vadd.f32 0.0, %v4306
        %v4308 = vpop.f32.mrb[0].mxu0
        %v4309 = vadd.f32 0.0, %v4308
        %v4310 = vpop.f32.mrb[0].mxu0
        %v4311 = vadd.f32 0.0, %v4310
        %4312 = vmatprep.mubr.bf16.mxu0 0
        %4313 = vmatmul.mubr.bf16.gmra.mrb[0].mxu0 %v4163
        %v4314 = vpop.f32.mrb[0].mxu0
        %v4315 = vadd.f32 0.0, %v4314
        %v4316 = vpop.f32.mrb[0].mxu0
        %v4317 = vadd.f32 0.0, %v4316
        %v4318 = vpop.f32.mrb[0].mxu0
        %v4319 = vadd.f32 0.0, %v4318
        %v4320 = vpop.f32.mrb[0].mxu0
        %v4321 = vadd.f32 0.0, %v4320
        %4322 = vmatprep.mubr.bf16.mxu0 0
        %4323 = vmatmul.mubr.bf16.gmra.mrb[0].mxu0 %v4166
        %v4324 = vpop.f32.mrb[0].mxu0
        %v4325 = vadd.f32 0.0, %v4324
        %v4326 = vpop.f32.mrb[0].mxu0
        %v4327 = vadd.f32 0.0, %v4326
        %v4328 = vpop.f32.mrb[0].mxu0
        %v4329 = vadd.f32 0.0, %v4328
        %v4330 = vpop.f32.mrb[0].mxu0
        %v4331 = vadd.f32 0.0, %v4330
        %4332 = vmatprep.mubr.bf16.mxu0 0
        %4333 = vmatmul.mubr.bf16.gmra.mrb[0].mxu0 %v4169
        %v4334 = vpop.f32.mrb[0].mxu0
        %v4335 = vadd.f32 0.0, %v4334
        %v4336 = vpop.f32.mrb[0].mxu0
        %v4337 = vadd.f32 0.0, %v4336
        %v4338 = vpop.f32.mrb[0].mxu0
        %v4339 = vadd.f32 0.0, %v4338
        %v4340 = vpop.f32.mrb[0].mxu0
        %v4341 = vadd.f32 0.0, %v4340
        %4342 = vmatprep.mubr.bf16.mxu0 0
        %4343 = vmatmul.mubr.bf16.gmra.mrb[0].mxu0 %v4172
        %v4344 = vpop.f32.mrb[0].mxu0
        %v4345 = vadd.f32 0.0, %v4344
        %v4346 = vpop.f32.mrb[0].mxu0
        %v4347 = vadd.f32 0.0, %v4346
        %v4348 = vpop.f32.mrb[0].mxu0
        %v4349 = vadd.f32 0.0, %v4348
        %v4350 = vpop.f32.mrb[0].mxu0
        %v4351 = vadd.f32 0.0, %v4350
        %4352 = vmatprep.mubr.bf16.mxu0 0
        %4353 = vmatmul.mubr.bf16.gmra.mrb[0].mxu0 %v4175
        %v4354 = vpop.f32.mrb[0].mxu0
        %v4355 = vadd.f32 0.0, %v4354
        %v4356 = vpop.f32.mrb[0].mxu0
        %v4357 = vadd.f32 0.0, %v4356
        %v4358 = vpop.f32.mrb[0].mxu0
        %v4359 = vadd.f32 0.0, %v4358
        %v4360 = vpop.f32.mrb[0].mxu0
        %v4361 = vadd.f32 0.0, %v4360
        %4362 = vdwg.mxu0
        %4363 = vmatprep.subr.bf16.mxu0 %v2499
        %4364 = vmatpush1.bf16.msra.mxu0 %v2498
        %4365 = vmatprep.subr.bf16.mxu0 %v2546
        %4366 = vmatpush1.bf16.msra.mxu0 %v2543
        %4367 = vmatprep.subr.bf16.mxu0 0
        %4368 = vmatpush1.bf16.msra.mxu0 0
        %4369 = vmatprep.subr.bf16.mxu0 0
        %4370 = vmatpush1.bf16.msra.mxu0 0
        %4371 = vmatprep.subr.bf16.mxu0 0
        %4372 = vmatpush1.bf16.msra.mxu0 0
        %4373 = vmatprep.subr.bf16.mxu0 0
        %4374 = vmatpush1.bf16.msra.mxu0 0
        %4375 = vmatprep.subr.bf16.mxu0 0
        %4376 = vmatpush1.bf16.msra.mxu0 0
        %4377 = vmatprep.subr.bf16.mxu0 0
        %4378 = vmatpush1.bf16.msra.mxu0 0
        %4379 = vmatprep.subr.bf16.mxu0 0
        %4380 = vmatpush1.bf16.msra.mxu0 0
        %4381 = vmatprep.subr.bf16.mxu0 0
        %4382 = vmatpush1.bf16.msra.mxu0 0
        %4383 = vmatprep.subr.bf16.mxu0 0
        %4384 = vmatpush1.bf16.msra.mxu0 0
        %4385 = vmatprep.subr.bf16.mxu0 0
        %4386 = vmatpush1.bf16.msra.mxu0 0
        %4387 = vmatprep.subr.bf16.mxu0 0
        %4388 = vmatpush1.bf16.msra.mxu0 0
        %4389 = vmatprep.subr.bf16.mxu0 0
        %4390 = vmatpush1.bf16.msra.mxu0 0
        %4391 = vmatprep.subr.bf16.mxu0 0
        %4392 = vmatpush1.bf16.msra.mxu0 0
        %4393 = vmatprep.subr.bf16.mxu0 0
        %4394 = vmatpush1.bf16.msra.mxu0 0
        %4395 = vmatprep.mubr.bf16.mxu0 0
        %4396 = vmatmul.mubr.bf16.gmra.mrb[0].mxu0 %v4160
        %v4397 = vpop.f32.mrb[0].mxu0
        %v4398 = vadd.f32 0.0, %v4397
        %v4399 = vpop.f32.mrb[0].mxu0
        %v4400 = vadd.f32 0.0, %v4399
        %v4401 = vpop.f32.mrb[0].mxu0
        %v4402 = vadd.f32 0.0, %v4401
        %v4403 = vpop.f32.mrb[0].mxu0
        %v4404 = vadd.f32 0.0, %v4403
        %4405 = vmatprep.mubr.bf16.mxu0 0
        %4406 = vmatmul.mubr.bf16.gmra.mrb[0].mxu0 %v4163
        %v4407 = vpop.f32.mrb[0].mxu0
        %v4408 = vadd.f32 0.0, %v4407
        %v4409 = vpop.f32.mrb[0].mxu0
        %v4410 = vadd.f32 0.0, %v4409
        %v4411 = vpop.f32.mrb[0].mxu0
        %v4412 = vadd.f32 0.0, %v4411
        %v4413 = vpop.f32.mrb[0].mxu0
        %v4414 = vadd.f32 0.0, %v4413
        %4415 = vmatprep.mubr.bf16.mxu0 0
        %4416 = vmatmul.mubr.bf16.gmra.mrb[0].mxu0 %v4166
        %v4417 = vpop.f32.mrb[0].mxu0
        %v4418 = vadd.f32 0.0, %v4417
        %v4419 = vpop.f32.mrb[0].mxu0
        %v4420 = vadd.f32 0.0, %v4419
        %v4421 = vpop.f32.mrb[0].mxu0
        %v4422 = vadd.f32 0.0, %v4421
        %v4423 = vpop.f32.mrb[0].mxu0
        %v4424 = vadd.f32 0.0, %v4423
        %4425 = vmatprep.mubr.bf16.mxu0 0
        %4426 = vmatmul.mubr.bf16.gmra.mrb[0].mxu0 %v4169
        %v4427 = vpop.f32.mrb[0].mxu0
        %v4428 = vadd.f32 0.0, %v4427
        %v4429 = vpop.f32.mrb[0].mxu0
        %v4430 = vadd.f32 0.0, %v4429
        %v4431 = vpop.f32.mrb[0].mxu0
        %v4432 = vadd.f32 0.0, %v4431
        %v4433 = vpop.f32.mrb[0].mxu0
        %v4434 = vadd.f32 0.0, %v4433
        %4435 = vmatprep.mubr.bf16.mxu0 0
        %4436 = vmatmul.mubr.bf16.gmra.mrb[0].mxu0 %v4172
        %v4437 = vpop.f32.mrb[0].mxu0
        %v4438 = vadd.f32 0.0, %v4437
        %v4439 = vpop.f32.mrb[0].mxu0
        %v4440 = vadd.f32 0.0, %v4439
        %v4441 = vpop.f32.mrb[0].mxu0
        %v4442 = vadd.f32 0.0, %v4441
        %v4443 = vpop.f32.mrb[0].mxu0
        %v4444 = vadd.f32 0.0, %v4443
        %4445 = vmatprep.mubr.bf16.mxu0 0
        %4446 = vmatmul.mubr.bf16.gmra.mrb[0].mxu0 %v4175
        %v4447 = vpop.f32.mrb[0].mxu0
        %v4448 = vadd.f32 0.0, %v4447
        %v4449 = vpop.f32.mrb[0].mxu0
        %v4450 = vadd.f32 0.0, %v4449
        %v4451 = vpop.f32.mrb[0].mxu0
        %v4452 = vadd.f32 0.0, %v4451
        %v4453 = vpop.f32.mrb[0].mxu0
        %v4454 = vadd.f32 0.0, %v4453
        %4455 = vdwg.mxu0
        %v4456 = vadd.f32 %v4087, %v4212
        %v4457 = vadd.f32 %v4088, %v4214
        %v4458 = vadd.f32 %v4089, %v4305
        %v4459 = vadd.f32 %v4090, %v4307
        %v4460 = vadd.f32 %v4091, %v4398
        %v4461 = vadd.f32 %v4092, %v4400
        %v4462 = vadd.f32 %v4093, %v4216
        %v4463 = vadd.f32 %v4094, %v4218
        %v4464 = vadd.f32 %v4095, %v4309
        %v4465 = vadd.f32 %v4096, %v4311
        %v4466 = vadd.f32 %v4097, %v4402
        %v4467 = vadd.f32 %v4098, %v4404
        %v4468 = vadd.f32 %v4099, %v4222
        %v4469 = vadd.f32 %v4100, %v4224
        %v4470 = vadd.f32 %v4101, %v4315
        %v4471 = vadd.f32 %v4102, %v4317
        %v4472 = vadd.f32 %v4103, %v4408
        %v4473 = vadd.f32 %v4104, %v4410
        %v4474 = vadd.f32 %v4105, %v4226
        %v4475 = vadd.f32 %v4106, %v4228
        %v4476 = vadd.f32 %v4107, %v4319
        %v4477 = vadd.f32 %v4108, %v4321
        %v4478 = vadd.f32 %v4109, %v4412
        %v4479 = vadd.f32 %v4110, %v4414
        %v4480 = vadd.f32 %v4111, %v4232
        %v4481 = vadd.f32 %v4112, %v4234
        %v4482 = vadd.f32 %v4113, %v4325
        %v4483 = vadd.f32 %v4114, %v4327
        %v4484 = vadd.f32 %v4115, %v4418
        %v4485 = vadd.f32 %v4116, %v4420
        %v4486 = vadd.f32 %v4117, %v4236
        %v4487 = vadd.f32 %v4118, %v4238
        %v4488 = vadd.f32 %v4119, %v4329
        %v4489 = vadd.f32 %v4120, %v4331
        %v4490 = vadd.f32 %v4121, %v4422
        %v4491 = vadd.f32 %v4122, %v4424
        %v4492 = vadd.f32 %v4123, %v4242
        %v4493 = vadd.f32 %v4124, %v4244
        %v4494 = vadd.f32 %v4125, %v4335
        %v4495 = vadd.f32 %v4126, %v4337
        %v4496 = vadd.f32 %v4127, %v4428
        %v4497 = vadd.f32 %v4128, %v4430
        %v4498 = vadd.f32 %v4129, %v4246
        %v4499 = vadd.f32 %v4130, %v4248
        %v4500 = vadd.f32 %v4131, %v4339
        %v4501 = vadd.f32 %v4132, %v4341
        %v4502 = vadd.f32 %v4133, %v4432
        %v4503 = vadd.f32 %v4134, %v4434
        %v4504 = vadd.f32 %v4135, %v4252
        %v4505 = vadd.f32 %v4136, %v4254
        %v4506 = vadd.f32 %v4137, %v4345
        %v4507 = vadd.f32 %v4138, %v4347
        %v4508 = vadd.f32 %v4139, %v4438
        %v4509 = vadd.f32 %v4140, %v4440
        %v4510 = vadd.f32 %v4141, %v4256
        %v4511 = vadd.f32 %v4142, %v4258
        %v4512 = vadd.f32 %v4143, %v4349
        %v4513 = vadd.f32 %v4144, %v4351
        %v4514 = vadd.f32 %v4145, %v4442
        %v4515 = vadd.f32 %v4146, %v4444
        %v4516 = vadd.f32 %v4147, %v4262
        %v4517 = vadd.f32 %v4148, %v4264
        %v4518 = vadd.f32 %v4149, %v4355
        %v4519 = vadd.f32 %v4150, %v4357
        %v4520 = vadd.f32 %v4151, %v4448
        %v4521 = vadd.f32 %v4152, %v4450
        %v4522 = vadd.f32 %v4153, %v4266
        %v4523 = vadd.f32 %v4154, %v4268
        %v4524 = vadd.f32 %v4155, %v4359
        %v4525 = vadd.f32 %v4156, %v4361
        %v4526 = vadd.f32 %v4157, %v4452
        %v4527 = vadd.f32 %v4158, %v4454
        %v4528 = vmax.f32 %v2827, %v2830
        %v4529 = vmax.f32 %v2828, %v2831
        %v4530 = vmax.f32 %v2829, %v2832
        %v4531 = vmax.f32 %v2833, %v2836
        %v4532 = vmax.f32 %v2834, %v2837
        %v4533 = vmax.f32 %v2835, %v2838
        %v4534 = vmax.f32 %v2839, %v2842
        %v4535 = vmax.f32 %v2840, %v2843
        %v4536 = vmax.f32 %v2841, %v2844
        %v4537 = vmax.f32 %v2845, %v2848
        %v4538 = vmax.f32 %v2846, %v2849
        %v4539 = vmax.f32 %v2847, %v2850
        %v4540 = vmax.f32 %v2851, %v2854
        %v4541 = vmax.f32 %v2852, %v2855
        %v4542 = vmax.f32 %v2853, %v2856
        %v4543 = vmax.f32 %v2857, %v2860
        %v4544 = vmax.f32 %v2858, %v2861
        %v4545 = vmax.f32 %v2859, %v2862
        %v4546 = vmax.f32 %v2863, %v2866
        %v4547 = vmax.f32 %v2864, %v2867
        %v4548 = vmax.f32 %v2865, %v2868
        %v4549 = vmax.f32 %v2869, %v2872
        %v4550 = vmax.f32 %v2870, %v2873
        %v4551 = vmax.f32 %v2871, %v2874
        %v4552 = vmax.f32 %v2875, %v2878
        %v4553 = vmax.f32 %v2876, %v2879
        %v4554 = vmax.f32 %v2877, %v2880
        %v4555 = vmax.f32 %v2881, %v2884
        %v4556 = vmax.f32 %v2882, %v2885
        %v4557 = vmax.f32 %v2883, %v2886
        %v4558 = vmax.f32 %v2887, %v2890
        %v4559 = vmax.f32 %v2888, %v2891
        %v4560 = vmax.f32 %v2889, %v2892
        %v4561 = vmax.f32 %v2893, %v2896
        %v4562 = vmax.f32 %v2894, %v2897
        %v4563 = vmax.f32 %v2895, %v2898
        %v4564 = vmax.f32 %v4456, %v4459
        %v4565 = vmax.f32 %v4457, %v4460
        %v4566 = vmax.f32 %v4458, %v4461
        %v4567 = vmax.f32 %v4462, %v4465
        %v4568 = vmax.f32 %v4463, %v4466
        %v4569 = vmax.f32 %v4464, %v4467
        %v4570 = vmax.f32 %v4468, %v4471
        %v4571 = vmax.f32 %v4469, %v4472
        %v4572 = vmax.f32 %v4470, %v4473
        %v4573 = vmax.f32 %v4474, %v4477
        %v4574 = vmax.f32 %v4475, %v4478
        %v4575 = vmax.f32 %v4476, %v4479
        %v4576 = vmax.f32 %v4480, %v4483
        %v4577 = vmax.f32 %v4481, %v4484
        %v4578 = vmax.f32 %v4482, %v4485
        %v4579 = vmax.f32 %v4486, %v4489
        %v4580 = vmax.f32 %v4487, %v4490
        %v4581 = vmax.f32 %v4488, %v4491
        %v4582 = vmax.f32 %v4492, %v4495
        %v4583 = vmax.f32 %v4493, %v4496
        %v4584 = vmax.f32 %v4494, %v4497
        %v4585 = vmax.f32 %v4498, %v4501
        %v4586 = vmax.f32 %v4499, %v4502
        %v4587 = vmax.f32 %v4500, %v4503
        %v4588 = vmax.f32 %v4504, %v4507
        %v4589 = vmax.f32 %v4505, %v4508
        %v4590 = vmax.f32 %v4506, %v4509
        %v4591 = vmax.f32 %v4510, %v4513
        %v4592 = vmax.f32 %v4511, %v4514
        %v4593 = vmax.f32 %v4512, %v4515
        %v4594 = vmax.f32 %v4516, %v4519
        %v4595 = vmax.f32 %v4517, %v4520
        %v4596 = vmax.f32 %v4518, %v4521
        %v4597 = vmax.f32 %v4522, %v4525
        %v4598 = vmax.f32 %v4523, %v4526
        %v4599 = vmax.f32 %v4524, %v4527
        %v4600 = vmax.f32 %v4528, %v4564
        %v4601 = vmax.f32 %v4529, %v4565
        %v4602 = vmax.f32 %v4530, %v4566
        %v4603 = vmax.f32 %v4531, %v4567
        %v4604 = vmax.f32 %v4532, %v4568
        %v4605 = vmax.f32 %v4533, %v4569
        %v4606 = vmax.f32 %v4534, %v4570
        %v4607 = vmax.f32 %v4535, %v4571
        %v4608 = vmax.f32 %v4536, %v4572
        %v4609 = vmax.f32 %v4537, %v4573
        %v4610 = vmax.f32 %v4538, %v4574
        %v4611 = vmax.f32 %v4539, %v4575
        %v4612 = vmax.f32 %v4540, %v4576
        %v4613 = vmax.f32 %v4541, %v4577
        %v4614 = vmax.f32 %v4542, %v4578
        %v4615 = vmax.f32 %v4543, %v4579
        %v4616 = vmax.f32 %v4544, %v4580
        %v4617 = vmax.f32 %v4545, %v4581
        %v4618 = vmax.f32 %v4546, %v4582
        %v4619 = vmax.f32 %v4547, %v4583
        %v4620 = vmax.f32 %v4548, %v4584
        %v4621 = vmax.f32 %v4549, %v4585
        %v4622 = vmax.f32 %v4550, %v4586
        %v4623 = vmax.f32 %v4551, %v4587
        %v4624 = vmax.f32 %v4552, %v4588
        %v4625 = vmax.f32 %v4553, %v4589
        %v4626 = vmax.f32 %v4554, %v4590
        %v4627 = vmax.f32 %v4555, %v4591
        %v4628 = vmax.f32 %v4556, %v4592
        %v4629 = vmax.f32 %v4557, %v4593
        %v4630 = vmax.f32 %v4558, %v4594
        %v4631 = vmax.f32 %v4559, %v4595
        %v4632 = vmax.f32 %v4560, %v4596
        %v4633 = vmax.f32 %v4561, %v4597
        %v4634 = vmax.f32 %v4562, %v4598
        %v4635 = vmax.f32 %v4563, %v4599
        %v4636 = vld [vmem:[#allocation7] sm:$0x7]
        %v4638 = vlaneseq
        %v4639 = vshrl.u32 %v4638, 7
        %v4640 = vsub.s32 0, %v4639
        %v4641 = vrot.slane %v4636, %v4640
        %v4642 = vlaneseq
        %v4643 = vshrl.u32 %v4642, 7
        %v4644 = vsub.s32 1, %v4643
        %v4645 = vrot.slane %v4636, %v4644
        %v4646 = vlaneseq
        %v4647 = vshrl.u32 %v4646, 7
        %v4648 = vsub.s32 2, %v4647
        %v4649 = vrot.slane %v4636, %v4648
        %v4653 = vadd.f32 %v4600, %v4641
        %v4654 = vadd.f32 %v4601, %v4645
        %v4655 = vadd.f32 %v4602, %v4649
        %v4656 = vadd.f32 %v4603, %v4641
        %v4657 = vadd.f32 %v4604, %v4645
        %v4658 = vadd.f32 %v4605, %v4649
        %v4659 = vadd.f32 %v4606, %v4641
        %v4660 = vadd.f32 %v4607, %v4645
        %v4661 = vadd.f32 %v4608, %v4649
        %v4662 = vadd.f32 %v4609, %v4641
        %v4663 = vadd.f32 %v4610, %v4645
        %v4664 = vadd.f32 %v4611, %v4649
        %v4665 = vadd.f32 %v4612, %v4641
        %v4666 = vadd.f32 %v4613, %v4645
        %v4667 = vadd.f32 %v4614, %v4649
        %v4668 = vadd.f32 %v4615, %v4641
        %v4669 = vadd.f32 %v4616, %v4645
        %v4670 = vadd.f32 %v4617, %v4649
        %v4671 = vadd.f32 %v4618, %v4641
        %v4672 = vadd.f32 %v4619, %v4645
        %v4673 = vadd.f32 %v4620, %v4649
        %v4674 = vadd.f32 %v4621, %v4641
        %v4675 = vadd.f32 %v4622, %v4645
        %v4676 = vadd.f32 %v4623, %v4649
        %v4677 = vadd.f32 %v4624, %v4641
        %v4678 = vadd.f32 %v4625, %v4645
        %v4679 = vadd.f32 %v4626, %v4649
        %v4680 = vadd.f32 %v4627, %v4641
        %v4681 = vadd.f32 %v4628, %v4645
        %v4682 = vadd.f32 %v4629, %v4649
        %v4683 = vadd.f32 %v4630, %v4641
        %v4684 = vadd.f32 %v4631, %v4645
        %v4685 = vadd.f32 %v4632, %v4649
        %v4686 = vadd.f32 %v4633, %v4641
        %v4687 = vadd.f32 %v4634, %v4645
        %v4688 = vadd.f32 %v4635, %v4649
        %v4689 = vmax.f32 %v4653, 0.0
        %v4690 = vmax.f32 %v4654, 0.0
        %v4691 = vmax.f32 %v4655, 0.0
        %v4692 = vmax.f32 %v4656, 0.0
        %v4693 = vmax.f32 %v4657, 0.0
        %v4694 = vmax.f32 %v4658, 0.0
        %v4695 = vmax.f32 %v4659, 0.0
        %v4696 = vmax.f32 %v4660, 0.0
        %v4697 = vmax.f32 %v4661, 0.0
        %v4698 = vmax.f32 %v4662, 0.0
        %v4699 = vmax.f32 %v4663, 0.0
        %v4700 = vmax.f32 %v4664, 0.0
        %v4701 = vmax.f32 %v4665, 0.0
        %v4702 = vmax.f32 %v4666, 0.0
        %v4703 = vmax.f32 %v4667, 0.0
        %v4704 = vmax.f32 %v4668, 0.0
        %v4705 = vmax.f32 %v4669, 0.0
        %v4706 = vmax.f32 %v4670, 0.0
        %v4707 = vmax.f32 %v4671, 0.0
        %v4708 = vmax.f32 %v4672, 0.0
        %v4709 = vmax.f32 %v4673, 0.0
        %v4710 = vmax.f32 %v4674, 0.0
        %v4711 = vmax.f32 %v4675, 0.0
        %v4712 = vmax.f32 %v4676, 0.0
        %v4713 = vmax.f32 %v4677, 0.0
        %v4714 = vmax.f32 %v4678, 0.0
        %v4715 = vmax.f32 %v4679, 0.0
        %v4716 = vmax.f32 %v4680, 0.0
        %v4717 = vmax.f32 %v4681, 0.0
        %v4718 = vmax.f32 %v4682, 0.0
        %v4719 = vmax.f32 %v4683, 0.0
        %v4720 = vmax.f32 %v4684, 0.0
        %v4721 = vmax.f32 %v4685, 0.0
        %v4722 = vmax.f32 %v4686, 0.0
        %v4723 = vmax.f32 %v4687, 0.0
        %v4724 = vmax.f32 %v4688, 0.0
        %v4725 = vpack.c.bf16 %v4695, %v4689
        %v4726 = vpack.c.bf16 %v4696, %v4690
        %v4727 = vpack.c.bf16 %v4697, %v4691
        %v4728 = vpack.c.bf16 %v4707, %v4701
        %v4729 = vpack.c.bf16 %v4708, %v4702
        %v4730 = vpack.c.bf16 %v4709, %v4703
        %v4731 = vpack.c.bf16 %v4701, %v4695
        %v4732 = vpack.c.bf16 %v4702, %v4696
        %v4733 = vpack.c.bf16 %v4703, %v4697
        %v4734 = vpack.c.bf16 %v4713, %v4707
        %v4735 = vpack.c.bf16 %v4714, %v4708
        %v4736 = vpack.c.bf16 %v4715, %v4709
        %v4737 = vpack.c.bf16 %v4719, %v4713
        %v4738 = vpack.c.bf16 %v4720, %v4714
        %v4739 = vpack.c.bf16 %v4721, %v4715
        %v4740 = vpack.c.bf16 %v4698, %v4692
        %v4741 = vpack.c.bf16 %v4699, %v4693
        %v4742 = vpack.c.bf16 %v4700, %v4694
        %v4743 = vpack.c.bf16 %v4710, %v4704
        %v4744 = vpack.c.bf16 %v4711, %v4705
        %v4745 = vpack.c.bf16 %v4712, %v4706
        %v4746 = vpack.c.bf16 %v4704, %v4698
        %v4747 = vpack.c.bf16 %v4705, %v4699
        %v4748 = vpack.c.bf16 %v4706, %v4700
        %v4749 = vpack.c.bf16 %v4716, %v4710
        %v4750 = vpack.c.bf16 %v4717, %v4711
        %v4751 = vpack.c.bf16 %v4718, %v4712
        %v4752 = vpack.c.bf16 %v4722, %v4716
        %v4753 = vpack.c.bf16 %v4723, %v4717
        %v4754 = vpack.c.bf16 %v4724, %v4718
        %v4755 = vld [vmem:[#allocation9] sm:$0xff]
        %v4756 = vld [vmem:[#allocation9 + $0x8] sm:$0xff]
        %v4757 = vld [vmem:[#allocation9 + $0x10] sm:$0xff]
        %v4758 = vld [vmem:[#allocation9 + $0x18] sm:$0xff]
        %v4759 = vld [vmem:[#allocation9 + $0x20] sm:$0xff]
        %v4760 = vld [vmem:[#allocation9 + $0x28] sm:$0xff]
        %v4761 = vld [vmem:[#allocation9 + $0x30] sm:$0xff]
        %v4762 = vld [vmem:[#allocation9 + $0x38] sm:$0xff]
        %v4763 = vld [vmem:[#allocation9 + $0x40] sm:$0xff]
        %v4764 = vld [vmem:[#allocation9 + $0x48] sm:$0xff]
        %v4765 = vld [vmem:[#allocation9 + $0x50] sm:$0xff]
        %v4766 = vld [vmem:[#allocation9 + $0x58] sm:$0xff]
        %v4767 = vld [vmem:[#allocation9 + $0x60] sm:$0xff]
        %v4768 = vld [vmem:[#allocation9 + $0x68] sm:$0xff]
        %v4769 = vld [vmem:[#allocation9 + $0x70] sm:$0xff]
        %v4770 = vld [vmem:[#allocation9 + $0x78] sm:$0xff]
        %v4771 = vld [vmem:[#allocation9 + $0x80] sm:$0xff]
        %v4772 = vld [vmem:[#allocation9 + $0x88] sm:$0xff]
        %v4773 = vld [vmem:[#allocation9 + $0x90] sm:$0xff]
        %v4774 = vld [vmem:[#allocation9 + $0x98] sm:$0xff]
        %v4775 = vld [vmem:[#allocation9 + $0xa0] sm:$0xff]
        %v4776 = vld [vmem:[#allocation9 + $0xa8] sm:$0xff]
        %v4777 = vld [vmem:[#allocation9 + $0xb0] sm:$0xff]
        %v4778 = vld [vmem:[#allocation9 + $0xb8] sm:$0xff]
        %v4779 = vld [vmem:[#allocation9 + $0xc0] sm:$0xff]
        %v4780 = vld [vmem:[#allocation9 + $0xc8] sm:$0xff]
        %v4781 = vld [vmem:[#allocation9 + $0xd0] sm:$0xff]
        %v4782 = vld [vmem:[#allocation9 + $0xd8] sm:$0xff]
        %v4783 = vld [vmem:[#allocation9 + $0xe0] sm:$0xff]
        %v4784 = vld [vmem:[#allocation9 + $0xe8] sm:$0xff]
        %v4785 = vld [vmem:[#allocation9 + $0xf0] sm:$0xff]
        %v4786 = vld [vmem:[#allocation9 + $0xf8] sm:$0xff]
        %v4787 = vld [vmem:[#allocation9 + $0x100] sm:$0xff]
        %v4788 = vld [vmem:[#allocation9 + $0x108] sm:$0xff]
        %v4789 = vld [vmem:[#allocation9 + $0x110] sm:$0xff]
        %v4790 = vld [vmem:[#allocation9 + $0x118] sm:$0xff]
        %v4791 = vld [vmem:[#allocation9 + $0x120] sm:$0xff]
        %v4792 = vld [vmem:[#allocation9 + $0x128] sm:$0xff]
        %v4793 = vld [vmem:[#allocation9 + $0x130] sm:$0xff]
        %v4794 = vld [vmem:[#allocation9 + $0x138] sm:$0xff]
        %v4795 = vld [vmem:[#allocation9 + $0x140] sm:$0xff]
        %v4796 = vld [vmem:[#allocation9 + $0x148] sm:$0xff]
        %v4797 = vld [vmem:[#allocation9 + $0x150] sm:$0xff]
        %v4798 = vld [vmem:[#allocation9 + $0x158] sm:$0xff]
        %v4799 = vld [vmem:[#allocation9 + $0x160] sm:$0xff]
        %v4800 = vld [vmem:[#allocation9 + $0x168] sm:$0xff]
        %v4801 = vld [vmem:[#allocation9 + $0x170] sm:$0xff]
        %v4802 = vld [vmem:[#allocation9 + $0x178] sm:$0xff]
        %v4803 = vld [vmem:[#allocation9 + $0x180] sm:$0xff]
        %v4804 = vld [vmem:[#allocation9 + $0x188] sm:$0xff]
        %v4805 = vld [vmem:[#allocation9 + $0x190] sm:$0xff]
        %v4806 = vld [vmem:[#allocation9 + $0x198] sm:$0xff]
        %v4807 = vld [vmem:[#allocation9 + $0x1a0] sm:$0xff]
        %v4808 = vld [vmem:[#allocation9 + $0x1a8] sm:$0xff]
        %v4809 = vld [vmem:[#allocation9 + $0x1b0] sm:$0xff]
        %v4810 = vld [vmem:[#allocation9 + $0x1b8] sm:$0xff]
        %v4811 = vld [vmem:[#allocation9 + $0x1c0] sm:$0xff]
        %v4812 = vld [vmem:[#allocation9 + $0x1c8] sm:$0xff]
        %v4813 = vld [vmem:[#allocation9 + $0x1d0] sm:$0xff]
        %v4814 = vld [vmem:[#allocation9 + $0x1d8] sm:$0xff]
        %v4815 = vld [vmem:[#allocation9 + $0x1e0] sm:$0xff]
        %v4816 = vld [vmem:[#allocation9 + $0x1e8] sm:$0xff]
        %v4817 = vld [vmem:[#allocation9 + $0x1f0] sm:$0xff]
        %v4818 = vld [vmem:[#allocation9 + $0x1f8] sm:$0xff]
        %v4819 = vld [vmem:[#allocation9 + $0x200] sm:$0xff]
        %v4820 = vld [vmem:[#allocation9 + $0x208] sm:$0xff]
        %v4821 = vld [vmem:[#allocation9 + $0x210] sm:$0xff]
        %v4822 = vld [vmem:[#allocation9 + $0x218] sm:$0xff]
        %v4823 = vld [vmem:[#allocation9 + $0x220] sm:$0xff]
        %v4824 = vld [vmem:[#allocation9 + $0x228] sm:$0xff]
        %v4825 = vld [vmem:[#allocation9 + $0x230] sm:$0xff]
        %v4826 = vld [vmem:[#allocation9 + $0x238] sm:$0xff]
        %v4827 = vld [vmem:[#allocation9 + $0x240] sm:$0xff]
        %v4828 = vld [vmem:[#allocation9 + $0x248] sm:$0xff]
        %v4829 = vld [vmem:[#allocation9 + $0x250] sm:$0xff]
        %v4830 = vld [vmem:[#allocation9 + $0x258] sm:$0xff]
        %v4831 = vld [vmem:[#allocation9 + $0x260] sm:$0xff]
        %v4832 = vld [vmem:[#allocation9 + $0x268] sm:$0xff]
        %v4833 = vld [vmem:[#allocation9 + $0x270] sm:$0xff]
        %v4834 = vld [vmem:[#allocation9 + $0x278] sm:$0xff]
        %v4835 = vld [vmem:[#allocation9 + $0x280] sm:$0xff]
        %v4836 = vld [vmem:[#allocation9 + $0x288] sm:$0xff]
        %v4837 = vld [vmem:[#allocation9 + $0x290] sm:$0xff]
        %v4838 = vld [vmem:[#allocation9 + $0x298] sm:$0xff]
        %v4839 = vld [vmem:[#allocation9 + $0x2a0] sm:$0xff]
        %v4840 = vld [vmem:[#allocation9 + $0x2a8] sm:$0xff]
        %v4841 = vld [vmem:[#allocation9 + $0x2b0] sm:$0xff]
        %v4842 = vld [vmem:[#allocation9 + $0x2b8] sm:$0xff]
        %v4843 = vld [vmem:[#allocation9 + $0x2c0] sm:$0xff]
        %v4844 = vld [vmem:[#allocation9 + $0x2c8] sm:$0xff]
        %v4845 = vld [vmem:[#allocation9 + $0x2d0] sm:$0xff]
        %v4846 = vld [vmem:[#allocation9 + $0x2d8] sm:$0xff]
        %v4847 = vld [vmem:[#allocation9 + $0x2e0] sm:$0xff]
        %v4848 = vld [vmem:[#allocation9 + $0x2e8] sm:$0xff]
        %v4849 = vld [vmem:[#allocation9 + $0x2f0] sm:$0xff]
        %v4850 = vld [vmem:[#allocation9 + $0x2f8] sm:$0xff]
        %s4851 = scalar_lea.vmem [#allocation9], 768
        %v4852 = vld [vmem:[%s4851] sm:$0xff]
        %v4853 = vld [vmem:[%s4851 + $0x8] sm:$0xff]
        %v4854 = vld [vmem:[%s4851 + $0x10] sm:$0xff]
        %v4855 = vld [vmem:[%s4851 + $0x18] sm:$0xff]
        %v4856 = vld [vmem:[%s4851 + $0x20] sm:$0xff]
        %v4857 = vld [vmem:[%s4851 + $0x28] sm:$0xff]
        %v4858 = vld [vmem:[%s4851 + $0x30] sm:$0xff]
        %v4859 = vld [vmem:[%s4851 + $0x38] sm:$0xff]
        %v4860 = vld [vmem:[%s4851 + $0x40] sm:$0xff]
        %v4861 = vld [vmem:[%s4851 + $0x48] sm:$0xff]
        %v4862 = vld [vmem:[%s4851 + $0x50] sm:$0xff]
        %v4863 = vld [vmem:[%s4851 + $0x58] sm:$0xff]
        %v4864 = vld [vmem:[%s4851 + $0x60] sm:$0xff]
        %v4865 = vld [vmem:[%s4851 + $0x68] sm:$0xff]
        %v4866 = vld [vmem:[%s4851 + $0x70] sm:$0xff]
        %v4867 = vld [vmem:[%s4851 + $0x78] sm:$0xff]
        %v4868 = vld [vmem:[%s4851 + $0x80] sm:$0xff]
        %v4869 = vld [vmem:[%s4851 + $0x88] sm:$0xff]
        %v4870 = vld [vmem:[%s4851 + $0x90] sm:$0xff]
        %v4871 = vld [vmem:[%s4851 + $0x98] sm:$0xff]
        %v4872 = vld [vmem:[%s4851 + $0xa0] sm:$0xff]
        %v4873 = vld [vmem:[%s4851 + $0xa8] sm:$0xff]
        %v4874 = vld [vmem:[%s4851 + $0xb0] sm:$0xff]
        %v4875 = vld [vmem:[%s4851 + $0xb8] sm:$0xff]
        %v4876 = vld [vmem:[%s4851 + $0xc0] sm:$0xff]
        %v4877 = vld [vmem:[%s4851 + $0xc8] sm:$0xff]
        %v4878 = vld [vmem:[%s4851 + $0xd0] sm:$0xff]
        %v4879 = vld [vmem:[%s4851 + $0xd8] sm:$0xff]
        %v4880 = vld [vmem:[%s4851 + $0xe0] sm:$0xff]
        %v4881 = vld [vmem:[%s4851 + $0xe8] sm:$0xff]
        %v4882 = vld [vmem:[%s4851 + $0xf0] sm:$0xff]
        %v4883 = vld [vmem:[%s4851 + $0xf8] sm:$0xff]
        %v4884 = vld [vmem:[%s4851 + $0x100] sm:$0xff]
        %v4885 = vld [vmem:[%s4851 + $0x108] sm:$0xff]
        %v4886 = vld [vmem:[%s4851 + $0x110] sm:$0xff]
        %v4887 = vld [vmem:[%s4851 + $0x118] sm:$0xff]
        %v4888 = vld [vmem:[%s4851 + $0x120] sm:$0xff]
        %v4889 = vld [vmem:[%s4851 + $0x128] sm:$0xff]
        %v4890 = vld [vmem:[%s4851 + $0x130] sm:$0xff]
        %v4891 = vld [vmem:[%s4851 + $0x138] sm:$0xff]
        %v4892 = vld [vmem:[%s4851 + $0x140] sm:$0xff]
        %v4893 = vld [vmem:[%s4851 + $0x148] sm:$0xff]
        %v4894 = vld [vmem:[%s4851 + $0x150] sm:$0xff]
        %v4895 = vld [vmem:[%s4851 + $0x158] sm:$0xff]
        %v4896 = vld [vmem:[%s4851 + $0x160] sm:$0xff]
        %v4897 = vld [vmem:[%s4851 + $0x168] sm:$0xff]
        %v4898 = vld [vmem:[%s4851 + $0x170] sm:$0xff]
        %v4899 = vld [vmem:[%s4851 + $0x178] sm:$0xff]
        %v4900 = vld [vmem:[%s4851 + $0x180] sm:$0xff]
        %v4901 = vld [vmem:[%s4851 + $0x188] sm:$0xff]
        %v4902 = vld [vmem:[%s4851 + $0x190] sm:$0xff]
        %v4903 = vld [vmem:[%s4851 + $0x198] sm:$0xff]
        %v4904 = vld [vmem:[%s4851 + $0x1a0] sm:$0xff]
        %v4905 = vld [vmem:[%s4851 + $0x1a8] sm:$0xff]
        %v4906 = vld [vmem:[%s4851 + $0x1b0] sm:$0xff]
        %v4907 = vld [vmem:[%s4851 + $0x1b8] sm:$0xff]
        %v4908 = vld [vmem:[%s4851 + $0x1c0] sm:$0xff]
        %v4909 = vld [vmem:[%s4851 + $0x1c8] sm:$0xff]
        %v4910 = vld [vmem:[%s4851 + $0x1d0] sm:$0xff]
        %v4911 = vld [vmem:[%s4851 + $0x1d8] sm:$0xff]
        %v4912 = vld [vmem:[%s4851 + $0x1e0] sm:$0xff]
        %v4913 = vld [vmem:[%s4851 + $0x1e8] sm:$0xff]
        %v4914 = vld [vmem:[%s4851 + $0x1f0] sm:$0xff]
        %v4915 = vld [vmem:[%s4851 + $0x1f8] sm:$0xff]
        %v4916 = vld [vmem:[%s4851 + $0x200] sm:$0xff]
        %v4917 = vld [vmem:[%s4851 + $0x208] sm:$0xff]
        %v4918 = vld [vmem:[%s4851 + $0x210] sm:$0xff]
        %v4919 = vld [vmem:[%s4851 + $0x218] sm:$0xff]
        %v4920 = vld [vmem:[%s4851 + $0x220] sm:$0xff]
        %v4921 = vld [vmem:[%s4851 + $0x228] sm:$0xff]
        %v4922 = vld [vmem:[%s4851 + $0x230] sm:$0xff]
        %v4923 = vld [vmem:[%s4851 + $0x238] sm:$0xff]
        %v4924 = vld [vmem:[%s4851 + $0x240] sm:$0xff]
        %v4925 = vld [vmem:[%s4851 + $0x248] sm:$0xff]
        %v4926 = vld [vmem:[%s4851 + $0x250] sm:$0xff]
        %v4927 = vld [vmem:[%s4851 + $0x258] sm:$0xff]
        %v4928 = vld [vmem:[%s4851 + $0x260] sm:$0xff]
        %v4929 = vld [vmem:[%s4851 + $0x268] sm:$0xff]
        %v4930 = vld [vmem:[%s4851 + $0x270] sm:$0xff]
        %v4931 = vld [vmem:[%s4851 + $0x278] sm:$0xff]
        %v4932 = vld [vmem:[%s4851 + $0x280] sm:$0xff]
        %v4933 = vld [vmem:[%s4851 + $0x288] sm:$0xff]
        %v4934 = vld [vmem:[%s4851 + $0x290] sm:$0xff]
        %v4935 = vld [vmem:[%s4851 + $0x298] sm:$0xff]
        %v4936 = vld [vmem:[%s4851 + $0x2a0] sm:$0xff]
        %v4937 = vld [vmem:[%s4851 + $0x2a8] sm:$0xff]
        %v4938 = vld [vmem:[%s4851 + $0x2b0] sm:$0xff]
        %v4939 = vld [vmem:[%s4851 + $0x2b8] sm:$0xff]
        %v4940 = vld [vmem:[%s4851 + $0x2c0] sm:$0xff]
        %v4941 = vld [vmem:[%s4851 + $0x2c8] sm:$0xff]
        %v4942 = vld [vmem:[%s4851 + $0x2d0] sm:$0xff]
        %v4943 = vld [vmem:[%s4851 + $0x2d8] sm:$0xff]
        %v4944 = vld [vmem:[%s4851 + $0x2e0] sm:$0xff]
        %v4945 = vld [vmem:[%s4851 + $0x2e8] sm:$0xff]
        %v4946 = vld [vmem:[%s4851 + $0x2f0] sm:$0xff]
        %v4947 = vld [vmem:[%s4851 + $0x2f8] sm:$0xff]
        %s4948 = scalar_lea.vmem [#allocation9], 1536
        %v4949 = vld [vmem:[%s4948] sm:$0xff]
        %v4950 = vld [vmem:[%s4948 + $0x8] sm:$0xff]
        %v4951 = vld [vmem:[%s4948 + $0x10] sm:$0xff]
        %v4952 = vld [vmem:[%s4948 + $0x18] sm:$0xff]
        %v4953 = vld [vmem:[%s4948 + $0x20] sm:$0xff]
        %v4954 = vld [vmem:[%s4948 + $0x28] sm:$0xff]
        %v4955 = vld [vmem:[%s4948 + $0x30] sm:$0xff]
        %v4956 = vld [vmem:[%s4948 + $0x38] sm:$0xff]
        %v4957 = vld [vmem:[%s4948 + $0x40] sm:$0xff]
        %v4958 = vld [vmem:[%s4948 + $0x48] sm:$0xff]
        %v4959 = vld [vmem:[%s4948 + $0x50] sm:$0xff]
        %v4960 = vld [vmem:[%s4948 + $0x58] sm:$0xff]
        %v4961 = vld [vmem:[%s4948 + $0x60] sm:$0xff]
        %v4962 = vld [vmem:[%s4948 + $0x68] sm:$0xff]
        %v4963 = vld [vmem:[%s4948 + $0x70] sm:$0xff]
        %v4964 = vld [vmem:[%s4948 + $0x78] sm:$0xff]
        %v4965 = vld [vmem:[%s4948 + $0x80] sm:$0xff]
        %v4966 = vld [vmem:[%s4948 + $0x88] sm:$0xff]
        %v4967 = vld [vmem:[%s4948 + $0x90] sm:$0xff]
        %v4968 = vld [vmem:[%s4948 + $0x98] sm:$0xff]
        %v4969 = vld [vmem:[%s4948 + $0xa0] sm:$0xff]
        %v4970 = vld [vmem:[%s4948 + $0xa8] sm:$0xff]
        %v4971 = vld [vmem:[%s4948 + $0xb0] sm:$0xff]
        %v4972 = vld [vmem:[%s4948 + $0xb8] sm:$0xff]
        %v4973 = vld [vmem:[%s4948 + $0xc0] sm:$0xff]
        %v4974 = vld [vmem:[%s4948 + $0xc8] sm:$0xff]
        %v4975 = vld [vmem:[%s4948 + $0xd0] sm:$0xff]
        %v4976 = vld [vmem:[%s4948 + $0xd8] sm:$0xff]
        %v4977 = vld [vmem:[%s4948 + $0xe0] sm:$0xff]
        %v4978 = vld [vmem:[%s4948 + $0xe8] sm:$0xff]
        %v4979 = vld [vmem:[%s4948 + $0xf0] sm:$0xff]
        %v4980 = vld [vmem:[%s4948 + $0xf8] sm:$0xff]
        %v4981 = vld [vmem:[%s4948 + $0x100] sm:$0xff]
        %v4982 = vld [vmem:[%s4948 + $0x108] sm:$0xff]
        %v4983 = vld [vmem:[%s4948 + $0x110] sm:$0xff]
        %v4984 = vld [vmem:[%s4948 + $0x118] sm:$0xff]
        %v4985 = vld [vmem:[%s4948 + $0x120] sm:$0xff]
        %v4986 = vld [vmem:[%s4948 + $0x128] sm:$0xff]
        %v4987 = vld [vmem:[%s4948 + $0x130] sm:$0xff]
        %v4988 = vld [vmem:[%s4948 + $0x138] sm:$0xff]
        %v4989 = vld [vmem:[%s4948 + $0x140] sm:$0xff]
        %v4990 = vld [vmem:[%s4948 + $0x148] sm:$0xff]
        %v4991 = vld [vmem:[%s4948 + $0x150] sm:$0xff]
        %v4992 = vld [vmem:[%s4948 + $0x158] sm:$0xff]
        %v4993 = vld [vmem:[%s4948 + $0x160] sm:$0xff]
        %v4994 = vld [vmem:[%s4948 + $0x168] sm:$0xff]
        %v4995 = vld [vmem:[%s4948 + $0x170] sm:$0xff]
        %v4996 = vld [vmem:[%s4948 + $0x178] sm:$0xff]
        %v4997 = vld [vmem:[%s4948 + $0x180] sm:$0xff]
        %v4998 = vld [vmem:[%s4948 + $0x188] sm:$0xff]
        %v4999 = vld [vmem:[%s4948 + $0x190] sm:$0xff]
        %v5000 = vld [vmem:[%s4948 + $0x198] sm:$0xff]
        %v5001 = vld [vmem:[%s4948 + $0x1a0] sm:$0xff]
        %v5002 = vld [vmem:[%s4948 + $0x1a8] sm:$0xff]
        %v5003 = vld [vmem:[%s4948 + $0x1b0] sm:$0xff]
        %v5004 = vld [vmem:[%s4948 + $0x1b8] sm:$0xff]
        %v5005 = vld [vmem:[%s4948 + $0x1c0] sm:$0xff]
        %v5006 = vld [vmem:[%s4948 + $0x1c8] sm:$0xff]
        %v5007 = vld [vmem:[%s4948 + $0x1d0] sm:$0xff]
        %v5008 = vld [vmem:[%s4948 + $0x1d8] sm:$0xff]
        %v5009 = vld [vmem:[%s4948 + $0x1e0] sm:$0xff]
        %v5010 = vld [vmem:[%s4948 + $0x1e8] sm:$0xff]
        %v5011 = vld [vmem:[%s4948 + $0x1f0] sm:$0xff]
        %v5012 = vld [vmem:[%s4948 + $0x1f8] sm:$0xff]
        %v5013 = vld [vmem:[%s4948 + $0x200] sm:$0xff]
        %v5014 = vld [vmem:[%s4948 + $0x208] sm:$0xff]
        %v5015 = vld [vmem:[%s4948 + $0x210] sm:$0xff]
        %v5016 = vld [vmem:[%s4948 + $0x218] sm:$0xff]
        %v5017 = vld [vmem:[%s4948 + $0x220] sm:$0xff]
        %v5018 = vld [vmem:[%s4948 + $0x228] sm:$0xff]
        %v5019 = vld [vmem:[%s4948 + $0x230] sm:$0xff]
        %v5020 = vld [vmem:[%s4948 + $0x238] sm:$0xff]
        %v5021 = vld [vmem:[%s4948 + $0x240] sm:$0xff]
        %v5022 = vld [vmem:[%s4948 + $0x248] sm:$0xff]
        %v5023 = vld [vmem:[%s4948 + $0x250] sm:$0xff]
        %v5024 = vld [vmem:[%s4948 + $0x258] sm:$0xff]
        %v5025 = vld [vmem:[%s4948 + $0x260] sm:$0xff]
        %v5026 = vld [vmem:[%s4948 + $0x268] sm:$0xff]
        %v5027 = vld [vmem:[%s4948 + $0x270] sm:$0xff]
        %v5028 = vld [vmem:[%s4948 + $0x278] sm:$0xff]
        %v5029 = vld [vmem:[%s4948 + $0x280] sm:$0xff]
        %v5030 = vld [vmem:[%s4948 + $0x288] sm:$0xff]
        %v5031 = vld [vmem:[%s4948 + $0x290] sm:$0xff]
        %v5032 = vld [vmem:[%s4948 + $0x298] sm:$0xff]
        %v5033 = vld [vmem:[%s4948 + $0x2a0] sm:$0xff]
        %v5034 = vld [vmem:[%s4948 + $0x2a8] sm:$0xff]
        %v5035 = vld [vmem:[%s4948 + $0x2b0] sm:$0xff]
        %v5036 = vld [vmem:[%s4948 + $0x2b8] sm:$0xff]
        %v5037 = vld [vmem:[%s4948 + $0x2c0] sm:$0xff]
        %v5038 = vld [vmem:[%s4948 + $0x2c8] sm:$0xff]
        %v5039 = vld [vmem:[%s4948 + $0x2d0] sm:$0xff]
        %v5040 = vld [vmem:[%s4948 + $0x2d8] sm:$0xff]
        %v5041 = vld [vmem:[%s4948 + $0x2e0] sm:$0xff]
        %v5042 = vld [vmem:[%s4948 + $0x2e8] sm:$0xff]
        %v5043 = vld [vmem:[%s4948 + $0x2f0] sm:$0xff]
        %v5044 = vld [vmem:[%s4948 + $0x2f8] sm:$0xff]
        %s5045 = scalar_lea.vmem [#allocation9], 2304
        %v5046 = vld [vmem:[%s5045] sm:$0xff]
        %v5047 = vld [vmem:[%s5045 + $0x8] sm:$0xff]
        %v5048 = vld [vmem:[%s5045 + $0x10] sm:$0xff]
        %v5049 = vld [vmem:[%s5045 + $0x18] sm:$0xff]
        %v5050 = vld [vmem:[%s5045 + $0x20] sm:$0xff]
        %v5051 = vld [vmem:[%s5045 + $0x28] sm:$0xff]
        %v5052 = vld [vmem:[%s5045 + $0x30] sm:$0xff]
        %v5053 = vld [vmem:[%s5045 + $0x38] sm:$0xff]
        %v5054 = vld [vmem:[%s5045 + $0x40] sm:$0xff]
        %v5055 = vld [vmem:[%s5045 + $0x48] sm:$0xff]
        %v5056 = vld [vmem:[%s5045 + $0x50] sm:$0xff]
        %v5057 = vld [vmem:[%s5045 + $0x58] sm:$0xff]
        %v5058 = vld [vmem:[%s5045 + $0x60] sm:$0xff]
        %v5059 = vld [vmem:[%s5045 + $0x68] sm:$0xff]
        %v5060 = vld [vmem:[%s5045 + $0x70] sm:$0xff]
        %v5061 = vld [vmem:[%s5045 + $0x78] sm:$0xff]
        %v5062 = vld [vmem:[%s5045 + $0x80] sm:$0xff]
        %v5063 = vld [vmem:[%s5045 + $0x88] sm:$0xff]
        %v5064 = vld [vmem:[%s5045 + $0x90] sm:$0xff]
        %v5065 = vld [vmem:[%s5045 + $0x98] sm:$0xff]
        %v5066 = vld [vmem:[%s5045 + $0xa0] sm:$0xff]
        %v5067 = vld [vmem:[%s5045 + $0xa8] sm:$0xff]
        %v5068 = vld [vmem:[%s5045 + $0xb0] sm:$0xff]
        %v5069 = vld [vmem:[%s5045 + $0xb8] sm:$0xff]
        %v5070 = vld [vmem:[%s5045 + $0xc0] sm:$0xff]
        %v5071 = vld [vmem:[%s5045 + $0xc8] sm:$0xff]
        %v5072 = vld [vmem:[%s5045 + $0xd0] sm:$0xff]
        %v5073 = vld [vmem:[%s5045 + $0xd8] sm:$0xff]
        %v5074 = vld [vmem:[%s5045 + $0xe0] sm:$0xff]
        %v5075 = vld [vmem:[%s5045 + $0xe8] sm:$0xff]
        %v5076 = vld [vmem:[%s5045 + $0xf0] sm:$0xff]
        %v5077 = vld [vmem:[%s5045 + $0xf8] sm:$0xff]
        %v5078 = vld [vmem:[%s5045 + $0x100] sm:$0xff]
        %v5079 = vld [vmem:[%s5045 + $0x108] sm:$0xff]
        %v5080 = vld [vmem:[%s5045 + $0x110] sm:$0xff]
        %v5081 = vld [vmem:[%s5045 + $0x118] sm:$0xff]
        %v5082 = vld [vmem:[%s5045 + $0x120] sm:$0xff]
        %v5083 = vld [vmem:[%s5045 + $0x128] sm:$0xff]
        %v5084 = vld [vmem:[%s5045 + $0x130] sm:$0xff]
        %v5085 = vld [vmem:[%s5045 + $0x138] sm:$0xff]
        %v5086 = vld [vmem:[%s5045 + $0x140] sm:$0xff]
        %v5087 = vld [vmem:[%s5045 + $0x148] sm:$0xff]
        %v5088 = vld [vmem:[%s5045 + $0x150] sm:$0xff]
        %v5089 = vld [vmem:[%s5045 + $0x158] sm:$0xff]
        %v5090 = vld [vmem:[%s5045 + $0x160] sm:$0xff]
        %v5091 = vld [vmem:[%s5045 + $0x168] sm:$0xff]
        %v5092 = vld [vmem:[%s5045 + $0x170] sm:$0xff]
        %v5093 = vld [vmem:[%s5045 + $0x178] sm:$0xff]
        %v5094 = vld [vmem:[%s5045 + $0x180] sm:$0xff]
        %v5095 = vld [vmem:[%s5045 + $0x188] sm:$0xff]
        %v5096 = vld [vmem:[%s5045 + $0x190] sm:$0xff]
        %v5097 = vld [vmem:[%s5045 + $0x198] sm:$0xff]
        %v5098 = vld [vmem:[%s5045 + $0x1a0] sm:$0xff]
        %v5099 = vld [vmem:[%s5045 + $0x1a8] sm:$0xff]
        %v5100 = vld [vmem:[%s5045 + $0x1b0] sm:$0xff]
        %v5101 = vld [vmem:[%s5045 + $0x1b8] sm:$0xff]
        %v5102 = vld [vmem:[%s5045 + $0x1c0] sm:$0xff]
        %v5103 = vld [vmem:[%s5045 + $0x1c8] sm:$0xff]
        %v5104 = vld [vmem:[%s5045 + $0x1d0] sm:$0xff]
        %v5105 = vld [vmem:[%s5045 + $0x1d8] sm:$0xff]
        %v5106 = vld [vmem:[%s5045 + $0x1e0] sm:$0xff]
        %v5107 = vld [vmem:[%s5045 + $0x1e8] sm:$0xff]
        %v5108 = vld [vmem:[%s5045 + $0x1f0] sm:$0xff]
        %v5109 = vld [vmem:[%s5045 + $0x1f8] sm:$0xff]
        %v5110 = vld [vmem:[%s5045 + $0x200] sm:$0xff]
        %v5111 = vld [vmem:[%s5045 + $0x208] sm:$0xff]
        %v5112 = vld [vmem:[%s5045 + $0x210] sm:$0xff]
        %v5113 = vld [vmem:[%s5045 + $0x218] sm:$0xff]
        %v5114 = vld [vmem:[%s5045 + $0x220] sm:$0xff]
        %v5115 = vld [vmem:[%s5045 + $0x228] sm:$0xff]
        %v5116 = vld [vmem:[%s5045 + $0x230] sm:$0xff]
        %v5117 = vld [vmem:[%s5045 + $0x238] sm:$0xff]
        %v5118 = vld [vmem:[%s5045 + $0x240] sm:$0xff]
        %v5119 = vld [vmem:[%s5045 + $0x248] sm:$0xff]
        %v5120 = vld [vmem:[%s5045 + $0x250] sm:$0xff]
        %v5121 = vld [vmem:[%s5045 + $0x258] sm:$0xff]
        %v5122 = vld [vmem:[%s5045 + $0x260] sm:$0xff]
        %v5123 = vld [vmem:[%s5045 + $0x268] sm:$0xff]
        %v5124 = vld [vmem:[%s5045 + $0x270] sm:$0xff]
        %v5125 = vld [vmem:[%s5045 + $0x278] sm:$0xff]
        %v5126 = vld [vmem:[%s5045 + $0x280] sm:$0xff]
        %v5127 = vld [vmem:[%s5045 + $0x288] sm:$0xff]
        %v5128 = vld [vmem:[%s5045 + $0x290] sm:$0xff]
        %v5129 = vld [vmem:[%s5045 + $0x298] sm:$0xff]
        %v5130 = vld [vmem:[%s5045 + $0x2a0] sm:$0xff]
        %v5131 = vld [vmem:[%s5045 + $0x2a8] sm:$0xff]
        %v5132 = vld [vmem:[%s5045 + $0x2b0] sm:$0xff]
        %v5133 = vld [vmem:[%s5045 + $0x2b8] sm:$0xff]
        %v5134 = vld [vmem:[%s5045 + $0x2c0] sm:$0xff]
        %v5135 = vld [vmem:[%s5045 + $0x2c8] sm:$0xff]
        %v5136 = vld [vmem:[%s5045 + $0x2d0] sm:$0xff]
        %v5137 = vld [vmem:[%s5045 + $0x2d8] sm:$0xff]
        %v5138 = vld [vmem:[%s5045 + $0x2e0] sm:$0xff]
        %v5139 = vld [vmem:[%s5045 + $0x2e8] sm:$0xff]
        %v5140 = vld [vmem:[%s5045 + $0x2f0] sm:$0xff]
        %v5141 = vld [vmem:[%s5045 + $0x2f8] sm:$0xff]
        %s5142 = scalar_lea.vmem [#allocation9], 3072
        %v5143 = vld [vmem:[%s5142] sm:$0xff]
        %v5144 = vld [vmem:[%s5142 + $0x8] sm:$0xff]
        %v5145 = vld [vmem:[%s5142 + $0x10] sm:$0xff]
        %v5146 = vld [vmem:[%s5142 + $0x18] sm:$0xff]
        %v5147 = vld [vmem:[%s5142 + $0x20] sm:$0xff]
        %v5148 = vld [vmem:[%s5142 + $0x28] sm:$0xff]
        %v5149 = vld [vmem:[%s5142 + $0x30] sm:$0xff]
        %v5150 = vld [vmem:[%s5142 + $0x38] sm:$0xff]
        %v5151 = vld [vmem:[%s5142 + $0x40] sm:$0xff]
        %v5152 = vld [vmem:[%s5142 + $0x48] sm:$0xff]
        %v5153 = vld [vmem:[%s5142 + $0x50] sm:$0xff]
        %v5154 = vld [vmem:[%s5142 + $0x58] sm:$0xff]
        %v5155 = vld [vmem:[%s5142 + $0x60] sm:$0xff]
        %v5156 = vld [vmem:[%s5142 + $0x68] sm:$0xff]
        %v5157 = vld [vmem:[%s5142 + $0x70] sm:$0xff]
        %v5158 = vld [vmem:[%s5142 + $0x78] sm:$0xff]
        %v5159 = vld [vmem:[%s5142 + $0x80] sm:$0xff]
        %v5160 = vld [vmem:[%s5142 + $0x88] sm:$0xff]
        %v5161 = vld [vmem:[%s5142 + $0x90] sm:$0xff]
        %v5162 = vld [vmem:[%s5142 + $0x98] sm:$0xff]
        %v5163 = vld [vmem:[%s5142 + $0xa0] sm:$0xff]
        %v5164 = vld [vmem:[%s5142 + $0xa8] sm:$0xff]
        %v5165 = vld [vmem:[%s5142 + $0xb0] sm:$0xff]
        %v5166 = vld [vmem:[%s5142 + $0xb8] sm:$0xff]
        %v5167 = vld [vmem:[%s5142 + $0xc0] sm:$0xff]
        %v5168 = vld [vmem:[%s5142 + $0xc8] sm:$0xff]
        %v5169 = vld [vmem:[%s5142 + $0xd0] sm:$0xff]
        %v5170 = vld [vmem:[%s5142 + $0xd8] sm:$0xff]
        %v5171 = vld [vmem:[%s5142 + $0xe0] sm:$0xff]
        %v5172 = vld [vmem:[%s5142 + $0xe8] sm:$0xff]
        %v5173 = vld [vmem:[%s5142 + $0xf0] sm:$0xff]
        %v5174 = vld [vmem:[%s5142 + $0xf8] sm:$0xff]
        %v5175 = vld [vmem:[%s5142 + $0x100] sm:$0xff]
        %v5176 = vld [vmem:[%s5142 + $0x108] sm:$0xff]
        %v5177 = vld [vmem:[%s5142 + $0x110] sm:$0xff]
        %v5178 = vld [vmem:[%s5142 + $0x118] sm:$0xff]
        %v5179 = vld [vmem:[%s5142 + $0x120] sm:$0xff]
        %v5180 = vld [vmem:[%s5142 + $0x128] sm:$0xff]
        %v5181 = vld [vmem:[%s5142 + $0x130] sm:$0xff]
        %v5182 = vld [vmem:[%s5142 + $0x138] sm:$0xff]
        %v5183 = vld [vmem:[%s5142 + $0x140] sm:$0xff]
        %v5184 = vld [vmem:[%s5142 + $0x148] sm:$0xff]
        %v5185 = vld [vmem:[%s5142 + $0x150] sm:$0xff]
        %v5186 = vld [vmem:[%s5142 + $0x158] sm:$0xff]
        %v5187 = vld [vmem:[%s5142 + $0x160] sm:$0xff]
        %v5188 = vld [vmem:[%s5142 + $0x168] sm:$0xff]
        %v5189 = vld [vmem:[%s5142 + $0x170] sm:$0xff]
        %v5190 = vld [vmem:[%s5142 + $0x178] sm:$0xff]
        %v5191 = vld [vmem:[%s5142 + $0x180] sm:$0xff]
        %v5192 = vld [vmem:[%s5142 + $0x188] sm:$0xff]
        %v5193 = vld [vmem:[%s5142 + $0x190] sm:$0xff]
        %v5194 = vld [vmem:[%s5142 + $0x198] sm:$0xff]
        %v5195 = vld [vmem:[%s5142 + $0x1a0] sm:$0xff]
        %v5196 = vld [vmem:[%s5142 + $0x1a8] sm:$0xff]
        %v5197 = vld [vmem:[%s5142 + $0x1b0] sm:$0xff]
        %v5198 = vld [vmem:[%s5142 + $0x1b8] sm:$0xff]
        %v5199 = vld [vmem:[%s5142 + $0x1c0] sm:$0xff]
        %v5200 = vld [vmem:[%s5142 + $0x1c8] sm:$0xff]
        %v5201 = vld [vmem:[%s5142 + $0x1d0] sm:$0xff]
        %v5202 = vld [vmem:[%s5142 + $0x1d8] sm:$0xff]
        %v5203 = vld [vmem:[%s5142 + $0x1e0] sm:$0xff]
        %v5204 = vld [vmem:[%s5142 + $0x1e8] sm:$0xff]
        %v5205 = vld [vmem:[%s5142 + $0x1f0] sm:$0xff]
        %v5206 = vld [vmem:[%s5142 + $0x1f8] sm:$0xff]
        %v5207 = vld [vmem:[%s5142 + $0x200] sm:$0xff]
        %v5208 = vld [vmem:[%s5142 + $0x208] sm:$0xff]
        %v5209 = vld [vmem:[%s5142 + $0x210] sm:$0xff]
        %v5210 = vld [vmem:[%s5142 + $0x218] sm:$0xff]
        %v5211 = vld [vmem:[%s5142 + $0x220] sm:$0xff]
        %v5212 = vld [vmem:[%s5142 + $0x228] sm:$0xff]
        %v5213 = vld [vmem:[%s5142 + $0x230] sm:$0xff]
        %v5214 = vld [vmem:[%s5142 + $0x238] sm:$0xff]
        %v5215 = vld [vmem:[%s5142 + $0x240] sm:$0xff]
        %v5216 = vld [vmem:[%s5142 + $0x248] sm:$0xff]
        %v5217 = vld [vmem:[%s5142 + $0x250] sm:$0xff]
        %v5218 = vld [vmem:[%s5142 + $0x258] sm:$0xff]
        %v5219 = vld [vmem:[%s5142 + $0x260] sm:$0xff]
        %v5220 = vld [vmem:[%s5142 + $0x268] sm:$0xff]
        %v5221 = vld [vmem:[%s5142 + $0x270] sm:$0xff]
        %v5222 = vld [vmem:[%s5142 + $0x278] sm:$0xff]
        %v5223 = vld [vmem:[%s5142 + $0x280] sm:$0xff]
        %v5224 = vld [vmem:[%s5142 + $0x288] sm:$0xff]
        %v5225 = vld [vmem:[%s5142 + $0x290] sm:$0xff]
        %v5226 = vld [vmem:[%s5142 + $0x298] sm:$0xff]
        %v5227 = vld [vmem:[%s5142 + $0x2a0] sm:$0xff]
        %v5228 = vld [vmem:[%s5142 + $0x2a8] sm:$0xff]
        %v5229 = vld [vmem:[%s5142 + $0x2b0] sm:$0xff]
        %v5230 = vld [vmem:[%s5142 + $0x2b8] sm:$0xff]
        %v5231 = vld [vmem:[%s5142 + $0x2c0] sm:$0xff]
        %v5232 = vld [vmem:[%s5142 + $0x2c8] sm:$0xff]
        %v5233 = vld [vmem:[%s5142 + $0x2d0] sm:$0xff]
        %v5234 = vld [vmem:[%s5142 + $0x2d8] sm:$0xff]
        %v5235 = vld [vmem:[%s5142 + $0x2e0] sm:$0xff]
        %v5236 = vld [vmem:[%s5142 + $0x2e8] sm:$0xff]
        %v5237 = vld [vmem:[%s5142 + $0x2f0] sm:$0xff]
        %v5238 = vld [vmem:[%s5142 + $0x2f8] sm:$0xff]
        %v5335 = vunpack.c.l.b16 %v4852
        %v5336 = vunpack.c.h.b16 %v4852
        %v5337 = vunpack.c.l.b16 %v4853
        %v5338 = vunpack.c.h.b16 %v4853
        %v5339 = vunpack.c.l.b16 %v4854
        %v5340 = vunpack.c.h.b16 %v4854
        %v5341 = vunpack.c.l.b16 %v4855
        %v5342 = vunpack.c.h.b16 %v4855
        %v5343 = vunpack.c.l.b16 %v4856
        %v5344 = vunpack.c.h.b16 %v4856
        %v5345 = vunpack.c.l.b16 %v4857
        %v5346 = vunpack.c.h.b16 %v4857
        %v5347 = vunpack.c.l.b16 %v4858
        %v5348 = vunpack.c.h.b16 %v4858
        %v5349 = vunpack.c.l.b16 %v4859
        %v5350 = vunpack.c.h.b16 %v4859
        %v5351 = vunpack.c.l.b16 %v4860
        %v5352 = vunpack.c.h.b16 %v4860
        %v5353 = vunpack.c.l.b16 %v4861
        %v5354 = vunpack.c.h.b16 %v4861
        %v5355 = vunpack.c.l.b16 %v4862
        %v5356 = vunpack.c.h.b16 %v4862
        %v5357 = vunpack.c.l.b16 %v4863
        %v5358 = vunpack.c.h.b16 %v4863
        %v5359 = vunpack.c.l.b16 %v4864
        %v5360 = vunpack.c.h.b16 %v4864
        %v5361 = vunpack.c.l.b16 %v4865
        %v5362 = vunpack.c.h.b16 %v4865
        %v5363 = vunpack.c.l.b16 %v4866
        %v5364 = vunpack.c.h.b16 %v4866
        %v5365 = vunpack.c.l.b16 %v4867
        %v5366 = vunpack.c.h.b16 %v4867
        %v5367 = vunpack.c.l.b16 %v4868
        %v5368 = vunpack.c.h.b16 %v4868
        %v5369 = vunpack.c.l.b16 %v4869
        %v5370 = vunpack.c.h.b16 %v4869
        %v5371 = vunpack.c.l.b16 %v4870
        %v5372 = vunpack.c.h.b16 %v4870
        %v5373 = vunpack.c.l.b16 %v4871
        %v5374 = vunpack.c.h.b16 %v4871
        %v5375 = vunpack.c.l.b16 %v4872
        %v5376 = vunpack.c.h.b16 %v4872
        %v5377 = vunpack.c.l.b16 %v4873
        %v5378 = vunpack.c.h.b16 %v4873
        %v5379 = vunpack.c.l.b16 %v4874
        %v5380 = vunpack.c.h.b16 %v4874
        %v5381 = vunpack.c.l.b16 %v4875
        %v5382 = vunpack.c.h.b16 %v4875
        %v5383 = vunpack.c.l.b16 %v4876
        %v5384 = vunpack.c.h.b16 %v4876
        %v5385 = vunpack.c.l.b16 %v4877
        %v5386 = vunpack.c.h.b16 %v4877
        %v5387 = vunpack.c.l.b16 %v4878
        %v5388 = vunpack.c.h.b16 %v4878
        %v5389 = vunpack.c.l.b16 %v4879
        %v5390 = vunpack.c.h.b16 %v4879
        %v5391 = vunpack.c.l.b16 %v4880
        %v5392 = vunpack.c.h.b16 %v4880
        %v5393 = vunpack.c.l.b16 %v4881
        %v5394 = vunpack.c.h.b16 %v4881
        %v5395 = vunpack.c.l.b16 %v4882
        %v5396 = vunpack.c.h.b16 %v4882
        %v5397 = vunpack.c.l.b16 %v4883
        %v5398 = vunpack.c.h.b16 %v4883
        %v5399 = vunpack.c.l.b16 %v4884
        %v5400 = vunpack.c.h.b16 %v4884
        %v5401 = vunpack.c.l.b16 %v4885
        %v5402 = vunpack.c.h.b16 %v4885
        %v5403 = vunpack.c.l.b16 %v4886
        %v5404 = vunpack.c.h.b16 %v4886
        %v5405 = vunpack.c.l.b16 %v4887
        %v5406 = vunpack.c.h.b16 %v4887
        %v5407 = vunpack.c.l.b16 %v4888
        %v5408 = vunpack.c.h.b16 %v4888
        %v5409 = vunpack.c.l.b16 %v4889
        %v5410 = vunpack.c.h.b16 %v4889
        %v5411 = vunpack.c.l.b16 %v4890
        %v5412 = vunpack.c.h.b16 %v4890
        %v5413 = vunpack.c.l.b16 %v4891
        %v5414 = vunpack.c.h.b16 %v4891
        %v5415 = vunpack.c.l.b16 %v4892
        %v5416 = vunpack.c.h.b16 %v4892
        %v5417 = vunpack.c.l.b16 %v4893
        %v5418 = vunpack.c.h.b16 %v4893
        %v5419 = vunpack.c.l.b16 %v4894
        %v5420 = vunpack.c.h.b16 %v4894
        %v5421 = vunpack.c.l.b16 %v4895
        %v5422 = vunpack.c.h.b16 %v4895
        %v5423 = vunpack.c.l.b16 %v4896
        %v5424 = vunpack.c.h.b16 %v4896
        %v5425 = vunpack.c.l.b16 %v4897
        %v5426 = vunpack.c.h.b16 %v4897
        %v5427 = vunpack.c.l.b16 %v4898
        %v5428 = vunpack.c.h.b16 %v4898
        %v5429 = vunpack.c.l.b16 %v4899
        %v5430 = vunpack.c.h.b16 %v4899
        %v5431 = vunpack.c.l.b16 %v4900
        %v5432 = vunpack.c.h.b16 %v4900
        %v5433 = vunpack.c.l.b16 %v4901
        %v5434 = vunpack.c.h.b16 %v4901
        %v5435 = vunpack.c.l.b16 %v4902
        %v5436 = vunpack.c.h.b16 %v4902
        %v5437 = vunpack.c.l.b16 %v4903
        %v5438 = vunpack.c.h.b16 %v4903
        %v5439 = vunpack.c.l.b16 %v4904
        %v5440 = vunpack.c.h.b16 %v4904
        %v5441 = vunpack.c.l.b16 %v4905
        %v5442 = vunpack.c.h.b16 %v4905
        %v5443 = vunpack.c.l.b16 %v4906
        %v5444 = vunpack.c.h.b16 %v4906
        %v5445 = vunpack.c.l.b16 %v4907
        %v5446 = vunpack.c.h.b16 %v4907
        %v5447 = vunpack.c.l.b16 %v4908
        %v5448 = vunpack.c.h.b16 %v4908
        %v5449 = vunpack.c.l.b16 %v4909
        %v5450 = vunpack.c.h.b16 %v4909
        %v5451 = vunpack.c.l.b16 %v4910
        %v5452 = vunpack.c.h.b16 %v4910
        %v5453 = vunpack.c.l.b16 %v4911
        %v5454 = vunpack.c.h.b16 %v4911
        %v5455 = vunpack.c.l.b16 %v4912
        %v5456 = vunpack.c.h.b16 %v4912
        %v5457 = vunpack.c.l.b16 %v4913
        %v5458 = vunpack.c.h.b16 %v4913
        %v5459 = vunpack.c.l.b16 %v4914
        %v5460 = vunpack.c.h.b16 %v4914
        %v5461 = vunpack.c.l.b16 %v4915
        %v5462 = vunpack.c.h.b16 %v4915
        %v5463 = vunpack.c.l.b16 %v4916
        %v5464 = vunpack.c.h.b16 %v4916
        %v5465 = vunpack.c.l.b16 %v4917
        %v5466 = vunpack.c.h.b16 %v4917
        %v5467 = vunpack.c.l.b16 %v4918
        %v5468 = vunpack.c.h.b16 %v4918
        %v5469 = vunpack.c.l.b16 %v4919
        %v5470 = vunpack.c.h.b16 %v4919
        %v5471 = vunpack.c.l.b16 %v4920
        %v5472 = vunpack.c.h.b16 %v4920
        %v5473 = vunpack.c.l.b16 %v4921
        %v5474 = vunpack.c.h.b16 %v4921
        %v5475 = vunpack.c.l.b16 %v4922
        %v5476 = vunpack.c.h.b16 %v4922
        %v5477 = vunpack.c.l.b16 %v4923
        %v5478 = vunpack.c.h.b16 %v4923
        %v5479 = vunpack.c.l.b16 %v4924
        %v5480 = vunpack.c.h.b16 %v4924
        %v5481 = vunpack.c.l.b16 %v4925
        %v5482 = vunpack.c.h.b16 %v4925
        %v5483 = vunpack.c.l.b16 %v4926
        %v5484 = vunpack.c.h.b16 %v4926
        %v5485 = vunpack.c.l.b16 %v4927
        %v5486 = vunpack.c.h.b16 %v4927
        %v5487 = vunpack.c.l.b16 %v4928
        %v5488 = vunpack.c.h.b16 %v4928
        %v5489 = vunpack.c.l.b16 %v4929
        %v5490 = vunpack.c.h.b16 %v4929
        %v5491 = vunpack.c.l.b16 %v4930
        %v5492 = vunpack.c.h.b16 %v4930
        %v5493 = vunpack.c.l.b16 %v4931
        %v5494 = vunpack.c.h.b16 %v4931
        %v5495 = vunpack.c.l.b16 %v4932
        %v5496 = vunpack.c.h.b16 %v4932
        %v5497 = vunpack.c.l.b16 %v4933
        %v5498 = vunpack.c.h.b16 %v4933
        %v5499 = vunpack.c.l.b16 %v4934
        %v5500 = vunpack.c.h.b16 %v4934
        %v5501 = vunpack.c.l.b16 %v4935
        %v5502 = vunpack.c.h.b16 %v4935
        %v5503 = vunpack.c.l.b16 %v4936
        %v5504 = vunpack.c.h.b16 %v4936
        %v5505 = vunpack.c.l.b16 %v4937
        %v5506 = vunpack.c.h.b16 %v4937
        %v5507 = vunpack.c.l.b16 %v4938
        %v5508 = vunpack.c.h.b16 %v4938
        %v5509 = vunpack.c.l.b16 %v4939
        %v5510 = vunpack.c.h.b16 %v4939
        %v5511 = vunpack.c.l.b16 %v4940
        %v5512 = vunpack.c.h.b16 %v4940
        %v5513 = vunpack.c.l.b16 %v4941
        %v5514 = vunpack.c.h.b16 %v4941
        %v5515 = vunpack.c.l.b16 %v4942
        %v5516 = vunpack.c.h.b16 %v4942
        %v5517 = vunpack.c.l.b16 %v4943
        %v5518 = vunpack.c.h.b16 %v4943
        %v5519 = vunpack.c.l.b16 %v4944
        %v5520 = vunpack.c.h.b16 %v4944
        %v5521 = vunpack.c.l.b16 %v4945
        %v5522 = vunpack.c.h.b16 %v4945
        %v5523 = vunpack.c.l.b16 %v4946
        %v5524 = vunpack.c.h.b16 %v4946
        %v5525 = vunpack.c.l.b16 %v4947
        %v5526 = vunpack.c.h.b16 %v4947
        %v5527 = vpack.c.b16 %v5339, %v5335
        %v5528 = vpack.c.b16 %v5340, %v5336
        %v5529 = vpack.c.b16 %v5341, %v5337
        %v5530 = vpack.c.b16 %v5342, %v5338
        %v5531 = vpack.c.b16 %v5347, %v5343
        %v5532 = vpack.c.b16 %v5348, %v5344
        %v5533 = vpack.c.b16 %v5349, %v5345
        %v5534 = vpack.c.b16 %v5350, %v5346
        %v5535 = vpack.c.b16 %v5355, %v5351
        %v5536 = vpack.c.b16 %v5356, %v5352
        %v5537 = vpack.c.b16 %v5357, %v5353
        %v5538 = vpack.c.b16 %v5358, %v5354
        %v5539 = vpack.c.b16 %v5363, %v5359
        %v5540 = vpack.c.b16 %v5364, %v5360
        %v5541 = vpack.c.b16 %v5365, %v5361
        %v5542 = vpack.c.b16 %v5366, %v5362
        %v5543 = vpack.c.b16 %v5371, %v5367
        %v5544 = vpack.c.b16 %v5372, %v5368
        %v5545 = vpack.c.b16 %v5373, %v5369
        %v5546 = vpack.c.b16 %v5374, %v5370
        %v5547 = vpack.c.b16 %v5379, %v5375
        %v5548 = vpack.c.b16 %v5380, %v5376
        %v5549 = vpack.c.b16 %v5381, %v5377
        %v5550 = vpack.c.b16 %v5382, %v5378
        %v5551 = vpack.c.b16 %v5387, %v5383
        %v5552 = vpack.c.b16 %v5388, %v5384
        %v5553 = vpack.c.b16 %v5389, %v5385
        %v5554 = vpack.c.b16 %v5390, %v5386
        %v5555 = vpack.c.b16 %v5395, %v5391
        %v5556 = vpack.c.b16 %v5396, %v5392
        %v5557 = vpack.c.b16 %v5397, %v5393
        %v5558 = vpack.c.b16 %v5398, %v5394
        %v5559 = vpack.c.b16 %v5403, %v5399
        %v5560 = vpack.c.b16 %v5404, %v5400
        %v5561 = vpack.c.b16 %v5405, %v5401
        %v5562 = vpack.c.b16 %v5406, %v5402
        %v5563 = vpack.c.b16 %v5411, %v5407
        %v5564 = vpack.c.b16 %v5412, %v5408
        %v5565 = vpack.c.b16 %v5413, %v5409
        %v5566 = vpack.c.b16 %v5414, %v5410
        %v5567 = vpack.c.b16 %v5419, %v5415
        %v5568 = vpack.c.b16 %v5420, %v5416
        %v5569 = vpack.c.b16 %v5421, %v5417
        %v5570 = vpack.c.b16 %v5422, %v5418
        %v5571 = vpack.c.b16 %v5427, %v5423
        %v5572 = vpack.c.b16 %v5428, %v5424
        %v5573 = vpack.c.b16 %v5429, %v5425
        %v5574 = vpack.c.b16 %v5430, %v5426
        %v5575 = vpack.c.b16 %v5435, %v5431
        %v5576 = vpack.c.b16 %v5436, %v5432
        %v5577 = vpack.c.b16 %v5437, %v5433
        %v5578 = vpack.c.b16 %v5438, %v5434
        %v5579 = vpack.c.b16 %v5443, %v5439
        %v5580 = vpack.c.b16 %v5444, %v5440
        %v5581 = vpack.c.b16 %v5445, %v5441
        %v5582 = vpack.c.b16 %v5446, %v5442
        %v5583 = vpack.c.b16 %v5451, %v5447
        %v5584 = vpack.c.b16 %v5452, %v5448
        %v5585 = vpack.c.b16 %v5453, %v5449
        %v5586 = vpack.c.b16 %v5454, %v5450
        %v5587 = vpack.c.b16 %v5459, %v5455
        %v5588 = vpack.c.b16 %v5460, %v5456
        %v5589 = vpack.c.b16 %v5461, %v5457
        %v5590 = vpack.c.b16 %v5462, %v5458
        %v5591 = vpack.c.b16 %v5467, %v5463
        %v5592 = vpack.c.b16 %v5468, %v5464
        %v5593 = vpack.c.b16 %v5469, %v5465
        %v5594 = vpack.c.b16 %v5470, %v5466
        %v5595 = vpack.c.b16 %v5475, %v5471
        %v5596 = vpack.c.b16 %v5476, %v5472
        %v5597 = vpack.c.b16 %v5477, %v5473
        %v5598 = vpack.c.b16 %v5478, %v5474
        %v5599 = vpack.c.b16 %v5483, %v5479
        %v5600 = vpack.c.b16 %v5484, %v5480
        %v5601 = vpack.c.b16 %v5485, %v5481
        %v5602 = vpack.c.b16 %v5486, %v5482
        %v5603 = vpack.c.b16 %v5491, %v5487
        %v5604 = vpack.c.b16 %v5492, %v5488
        %v5605 = vpack.c.b16 %v5493, %v5489
        %v5606 = vpack.c.b16 %v5494, %v5490
        %v5607 = vpack.c.b16 %v5499, %v5495
        %v5608 = vpack.c.b16 %v5500, %v5496
        %v5609 = vpack.c.b16 %v5501, %v5497
        %v5610 = vpack.c.b16 %v5502, %v5498
        %v5611 = vpack.c.b16 %v5507, %v5503
        %v5612 = vpack.c.b16 %v5508, %v5504
        %v5613 = vpack.c.b16 %v5509, %v5505
        %v5614 = vpack.c.b16 %v5510, %v5506
        %v5615 = vpack.c.b16 %v5515, %v5511
        %v5616 = vpack.c.b16 %v5516, %v5512
        %v5617 = vpack.c.b16 %v5517, %v5513
        %v5618 = vpack.c.b16 %v5518, %v5514
        %v5619 = vpack.c.b16 %v5523, %v5519
        %v5620 = vpack.c.b16 %v5524, %v5520
        %v5621 = vpack.c.b16 %v5525, %v5521
        %v5622 = vpack.c.b16 %v5526, %v5522
        %5719 = vmatprep.subr.bf16.mxu0 %v5528
        %5720 = vmatpush1.bf16.msra.mxu0 %v5527
        %5721 = vmatprep.subr.bf16.mxu0 %v5532
        %5722 = vmatpush1.bf16.msra.mxu0 %v5531
        %5723 = vmatprep.subr.bf16.mxu0 %v5536
        %5724 = vmatpush1.bf16.msra.mxu0 %v5535
        %5725 = vmatprep.subr.bf16.mxu0 %v5540
        %5726 = vmatpush1.bf16.msra.mxu0 %v5539
        %5727 = vmatprep.subr.bf16.mxu0 %v5544
        %5728 = vmatpush1.bf16.msra.mxu0 %v5543
        %5729 = vmatprep.subr.bf16.mxu0 %v5548
        %5730 = vmatpush1.bf16.msra.mxu0 %v5547
        %5731 = vmatprep.subr.bf16.mxu0 %v5552
        %5732 = vmatpush1.bf16.msra.mxu0 %v5551
        %5733 = vmatprep.subr.bf16.mxu0 %v5556
        %5734 = vmatpush1.bf16.msra.mxu0 %v5555
        %5735 = vmatprep.subr.bf16.mxu0 %v5560
        %5736 = vmatpush1.bf16.msra.mxu0 %v5559
        %5737 = vmatprep.subr.bf16.mxu0 %v5564
        %5738 = vmatpush1.bf16.msra.mxu0 %v5563
        %5739 = vmatprep.subr.bf16.mxu0 %v5568
        %5740 = vmatpush1.bf16.msra.mxu0 %v5567
        %5741 = vmatprep.subr.bf16.mxu0 %v5572
        %5742 = vmatpush1.bf16.msra.mxu0 %v5571
        %5743 = vmatprep.subr.bf16.mxu0 %v5576
        %5744 = vmatpush1.bf16.msra.mxu0 %v5575
        %5745 = vmatprep.subr.bf16.mxu0 %v5580
        %5746 = vmatpush1.bf16.msra.mxu0 %v5579
        %5747 = vmatprep.subr.bf16.mxu0 %v5584
        %5748 = vmatpush1.bf16.msra.mxu0 %v5583
        %5749 = vmatprep.subr.bf16.mxu0 %v5588
        %5750 = vmatpush1.bf16.msra.mxu0 %v5587
        %5751 = vmatprep.mubr.bf16.mxu0 %v4741
        %5752 = vmatmul.mubr.bf16.gmra.mrb[0].mxu0 %v4740
        %v5753 = vpop.f32.mrb[0].mxu0
        %v5754 = vadd.f32 0.0, %v5753
        %v5755 = vpop.f32.mrb[0].mxu0
        %v5756 = vadd.f32 0.0, %v5755
        %v5757 = vpop.f32.mrb[0].mxu0
        %v5758 = vadd.f32 0.0, %v5757
        %v5759 = vpop.f32.mrb[0].mxu0
        %v5760 = vadd.f32 0.0, %v5759
        %5761 = vmatprep.mubr.bf16.mxu0 %v4744
        %5762 = vmatmul.mubr.bf16.gmra.mrb[0].mxu0 %v4743
        %v5763 = vpop.f32.mrb[0].mxu0
        %v5764 = vadd.f32 0.0, %v5763
        %v5765 = vpop.f32.mrb[0].mxu0
        %v5766 = vadd.f32 0.0, %v5765
        %v5767 = vpop.f32.mrb[0].mxu0
        %v5768 = vadd.f32 0.0, %v5767
        %v5769 = vpop.f32.mrb[0].mxu0
        %v5770 = vadd.f32 0.0, %v5769
        %5771 = vdwg.mxu0
        %5772 = vmatprep.subr.bf16.mxu0 %v5592
        %5773 = vmatpush1.bf16.msra.mxu0 %v5591
        %5774 = vmatprep.subr.bf16.mxu0 %v5596
        %5775 = vmatpush1.bf16.msra.mxu0 %v5595
        %5776 = vmatprep.subr.bf16.mxu0 %v5600
        %5777 = vmatpush1.bf16.msra.mxu0 %v5599
        %5778 = vmatprep.subr.bf16.mxu0 %v5604
        %5779 = vmatpush1.bf16.msra.mxu0 %v5603
        %5780 = vmatprep.subr.bf16.mxu0 %v5608
        %5781 = vmatpush1.bf16.msra.mxu0 %v5607
        %5782 = vmatprep.subr.bf16.mxu0 %v5612
        %5783 = vmatpush1.bf16.msra.mxu0 %v5611
        %5784 = vmatprep.subr.bf16.mxu0 %v5616
        %5785 = vmatpush1.bf16.msra.mxu0 %v5615
        %5786 = vmatprep.subr.bf16.mxu0 %v5620
        %5787 = vmatpush1.bf16.msra.mxu0 %v5619
        %5788 = vmatprep.subr.bf16.mxu0 0
        %5789 = vmatpush1.bf16.msra.mxu0 0
        %5790 = vmatprep.subr.bf16.mxu0 0
        %5791 = vmatpush1.bf16.msra.mxu0 0
        %5792 = vmatprep.subr.bf16.mxu0 0
        %5793 = vmatpush1.bf16.msra.mxu0 0
        %5794 = vmatprep.subr.bf16.mxu0 0
        %5795 = vmatpush1.bf16.msra.mxu0 0
        %5796 = vmatprep.subr.bf16.mxu0 0
        %5797 = vmatpush1.bf16.msra.mxu0 0
        %5798 = vmatprep.subr.bf16.mxu0 0
        %5799 = vmatpush1.bf16.msra.mxu0 0
        %5800 = vmatprep.subr.bf16.mxu0 0
        %5801 = vmatpush1.bf16.msra.mxu0 0
        %5802 = vmatprep.subr.bf16.mxu0 0
        %5803 = vmatpush1.bf16.msra.mxu0 0
        %5804 = vmatprep.mubr.bf16.mxu0 0
        %5805 = vmatmul.mubr.bf16.gmra.mrb[0].mxu0 %v4742
        %v5806 = vpop.f32.mrb[0].mxu0
        %v5807 = vadd.f32 %v5754, %v5806
        %v5808 = vpop.f32.mrb[0].mxu0
        %v5809 = vadd.f32 %v5756, %v5808
        %v5810 = vpop.f32.mrb[0].mxu0
        %v5811 = vadd.f32 %v5758, %v5810
        %v5812 = vpop.f32.mrb[0].mxu0
        %v5813 = vadd.f32 %v5760, %v5812
        %5814 = vmatprep.mubr.bf16.mxu0 0
        %5815 = vmatmul.mubr.bf16.gmra.mrb[0].mxu0 %v4745
        %v5816 = vpop.f32.mrb[0].mxu0
        %v5817 = vadd.f32 %v5764, %v5816
        %v5818 = vpop.f32.mrb[0].mxu0
        %v5819 = vadd.f32 %v5766, %v5818
        %v5820 = vpop.f32.mrb[0].mxu0
        %v5821 = vadd.f32 %v5768, %v5820
        %v5822 = vpop.f32.mrb[0].mxu0
        %v5823 = vadd.f32 %v5770, %v5822
        %5824 = vdwg.mxu0
        %5825 = vmatprep.subr.bf16.mxu0 %v5530
        %5826 = vmatpush1.bf16.msra.mxu0 %v5529
        %5827 = vmatprep.subr.bf16.mxu0 %v5534
        %5828 = vmatpush1.bf16.msra.mxu0 %v5533
        %5829 = vmatprep.subr.bf16.mxu0 %v5538
        %5830 = vmatpush1.bf16.msra.mxu0 %v5537
        %5831 = vmatprep.subr.bf16.mxu0 %v5542
        %5832 = vmatpush1.bf16.msra.mxu0 %v5541
        %5833 = vmatprep.subr.bf16.mxu0 %v5546
        %5834 = vmatpush1.bf16.msra.mxu0 %v5545
        %5835 = vmatprep.subr.bf16.mxu0 %v5550
        %5836 = vmatpush1.bf16.msra.mxu0 %v5549
        %5837 = vmatprep.subr.bf16.mxu0 %v5554
        %5838 = vmatpush1.bf16.msra.mxu0 %v5553
        %5839 = vmatprep.subr.bf16.mxu0 %v5558
        %5840 = vmatpush1.bf16.msra.mxu0 %v5557
        %5841 = vmatprep.subr.bf16.mxu0 %v5562
        %5842 = vmatpush1.bf16.msra.mxu0 %v5561
        %5843 = vmatprep.subr.bf16.mxu0 %v5566
        %5844 = vmatpush1.bf16.msra.mxu0 %v5565
        %5845 = vmatprep.subr.bf16.mxu0 %v5570
        %5846 = vmatpush1.bf16.msra.mxu0 %v5569
        %5847 = vmatprep.subr.bf16.mxu0 %v5574
        %5848 = vmatpush1.bf16.msra.mxu0 %v5573
        %5849 = vmatprep.subr.bf16.mxu0 %v5578
        %5850 = vmatpush1.bf16.msra.mxu0 %v5577
        %5851 = vmatprep.subr.bf16.mxu0 %v5582
        %5852 = vmatpush1.bf16.msra.mxu0 %v5581
        %5853 = vmatprep.subr.bf16.mxu0 %v5586
        %5854 = vmatpush1.bf16.msra.mxu0 %v5585
        %5855 = vmatprep.subr.bf16.mxu0 %v5590
        %5856 = vmatpush1.bf16.msra.mxu0 %v5589
        %5857 = vmatprep.mubr.bf16.mxu0 %v4741
        %5858 = vmatmul.mubr.bf16.gmra.mrb[0].mxu0 %v4740
        %v5859 = vpop.f32.mrb[0].mxu0
        %v5860 = vadd.f32 0.0, %v5859
        %v5861 = vpop.f32.mrb[0].mxu0
        %v5862 = vadd.f32 0.0, %v5861
        %v5863 = vpop.f32.mrb[0].mxu0
        %v5864 = vadd.f32 0.0, %v5863
        %v5865 = vpop.f32.mrb[0].mxu0
        %v5866 = vadd.f32 0.0, %v5865
        %5867 = vmatprep.mubr.bf16.mxu0 %v4744
        %5868 = vmatmul.mubr.bf16.gmra.mrb[0].mxu0 %v4743
        %v5869 = vpop.f32.mrb[0].mxu0
        %v5870 = vadd.f32 0.0, %v5869
        %v5871 = vpop.f32.mrb[0].mxu0
        %v5872 = vadd.f32 0.0, %v5871
        %v5873 = vpop.f32.mrb[0].mxu0
        %v5874 = vadd.f32 0.0, %v5873
        %v5875 = vpop.f32.mrb[0].mxu0
        %v5876 = vadd.f32 0.0, %v5875
        %5877 = vdwg.mxu0
        %5878 = vmatprep.subr.bf16.mxu0 %v5594
        %5879 = vmatpush1.bf16.msra.mxu0 %v5593
        %5880 = vmatprep.subr.bf16.mxu0 %v5598
        %5881 = vmatpush1.bf16.msra.mxu0 %v5597
        %5882 = vmatprep.subr.bf16.mxu0 %v5602
        %5883 = vmatpush1.bf16.msra.mxu0 %v5601
        %5884 = vmatprep.subr.bf16.mxu0 %v5606
        %5885 = vmatpush1.bf16.msra.mxu0 %v5605
        %5886 = vmatprep.subr.bf16.mxu0 %v5610
        %5887 = vmatpush1.bf16.msra.mxu0 %v5609
        %5888 = vmatprep.subr.bf16.mxu0 %v5614
        %5889 = vmatpush1.bf16.msra.mxu0 %v5613
        %5890 = vmatprep.subr.bf16.mxu0 %v5618
        %5891 = vmatpush1.bf16.msra.mxu0 %v5617
        %5892 = vmatprep.subr.bf16.mxu0 %v5622
        %5893 = vmatpush1.bf16.msra.mxu0 %v5621
        %5894 = vmatprep.subr.bf16.mxu0 0
        %5895 = vmatpush1.bf16.msra.mxu0 0
        %5896 = vmatprep.subr.bf16.mxu0 0
        %5897 = vmatpush1.bf16.msra.mxu0 0
        %5898 = vmatprep.subr.bf16.mxu0 0
        %5899 = vmatpush1.bf16.msra.mxu0 0
        %5900 = vmatprep.subr.bf16.mxu0 0
        %5901 = vmatpush1.bf16.msra.mxu0 0
        %5902 = vmatprep.subr.bf16.mxu0 0
        %5903 = vmatpush1.bf16.msra.mxu0 0
        %5904 = vmatprep.subr.bf16.mxu0 0
        %5905 = vmatpush1.bf16.msra.mxu0 0
        %5906 = vmatprep.subr.bf16.mxu0 0
        %5907 = vmatpush1.bf16.msra.mxu0 0
        %5908 = vmatprep.subr.bf16.mxu0 0
        %5909 = vmatpush1.bf16.msra.mxu0 0
        %5910 = vmatprep.mubr.bf16.mxu0 0
        %5911 = vmatmul.mubr.bf16.gmra.mrb[0].mxu0 %v4742
        %v5912 = vpop.f32.mrb[0].mxu0
        %v5913 = vadd.f32 %v5860, %v5912
        %v5914 = vpop.f32.mrb[0].mxu0
        %v5915 = vadd.f32 %v5862, %v5914
        %v5916 = vpop.f32.mrb[0].mxu0
        %v5917 = vadd.f32 %v5864, %v5916
        %v5918 = vpop.f32.mrb[0].mxu0
        %v5919 = vadd.f32 %v5866, %v5918
        %5920 = vmatprep.mubr.bf16.mxu0 0
        %5921 = vmatmul.mubr.bf16.gmra.mrb[0].mxu0 %v4745
        %v5922 = vpop.f32.mrb[0].mxu0
        %v5923 = vadd.f32 %v5870, %v5922
        %v5924 = vpop.f32.mrb[0].mxu0
        %v5925 = vadd.f32 %v5872, %v5924
        %v5926 = vpop.f32.mrb[0].mxu0
        %v5927 = vadd.f32 %v5874, %v5926
        %v5928 = vpop.f32.mrb[0].mxu0
        %v5929 = vadd.f32 %v5876, %v5928
        %5930 = vdwg.mxu0
        %v6027 = vunpack.c.l.b16 %v4755
        %v6028 = vunpack.c.h.b16 %v4755
        %v6029 = vunpack.c.l.b16 %v4756
        %v6030 = vunpack.c.h.b16 %v4756
        %v6031 = vunpack.c.l.b16 %v4757
        %v6032 = vunpack.c.h.b16 %v4757
        %v6033 = vunpack.c.l.b16 %v4758
        %v6034 = vunpack.c.h.b16 %v4758
        %v6035 = vunpack.c.l.b16 %v4759
        %v6036 = vunpack.c.h.b16 %v4759
        %v6037 = vunpack.c.l.b16 %v4760
        %v6038 = vunpack.c.h.b16 %v4760
        %v6039 = vunpack.c.l.b16 %v4761
        %v6040 = vunpack.c.h.b16 %v4761
        %v6041 = vunpack.c.l.b16 %v4762
        %v6042 = vunpack.c.h.b16 %v4762
        %v6043 = vunpack.c.l.b16 %v4763
        %v6044 = vunpack.c.h.b16 %v4763
        %v6045 = vunpack.c.l.b16 %v4764
        %v6046 = vunpack.c.h.b16 %v4764
        %v6047 = vunpack.c.l.b16 %v4765
        %v6048 = vunpack.c.h.b16 %v4765
        %v6049 = vunpack.c.l.b16 %v4766
        %v6050 = vunpack.c.h.b16 %v4766
        %v6051 = vunpack.c.l.b16 %v4767
        %v6052 = vunpack.c.h.b16 %v4767
        %v6053 = vunpack.c.l.b16 %v4768
        %v6054 = vunpack.c.h.b16 %v4768
        %v6055 = vunpack.c.l.b16 %v4769
        %v6056 = vunpack.c.h.b16 %v4769
        %v6057 = vunpack.c.l.b16 %v4770
        %v6058 = vunpack.c.h.b16 %v4770
        %v6059 = vunpack.c.l.b16 %v4771
        %v6060 = vunpack.c.h.b16 %v4771
        %v6061 = vunpack.c.l.b16 %v4772
        %v6062 = vunpack.c.h.b16 %v4772
        %v6063 = vunpack.c.l.b16 %v4773
        %v6064 = vunpack.c.h.b16 %v4773
        %v6065 = vunpack.c.l.b16 %v4774
        %v6066 = vunpack.c.h.b16 %v4774
        %v6067 = vunpack.c.l.b16 %v4775
        %v6068 = vunpack.c.h.b16 %v4775
        %v6069 = vunpack.c.l.b16 %v4776
        %v6070 = vunpack.c.h.b16 %v4776
        %v6071 = vunpack.c.l.b16 %v4777
        %v6072 = vunpack.c.h.b16 %v4777
        %v6073 = vunpack.c.l.b16 %v4778
        %v6074 = vunpack.c.h.b16 %v4778
        %v6075 = vunpack.c.l.b16 %v4779
        %v6076 = vunpack.c.h.b16 %v4779
        %v6077 = vunpack.c.l.b16 %v4780
        %v6078 = vunpack.c.h.b16 %v4780
        %v6079 = vunpack.c.l.b16 %v4781
        %v6080 = vunpack.c.h.b16 %v4781
        %v6081 = vunpack.c.l.b16 %v4782
        %v6082 = vunpack.c.h.b16 %v4782
        %v6083 = vunpack.c.l.b16 %v4783
        %v6084 = vunpack.c.h.b16 %v4783
        %v6085 = vunpack.c.l.b16 %v4784
        %v6086 = vunpack.c.h.b16 %v4784
        %v6087 = vunpack.c.l.b16 %v4785
        %v6088 = vunpack.c.h.b16 %v4785
        %v6089 = vunpack.c.l.b16 %v4786
        %v6090 = vunpack.c.h.b16 %v4786
        %v6091 = vunpack.c.l.b16 %v4787
        %v6092 = vunpack.c.h.b16 %v4787
        %v6093 = vunpack.c.l.b16 %v4788
        %v6094 = vunpack.c.h.b16 %v4788
        %v6095 = vunpack.c.l.b16 %v4789
        %v6096 = vunpack.c.h.b16 %v4789
        %v6097 = vunpack.c.l.b16 %v4790
        %v6098 = vunpack.c.h.b16 %v4790
        %v6099 = vunpack.c.l.b16 %v4791
        %v6100 = vunpack.c.h.b16 %v4791
        %v6101 = vunpack.c.l.b16 %v4792
        %v6102 = vunpack.c.h.b16 %v4792
        %v6103 = vunpack.c.l.b16 %v4793
        %v6104 = vunpack.c.h.b16 %v4793
        %v6105 = vunpack.c.l.b16 %v4794
        %v6106 = vunpack.c.h.b16 %v4794
        %v6107 = vunpack.c.l.b16 %v4795
        %v6108 = vunpack.c.h.b16 %v4795
        %v6109 = vunpack.c.l.b16 %v4796
        %v6110 = vunpack.c.h.b16 %v4796
        %v6111 = vunpack.c.l.b16 %v4797
        %v6112 = vunpack.c.h.b16 %v4797
        %v6113 = vunpack.c.l.b16 %v4798
        %v6114 = vunpack.c.h.b16 %v4798
        %v6115 = vunpack.c.l.b16 %v4799
        %v6116 = vunpack.c.h.b16 %v4799
        %v6117 = vunpack.c.l.b16 %v4800
        %v6118 = vunpack.c.h.b16 %v4800
        %v6119 = vunpack.c.l.b16 %v4801
        %v6120 = vunpack.c.h.b16 %v4801
        %v6121 = vunpack.c.l.b16 %v4802
        %v6122 = vunpack.c.h.b16 %v4802
        %v6123 = vunpack.c.l.b16 %v4803
        %v6124 = vunpack.c.h.b16 %v4803
        %v6125 = vunpack.c.l.b16 %v4804
        %v6126 = vunpack.c.h.b16 %v4804
        %v6127 = vunpack.c.l.b16 %v4805
        %v6128 = vunpack.c.h.b16 %v4805
        %v6129 = vunpack.c.l.b16 %v4806
        %v6130 = vunpack.c.h.b16 %v4806
        %v6131 = vunpack.c.l.b16 %v4807
        %v6132 = vunpack.c.h.b16 %v4807
        %v6133 = vunpack.c.l.b16 %v4808
        %v6134 = vunpack.c.h.b16 %v4808
        %v6135 = vunpack.c.l.b16 %v4809
        %v6136 = vunpack.c.h.b16 %v4809
        %v6137 = vunpack.c.l.b16 %v4810
        %v6138 = vunpack.c.h.b16 %v4810
        %v6139 = vunpack.c.l.b16 %v4811
        %v6140 = vunpack.c.h.b16 %v4811
        %v6141 = vunpack.c.l.b16 %v4812
        %v6142 = vunpack.c.h.b16 %v4812
        %v6143 = vunpack.c.l.b16 %v4813
        %v6144 = vunpack.c.h.b16 %v4813
        %v6145 = vunpack.c.l.b16 %v4814
        %v6146 = vunpack.c.h.b16 %v4814
        %v6147 = vunpack.c.l.b16 %v4815
        %v6148 = vunpack.c.h.b16 %v4815
        %v6149 = vunpack.c.l.b16 %v4816
        %v6150 = vunpack.c.h.b16 %v4816
        %v6151 = vunpack.c.l.b16 %v4817
        %v6152 = vunpack.c.h.b16 %v4817
        %v6153 = vunpack.c.l.b16 %v4818
        %v6154 = vunpack.c.h.b16 %v4818
        %v6155 = vunpack.c.l.b16 %v4819
        %v6156 = vunpack.c.h.b16 %v4819
        %v6157 = vunpack.c.l.b16 %v4820
        %v6158 = vunpack.c.h.b16 %v4820
        %v6159 = vunpack.c.l.b16 %v4821
        %v6160 = vunpack.c.h.b16 %v4821
        %v6161 = vunpack.c.l.b16 %v4822
        %v6162 = vunpack.c.h.b16 %v4822
        %v6163 = vunpack.c.l.b16 %v4823
        %v6164 = vunpack.c.h.b16 %v4823
        %v6165 = vunpack.c.l.b16 %v4824
        %v6166 = vunpack.c.h.b16 %v4824
        %v6167 = vunpack.c.l.b16 %v4825
        %v6168 = vunpack.c.h.b16 %v4825
        %v6169 = vunpack.c.l.b16 %v4826
        %v6170 = vunpack.c.h.b16 %v4826
        %v6171 = vunpack.c.l.b16 %v4827
        %v6172 = vunpack.c.h.b16 %v4827
        %v6173 = vunpack.c.l.b16 %v4828
        %v6174 = vunpack.c.h.b16 %v4828
        %v6175 = vunpack.c.l.b16 %v4829
        %v6176 = vunpack.c.h.b16 %v4829
        %v6177 = vunpack.c.l.b16 %v4830
        %v6178 = vunpack.c.h.b16 %v4830
        %v6179 = vunpack.c.l.b16 %v4831
        %v6180 = vunpack.c.h.b16 %v4831
        %v6181 = vunpack.c.l.b16 %v4832
        %v6182 = vunpack.c.h.b16 %v4832
        %v6183 = vunpack.c.l.b16 %v4833
        %v6184 = vunpack.c.h.b16 %v4833
        %v6185 = vunpack.c.l.b16 %v4834
        %v6186 = vunpack.c.h.b16 %v4834
        %v6187 = vunpack.c.l.b16 %v4835
        %v6188 = vunpack.c.h.b16 %v4835
        %v6189 = vunpack.c.l.b16 %v4836
        %v6190 = vunpack.c.h.b16 %v4836
        %v6191 = vunpack.c.l.b16 %v4837
        %v6192 = vunpack.c.h.b16 %v4837
        %v6193 = vunpack.c.l.b16 %v4838
        %v6194 = vunpack.c.h.b16 %v4838
        %v6195 = vunpack.c.l.b16 %v4839
        %v6196 = vunpack.c.h.b16 %v4839
        %v6197 = vunpack.c.l.b16 %v4840
        %v6198 = vunpack.c.h.b16 %v4840
        %v6199 = vunpack.c.l.b16 %v4841
        %v6200 = vunpack.c.h.b16 %v4841
        %v6201 = vunpack.c.l.b16 %v4842
        %v6202 = vunpack.c.h.b16 %v4842
        %v6203 = vunpack.c.l.b16 %v4843
        %v6204 = vunpack.c.h.b16 %v4843
        %v6205 = vunpack.c.l.b16 %v4844
        %v6206 = vunpack.c.h.b16 %v4844
        %v6207 = vunpack.c.l.b16 %v4845
        %v6208 = vunpack.c.h.b16 %v4845
        %v6209 = vunpack.c.l.b16 %v4846
        %v6210 = vunpack.c.h.b16 %v4846
        %v6211 = vunpack.c.l.b16 %v4847
        %v6212 = vunpack.c.h.b16 %v4847
        %v6213 = vunpack.c.l.b16 %v4848
        %v6214 = vunpack.c.h.b16 %v4848
        %v6215 = vunpack.c.l.b16 %v4849
        %v6216 = vunpack.c.h.b16 %v4849
        %v6217 = vunpack.c.l.b16 %v4850
        %v6218 = vunpack.c.h.b16 %v4850
        %v6219 = vpack.c.b16 %v6031, %v6027
        %v6220 = vpack.c.b16 %v6032, %v6028
        %v6221 = vpack.c.b16 %v6033, %v6029
        %v6222 = vpack.c.b16 %v6034, %v6030
        %v6223 = vpack.c.b16 %v6039, %v6035
        %v6224 = vpack.c.b16 %v6040, %v6036
        %v6225 = vpack.c.b16 %v6041, %v6037
        %v6226 = vpack.c.b16 %v6042, %v6038
        %v6227 = vpack.c.b16 %v6047, %v6043
        %v6228 = vpack.c.b16 %v6048, %v6044
        %v6229 = vpack.c.b16 %v6049, %v6045
        %v6230 = vpack.c.b16 %v6050, %v6046
        %v6231 = vpack.c.b16 %v6055, %v6051
        %v6232 = vpack.c.b16 %v6056, %v6052
        %v6233 = vpack.c.b16 %v6057, %v6053
        %v6234 = vpack.c.b16 %v6058, %v6054
        %v6235 = vpack.c.b16 %v6063, %v6059
        %v6236 = vpack.c.b16 %v6064, %v6060
        %v6237 = vpack.c.b16 %v6065, %v6061
        %v6238 = vpack.c.b16 %v6066, %v6062
        %v6239 = vpack.c.b16 %v6071, %v6067
        %v6240 = vpack.c.b16 %v6072, %v6068
        %v6241 = vpack.c.b16 %v6073, %v6069
        %v6242 = vpack.c.b16 %v6074, %v6070
        %v6243 = vpack.c.b16 %v6079, %v6075
        %v6244 = vpack.c.b16 %v6080, %v6076
        %v6245 = vpack.c.b16 %v6081, %v6077
        %v6246 = vpack.c.b16 %v6082, %v6078
        %v6247 = vpack.c.b16 %v6087, %v6083
        %v6248 = vpack.c.b16 %v6088, %v6084
        %v6249 = vpack.c.b16 %v6089, %v6085
        %v6250 = vpack.c.b16 %v6090, %v6086
        %v6251 = vpack.c.b16 %v6095, %v6091
        %v6252 = vpack.c.b16 %v6096, %v6092
        %v6253 = vpack.c.b16 %v6097, %v6093
        %v6254 = vpack.c.b16 %v6098, %v6094
        %v6255 = vpack.c.b16 %v6103, %v6099
        %v6256 = vpack.c.b16 %v6104, %v6100
        %v6257 = vpack.c.b16 %v6105, %v6101
        %v6258 = vpack.c.b16 %v6106, %v6102
        %v6259 = vpack.c.b16 %v6111, %v6107
        %v6260 = vpack.c.b16 %v6112, %v6108
        %v6261 = vpack.c.b16 %v6113, %v6109
        %v6262 = vpack.c.b16 %v6114, %v6110
        %v6263 = vpack.c.b16 %v6119, %v6115
        %v6264 = vpack.c.b16 %v6120, %v6116
        %v6265 = vpack.c.b16 %v6121, %v6117
        %v6266 = vpack.c.b16 %v6122, %v6118
        %v6267 = vpack.c.b16 %v6127, %v6123
        %v6268 = vpack.c.b16 %v6128, %v6124
        %v6269 = vpack.c.b16 %v6129, %v6125
        %v6270 = vpack.c.b16 %v6130, %v6126
        %v6271 = vpack.c.b16 %v6135, %v6131
        %v6272 = vpack.c.b16 %v6136, %v6132
        %v6273 = vpack.c.b16 %v6137, %v6133
        %v6274 = vpack.c.b16 %v6138, %v6134
        %v6275 = vpack.c.b16 %v6143, %v6139
        %v6276 = vpack.c.b16 %v6144, %v6140
        %v6277 = vpack.c.b16 %v6145, %v6141
        %v6278 = vpack.c.b16 %v6146, %v6142
        %v6279 = vpack.c.b16 %v6151, %v6147
        %v6280 = vpack.c.b16 %v6152, %v6148
        %v6281 = vpack.c.b16 %v6153, %v6149
        %v6282 = vpack.c.b16 %v6154, %v6150
        %v6283 = vpack.c.b16 %v6159, %v6155
        %v6284 = vpack.c.b16 %v6160, %v6156
        %v6285 = vpack.c.b16 %v6161, %v6157
        %v6286 = vpack.c.b16 %v6162, %v6158
        %v6287 = vpack.c.b16 %v6167, %v6163
        %v6288 = vpack.c.b16 %v6168, %v6164
        %v6289 = vpack.c.b16 %v6169, %v6165
        %v6290 = vpack.c.b16 %v6170, %v6166
        %v6291 = vpack.c.b16 %v6175, %v6171
        %v6292 = vpack.c.b16 %v6176, %v6172
        %v6293 = vpack.c.b16 %v6177, %v6173
        %v6294 = vpack.c.b16 %v6178, %v6174
        %v6295 = vpack.c.b16 %v6183, %v6179
        %v6296 = vpack.c.b16 %v6184, %v6180
        %v6297 = vpack.c.b16 %v6185, %v6181
        %v6298 = vpack.c.b16 %v6186, %v6182
        %v6299 = vpack.c.b16 %v6191, %v6187
        %v6300 = vpack.c.b16 %v6192, %v6188
        %v6301 = vpack.c.b16 %v6193, %v6189
        %v6302 = vpack.c.b16 %v6194, %v6190
        %v6303 = vpack.c.b16 %v6199, %v6195
        %v6304 = vpack.c.b16 %v6200, %v6196
        %v6305 = vpack.c.b16 %v6201, %v6197
        %v6306 = vpack.c.b16 %v6202, %v6198
        %v6307 = vpack.c.b16 %v6207, %v6203
        %v6308 = vpack.c.b16 %v6208, %v6204
        %v6309 = vpack.c.b16 %v6209, %v6205
        %v6310 = vpack.c.b16 %v6210, %v6206
        %v6311 = vpack.c.b16 %v6215, %v6211
        %v6312 = vpack.c.b16 %v6216, %v6212
        %v6313 = vpack.c.b16 %v6217, %v6213
        %v6314 = vpack.c.b16 %v6218, %v6214
        %6411 = vmatprep.subr.bf16.mxu0 %v6220
        %6412 = vmatpush1.bf16.msra.mxu0 %v6219
        %6413 = vmatprep.subr.bf16.mxu0 %v6224
        %6414 = vmatpush1.bf16.msra.mxu0 %v6223
        %6415 = vmatprep.subr.bf16.mxu0 %v6228
        %6416 = vmatpush1.bf16.msra.mxu0 %v6227
        %6417 = vmatprep.subr.bf16.mxu0 %v6232
        %6418 = vmatpush1.bf16.msra.mxu0 %v6231
        %6419 = vmatprep.subr.bf16.mxu0 %v6236
        %6420 = vmatpush1.bf16.msra.mxu0 %v6235
        %6421 = vmatprep.subr.bf16.mxu0 %v6240
        %6422 = vmatpush1.bf16.msra.mxu0 %v6239
        %6423 = vmatprep.subr.bf16.mxu0 %v6244
        %6424 = vmatpush1.bf16.msra.mxu0 %v6243
        %6425 = vmatprep.subr.bf16.mxu0 %v6248
        %6426 = vmatpush1.bf16.msra.mxu0 %v6247
        %6427 = vmatprep.subr.bf16.mxu0 %v6252
        %6428 = vmatpush1.bf16.msra.mxu0 %v6251
        %6429 = vmatprep.subr.bf16.mxu0 %v6256
        %6430 = vmatpush1.bf16.msra.mxu0 %v6255
        %6431 = vmatprep.subr.bf16.mxu0 %v6260
        %6432 = vmatpush1.bf16.msra.mxu0 %v6259
        %6433 = vmatprep.subr.bf16.mxu0 %v6264
        %6434 = vmatpush1.bf16.msra.mxu0 %v6263
        %6435 = vmatprep.subr.bf16.mxu0 %v6268
        %6436 = vmatpush1.bf16.msra.mxu0 %v6267
        %6437 = vmatprep.subr.bf16.mxu0 %v6272
        %6438 = vmatpush1.bf16.msra.mxu0 %v6271
        %6439 = vmatprep.subr.bf16.mxu0 %v6276
        %6440 = vmatpush1.bf16.msra.mxu0 %v6275
        %6441 = vmatprep.subr.bf16.mxu0 %v6280
        %6442 = vmatpush1.bf16.msra.mxu0 %v6279
        %6443 = vmatprep.mubr.bf16.mxu0 %v4726
        %6444 = vmatmul.mubr.bf16.gmra.mrb[0].mxu0 %v4725
        %v6445 = vpop.f32.mrb[0].mxu0
        %v6446 = vadd.f32 %v5807, %v6445
        %v6447 = vpop.f32.mrb[0].mxu0
        %v6448 = vadd.f32 %v5809, %v6447
        %v6449 = vpop.f32.mrb[0].mxu0
        %v6450 = vadd.f32 %v5811, %v6449
        %v6451 = vpop.f32.mrb[0].mxu0
        %v6452 = vadd.f32 %v5813, %v6451
        %6453 = vmatprep.mubr.bf16.mxu0 %v4729
        %6454 = vmatmul.mubr.bf16.gmra.mrb[0].mxu0 %v4728
        %v6455 = vpop.f32.mrb[0].mxu0
        %v6456 = vadd.f32 %v5817, %v6455
        %v6457 = vpop.f32.mrb[0].mxu0
        %v6458 = vadd.f32 %v5819, %v6457
        %v6459 = vpop.f32.mrb[0].mxu0
        %v6460 = vadd.f32 %v5821, %v6459
        %v6461 = vpop.f32.mrb[0].mxu0
        %v6462 = vadd.f32 %v5823, %v6461
        %6463 = vdwg.mxu0
        %6464 = vmatprep.subr.bf16.mxu0 %v6284
        %6465 = vmatpush1.bf16.msra.mxu0 %v6283
        %6466 = vmatprep.subr.bf16.mxu0 %v6288
        %6467 = vmatpush1.bf16.msra.mxu0 %v6287
        %6468 = vmatprep.subr.bf16.mxu0 %v6292
        %6469 = vmatpush1.bf16.msra.mxu0 %v6291
        %6470 = vmatprep.subr.bf16.mxu0 %v6296
        %6471 = vmatpush1.bf16.msra.mxu0 %v6295
        %6472 = vmatprep.subr.bf16.mxu0 %v6300
        %6473 = vmatpush1.bf16.msra.mxu0 %v6299
        %6474 = vmatprep.subr.bf16.mxu0 %v6304
        %6475 = vmatpush1.bf16.msra.mxu0 %v6303
        %6476 = vmatprep.subr.bf16.mxu0 %v6308
        %6477 = vmatpush1.bf16.msra.mxu0 %v6307
        %6478 = vmatprep.subr.bf16.mxu0 %v6312
        %6479 = vmatpush1.bf16.msra.mxu0 %v6311
        %6480 = vmatprep.subr.bf16.mxu0 0
        %6481 = vmatpush1.bf16.msra.mxu0 0
        %6482 = vmatprep.subr.bf16.mxu0 0
        %6483 = vmatpush1.bf16.msra.mxu0 0
        %6484 = vmatprep.subr.bf16.mxu0 0
        %6485 = vmatpush1.bf16.msra.mxu0 0
        %6486 = vmatprep.subr.bf16.mxu0 0
        %6487 = vmatpush1.bf16.msra.mxu0 0
        %6488 = vmatprep.subr.bf16.mxu0 0
        %6489 = vmatpush1.bf16.msra.mxu0 0
        %6490 = vmatprep.subr.bf16.mxu0 0
        %6491 = vmatpush1.bf16.msra.mxu0 0
        %6492 = vmatprep.subr.bf16.mxu0 0
        %6493 = vmatpush1.bf16.msra.mxu0 0
        %6494 = vmatprep.subr.bf16.mxu0 0
        %6495 = vmatpush1.bf16.msra.mxu0 0
        %6496 = vmatprep.mubr.bf16.mxu0 0
        %6497 = vmatmul.mubr.bf16.gmra.mrb[0].mxu0 %v4727
        %v6498 = vpop.f32.mrb[0].mxu0
        %v6499 = vadd.f32 %v6446, %v6498
        %v6500 = vpop.f32.mrb[0].mxu0
        %v6501 = vadd.f32 %v6448, %v6500
        %v6502 = vpop.f32.mrb[0].mxu0
        %v6503 = vadd.f32 %v6450, %v6502
        %v6504 = vpop.f32.mrb[0].mxu0
        %v6505 = vadd.f32 %v6452, %v6504
        %6506 = vmatprep.mubr.bf16.mxu0 0
        %6507 = vmatmul.mubr.bf16.gmra.mrb[0].mxu0 %v4730
        %v6508 = vpop.f32.mrb[0].mxu0
        %v6509 = vadd.f32 %v6456, %v6508
        %v6510 = vpop.f32.mrb[0].mxu0
        %v6511 = vadd.f32 %v6458, %v6510
        %v6512 = vpop.f32.mrb[0].mxu0
        %v6513 = vadd.f32 %v6460, %v6512
        %v6514 = vpop.f32.mrb[0].mxu0
        %v6515 = vadd.f32 %v6462, %v6514
        %6516 = vdwg.mxu0
        %6517 = vmatprep.subr.bf16.mxu0 %v6222
        %6518 = vmatpush1.bf16.msra.mxu0 %v6221
        %6519 = vmatprep.subr.bf16.mxu0 %v6226
        %6520 = vmatpush1.bf16.msra.mxu0 %v6225
        %6521 = vmatprep.subr.bf16.mxu0 %v6230
        %6522 = vmatpush1.bf16.msra.mxu0 %v6229
        %6523 = vmatprep.subr.bf16.mxu0 %v6234
        %6524 = vmatpush1.bf16.msra.mxu0 %v6233
        %6525 = vmatprep.subr.bf16.mxu0 %v6238
        %6526 = vmatpush1.bf16.msra.mxu0 %v6237
        %6527 = vmatprep.subr.bf16.mxu0 %v6242
        %6528 = vmatpush1.bf16.msra.mxu0 %v6241
        %6529 = vmatprep.subr.bf16.mxu0 %v6246
        %6530 = vmatpush1.bf16.msra.mxu0 %v6245
        %6531 = vmatprep.subr.bf16.mxu0 %v6250
        %6532 = vmatpush1.bf16.msra.mxu0 %v6249
        %6533 = vmatprep.subr.bf16.mxu0 %v6254
        %6534 = vmatpush1.bf16.msra.mxu0 %v6253
        %6535 = vmatprep.subr.bf16.mxu0 %v6258
        %6536 = vmatpush1.bf16.msra.mxu0 %v6257
        %6537 = vmatprep.subr.bf16.mxu0 %v6262
        %6538 = vmatpush1.bf16.msra.mxu0 %v6261
        %6539 = vmatprep.subr.bf16.mxu0 %v6266
        %6540 = vmatpush1.bf16.msra.mxu0 %v6265
        %6541 = vmatprep.subr.bf16.mxu0 %v6270
        %6542 = vmatpush1.bf16.msra.mxu0 %v6269
        %6543 = vmatprep.subr.bf16.mxu0 %v6274
        %6544 = vmatpush1.bf16.msra.mxu0 %v6273
        %6545 = vmatprep.subr.bf16.mxu0 %v6278
        %6546 = vmatpush1.bf16.msra.mxu0 %v6277
        %6547 = vmatprep.subr.bf16.mxu0 %v6282
        %6548 = vmatpush1.bf16.msra.mxu0 %v6281
        %6549 = vmatprep.mubr.bf16.mxu0 %v4726
        %6550 = vmatmul.mubr.bf16.gmra.mrb[0].mxu0 %v4725
        %v6551 = vpop.f32.mrb[0].mxu0
        %v6552 = vadd.f32 %v5913, %v6551
        %v6553 = vpop.f32.mrb[0].mxu0
        %v6554 = vadd.f32 %v5915, %v6553
        %v6555 = vpop.f32.mrb[0].mxu0
        %v6556 = vadd.f32 %v5917, %v6555
        %v6557 = vpop.f32.mrb[0].mxu0
        %v6558 = vadd.f32 %v5919, %v6557
        %6559 = vmatprep.mubr.bf16.mxu0 %v4729
        %6560 = vmatmul.mubr.bf16.gmra.mrb[0].mxu0 %v4728
        %v6561 = vpop.f32.mrb[0].mxu0
        %v6562 = vadd.f32 %v5923, %v6561
        %v6563 = vpop.f32.mrb[0].mxu0
        %v6564 = vadd.f32 %v5925, %v6563
        %v6565 = vpop.f32.mrb[0].mxu0
        %v6566 = vadd.f32 %v5927, %v6565
        %v6567 = vpop.f32.mrb[0].mxu0
        %v6568 = vadd.f32 %v5929, %v6567
        %6569 = vdwg.mxu0
        %6570 = vmatprep.subr.bf16.mxu0 %v6286
        %6571 = vmatpush1.bf16.msra.mxu0 %v6285
        %6572 = vmatprep.subr.bf16.mxu0 %v6290
        %6573 = vmatpush1.bf16.msra.mxu0 %v6289
        %6574 = vmatprep.subr.bf16.mxu0 %v6294
        %6575 = vmatpush1.bf16.msra.mxu0 %v6293
        %6576 = vmatprep.subr.bf16.mxu0 %v6298
        %6577 = vmatpush1.bf16.msra.mxu0 %v6297
        %6578 = vmatprep.subr.bf16.mxu0 %v6302
        %6579 = vmatpush1.bf16.msra.mxu0 %v6301
        %6580 = vmatprep.subr.bf16.mxu0 %v6306
        %6581 = vmatpush1.bf16.msra.mxu0 %v6305
        %6582 = vmatprep.subr.bf16.mxu0 %v6310
        %6583 = vmatpush1.bf16.msra.mxu0 %v6309
        %6584 = vmatprep.subr.bf16.mxu0 %v6314
        %6585 = vmatpush1.bf16.msra.mxu0 %v6313
        %6586 = vmatprep.subr.bf16.mxu0 0
        %6587 = vmatpush1.bf16.msra.mxu0 0
        %6588 = vmatprep.subr.bf16.mxu0 0
        %6589 = vmatpush1.bf16.msra.mxu0 0
        %6590 = vmatprep.subr.bf16.mxu0 0
        %6591 = vmatpush1.bf16.msra.mxu0 0
        %6592 = vmatprep.subr.bf16.mxu0 0
        %6593 = vmatpush1.bf16.msra.mxu0 0
        %6594 = vmatprep.subr.bf16.mxu0 0
        %6595 = vmatpush1.bf16.msra.mxu0 0
        %6596 = vmatprep.subr.bf16.mxu0 0
        %6597 = vmatpush1.bf16.msra.mxu0 0
        %6598 = vmatprep.subr.bf16.mxu0 0
        %6599 = vmatpush1.bf16.msra.mxu0 0
        %6600 = vmatprep.subr.bf16.mxu0 0
        %6601 = vmatpush1.bf16.msra.mxu0 0
        %6602 = vmatprep.mubr.bf16.mxu0 0
        %6603 = vmatmul.mubr.bf16.gmra.mrb[0].mxu0 %v4727
        %v6604 = vpop.f32.mrb[0].mxu0
        %v6605 = vadd.f32 %v6552, %v6604
        %v6606 = vpop.f32.mrb[0].mxu0
        %v6607 = vadd.f32 %v6554, %v6606
        %v6608 = vpop.f32.mrb[0].mxu0
        %v6609 = vadd.f32 %v6556, %v6608
        %v6610 = vpop.f32.mrb[0].mxu0
        %v6611 = vadd.f32 %v6558, %v6610
        %6612 = vmatprep.mubr.bf16.mxu0 0
        %6613 = vmatmul.mubr.bf16.gmra.mrb[0].mxu0 %v4730
        %v6614 = vpop.f32.mrb[0].mxu0
        %v6615 = vadd.f32 %v6562, %v6614
        %v6616 = vpop.f32.mrb[0].mxu0
        %v6617 = vadd.f32 %v6564, %v6616
        %v6618 = vpop.f32.mrb[0].mxu0
        %v6619 = vadd.f32 %v6566, %v6618
        %v6620 = vpop.f32.mrb[0].mxu0
        %v6621 = vadd.f32 %v6568, %v6620
        %6622 = vdwg.mxu0
        %v6719 = vunpack.c.l.b16 %v4949
        %v6720 = vunpack.c.h.b16 %v4949
        %v6721 = vunpack.c.l.b16 %v4950
        %v6722 = vunpack.c.h.b16 %v4950
        %v6723 = vunpack.c.l.b16 %v4951
        %v6724 = vunpack.c.h.b16 %v4951
        %v6725 = vunpack.c.l.b16 %v4952
        %v6726 = vunpack.c.h.b16 %v4952
        %v6727 = vunpack.c.l.b16 %v4953
        %v6728 = vunpack.c.h.b16 %v4953
        %v6729 = vunpack.c.l.b16 %v4954
        %v6730 = vunpack.c.h.b16 %v4954
        %v6731 = vunpack.c.l.b16 %v4955
        %v6732 = vunpack.c.h.b16 %v4955
        %v6733 = vunpack.c.l.b16 %v4956
        %v6734 = vunpack.c.h.b16 %v4956
        %v6735 = vunpack.c.l.b16 %v4957
        %v6736 = vunpack.c.h.b16 %v4957
        %v6737 = vunpack.c.l.b16 %v4958
        %v6738 = vunpack.c.h.b16 %v4958
        %v6739 = vunpack.c.l.b16 %v4959
        %v6740 = vunpack.c.h.b16 %v4959
        %v6741 = vunpack.c.l.b16 %v4960
        %v6742 = vunpack.c.h.b16 %v4960
        %v6743 = vunpack.c.l.b16 %v4961
        %v6744 = vunpack.c.h.b16 %v4961
        %v6745 = vunpack.c.l.b16 %v4962
        %v6746 = vunpack.c.h.b16 %v4962
        %v6747 = vunpack.c.l.b16 %v4963
        %v6748 = vunpack.c.h.b16 %v4963
        %v6749 = vunpack.c.l.b16 %v4964
        %v6750 = vunpack.c.h.b16 %v4964
        %v6751 = vunpack.c.l.b16 %v4965
        %v6752 = vunpack.c.h.b16 %v4965
        %v6753 = vunpack.c.l.b16 %v4966
        %v6754 = vunpack.c.h.b16 %v4966
        %v6755 = vunpack.c.l.b16 %v4967
        %v6756 = vunpack.c.h.b16 %v4967
        %v6757 = vunpack.c.l.b16 %v4968
        %v6758 = vunpack.c.h.b16 %v4968
        %v6759 = vunpack.c.l.b16 %v4969
        %v6760 = vunpack.c.h.b16 %v4969
        %v6761 = vunpack.c.l.b16 %v4970
        %v6762 = vunpack.c.h.b16 %v4970
        %v6763 = vunpack.c.l.b16 %v4971
        %v6764 = vunpack.c.h.b16 %v4971
        %v6765 = vunpack.c.l.b16 %v4972
        %v6766 = vunpack.c.h.b16 %v4972
        %v6767 = vunpack.c.l.b16 %v4973
        %v6768 = vunpack.c.h.b16 %v4973
        %v6769 = vunpack.c.l.b16 %v4974
        %v6770 = vunpack.c.h.b16 %v4974
        %v6771 = vunpack.c.l.b16 %v4975
        %v6772 = vunpack.c.h.b16 %v4975
        %v6773 = vunpack.c.l.b16 %v4976
        %v6774 = vunpack.c.h.b16 %v4976
        %v6775 = vunpack.c.l.b16 %v4977
        %v6776 = vunpack.c.h.b16 %v4977
        %v6777 = vunpack.c.l.b16 %v4978
        %v6778 = vunpack.c.h.b16 %v4978
        %v6779 = vunpack.c.l.b16 %v4979
        %v6780 = vunpack.c.h.b16 %v4979
        %v6781 = vunpack.c.l.b16 %v4980
        %v6782 = vunpack.c.h.b16 %v4980
        %v6783 = vunpack.c.l.b16 %v4981
        %v6784 = vunpack.c.h.b16 %v4981
        %v6785 = vunpack.c.l.b16 %v4982
        %v6786 = vunpack.c.h.b16 %v4982
        %v6787 = vunpack.c.l.b16 %v4983
        %v6788 = vunpack.c.h.b16 %v4983
        %v6789 = vunpack.c.l.b16 %v4984
        %v6790 = vunpack.c.h.b16 %v4984
        %v6791 = vunpack.c.l.b16 %v4985
        %v6792 = vunpack.c.h.b16 %v4985
        %v6793 = vunpack.c.l.b16 %v4986
        %v6794 = vunpack.c.h.b16 %v4986
        %v6795 = vunpack.c.l.b16 %v4987
        %v6796 = vunpack.c.h.b16 %v4987
        %v6797 = vunpack.c.l.b16 %v4988
        %v6798 = vunpack.c.h.b16 %v4988
        %v6799 = vunpack.c.l.b16 %v4989
        %v6800 = vunpack.c.h.b16 %v4989
        %v6801 = vunpack.c.l.b16 %v4990
        %v6802 = vunpack.c.h.b16 %v4990
        %v6803 = vunpack.c.l.b16 %v4991
        %v6804 = vunpack.c.h.b16 %v4991
        %v6805 = vunpack.c.l.b16 %v4992
        %v6806 = vunpack.c.h.b16 %v4992
        %v6807 = vunpack.c.l.b16 %v4993
        %v6808 = vunpack.c.h.b16 %v4993
        %v6809 = vunpack.c.l.b16 %v4994
        %v6810 = vunpack.c.h.b16 %v4994
        %v6811 = vunpack.c.l.b16 %v4995
        %v6812 = vunpack.c.h.b16 %v4995
        %v6813 = vunpack.c.l.b16 %v4996
        %v6814 = vunpack.c.h.b16 %v4996
        %v6815 = vunpack.c.l.b16 %v4997
        %v6816 = vunpack.c.h.b16 %v4997
        %v6817 = vunpack.c.l.b16 %v4998
        %v6818 = vunpack.c.h.b16 %v4998
        %v6819 = vunpack.c.l.b16 %v4999
        %v6820 = vunpack.c.h.b16 %v4999
        %v6821 = vunpack.c.l.b16 %v5000
        %v6822 = vunpack.c.h.b16 %v5000
        %v6823 = vunpack.c.l.b16 %v5001
        %v6824 = vunpack.c.h.b16 %v5001
        %v6825 = vunpack.c.l.b16 %v5002
        %v6826 = vunpack.c.h.b16 %v5002
        %v6827 = vunpack.c.l.b16 %v5003
        %v6828 = vunpack.c.h.b16 %v5003
        %v6829 = vunpack.c.l.b16 %v5004
        %v6830 = vunpack.c.h.b16 %v5004
        %v6831 = vunpack.c.l.b16 %v5005
        %v6832 = vunpack.c.h.b16 %v5005
        %v6833 = vunpack.c.l.b16 %v5006
        %v6834 = vunpack.c.h.b16 %v5006
        %v6835 = vunpack.c.l.b16 %v5007
        %v6836 = vunpack.c.h.b16 %v5007
        %v6837 = vunpack.c.l.b16 %v5008
        %v6838 = vunpack.c.h.b16 %v5008
        %v6839 = vunpack.c.l.b16 %v5009
        %v6840 = vunpack.c.h.b16 %v5009
        %v6841 = vunpack.c.l.b16 %v5010
        %v6842 = vunpack.c.h.b16 %v5010
        %v6843 = vunpack.c.l.b16 %v5011
        %v6844 = vunpack.c.h.b16 %v5011
        %v6845 = vunpack.c.l.b16 %v5012
        %v6846 = vunpack.c.h.b16 %v5012
        %v6847 = vunpack.c.l.b16 %v5013
        %v6848 = vunpack.c.h.b16 %v5013
        %v6849 = vunpack.c.l.b16 %v5014
        %v6850 = vunpack.c.h.b16 %v5014
        %v6851 = vunpack.c.l.b16 %v5015
        %v6852 = vunpack.c.h.b16 %v5015
        %v6853 = vunpack.c.l.b16 %v5016
        %v6854 = vunpack.c.h.b16 %v5016
        %v6855 = vunpack.c.l.b16 %v5017
        %v6856 = vunpack.c.h.b16 %v5017
        %v6857 = vunpack.c.l.b16 %v5018
        %v6858 = vunpack.c.h.b16 %v5018
        %v6859 = vunpack.c.l.b16 %v5019
        %v6860 = vunpack.c.h.b16 %v5019
        %v6861 = vunpack.c.l.b16 %v5020
        %v6862 = vunpack.c.h.b16 %v5020
        %v6863 = vunpack.c.l.b16 %v5021
        %v6864 = vunpack.c.h.b16 %v5021
        %v6865 = vunpack.c.l.b16 %v5022
        %v6866 = vunpack.c.h.b16 %v5022
        %v6867 = vunpack.c.l.b16 %v5023
        %v6868 = vunpack.c.h.b16 %v5023
        %v6869 = vunpack.c.l.b16 %v5024
        %v6870 = vunpack.c.h.b16 %v5024
        %v6871 = vunpack.c.l.b16 %v5025
        %v6872 = vunpack.c.h.b16 %v5025
        %v6873 = vunpack.c.l.b16 %v5026
        %v6874 = vunpack.c.h.b16 %v5026
        %v6875 = vunpack.c.l.b16 %v5027
        %v6876 = vunpack.c.h.b16 %v5027
        %v6877 = vunpack.c.l.b16 %v5028
        %v6878 = vunpack.c.h.b16 %v5028
        %v6879 = vunpack.c.l.b16 %v5029
        %v6880 = vunpack.c.h.b16 %v5029
        %v6881 = vunpack.c.l.b16 %v5030
        %v6882 = vunpack.c.h.b16 %v5030
        %v6883 = vunpack.c.l.b16 %v5031
        %v6884 = vunpack.c.h.b16 %v5031
        %v6885 = vunpack.c.l.b16 %v5032
        %v6886 = vunpack.c.h.b16 %v5032
        %v6887 = vunpack.c.l.b16 %v5033
        %v6888 = vunpack.c.h.b16 %v5033
        %v6889 = vunpack.c.l.b16 %v5034
        %v6890 = vunpack.c.h.b16 %v5034
        %v6891 = vunpack.c.l.b16 %v5035
        %v6892 = vunpack.c.h.b16 %v5035
        %v6893 = vunpack.c.l.b16 %v5036
        %v6894 = vunpack.c.h.b16 %v5036
        %v6895 = vunpack.c.l.b16 %v5037
        %v6896 = vunpack.c.h.b16 %v5037
        %v6897 = vunpack.c.l.b16 %v5038
        %v6898 = vunpack.c.h.b16 %v5038
        %v6899 = vunpack.c.l.b16 %v5039
        %v6900 = vunpack.c.h.b16 %v5039
        %v6901 = vunpack.c.l.b16 %v5040
        %v6902 = vunpack.c.h.b16 %v5040
        %v6903 = vunpack.c.l.b16 %v5041
        %v6904 = vunpack.c.h.b16 %v5041
        %v6905 = vunpack.c.l.b16 %v5042
        %v6906 = vunpack.c.h.b16 %v5042
        %v6907 = vunpack.c.l.b16 %v5043
        %v6908 = vunpack.c.h.b16 %v5043
        %v6909 = vunpack.c.l.b16 %v5044
        %v6910 = vunpack.c.h.b16 %v5044
        %v6911 = vpack.c.b16 %v6723, %v6719
        %v6912 = vpack.c.b16 %v6724, %v6720
        %v6913 = vpack.c.b16 %v6725, %v6721
        %v6914 = vpack.c.b16 %v6726, %v6722
        %v6915 = vpack.c.b16 %v6731, %v6727
        %v6916 = vpack.c.b16 %v6732, %v6728
        %v6917 = vpack.c.b16 %v6733, %v6729
        %v6918 = vpack.c.b16 %v6734, %v6730
        %v6919 = vpack.c.b16 %v6739, %v6735
        %v6920 = vpack.c.b16 %v6740, %v6736
        %v6921 = vpack.c.b16 %v6741, %v6737
        %v6922 = vpack.c.b16 %v6742, %v6738
        %v6923 = vpack.c.b16 %v6747, %v6743
        %v6924 = vpack.c.b16 %v6748, %v6744
        %v6925 = vpack.c.b16 %v6749, %v6745
        %v6926 = vpack.c.b16 %v6750, %v6746
        %v6927 = vpack.c.b16 %v6755, %v6751
        %v6928 = vpack.c.b16 %v6756, %v6752
        %v6929 = vpack.c.b16 %v6757, %v6753
        %v6930 = vpack.c.b16 %v6758, %v6754
        %v6931 = vpack.c.b16 %v6763, %v6759
        %v6932 = vpack.c.b16 %v6764, %v6760
        %v6933 = vpack.c.b16 %v6765, %v6761
        %v6934 = vpack.c.b16 %v6766, %v6762
        %v6935 = vpack.c.b16 %v6771, %v6767
        %v6936 = vpack.c.b16 %v6772, %v6768
        %v6937 = vpack.c.b16 %v6773, %v6769
        %v6938 = vpack.c.b16 %v6774, %v6770
        %v6939 = vpack.c.b16 %v6779, %v6775
        %v6940 = vpack.c.b16 %v6780, %v6776
        %v6941 = vpack.c.b16 %v6781, %v6777
        %v6942 = vpack.c.b16 %v6782, %v6778
        %v6943 = vpack.c.b16 %v6787, %v6783
        %v6944 = vpack.c.b16 %v6788, %v6784
        %v6945 = vpack.c.b16 %v6789, %v6785
        %v6946 = vpack.c.b16 %v6790, %v6786
        %v6947 = vpack.c.b16 %v6795, %v6791
        %v6948 = vpack.c.b16 %v6796, %v6792
        %v6949 = vpack.c.b16 %v6797, %v6793
        %v6950 = vpack.c.b16 %v6798, %v6794
        %v6951 = vpack.c.b16 %v6803, %v6799
        %v6952 = vpack.c.b16 %v6804, %v6800
        %v6953 = vpack.c.b16 %v6805, %v6801
        %v6954 = vpack.c.b16 %v6806, %v6802
        %v6955 = vpack.c.b16 %v6811, %v6807
        %v6956 = vpack.c.b16 %v6812, %v6808
        %v6957 = vpack.c.b16 %v6813, %v6809
        %v6958 = vpack.c.b16 %v6814, %v6810
        %v6959 = vpack.c.b16 %v6819, %v6815
        %v6960 = vpack.c.b16 %v6820, %v6816
        %v6961 = vpack.c.b16 %v6821, %v6817
        %v6962 = vpack.c.b16 %v6822, %v6818
        %v6963 = vpack.c.b16 %v6827, %v6823
        %v6964 = vpack.c.b16 %v6828, %v6824
        %v6965 = vpack.c.b16 %v6829, %v6825
        %v6966 = vpack.c.b16 %v6830, %v6826
        %v6967 = vpack.c.b16 %v6835, %v6831
        %v6968 = vpack.c.b16 %v6836, %v6832
        %v6969 = vpack.c.b16 %v6837, %v6833
        %v6970 = vpack.c.b16 %v6838, %v6834
        %v6971 = vpack.c.b16 %v6843, %v6839
        %v6972 = vpack.c.b16 %v6844, %v6840
        %v6973 = vpack.c.b16 %v6845, %v6841
        %v6974 = vpack.c.b16 %v6846, %v6842
        %v6975 = vpack.c.b16 %v6851, %v6847
        %v6976 = vpack.c.b16 %v6852, %v6848
        %v6977 = vpack.c.b16 %v6853, %v6849
        %v6978 = vpack.c.b16 %v6854, %v6850
        %v6979 = vpack.c.b16 %v6859, %v6855
        %v6980 = vpack.c.b16 %v6860, %v6856
        %v6981 = vpack.c.b16 %v6861, %v6857
        %v6982 = vpack.c.b16 %v6862, %v6858
        %v6983 = vpack.c.b16 %v6867, %v6863
        %v6984 = vpack.c.b16 %v6868, %v6864
        %v6985 = vpack.c.b16 %v6869, %v6865
        %v6986 = vpack.c.b16 %v6870, %v6866
        %v6987 = vpack.c.b16 %v6875, %v6871
        %v6988 = vpack.c.b16 %v6876, %v6872
        %v6989 = vpack.c.b16 %v6877, %v6873
        %v6990 = vpack.c.b16 %v6878, %v6874
        %v6991 = vpack.c.b16 %v6883, %v6879
        %v6992 = vpack.c.b16 %v6884, %v6880
        %v6993 = vpack.c.b16 %v6885, %v6881
        %v6994 = vpack.c.b16 %v6886, %v6882
        %v6995 = vpack.c.b16 %v6891, %v6887
        %v6996 = vpack.c.b16 %v6892, %v6888
        %v6997 = vpack.c.b16 %v6893, %v6889
        %v6998 = vpack.c.b16 %v6894, %v6890
        %v6999 = vpack.c.b16 %v6899, %v6895
        %v7000 = vpack.c.b16 %v6900, %v6896
        %v7001 = vpack.c.b16 %v6901, %v6897
        %v7002 = vpack.c.b16 %v6902, %v6898
        %v7003 = vpack.c.b16 %v6907, %v6903
        %v7004 = vpack.c.b16 %v6908, %v6904
        %v7005 = vpack.c.b16 %v6909, %v6905
        %v7006 = vpack.c.b16 %v6910, %v6906
        %7103 = vmatprep.subr.bf16.mxu0 %v6912
        %7104 = vmatpush1.bf16.msra.mxu0 %v6911
        %7105 = vmatprep.subr.bf16.mxu0 %v6916
        %7106 = vmatpush1.bf16.msra.mxu0 %v6915
        %7107 = vmatprep.subr.bf16.mxu0 %v6920
        %7108 = vmatpush1.bf16.msra.mxu0 %v6919
        %7109 = vmatprep.subr.bf16.mxu0 %v6924
        %7110 = vmatpush1.bf16.msra.mxu0 %v6923
        %7111 = vmatprep.subr.bf16.mxu0 %v6928
        %7112 = vmatpush1.bf16.msra.mxu0 %v6927
        %7113 = vmatprep.subr.bf16.mxu0 %v6932
        %7114 = vmatpush1.bf16.msra.mxu0 %v6931
        %7115 = vmatprep.subr.bf16.mxu0 %v6936
        %7116 = vmatpush1.bf16.msra.mxu0 %v6935
        %7117 = vmatprep.subr.bf16.mxu0 %v6940
        %7118 = vmatpush1.bf16.msra.mxu0 %v6939
        %7119 = vmatprep.subr.bf16.mxu0 %v6944
        %7120 = vmatpush1.bf16.msra.mxu0 %v6943
        %7121 = vmatprep.subr.bf16.mxu0 %v6948
        %7122 = vmatpush1.bf16.msra.mxu0 %v6947
        %7123 = vmatprep.subr.bf16.mxu0 %v6952
        %7124 = vmatpush1.bf16.msra.mxu0 %v6951
        %7125 = vmatprep.subr.bf16.mxu0 %v6956
        %7126 = vmatpush1.bf16.msra.mxu0 %v6955
        %7127 = vmatprep.subr.bf16.mxu0 %v6960
        %7128 = vmatpush1.bf16.msra.mxu0 %v6959
        %7129 = vmatprep.subr.bf16.mxu0 %v6964
        %7130 = vmatpush1.bf16.msra.mxu0 %v6963
        %7131 = vmatprep.subr.bf16.mxu0 %v6968
        %7132 = vmatpush1.bf16.msra.mxu0 %v6967
        %7133 = vmatprep.subr.bf16.mxu0 %v6972
        %7134 = vmatpush1.bf16.msra.mxu0 %v6971
        %7135 = vmatprep.mubr.bf16.mxu0 %v4732
        %7136 = vmatmul.mubr.bf16.gmra.mrb[0].mxu0 %v4731
        %v7137 = vpop.f32.mrb[0].mxu0
        %v7138 = vadd.f32 0.0, %v7137
        %v7139 = vpop.f32.mrb[0].mxu0
        %v7140 = vadd.f32 0.0, %v7139
        %v7141 = vpop.f32.mrb[0].mxu0
        %v7142 = vadd.f32 0.0, %v7141
        %v7143 = vpop.f32.mrb[0].mxu0
        %v7144 = vadd.f32 0.0, %v7143
        %7145 = vmatprep.mubr.bf16.mxu0 %v4735
        %7146 = vmatmul.mubr.bf16.gmra.mrb[0].mxu0 %v4734
        %v7147 = vpop.f32.mrb[0].mxu0
        %v7148 = vadd.f32 0.0, %v7147
        %v7149 = vpop.f32.mrb[0].mxu0
        %v7150 = vadd.f32 0.0, %v7149
        %v7151 = vpop.f32.mrb[0].mxu0
        %v7152 = vadd.f32 0.0, %v7151
        %v7153 = vpop.f32.mrb[0].mxu0
        %v7154 = vadd.f32 0.0, %v7153
        %7155 = vdwg.mxu0
        %7156 = vmatprep.subr.bf16.mxu0 %v6976
        %7157 = vmatpush1.bf16.msra.mxu0 %v6975
        %7158 = vmatprep.subr.bf16.mxu0 %v6980
        %7159 = vmatpush1.bf16.msra.mxu0 %v6979
        %7160 = vmatprep.subr.bf16.mxu0 %v6984
        %7161 = vmatpush1.bf16.msra.mxu0 %v6983
        %7162 = vmatprep.subr.bf16.mxu0 %v6988
        %7163 = vmatpush1.bf16.msra.mxu0 %v6987
        %7164 = vmatprep.subr.bf16.mxu0 %v6992
        %7165 = vmatpush1.bf16.msra.mxu0 %v6991
        %7166 = vmatprep.subr.bf16.mxu0 %v6996
        %7167 = vmatpush1.bf16.msra.mxu0 %v6995
        %7168 = vmatprep.subr.bf16.mxu0 %v7000
        %7169 = vmatpush1.bf16.msra.mxu0 %v6999
        %7170 = vmatprep.subr.bf16.mxu0 %v7004
        %7171 = vmatpush1.bf16.msra.mxu0 %v7003
        %7172 = vmatprep.subr.bf16.mxu0 0
        %7173 = vmatpush1.bf16.msra.mxu0 0
        %7174 = vmatprep.subr.bf16.mxu0 0
        %7175 = vmatpush1.bf16.msra.mxu0 0
        %7176 = vmatprep.subr.bf16.mxu0 0
        %7177 = vmatpush1.bf16.msra.mxu0 0
        %7178 = vmatprep.subr.bf16.mxu0 0
        %7179 = vmatpush1.bf16.msra.mxu0 0
        %7180 = vmatprep.subr.bf16.mxu0 0
        %7181 = vmatpush1.bf16.msra.mxu0 0
        %7182 = vmatprep.subr.bf16.mxu0 0
        %7183 = vmatpush1.bf16.msra.mxu0 0
        %7184 = vmatprep.subr.bf16.mxu0 0
        %7185 = vmatpush1.bf16.msra.mxu0 0
        %7186 = vmatprep.subr.bf16.mxu0 0
        %7187 = vmatpush1.bf16.msra.mxu0 0
        %7188 = vmatprep.mubr.bf16.mxu0 0
        %7189 = vmatmul.mubr.bf16.gmra.mrb[0].mxu0 %v4733
        %v7190 = vpop.f32.mrb[0].mxu0
        %v7191 = vadd.f32 %v7138, %v7190
        %v7192 = vpop.f32.mrb[0].mxu0
        %v7193 = vadd.f32 %v7140, %v7192
        %v7194 = vpop.f32.mrb[0].mxu0
        %v7195 = vadd.f32 %v7142, %v7194
        %v7196 = vpop.f32.mrb[0].mxu0
        %v7197 = vadd.f32 %v7144, %v7196
        %7198 = vmatprep.mubr.bf16.mxu0 0
        %7199 = vmatmul.mubr.bf16.gmra.mrb[0].mxu0 %v4736
        %v7200 = vpop.f32.mrb[0].mxu0
        %v7201 = vadd.f32 %v7148, %v7200
        %v7202 = vpop.f32.mrb[0].mxu0
        %v7203 = vadd.f32 %v7150, %v7202
        %v7204 = vpop.f32.mrb[0].mxu0
        %v7205 = vadd.f32 %v7152, %v7204
        %v7206 = vpop.f32.mrb[0].mxu0
        %v7207 = vadd.f32 %v7154, %v7206
        %7208 = vdwg.mxu0
        %7209 = vmatprep.subr.bf16.mxu0 %v6914
        %7210 = vmatpush1.bf16.msra.mxu0 %v6913
        %7211 = vmatprep.subr.bf16.mxu0 %v6918
        %7212 = vmatpush1.bf16.msra.mxu0 %v6917
        %7213 = vmatprep.subr.bf16.mxu0 %v6922
        %7214 = vmatpush1.bf16.msra.mxu0 %v6921
        %7215 = vmatprep.subr.bf16.mxu0 %v6926
        %7216 = vmatpush1.bf16.msra.mxu0 %v6925
        %7217 = vmatprep.subr.bf16.mxu0 %v6930
        %7218 = vmatpush1.bf16.msra.mxu0 %v6929
        %7219 = vmatprep.subr.bf16.mxu0 %v6934
        %7220 = vmatpush1.bf16.msra.mxu0 %v6933
        %7221 = vmatprep.subr.bf16.mxu0 %v6938
        %7222 = vmatpush1.bf16.msra.mxu0 %v6937
        %7223 = vmatprep.subr.bf16.mxu0 %v6942
        %7224 = vmatpush1.bf16.msra.mxu0 %v6941
        %7225 = vmatprep.subr.bf16.mxu0 %v6946
        %7226 = vmatpush1.bf16.msra.mxu0 %v6945
        %7227 = vmatprep.subr.bf16.mxu0 %v6950
        %7228 = vmatpush1.bf16.msra.mxu0 %v6949
        %7229 = vmatprep.subr.bf16.mxu0 %v6954
        %7230 = vmatpush1.bf16.msra.mxu0 %v6953
        %7231 = vmatprep.subr.bf16.mxu0 %v6958
        %7232 = vmatpush1.bf16.msra.mxu0 %v6957
        %7233 = vmatprep.subr.bf16.mxu0 %v6962
        %7234 = vmatpush1.bf16.msra.mxu0 %v6961
        %7235 = vmatprep.subr.bf16.mxu0 %v6966
        %7236 = vmatpush1.bf16.msra.mxu0 %v6965
        %7237 = vmatprep.subr.bf16.mxu0 %v6970
        %7238 = vmatpush1.bf16.msra.mxu0 %v6969
        %7239 = vmatprep.subr.bf16.mxu0 %v6974
        %7240 = vmatpush1.bf16.msra.mxu0 %v6973
        %7241 = vmatprep.mubr.bf16.mxu0 %v4732
        %7242 = vmatmul.mubr.bf16.gmra.mrb[0].mxu0 %v4731
        %v7243 = vpop.f32.mrb[0].mxu0
        %v7244 = vadd.f32 0.0, %v7243
        %v7245 = vpop.f32.mrb[0].mxu0
        %v7246 = vadd.f32 0.0, %v7245
        %v7247 = vpop.f32.mrb[0].mxu0
        %v7248 = vadd.f32 0.0, %v7247
        %v7249 = vpop.f32.mrb[0].mxu0
        %v7250 = vadd.f32 0.0, %v7249
        %7251 = vmatprep.mubr.bf16.mxu0 %v4735
        %7252 = vmatmul.mubr.bf16.gmra.mrb[0].mxu0 %v4734
        %v7253 = vpop.f32.mrb[0].mxu0
        %v7254 = vadd.f32 0.0, %v7253
        %v7255 = vpop.f32.mrb[0].mxu0
        %v7256 = vadd.f32 0.0, %v7255
        %v7257 = vpop.f32.mrb[0].mxu0
        %v7258 = vadd.f32 0.0, %v7257
        %v7259 = vpop.f32.mrb[0].mxu0
        %v7260 = vadd.f32 0.0, %v7259
        %7261 = vdwg.mxu0
        %7262 = vmatprep.subr.bf16.mxu0 %v6978
        %7263 = vmatpush1.bf16.msra.mxu0 %v6977
        %7264 = vmatprep.subr.bf16.mxu0 %v6982
        %7265 = vmatpush1.bf16.msra.mxu0 %v6981
        %7266 = vmatprep.subr.bf16.mxu0 %v6986
        %7267 = vmatpush1.bf16.msra.mxu0 %v6985
        %7268 = vmatprep.subr.bf16.mxu0 %v6990
        %7269 = vmatpush1.bf16.msra.mxu0 %v6989
        %7270 = vmatprep.subr.bf16.mxu0 %v6994
        %7271 = vmatpush1.bf16.msra.mxu0 %v6993
        %7272 = vmatprep.subr.bf16.mxu0 %v6998
        %7273 = vmatpush1.bf16.msra.mxu0 %v6997
        %7274 = vmatprep.subr.bf16.mxu0 %v7002
        %7275 = vmatpush1.bf16.msra.mxu0 %v7001
        %7276 = vmatprep.subr.bf16.mxu0 %v7006
        %7277 = vmatpush1.bf16.msra.mxu0 %v7005
        %7278 = vmatprep.subr.bf16.mxu0 0
        %7279 = vmatpush1.bf16.msra.mxu0 0
        %7280 = vmatprep.subr.bf16.mxu0 0
        %7281 = vmatpush1.bf16.msra.mxu0 0
        %7282 = vmatprep.subr.bf16.mxu0 0
        %7283 = vmatpush1.bf16.msra.mxu0 0
        %7284 = vmatprep.subr.bf16.mxu0 0
        %7285 = vmatpush1.bf16.msra.mxu0 0
        %7286 = vmatprep.subr.bf16.mxu0 0
        %7287 = vmatpush1.bf16.msra.mxu0 0
        %7288 = vmatprep.subr.bf16.mxu0 0
        %7289 = vmatpush1.bf16.msra.mxu0 0
        %7290 = vmatprep.subr.bf16.mxu0 0
        %7291 = vmatpush1.bf16.msra.mxu0 0
        %7292 = vmatprep.subr.bf16.mxu0 0
        %7293 = vmatpush1.bf16.msra.mxu0 0
        %7294 = vmatprep.mubr.bf16.mxu0 0
        %7295 = vmatmul.mubr.bf16.gmra.mrb[0].mxu0 %v4733
        %v7296 = vpop.f32.mrb[0].mxu0
        %v7297 = vadd.f32 %v7244, %v7296
        %v7298 = vpop.f32.mrb[0].mxu0
        %v7299 = vadd.f32 %v7246, %v7298
        %v7300 = vpop.f32.mrb[0].mxu0
        %v7301 = vadd.f32 %v7248, %v7300
        %v7302 = vpop.f32.mrb[0].mxu0
        %v7303 = vadd.f32 %v7250, %v7302
        %7304 = vmatprep.mubr.bf16.mxu0 0
        %7305 = vmatmul.mubr.bf16.gmra.mrb[0].mxu0 %v4736
        %v7306 = vpop.f32.mrb[0].mxu0
        %v7307 = vadd.f32 %v7254, %v7306
        %v7308 = vpop.f32.mrb[0].mxu0
        %v7309 = vadd.f32 %v7256, %v7308
        %v7310 = vpop.f32.mrb[0].mxu0
        %v7311 = vadd.f32 %v7258, %v7310
        %v7312 = vpop.f32.mrb[0].mxu0
        %v7313 = vadd.f32 %v7260, %v7312
        %7314 = vdwg.mxu0
        %v7315 = vadd.f32 %v6499, %v7191
        %v7316 = vadd.f32 %v6501, %v7193
        %v7317 = vadd.f32 %v6605, %v7297
        %v7318 = vadd.f32 %v6607, %v7299
        %v7319 = vadd.f32 %v6503, %v7195
        %v7320 = vadd.f32 %v6505, %v7197
        %v7321 = vadd.f32 %v6609, %v7301
        %v7322 = vadd.f32 %v6611, %v7303
        %v7323 = vadd.f32 %v6509, %v7201
        %v7324 = vadd.f32 %v6511, %v7203
        %v7325 = vadd.f32 %v6615, %v7307
        %v7326 = vadd.f32 %v6617, %v7309
        %v7327 = vadd.f32 %v6513, %v7205
        %v7328 = vadd.f32 %v6515, %v7207
        %v7329 = vadd.f32 %v6619, %v7311
        %v7330 = vadd.f32 %v6621, %v7313
        %v7427 = vunpack.c.l.b16 %v5046
        %v7428 = vunpack.c.h.b16 %v5046
        %v7429 = vunpack.c.l.b16 %v5047
        %v7430 = vunpack.c.h.b16 %v5047
        %v7431 = vunpack.c.l.b16 %v5048
        %v7432 = vunpack.c.h.b16 %v5048
        %v7433 = vunpack.c.l.b16 %v5049
        %v7434 = vunpack.c.h.b16 %v5049
        %v7435 = vunpack.c.l.b16 %v5050
        %v7436 = vunpack.c.h.b16 %v5050
        %v7437 = vunpack.c.l.b16 %v5051
        %v7438 = vunpack.c.h.b16 %v5051
        %v7439 = vunpack.c.l.b16 %v5052
        %v7440 = vunpack.c.h.b16 %v5052
        %v7441 = vunpack.c.l.b16 %v5053
        %v7442 = vunpack.c.h.b16 %v5053
        %v7443 = vunpack.c.l.b16 %v5054
        %v7444 = vunpack.c.h.b16 %v5054
        %v7445 = vunpack.c.l.b16 %v5055
        %v7446 = vunpack.c.h.b16 %v5055
        %v7447 = vunpack.c.l.b16 %v5056
        %v7448 = vunpack.c.h.b16 %v5056
        %v7449 = vunpack.c.l.b16 %v5057
        %v7450 = vunpack.c.h.b16 %v5057
        %v7451 = vunpack.c.l.b16 %v5058
        %v7452 = vunpack.c.h.b16 %v5058
        %v7453 = vunpack.c.l.b16 %v5059
        %v7454 = vunpack.c.h.b16 %v5059
        %v7455 = vunpack.c.l.b16 %v5060
        %v7456 = vunpack.c.h.b16 %v5060
        %v7457 = vunpack.c.l.b16 %v5061
        %v7458 = vunpack.c.h.b16 %v5061
        %v7459 = vunpack.c.l.b16 %v5062
        %v7460 = vunpack.c.h.b16 %v5062
        %v7461 = vunpack.c.l.b16 %v5063
        %v7462 = vunpack.c.h.b16 %v5063
        %v7463 = vunpack.c.l.b16 %v5064
        %v7464 = vunpack.c.h.b16 %v5064
        %v7465 = vunpack.c.l.b16 %v5065
        %v7466 = vunpack.c.h.b16 %v5065
        %v7467 = vunpack.c.l.b16 %v5066
        %v7468 = vunpack.c.h.b16 %v5066
        %v7469 = vunpack.c.l.b16 %v5067
        %v7470 = vunpack.c.h.b16 %v5067
        %v7471 = vunpack.c.l.b16 %v5068
        %v7472 = vunpack.c.h.b16 %v5068
        %v7473 = vunpack.c.l.b16 %v5069
        %v7474 = vunpack.c.h.b16 %v5069
        %v7475 = vunpack.c.l.b16 %v5070
        %v7476 = vunpack.c.h.b16 %v5070
        %v7477 = vunpack.c.l.b16 %v5071
        %v7478 = vunpack.c.h.b16 %v5071
        %v7479 = vunpack.c.l.b16 %v5072
        %v7480 = vunpack.c.h.b16 %v5072
        %v7481 = vunpack.c.l.b16 %v5073
        %v7482 = vunpack.c.h.b16 %v5073
        %v7483 = vunpack.c.l.b16 %v5074
        %v7484 = vunpack.c.h.b16 %v5074
        %v7485 = vunpack.c.l.b16 %v5075
        %v7486 = vunpack.c.h.b16 %v5075
        %v7487 = vunpack.c.l.b16 %v5076
        %v7488 = vunpack.c.h.b16 %v5076
        %v7489 = vunpack.c.l.b16 %v5077
        %v7490 = vunpack.c.h.b16 %v5077
        %v7491 = vunpack.c.l.b16 %v5078
        %v7492 = vunpack.c.h.b16 %v5078
        %v7493 = vunpack.c.l.b16 %v5079
        %v7494 = vunpack.c.h.b16 %v5079
        %v7495 = vunpack.c.l.b16 %v5080
        %v7496 = vunpack.c.h.b16 %v5080
        %v7497 = vunpack.c.l.b16 %v5081
        %v7498 = vunpack.c.h.b16 %v5081
        %v7499 = vunpack.c.l.b16 %v5082
        %v7500 = vunpack.c.h.b16 %v5082
        %v7501 = vunpack.c.l.b16 %v5083
        %v7502 = vunpack.c.h.b16 %v5083
        %v7503 = vunpack.c.l.b16 %v5084
        %v7504 = vunpack.c.h.b16 %v5084
        %v7505 = vunpack.c.l.b16 %v5085
        %v7506 = vunpack.c.h.b16 %v5085
        %v7507 = vunpack.c.l.b16 %v5086
        %v7508 = vunpack.c.h.b16 %v5086
        %v7509 = vunpack.c.l.b16 %v5087
        %v7510 = vunpack.c.h.b16 %v5087
        %v7511 = vunpack.c.l.b16 %v5088
        %v7512 = vunpack.c.h.b16 %v5088
        %v7513 = vunpack.c.l.b16 %v5089
        %v7514 = vunpack.c.h.b16 %v5089
        %v7515 = vunpack.c.l.b16 %v5090
        %v7516 = vunpack.c.h.b16 %v5090
        %v7517 = vunpack.c.l.b16 %v5091
        %v7518 = vunpack.c.h.b16 %v5091
        %v7519 = vunpack.c.l.b16 %v5092
        %v7520 = vunpack.c.h.b16 %v5092
        %v7521 = vunpack.c.l.b16 %v5093
        %v7522 = vunpack.c.h.b16 %v5093
        %v7523 = vunpack.c.l.b16 %v5094
        %v7524 = vunpack.c.h.b16 %v5094
        %v7525 = vunpack.c.l.b16 %v5095
        %v7526 = vunpack.c.h.b16 %v5095
        %v7527 = vunpack.c.l.b16 %v5096
        %v7528 = vunpack.c.h.b16 %v5096
        %v7529 = vunpack.c.l.b16 %v5097
        %v7530 = vunpack.c.h.b16 %v5097
        %v7531 = vunpack.c.l.b16 %v5098
        %v7532 = vunpack.c.h.b16 %v5098
        %v7533 = vunpack.c.l.b16 %v5099
        %v7534 = vunpack.c.h.b16 %v5099
        %v7535 = vunpack.c.l.b16 %v5100
        %v7536 = vunpack.c.h.b16 %v5100
        %v7537 = vunpack.c.l.b16 %v5101
        %v7538 = vunpack.c.h.b16 %v5101
        %v7539 = vunpack.c.l.b16 %v5102
        %v7540 = vunpack.c.h.b16 %v5102
        %v7541 = vunpack.c.l.b16 %v5103
        %v7542 = vunpack.c.h.b16 %v5103
        %v7543 = vunpack.c.l.b16 %v5104
        %v7544 = vunpack.c.h.b16 %v5104
        %v7545 = vunpack.c.l.b16 %v5105
        %v7546 = vunpack.c.h.b16 %v5105
        %v7547 = vunpack.c.l.b16 %v5106
        %v7548 = vunpack.c.h.b16 %v5106
        %v7549 = vunpack.c.l.b16 %v5107
        %v7550 = vunpack.c.h.b16 %v5107
        %v7551 = vunpack.c.l.b16 %v5108
        %v7552 = vunpack.c.h.b16 %v5108
        %v7553 = vunpack.c.l.b16 %v5109
        %v7554 = vunpack.c.h.b16 %v5109
        %v7555 = vunpack.c.l.b16 %v5110
        %v7556 = vunpack.c.h.b16 %v5110
        %v7557 = vunpack.c.l.b16 %v5111
        %v7558 = vunpack.c.h.b16 %v5111
        %v7559 = vunpack.c.l.b16 %v5112
        %v7560 = vunpack.c.h.b16 %v5112
        %v7561 = vunpack.c.l.b16 %v5113
        %v7562 = vunpack.c.h.b16 %v5113
        %v7563 = vunpack.c.l.b16 %v5114
        %v7564 = vunpack.c.h.b16 %v5114
        %v7565 = vunpack.c.l.b16 %v5115
        %v7566 = vunpack.c.h.b16 %v5115
        %v7567 = vunpack.c.l.b16 %v5116
        %v7568 = vunpack.c.h.b16 %v5116
        %v7569 = vunpack.c.l.b16 %v5117
        %v7570 = vunpack.c.h.b16 %v5117
        %v7571 = vunpack.c.l.b16 %v5118
        %v7572 = vunpack.c.h.b16 %v5118
        %v7573 = vunpack.c.l.b16 %v5119
        %v7574 = vunpack.c.h.b16 %v5119
        %v7575 = vunpack.c.l.b16 %v5120
        %v7576 = vunpack.c.h.b16 %v5120
        %v7577 = vunpack.c.l.b16 %v5121
        %v7578 = vunpack.c.h.b16 %v5121
        %v7579 = vunpack.c.l.b16 %v5122
        %v7580 = vunpack.c.h.b16 %v5122
        %v7581 = vunpack.c.l.b16 %v5123
        %v7582 = vunpack.c.h.b16 %v5123
        %v7583 = vunpack.c.l.b16 %v5124
        %v7584 = vunpack.c.h.b16 %v5124
        %v7585 = vunpack.c.l.b16 %v5125
        %v7586 = vunpack.c.h.b16 %v5125
        %v7587 = vunpack.c.l.b16 %v5126
        %v7588 = vunpack.c.h.b16 %v5126
        %v7589 = vunpack.c.l.b16 %v5127
        %v7590 = vunpack.c.h.b16 %v5127
        %v7591 = vunpack.c.l.b16 %v5128
        %v7592 = vunpack.c.h.b16 %v5128
        %v7593 = vunpack.c.l.b16 %v5129
        %v7594 = vunpack.c.h.b16 %v5129
        %v7595 = vunpack.c.l.b16 %v5130
        %v7596 = vunpack.c.h.b16 %v5130
        %v7597 = vunpack.c.l.b16 %v5131
        %v7598 = vunpack.c.h.b16 %v5131
        %v7599 = vunpack.c.l.b16 %v5132
        %v7600 = vunpack.c.h.b16 %v5132
        %v7601 = vunpack.c.l.b16 %v5133
        %v7602 = vunpack.c.h.b16 %v5133
        %v7603 = vunpack.c.l.b16 %v5134
        %v7604 = vunpack.c.h.b16 %v5134
        %v7605 = vunpack.c.l.b16 %v5135
        %v7606 = vunpack.c.h.b16 %v5135
        %v7607 = vunpack.c.l.b16 %v5136
        %v7608 = vunpack.c.h.b16 %v5136
        %v7609 = vunpack.c.l.b16 %v5137
        %v7610 = vunpack.c.h.b16 %v5137
        %v7611 = vunpack.c.l.b16 %v5138
        %v7612 = vunpack.c.h.b16 %v5138
        %v7613 = vunpack.c.l.b16 %v5139
        %v7614 = vunpack.c.h.b16 %v5139
        %v7615 = vunpack.c.l.b16 %v5140
        %v7616 = vunpack.c.h.b16 %v5140
        %v7617 = vunpack.c.l.b16 %v5141
        %v7618 = vunpack.c.h.b16 %v5141
        %v7619 = vpack.c.b16 %v7431, %v7427
        %v7620 = vpack.c.b16 %v7432, %v7428
        %v7621 = vpack.c.b16 %v7433, %v7429
        %v7622 = vpack.c.b16 %v7434, %v7430
        %v7623 = vpack.c.b16 %v7439, %v7435
        %v7624 = vpack.c.b16 %v7440, %v7436
        %v7625 = vpack.c.b16 %v7441, %v7437
        %v7626 = vpack.c.b16 %v7442, %v7438
        %v7627 = vpack.c.b16 %v7447, %v7443
        %v7628 = vpack.c.b16 %v7448, %v7444
        %v7629 = vpack.c.b16 %v7449, %v7445
        %v7630 = vpack.c.b16 %v7450, %v7446
        %v7631 = vpack.c.b16 %v7455, %v7451
        %v7632 = vpack.c.b16 %v7456, %v7452
        %v7633 = vpack.c.b16 %v7457, %v7453
        %v7634 = vpack.c.b16 %v7458, %v7454
        %v7635 = vpack.c.b16 %v7463, %v7459
        %v7636 = vpack.c.b16 %v7464, %v7460
        %v7637 = vpack.c.b16 %v7465, %v7461
        %v7638 = vpack.c.b16 %v7466, %v7462
        %v7639 = vpack.c.b16 %v7471, %v7467
        %v7640 = vpack.c.b16 %v7472, %v7468
        %v7641 = vpack.c.b16 %v7473, %v7469
        %v7642 = vpack.c.b16 %v7474, %v7470
        %v7643 = vpack.c.b16 %v7479, %v7475
        %v7644 = vpack.c.b16 %v7480, %v7476
        %v7645 = vpack.c.b16 %v7481, %v7477
        %v7646 = vpack.c.b16 %v7482, %v7478
        %v7647 = vpack.c.b16 %v7487, %v7483
        %v7648 = vpack.c.b16 %v7488, %v7484
        %v7649 = vpack.c.b16 %v7489, %v7485
        %v7650 = vpack.c.b16 %v7490, %v7486
        %v7651 = vpack.c.b16 %v7495, %v7491
        %v7652 = vpack.c.b16 %v7496, %v7492
        %v7653 = vpack.c.b16 %v7497, %v7493
        %v7654 = vpack.c.b16 %v7498, %v7494
        %v7655 = vpack.c.b16 %v7503, %v7499
        %v7656 = vpack.c.b16 %v7504, %v7500
        %v7657 = vpack.c.b16 %v7505, %v7501
        %v7658 = vpack.c.b16 %v7506, %v7502
        %v7659 = vpack.c.b16 %v7511, %v7507
        %v7660 = vpack.c.b16 %v7512, %v7508
        %v7661 = vpack.c.b16 %v7513, %v7509
        %v7662 = vpack.c.b16 %v7514, %v7510
        %v7663 = vpack.c.b16 %v7519, %v7515
        %v7664 = vpack.c.b16 %v7520, %v7516
        %v7665 = vpack.c.b16 %v7521, %v7517
        %v7666 = vpack.c.b16 %v7522, %v7518
        %v7667 = vpack.c.b16 %v7527, %v7523
        %v7668 = vpack.c.b16 %v7528, %v7524
        %v7669 = vpack.c.b16 %v7529, %v7525
        %v7670 = vpack.c.b16 %v7530, %v7526
        %v7671 = vpack.c.b16 %v7535, %v7531
        %v7672 = vpack.c.b16 %v7536, %v7532
        %v7673 = vpack.c.b16 %v7537, %v7533
        %v7674 = vpack.c.b16 %v7538, %v7534
        %v7675 = vpack.c.b16 %v7543, %v7539
        %v7676 = vpack.c.b16 %v7544, %v7540
        %v7677 = vpack.c.b16 %v7545, %v7541
        %v7678 = vpack.c.b16 %v7546, %v7542
        %v7679 = vpack.c.b16 %v7551, %v7547
        %v7680 = vpack.c.b16 %v7552, %v7548
        %v7681 = vpack.c.b16 %v7553, %v7549
        %v7682 = vpack.c.b16 %v7554, %v7550
        %v7683 = vpack.c.b16 %v7559, %v7555
        %v7684 = vpack.c.b16 %v7560, %v7556
        %v7685 = vpack.c.b16 %v7561, %v7557
        %v7686 = vpack.c.b16 %v7562, %v7558
        %v7687 = vpack.c.b16 %v7567, %v7563
        %v7688 = vpack.c.b16 %v7568, %v7564
        %v7689 = vpack.c.b16 %v7569, %v7565
        %v7690 = vpack.c.b16 %v7570, %v7566
        %v7691 = vpack.c.b16 %v7575, %v7571
        %v7692 = vpack.c.b16 %v7576, %v7572
        %v7693 = vpack.c.b16 %v7577, %v7573
        %v7694 = vpack.c.b16 %v7578, %v7574
        %v7695 = vpack.c.b16 %v7583, %v7579
        %v7696 = vpack.c.b16 %v7584, %v7580
        %v7697 = vpack.c.b16 %v7585, %v7581
        %v7698 = vpack.c.b16 %v7586, %v7582
        %v7699 = vpack.c.b16 %v7591, %v7587
        %v7700 = vpack.c.b16 %v7592, %v7588
        %v7701 = vpack.c.b16 %v7593, %v7589
        %v7702 = vpack.c.b16 %v7594, %v7590
        %v7703 = vpack.c.b16 %v7599, %v7595
        %v7704 = vpack.c.b16 %v7600, %v7596
        %v7705 = vpack.c.b16 %v7601, %v7597
        %v7706 = vpack.c.b16 %v7602, %v7598
        %v7707 = vpack.c.b16 %v7607, %v7603
        %v7708 = vpack.c.b16 %v7608, %v7604
        %v7709 = vpack.c.b16 %v7609, %v7605
        %v7710 = vpack.c.b16 %v7610, %v7606
        %v7711 = vpack.c.b16 %v7615, %v7611
        %v7712 = vpack.c.b16 %v7616, %v7612
        %v7713 = vpack.c.b16 %v7617, %v7613
        %v7714 = vpack.c.b16 %v7618, %v7614
        %7811 = vmatprep.subr.bf16.mxu0 %v7620
        %7812 = vmatpush1.bf16.msra.mxu0 %v7619
        %7813 = vmatprep.subr.bf16.mxu0 %v7624
        %7814 = vmatpush1.bf16.msra.mxu0 %v7623
        %7815 = vmatprep.subr.bf16.mxu0 %v7628
        %7816 = vmatpush1.bf16.msra.mxu0 %v7627
        %7817 = vmatprep.subr.bf16.mxu0 %v7632
        %7818 = vmatpush1.bf16.msra.mxu0 %v7631
        %7819 = vmatprep.subr.bf16.mxu0 %v7636
        %7820 = vmatpush1.bf16.msra.mxu0 %v7635
        %7821 = vmatprep.subr.bf16.mxu0 %v7640
        %7822 = vmatpush1.bf16.msra.mxu0 %v7639
        %7823 = vmatprep.subr.bf16.mxu0 %v7644
        %7824 = vmatpush1.bf16.msra.mxu0 %v7643
        %7825 = vmatprep.subr.bf16.mxu0 %v7648
        %7826 = vmatpush1.bf16.msra.mxu0 %v7647
        %7827 = vmatprep.subr.bf16.mxu0 %v7652
        %7828 = vmatpush1.bf16.msra.mxu0 %v7651
        %7829 = vmatprep.subr.bf16.mxu0 %v7656
        %7830 = vmatpush1.bf16.msra.mxu0 %v7655
        %7831 = vmatprep.subr.bf16.mxu0 %v7660
        %7832 = vmatpush1.bf16.msra.mxu0 %v7659
        %7833 = vmatprep.subr.bf16.mxu0 %v7664
        %7834 = vmatpush1.bf16.msra.mxu0 %v7663
        %7835 = vmatprep.subr.bf16.mxu0 %v7668
        %7836 = vmatpush1.bf16.msra.mxu0 %v7667
        %7837 = vmatprep.subr.bf16.mxu0 %v7672
        %7838 = vmatpush1.bf16.msra.mxu0 %v7671
        %7839 = vmatprep.subr.bf16.mxu0 %v7676
        %7840 = vmatpush1.bf16.msra.mxu0 %v7675
        %7841 = vmatprep.subr.bf16.mxu0 %v7680
        %7842 = vmatpush1.bf16.msra.mxu0 %v7679
        %7843 = vmatprep.mubr.bf16.mxu0 %v4747
        %7844 = vmatmul.mubr.bf16.gmra.mrb[0].mxu0 %v4746
        %v7845 = vpop.f32.mrb[0].mxu0
        %v7846 = vadd.f32 0.0, %v7845
        %v7847 = vpop.f32.mrb[0].mxu0
        %v7848 = vadd.f32 0.0, %v7847
        %v7849 = vpop.f32.mrb[0].mxu0
        %v7850 = vadd.f32 0.0, %v7849
        %v7851 = vpop.f32.mrb[0].mxu0
        %v7852 = vadd.f32 0.0, %v7851
        %7853 = vmatprep.mubr.bf16.mxu0 %v4750
        %7854 = vmatmul.mubr.bf16.gmra.mrb[0].mxu0 %v4749
        %v7855 = vpop.f32.mrb[0].mxu0
        %v7856 = vadd.f32 0.0, %v7855
        %v7857 = vpop.f32.mrb[0].mxu0
        %v7858 = vadd.f32 0.0, %v7857
        %v7859 = vpop.f32.mrb[0].mxu0
        %v7860 = vadd.f32 0.0, %v7859
        %v7861 = vpop.f32.mrb[0].mxu0
        %v7862 = vadd.f32 0.0, %v7861
        %7863 = vdwg.mxu0
        %7864 = vmatprep.subr.bf16.mxu0 %v7684
        %7865 = vmatpush1.bf16.msra.mxu0 %v7683
        %7866 = vmatprep.subr.bf16.mxu0 %v7688
        %7867 = vmatpush1.bf16.msra.mxu0 %v7687
        %7868 = vmatprep.subr.bf16.mxu0 %v7692
        %7869 = vmatpush1.bf16.msra.mxu0 %v7691
        %7870 = vmatprep.subr.bf16.mxu0 %v7696
        %7871 = vmatpush1.bf16.msra.mxu0 %v7695
        %7872 = vmatprep.subr.bf16.mxu0 %v7700
        %7873 = vmatpush1.bf16.msra.mxu0 %v7699
        %7874 = vmatprep.subr.bf16.mxu0 %v7704
        %7875 = vmatpush1.bf16.msra.mxu0 %v7703
        %7876 = vmatprep.subr.bf16.mxu0 %v7708
        %7877 = vmatpush1.bf16.msra.mxu0 %v7707
        %7878 = vmatprep.subr.bf16.mxu0 %v7712
        %7879 = vmatpush1.bf16.msra.mxu0 %v7711
        %7880 = vmatprep.subr.bf16.mxu0 0
        %7881 = vmatpush1.bf16.msra.mxu0 0
        %7882 = vmatprep.subr.bf16.mxu0 0
        %7883 = vmatpush1.bf16.msra.mxu0 0
        %7884 = vmatprep.subr.bf16.mxu0 0
        %7885 = vmatpush1.bf16.msra.mxu0 0
        %7886 = vmatprep.subr.bf16.mxu0 0
        %7887 = vmatpush1.bf16.msra.mxu0 0
        %7888 = vmatprep.subr.bf16.mxu0 0
        %7889 = vmatpush1.bf16.msra.mxu0 0
        %7890 = vmatprep.subr.bf16.mxu0 0
        %7891 = vmatpush1.bf16.msra.mxu0 0
        %7892 = vmatprep.subr.bf16.mxu0 0
        %7893 = vmatpush1.bf16.msra.mxu0 0
        %7894 = vmatprep.subr.bf16.mxu0 0
        %7895 = vmatpush1.bf16.msra.mxu0 0
        %7896 = vmatprep.mubr.bf16.mxu0 0
        %7897 = vmatmul.mubr.bf16.gmra.mrb[0].mxu0 %v4748
        %v7898 = vpop.f32.mrb[0].mxu0
        %v7899 = vadd.f32 %v7846, %v7898
        %v7900 = vpop.f32.mrb[0].mxu0
        %v7901 = vadd.f32 %v7848, %v7900
        %v7902 = vpop.f32.mrb[0].mxu0
        %v7903 = vadd.f32 %v7850, %v7902
        %v7904 = vpop.f32.mrb[0].mxu0
        %v7905 = vadd.f32 %v7852, %v7904
        %7906 = vmatprep.mubr.bf16.mxu0 0
        %7907 = vmatmul.mubr.bf16.gmra.mrb[0].mxu0 %v4751
        %v7908 = vpop.f32.mrb[0].mxu0
        %v7909 = vadd.f32 %v7856, %v7908
        %v7910 = vpop.f32.mrb[0].mxu0
        %v7911 = vadd.f32 %v7858, %v7910
        %v7912 = vpop.f32.mrb[0].mxu0
        %v7913 = vadd.f32 %v7860, %v7912
        %v7914 = vpop.f32.mrb[0].mxu0
        %v7915 = vadd.f32 %v7862, %v7914
        %7916 = vdwg.mxu0
        %7917 = vmatprep.subr.bf16.mxu0 %v7622
        %7918 = vmatpush1.bf16.msra.mxu0 %v7621
        %7919 = vmatprep.subr.bf16.mxu0 %v7626
        %7920 = vmatpush1.bf16.msra.mxu0 %v7625
        %7921 = vmatprep.subr.bf16.mxu0 %v7630
        %7922 = vmatpush1.bf16.msra.mxu0 %v7629
        %7923 = vmatprep.subr.bf16.mxu0 %v7634
        %7924 = vmatpush1.bf16.msra.mxu0 %v7633
        %7925 = vmatprep.subr.bf16.mxu0 %v7638
        %7926 = vmatpush1.bf16.msra.mxu0 %v7637
        %7927 = vmatprep.subr.bf16.mxu0 %v7642
        %7928 = vmatpush1.bf16.msra.mxu0 %v7641
        %7929 = vmatprep.subr.bf16.mxu0 %v7646
        %7930 = vmatpush1.bf16.msra.mxu0 %v7645
        %7931 = vmatprep.subr.bf16.mxu0 %v7650
        %7932 = vmatpush1.bf16.msra.mxu0 %v7649
        %7933 = vmatprep.subr.bf16.mxu0 %v7654
        %7934 = vmatpush1.bf16.msra.mxu0 %v7653
        %7935 = vmatprep.subr.bf16.mxu0 %v7658
        %7936 = vmatpush1.bf16.msra.mxu0 %v7657
        %7937 = vmatprep.subr.bf16.mxu0 %v7662
        %7938 = vmatpush1.bf16.msra.mxu0 %v7661
        %7939 = vmatprep.subr.bf16.mxu0 %v7666
        %7940 = vmatpush1.bf16.msra.mxu0 %v7665
        %7941 = vmatprep.subr.bf16.mxu0 %v7670
        %7942 = vmatpush1.bf16.msra.mxu0 %v7669
        %7943 = vmatprep.subr.bf16.mxu0 %v7674
        %7944 = vmatpush1.bf16.msra.mxu0 %v7673
        %7945 = vmatprep.subr.bf16.mxu0 %v7678
        %7946 = vmatpush1.bf16.msra.mxu0 %v7677
        %7947 = vmatprep.subr.bf16.mxu0 %v7682
        %7948 = vmatpush1.bf16.msra.mxu0 %v7681
        %7949 = vmatprep.mubr.bf16.mxu0 %v4747
        %7950 = vmatmul.mubr.bf16.gmra.mrb[0].mxu0 %v4746
        %v7951 = vpop.f32.mrb[0].mxu0
        %v7952 = vadd.f32 0.0, %v7951
        %v7953 = vpop.f32.mrb[0].mxu0
        %v7954 = vadd.f32 0.0, %v7953
        %v7955 = vpop.f32.mrb[0].mxu0
        %v7956 = vadd.f32 0.0, %v7955
        %v7957 = vpop.f32.mrb[0].mxu0
        %v7958 = vadd.f32 0.0, %v7957
        %7959 = vmatprep.mubr.bf16.mxu0 %v4750
        %7960 = vmatmul.mubr.bf16.gmra.mrb[0].mxu0 %v4749
        %v7961 = vpop.f32.mrb[0].mxu0
        %v7962 = vadd.f32 0.0, %v7961
        %v7963 = vpop.f32.mrb[0].mxu0
        %v7964 = vadd.f32 0.0, %v7963
        %v7965 = vpop.f32.mrb[0].mxu0
        %v7966 = vadd.f32 0.0, %v7965
        %v7967 = vpop.f32.mrb[0].mxu0
        %v7968 = vadd.f32 0.0, %v7967
        %7969 = vdwg.mxu0
        %7970 = vmatprep.subr.bf16.mxu0 %v7686
        %7971 = vmatpush1.bf16.msra.mxu0 %v7685
        %7972 = vmatprep.subr.bf16.mxu0 %v7690
        %7973 = vmatpush1.bf16.msra.mxu0 %v7689
        %7974 = vmatprep.subr.bf16.mxu0 %v7694
        %7975 = vmatpush1.bf16.msra.mxu0 %v7693
        %7976 = vmatprep.subr.bf16.mxu0 %v7698
        %7977 = vmatpush1.bf16.msra.mxu0 %v7697
        %7978 = vmatprep.subr.bf16.mxu0 %v7702
        %7979 = vmatpush1.bf16.msra.mxu0 %v7701
        %7980 = vmatprep.subr.bf16.mxu0 %v7706
        %7981 = vmatpush1.bf16.msra.mxu0 %v7705
        %7982 = vmatprep.subr.bf16.mxu0 %v7710
        %7983 = vmatpush1.bf16.msra.mxu0 %v7709
        %7984 = vmatprep.subr.bf16.mxu0 %v7714
        %7985 = vmatpush1.bf16.msra.mxu0 %v7713
        %7986 = vmatprep.subr.bf16.mxu0 0
        %7987 = vmatpush1.bf16.msra.mxu0 0
        %7988 = vmatprep.subr.bf16.mxu0 0
        %7989 = vmatpush1.bf16.msra.mxu0 0
        %7990 = vmatprep.subr.bf16.mxu0 0
        %7991 = vmatpush1.bf16.msra.mxu0 0
        %7992 = vmatprep.subr.bf16.mxu0 0
        %7993 = vmatpush1.bf16.msra.mxu0 0
        %7994 = vmatprep.subr.bf16.mxu0 0
        %7995 = vmatpush1.bf16.msra.mxu0 0
        %7996 = vmatprep.subr.bf16.mxu0 0
        %7997 = vmatpush1.bf16.msra.mxu0 0
        %7998 = vmatprep.subr.bf16.mxu0 0
        %7999 = vmatpush1.bf16.msra.mxu0 0
        %8000 = vmatprep.subr.bf16.mxu0 0
        %8001 = vmatpush1.bf16.msra.mxu0 0
        %8002 = vmatprep.mubr.bf16.mxu0 0
        %8003 = vmatmul.mubr.bf16.gmra.mrb[0].mxu0 %v4748
        %v8004 = vpop.f32.mrb[0].mxu0
        %v8005 = vadd.f32 %v7952, %v8004
        %v8006 = vpop.f32.mrb[0].mxu0
        %v8007 = vadd.f32 %v7954, %v8006
        %v8008 = vpop.f32.mrb[0].mxu0
        %v8009 = vadd.f32 %v7956, %v8008
        %v8010 = vpop.f32.mrb[0].mxu0
        %v8011 = vadd.f32 %v7958, %v8010
        %8012 = vmatprep.mubr.bf16.mxu0 0
        %8013 = vmatmul.mubr.bf16.gmra.mrb[0].mxu0 %v4751
        %v8014 = vpop.f32.mrb[0].mxu0
        %v8015 = vadd.f32 %v7962, %v8014
        %v8016 = vpop.f32.mrb[0].mxu0
        %v8017 = vadd.f32 %v7964, %v8016
        %v8018 = vpop.f32.mrb[0].mxu0
        %v8019 = vadd.f32 %v7966, %v8018
        %v8020 = vpop.f32.mrb[0].mxu0
        %v8021 = vadd.f32 %v7968, %v8020
        %8022 = vdwg.mxu0
        %v8023 = vadd.f32 %v7315, %v7899
        %v8024 = vadd.f32 %v7316, %v7901
        %v8025 = vadd.f32 %v7317, %v8005
        %v8026 = vadd.f32 %v7318, %v8007
        %v8027 = vadd.f32 %v7319, %v7903
        %v8028 = vadd.f32 %v7320, %v7905
        %v8029 = vadd.f32 %v7321, %v8009
        %v8030 = vadd.f32 %v7322, %v8011
        %v8031 = vadd.f32 %v7323, %v7909
        %v8032 = vadd.f32 %v7324, %v7911
        %v8033 = vadd.f32 %v7325, %v8015
        %v8034 = vadd.f32 %v7326, %v8017
        %v8035 = vadd.f32 %v7327, %v7913
        %v8036 = vadd.f32 %v7328, %v7915
        %v8037 = vadd.f32 %v7329, %v8019
        %v8038 = vadd.f32 %v7330, %v8021
        %v8135 = vunpack.c.l.b16 %v5143
        %v8136 = vunpack.c.h.b16 %v5143
        %v8137 = vunpack.c.l.b16 %v5144
        %v8138 = vunpack.c.h.b16 %v5144
        %v8139 = vunpack.c.l.b16 %v5145
        %v8140 = vunpack.c.h.b16 %v5145
        %v8141 = vunpack.c.l.b16 %v5146
        %v8142 = vunpack.c.h.b16 %v5146
        %v8143 = vunpack.c.l.b16 %v5147
        %v8144 = vunpack.c.h.b16 %v5147
        %v8145 = vunpack.c.l.b16 %v5148
        %v8146 = vunpack.c.h.b16 %v5148
        %v8147 = vunpack.c.l.b16 %v5149
        %v8148 = vunpack.c.h.b16 %v5149
        %v8149 = vunpack.c.l.b16 %v5150
        %v8150 = vunpack.c.h.b16 %v5150
        %v8151 = vunpack.c.l.b16 %v5151
        %v8152 = vunpack.c.h.b16 %v5151
        %v8153 = vunpack.c.l.b16 %v5152
        %v8154 = vunpack.c.h.b16 %v5152
        %v8155 = vunpack.c.l.b16 %v5153
        %v8156 = vunpack.c.h.b16 %v5153
        %v8157 = vunpack.c.l.b16 %v5154
        %v8158 = vunpack.c.h.b16 %v5154
        %v8159 = vunpack.c.l.b16 %v5155
        %v8160 = vunpack.c.h.b16 %v5155
        %v8161 = vunpack.c.l.b16 %v5156
        %v8162 = vunpack.c.h.b16 %v5156
        %v8163 = vunpack.c.l.b16 %v5157
        %v8164 = vunpack.c.h.b16 %v5157
        %v8165 = vunpack.c.l.b16 %v5158
        %v8166 = vunpack.c.h.b16 %v5158
        %v8167 = vunpack.c.l.b16 %v5159
        %v8168 = vunpack.c.h.b16 %v5159
        %v8169 = vunpack.c.l.b16 %v5160
        %v8170 = vunpack.c.h.b16 %v5160
        %v8171 = vunpack.c.l.b16 %v5161
        %v8172 = vunpack.c.h.b16 %v5161
        %v8173 = vunpack.c.l.b16 %v5162
        %v8174 = vunpack.c.h.b16 %v5162
        %v8175 = vunpack.c.l.b16 %v5163
        %v8176 = vunpack.c.h.b16 %v5163
        %v8177 = vunpack.c.l.b16 %v5164
        %v8178 = vunpack.c.h.b16 %v5164
        %v8179 = vunpack.c.l.b16 %v5165
        %v8180 = vunpack.c.h.b16 %v5165
        %v8181 = vunpack.c.l.b16 %v5166
        %v8182 = vunpack.c.h.b16 %v5166
        %v8183 = vunpack.c.l.b16 %v5167
        %v8184 = vunpack.c.h.b16 %v5167
        %v8185 = vunpack.c.l.b16 %v5168
        %v8186 = vunpack.c.h.b16 %v5168
        %v8187 = vunpack.c.l.b16 %v5169
        %v8188 = vunpack.c.h.b16 %v5169
        %v8189 = vunpack.c.l.b16 %v5170
        %v8190 = vunpack.c.h.b16 %v5170
        %v8191 = vunpack.c.l.b16 %v5171
        %v8192 = vunpack.c.h.b16 %v5171
        %v8193 = vunpack.c.l.b16 %v5172
        %v8194 = vunpack.c.h.b16 %v5172
        %v8195 = vunpack.c.l.b16 %v5173
        %v8196 = vunpack.c.h.b16 %v5173
        %v8197 = vunpack.c.l.b16 %v5174
        %v8198 = vunpack.c.h.b16 %v5174
        %v8199 = vunpack.c.l.b16 %v5175
        %v8200 = vunpack.c.h.b16 %v5175
        %v8201 = vunpack.c.l.b16 %v5176
        %v8202 = vunpack.c.h.b16 %v5176
        %v8203 = vunpack.c.l.b16 %v5177
        %v8204 = vunpack.c.h.b16 %v5177
        %v8205 = vunpack.c.l.b16 %v5178
        %v8206 = vunpack.c.h.b16 %v5178
        %v8207 = vunpack.c.l.b16 %v5179
        %v8208 = vunpack.c.h.b16 %v5179
        %v8209 = vunpack.c.l.b16 %v5180
        %v8210 = vunpack.c.h.b16 %v5180
        %v8211 = vunpack.c.l.b16 %v5181
        %v8212 = vunpack.c.h.b16 %v5181
        %v8213 = vunpack.c.l.b16 %v5182
        %v8214 = vunpack.c.h.b16 %v5182
        %v8215 = vunpack.c.l.b16 %v5183
        %v8216 = vunpack.c.h.b16 %v5183
        %v8217 = vunpack.c.l.b16 %v5184
        %v8218 = vunpack.c.h.b16 %v5184
        %v8219 = vunpack.c.l.b16 %v5185
        %v8220 = vunpack.c.h.b16 %v5185
        %v8221 = vunpack.c.l.b16 %v5186
        %v8222 = vunpack.c.h.b16 %v5186
        %v8223 = vunpack.c.l.b16 %v5187
        %v8224 = vunpack.c.h.b16 %v5187
        %v8225 = vunpack.c.l.b16 %v5188
        %v8226 = vunpack.c.h.b16 %v5188
        %v8227 = vunpack.c.l.b16 %v5189
        %v8228 = vunpack.c.h.b16 %v5189
        %v8229 = vunpack.c.l.b16 %v5190
        %v8230 = vunpack.c.h.b16 %v5190
        %v8231 = vunpack.c.l.b16 %v5191
        %v8232 = vunpack.c.h.b16 %v5191
        %v8233 = vunpack.c.l.b16 %v5192
        %v8234 = vunpack.c.h.b16 %v5192
        %v8235 = vunpack.c.l.b16 %v5193
        %v8236 = vunpack.c.h.b16 %v5193
        %v8237 = vunpack.c.l.b16 %v5194
        %v8238 = vunpack.c.h.b16 %v5194
        %v8239 = vunpack.c.l.b16 %v5195
        %v8240 = vunpack.c.h.b16 %v5195
        %v8241 = vunpack.c.l.b16 %v5196
        %v8242 = vunpack.c.h.b16 %v5196
        %v8243 = vunpack.c.l.b16 %v5197
        %v8244 = vunpack.c.h.b16 %v5197
        %v8245 = vunpack.c.l.b16 %v5198
        %v8246 = vunpack.c.h.b16 %v5198
        %v8247 = vunpack.c.l.b16 %v5199
        %v8248 = vunpack.c.h.b16 %v5199
        %v8249 = vunpack.c.l.b16 %v5200
        %v8250 = vunpack.c.h.b16 %v5200
        %v8251 = vunpack.c.l.b16 %v5201
        %v8252 = vunpack.c.h.b16 %v5201
        %v8253 = vunpack.c.l.b16 %v5202
        %v8254 = vunpack.c.h.b16 %v5202
        %v8255 = vunpack.c.l.b16 %v5203
        %v8256 = vunpack.c.h.b16 %v5203
        %v8257 = vunpack.c.l.b16 %v5204
        %v8258 = vunpack.c.h.b16 %v5204
        %v8259 = vunpack.c.l.b16 %v5205
        %v8260 = vunpack.c.h.b16 %v5205
        %v8261 = vunpack.c.l.b16 %v5206
        %v8262 = vunpack.c.h.b16 %v5206
        %v8263 = vunpack.c.l.b16 %v5207
        %v8264 = vunpack.c.h.b16 %v5207
        %v8265 = vunpack.c.l.b16 %v5208
        %v8266 = vunpack.c.h.b16 %v5208
        %v8267 = vunpack.c.l.b16 %v5209
        %v8268 = vunpack.c.h.b16 %v5209
        %v8269 = vunpack.c.l.b16 %v5210
        %v8270 = vunpack.c.h.b16 %v5210
        %v8271 = vunpack.c.l.b16 %v5211
        %v8272 = vunpack.c.h.b16 %v5211
        %v8273 = vunpack.c.l.b16 %v5212
        %v8274 = vunpack.c.h.b16 %v5212
        %v8275 = vunpack.c.l.b16 %v5213
        %v8276 = vunpack.c.h.b16 %v5213
        %v8277 = vunpack.c.l.b16 %v5214
        %v8278 = vunpack.c.h.b16 %v5214
        %v8279 = vunpack.c.l.b16 %v5215
        %v8280 = vunpack.c.h.b16 %v5215
        %v8281 = vunpack.c.l.b16 %v5216
        %v8282 = vunpack.c.h.b16 %v5216
        %v8283 = vunpack.c.l.b16 %v5217
        %v8284 = vunpack.c.h.b16 %v5217
        %v8285 = vunpack.c.l.b16 %v5218
        %v8286 = vunpack.c.h.b16 %v5218
        %v8287 = vunpack.c.l.b16 %v5219
        %v8288 = vunpack.c.h.b16 %v5219
        %v8289 = vunpack.c.l.b16 %v5220
        %v8290 = vunpack.c.h.b16 %v5220
        %v8291 = vunpack.c.l.b16 %v5221
        %v8292 = vunpack.c.h.b16 %v5221
        %v8293 = vunpack.c.l.b16 %v5222
        %v8294 = vunpack.c.h.b16 %v5222
        %v8295 = vunpack.c.l.b16 %v5223
        %v8296 = vunpack.c.h.b16 %v5223
        %v8297 = vunpack.c.l.b16 %v5224
        %v8298 = vunpack.c.h.b16 %v5224
        %v8299 = vunpack.c.l.b16 %v5225
        %v8300 = vunpack.c.h.b16 %v5225
        %v8301 = vunpack.c.l.b16 %v5226
        %v8302 = vunpack.c.h.b16 %v5226
        %v8303 = vunpack.c.l.b16 %v5227
        %v8304 = vunpack.c.h.b16 %v5227
        %v8305 = vunpack.c.l.b16 %v5228
        %v8306 = vunpack.c.h.b16 %v5228
        %v8307 = vunpack.c.l.b16 %v5229
        %v8308 = vunpack.c.h.b16 %v5229
        %v8309 = vunpack.c.l.b16 %v5230
        %v8310 = vunpack.c.h.b16 %v5230
        %v8311 = vunpack.c.l.b16 %v5231
        %v8312 = vunpack.c.h.b16 %v5231
        %v8313 = vunpack.c.l.b16 %v5232
        %v8314 = vunpack.c.h.b16 %v5232
        %v8315 = vunpack.c.l.b16 %v5233
        %v8316 = vunpack.c.h.b16 %v5233
        %v8317 = vunpack.c.l.b16 %v5234
        %v8318 = vunpack.c.h.b16 %v5234
        %v8319 = vunpack.c.l.b16 %v5235
        %v8320 = vunpack.c.h.b16 %v5235
        %v8321 = vunpack.c.l.b16 %v5236
        %v8322 = vunpack.c.h.b16 %v5236
        %v8323 = vunpack.c.l.b16 %v5237
        %v8324 = vunpack.c.h.b16 %v5237
        %v8325 = vunpack.c.l.b16 %v5238
        %v8326 = vunpack.c.h.b16 %v5238
        %v8327 = vpack.c.b16 %v8139, %v8135
        %v8328 = vpack.c.b16 %v8140, %v8136
        %v8329 = vpack.c.b16 %v8141, %v8137
        %v8330 = vpack.c.b16 %v8142, %v8138
        %v8331 = vpack.c.b16 %v8147, %v8143
        %v8332 = vpack.c.b16 %v8148, %v8144
        %v8333 = vpack.c.b16 %v8149, %v8145
        %v8334 = vpack.c.b16 %v8150, %v8146
        %v8335 = vpack.c.b16 %v8155, %v8151
        %v8336 = vpack.c.b16 %v8156, %v8152
        %v8337 = vpack.c.b16 %v8157, %v8153
        %v8338 = vpack.c.b16 %v8158, %v8154
        %v8339 = vpack.c.b16 %v8163, %v8159
        %v8340 = vpack.c.b16 %v8164, %v8160
        %v8341 = vpack.c.b16 %v8165, %v8161
        %v8342 = vpack.c.b16 %v8166, %v8162
        %v8343 = vpack.c.b16 %v8171, %v8167
        %v8344 = vpack.c.b16 %v8172, %v8168
        %v8345 = vpack.c.b16 %v8173, %v8169
        %v8346 = vpack.c.b16 %v8174, %v8170
        %v8347 = vpack.c.b16 %v8179, %v8175
        %v8348 = vpack.c.b16 %v8180, %v8176
        %v8349 = vpack.c.b16 %v8181, %v8177
        %v8350 = vpack.c.b16 %v8182, %v8178
        %v8351 = vpack.c.b16 %v8187, %v8183
        %v8352 = vpack.c.b16 %v8188, %v8184
        %v8353 = vpack.c.b16 %v8189, %v8185
        %v8354 = vpack.c.b16 %v8190, %v8186
        %v8355 = vpack.c.b16 %v8195, %v8191
        %v8356 = vpack.c.b16 %v8196, %v8192
        %v8357 = vpack.c.b16 %v8197, %v8193
        %v8358 = vpack.c.b16 %v8198, %v8194
        %v8359 = vpack.c.b16 %v8203, %v8199
        %v8360 = vpack.c.b16 %v8204, %v8200
        %v8361 = vpack.c.b16 %v8205, %v8201
        %v8362 = vpack.c.b16 %v8206, %v8202
        %v8363 = vpack.c.b16 %v8211, %v8207
        %v8364 = vpack.c.b16 %v8212, %v8208
        %v8365 = vpack.c.b16 %v8213, %v8209
        %v8366 = vpack.c.b16 %v8214, %v8210
        %v8367 = vpack.c.b16 %v8219, %v8215
        %v8368 = vpack.c.b16 %v8220, %v8216
        %v8369 = vpack.c.b16 %v8221, %v8217
        %v8370 = vpack.c.b16 %v8222, %v8218
        %v8371 = vpack.c.b16 %v8227, %v8223
        %v8372 = vpack.c.b16 %v8228, %v8224
        %v8373 = vpack.c.b16 %v8229, %v8225
        %v8374 = vpack.c.b16 %v8230, %v8226
        %v8375 = vpack.c.b16 %v8235, %v8231
        %v8376 = vpack.c.b16 %v8236, %v8232
        %v8377 = vpack.c.b16 %v8237, %v8233
        %v8378 = vpack.c.b16 %v8238, %v8234
        %v8379 = vpack.c.b16 %v8243, %v8239
        %v8380 = vpack.c.b16 %v8244, %v8240
        %v8381 = vpack.c.b16 %v8245, %v8241
        %v8382 = vpack.c.b16 %v8246, %v8242
        %v8383 = vpack.c.b16 %v8251, %v8247
        %v8384 = vpack.c.b16 %v8252, %v8248
        %v8385 = vpack.c.b16 %v8253, %v8249
        %v8386 = vpack.c.b16 %v8254, %v8250
        %v8387 = vpack.c.b16 %v8259, %v8255
        %v8388 = vpack.c.b16 %v8260, %v8256
        %v8389 = vpack.c.b16 %v8261, %v8257
        %v8390 = vpack.c.b16 %v8262, %v8258
        %v8391 = vpack.c.b16 %v8267, %v8263
        %v8392 = vpack.c.b16 %v8268, %v8264
        %v8393 = vpack.c.b16 %v8269, %v8265
        %v8394 = vpack.c.b16 %v8270, %v8266
        %v8395 = vpack.c.b16 %v8275, %v8271
        %v8396 = vpack.c.b16 %v8276, %v8272
        %v8397 = vpack.c.b16 %v8277, %v8273
        %v8398 = vpack.c.b16 %v8278, %v8274
        %v8399 = vpack.c.b16 %v8283, %v8279
        %v8400 = vpack.c.b16 %v8284, %v8280
        %v8401 = vpack.c.b16 %v8285, %v8281
        %v8402 = vpack.c.b16 %v8286, %v8282
        %v8403 = vpack.c.b16 %v8291, %v8287
        %v8404 = vpack.c.b16 %v8292, %v8288
        %v8405 = vpack.c.b16 %v8293, %v8289
        %v8406 = vpack.c.b16 %v8294, %v8290
        %v8407 = vpack.c.b16 %v8299, %v8295
        %v8408 = vpack.c.b16 %v8300, %v8296
        %v8409 = vpack.c.b16 %v8301, %v8297
        %v8410 = vpack.c.b16 %v8302, %v8298
        %v8411 = vpack.c.b16 %v8307, %v8303
        %v8412 = vpack.c.b16 %v8308, %v8304
        %v8413 = vpack.c.b16 %v8309, %v8305
        %v8414 = vpack.c.b16 %v8310, %v8306
        %v8415 = vpack.c.b16 %v8315, %v8311
        %v8416 = vpack.c.b16 %v8316, %v8312
        %v8417 = vpack.c.b16 %v8317, %v8313
        %v8418 = vpack.c.b16 %v8318, %v8314
        %v8419 = vpack.c.b16 %v8323, %v8319
        %v8420 = vpack.c.b16 %v8324, %v8320
        %v8421 = vpack.c.b16 %v8325, %v8321
        %v8422 = vpack.c.b16 %v8326, %v8322
        %8519 = vmatprep.subr.bf16.mxu0 %v8328
        %8520 = vmatpush1.bf16.msra.mxu0 %v8327
        %8521 = vmatprep.subr.bf16.mxu0 %v8332
        %8522 = vmatpush1.bf16.msra.mxu0 %v8331
        %8523 = vmatprep.subr.bf16.mxu0 %v8336
        %8524 = vmatpush1.bf16.msra.mxu0 %v8335
        %8525 = vmatprep.subr.bf16.mxu0 %v8340
        %8526 = vmatpush1.bf16.msra.mxu0 %v8339
        %8527 = vmatprep.subr.bf16.mxu0 %v8344
        %8528 = vmatpush1.bf16.msra.mxu0 %v8343
        %8529 = vmatprep.subr.bf16.mxu0 %v8348
        %8530 = vmatpush1.bf16.msra.mxu0 %v8347
        %8531 = vmatprep.subr.bf16.mxu0 %v8352
        %8532 = vmatpush1.bf16.msra.mxu0 %v8351
        %8533 = vmatprep.subr.bf16.mxu0 %v8356
        %8534 = vmatpush1.bf16.msra.mxu0 %v8355
        %8535 = vmatprep.subr.bf16.mxu0 %v8360
        %8536 = vmatpush1.bf16.msra.mxu0 %v8359
        %8537 = vmatprep.subr.bf16.mxu0 %v8364
        %8538 = vmatpush1.bf16.msra.mxu0 %v8363
        %8539 = vmatprep.subr.bf16.mxu0 %v8368
        %8540 = vmatpush1.bf16.msra.mxu0 %v8367
        %8541 = vmatprep.subr.bf16.mxu0 %v8372
        %8542 = vmatpush1.bf16.msra.mxu0 %v8371
        %8543 = vmatprep.subr.bf16.mxu0 %v8376
        %8544 = vmatpush1.bf16.msra.mxu0 %v8375
        %8545 = vmatprep.subr.bf16.mxu0 %v8380
        %8546 = vmatpush1.bf16.msra.mxu0 %v8379
        %8547 = vmatprep.subr.bf16.mxu0 %v8384
        %8548 = vmatpush1.bf16.msra.mxu0 %v8383
        %8549 = vmatprep.subr.bf16.mxu0 %v8388
        %8550 = vmatpush1.bf16.msra.mxu0 %v8387
        %8551 = vmatprep.mubr.bf16.mxu0 %v4729
        %8552 = vmatmul.mubr.bf16.gmra.mrb[0].mxu0 %v4728
        %v8553 = vpop.f32.mrb[0].mxu0
        %v8554 = vadd.f32 0.0, %v8553
        %v8555 = vpop.f32.mrb[0].mxu0
        %v8556 = vadd.f32 0.0, %v8555
        %v8557 = vpop.f32.mrb[0].mxu0
        %v8558 = vadd.f32 0.0, %v8557
        %v8559 = vpop.f32.mrb[0].mxu0
        %v8560 = vadd.f32 0.0, %v8559
        %8561 = vmatprep.mubr.bf16.mxu0 %v4738
        %8562 = vmatmul.mubr.bf16.gmra.mrb[0].mxu0 %v4737
        %v8563 = vpop.f32.mrb[0].mxu0
        %v8564 = vadd.f32 0.0, %v8563
        %v8565 = vpop.f32.mrb[0].mxu0
        %v8566 = vadd.f32 0.0, %v8565
        %v8567 = vpop.f32.mrb[0].mxu0
        %v8568 = vadd.f32 0.0, %v8567
        %v8569 = vpop.f32.mrb[0].mxu0
        %v8570 = vadd.f32 0.0, %v8569
        %8571 = vdwg.mxu0
        %8572 = vmatprep.subr.bf16.mxu0 %v8392
        %8573 = vmatpush1.bf16.msra.mxu0 %v8391
        %8574 = vmatprep.subr.bf16.mxu0 %v8396
        %8575 = vmatpush1.bf16.msra.mxu0 %v8395
        %8576 = vmatprep.subr.bf16.mxu0 %v8400
        %8577 = vmatpush1.bf16.msra.mxu0 %v8399
        %8578 = vmatprep.subr.bf16.mxu0 %v8404
        %8579 = vmatpush1.bf16.msra.mxu0 %v8403
        %8580 = vmatprep.subr.bf16.mxu0 %v8408
        %8581 = vmatpush1.bf16.msra.mxu0 %v8407
        %8582 = vmatprep.subr.bf16.mxu0 %v8412
        %8583 = vmatpush1.bf16.msra.mxu0 %v8411
        %8584 = vmatprep.subr.bf16.mxu0 %v8416
        %8585 = vmatpush1.bf16.msra.mxu0 %v8415
        %8586 = vmatprep.subr.bf16.mxu0 %v8420
        %8587 = vmatpush1.bf16.msra.mxu0 %v8419
        %8588 = vmatprep.subr.bf16.mxu0 0
        %8589 = vmatpush1.bf16.msra.mxu0 0
        %8590 = vmatprep.subr.bf16.mxu0 0
        %8591 = vmatpush1.bf16.msra.mxu0 0
        %8592 = vmatprep.subr.bf16.mxu0 0
        %8593 = vmatpush1.bf16.msra.mxu0 0
        %8594 = vmatprep.subr.bf16.mxu0 0
        %8595 = vmatpush1.bf16.msra.mxu0 0
        %8596 = vmatprep.subr.bf16.mxu0 0
        %8597 = vmatpush1.bf16.msra.mxu0 0
        %8598 = vmatprep.subr.bf16.mxu0 0
        %8599 = vmatpush1.bf16.msra.mxu0 0
        %8600 = vmatprep.subr.bf16.mxu0 0
        %8601 = vmatpush1.bf16.msra.mxu0 0
        %8602 = vmatprep.subr.bf16.mxu0 0
        %8603 = vmatpush1.bf16.msra.mxu0 0
        %8604 = vmatprep.mubr.bf16.mxu0 0
        %8605 = vmatmul.mubr.bf16.gmra.mrb[0].mxu0 %v4730
        %v8606 = vpop.f32.mrb[0].mxu0
        %v8607 = vadd.f32 %v8554, %v8606
        %v8608 = vpop.f32.mrb[0].mxu0
        %v8609 = vadd.f32 %v8556, %v8608
        %v8610 = vpop.f32.mrb[0].mxu0
        %v8611 = vadd.f32 %v8558, %v8610
        %v8612 = vpop.f32.mrb[0].mxu0
        %v8613 = vadd.f32 %v8560, %v8612
        %8614 = vmatprep.mubr.bf16.mxu0 0
        %8615 = vmatmul.mubr.bf16.gmra.mrb[0].mxu0 %v4739
        %v8616 = vpop.f32.mrb[0].mxu0
        %v8617 = vadd.f32 %v8564, %v8616
        %v8618 = vpop.f32.mrb[0].mxu0
        %v8619 = vadd.f32 %v8566, %v8618
        %v8620 = vpop.f32.mrb[0].mxu0
        %v8621 = vadd.f32 %v8568, %v8620
        %v8622 = vpop.f32.mrb[0].mxu0
        %v8623 = vadd.f32 %v8570, %v8622
        %8624 = vdwg.mxu0
        %8625 = vmatprep.subr.bf16.mxu0 %v8330
        %8626 = vmatpush1.bf16.msra.mxu0 %v8329
        %8627 = vmatprep.subr.bf16.mxu0 %v8334
        %8628 = vmatpush1.bf16.msra.mxu0 %v8333
        %8629 = vmatprep.subr.bf16.mxu0 %v8338
        %8630 = vmatpush1.bf16.msra.mxu0 %v8337
        %8631 = vmatprep.subr.bf16.mxu0 %v8342
        %8632 = vmatpush1.bf16.msra.mxu0 %v8341
        %8633 = vmatprep.subr.bf16.mxu0 %v8346
        %8634 = vmatpush1.bf16.msra.mxu0 %v8345
        %8635 = vmatprep.subr.bf16.mxu0 %v8350
        %8636 = vmatpush1.bf16.msra.mxu0 %v8349
        %8637 = vmatprep.subr.bf16.mxu0 %v8354
        %8638 = vmatpush1.bf16.msra.mxu0 %v8353
        %8639 = vmatprep.subr.bf16.mxu0 %v8358
        %8640 = vmatpush1.bf16.msra.mxu0 %v8357
        %8641 = vmatprep.subr.bf16.mxu0 %v8362
        %8642 = vmatpush1.bf16.msra.mxu0 %v8361
        %8643 = vmatprep.subr.bf16.mxu0 %v8366
        %8644 = vmatpush1.bf16.msra.mxu0 %v8365
        %8645 = vmatprep.subr.bf16.mxu0 %v8370
        %8646 = vmatpush1.bf16.msra.mxu0 %v8369
        %8647 = vmatprep.subr.bf16.mxu0 %v8374
        %8648 = vmatpush1.bf16.msra.mxu0 %v8373
        %8649 = vmatprep.subr.bf16.mxu0 %v8378
        %8650 = vmatpush1.bf16.msra.mxu0 %v8377
        %8651 = vmatprep.subr.bf16.mxu0 %v8382
        %8652 = vmatpush1.bf16.msra.mxu0 %v8381
        %8653 = vmatprep.subr.bf16.mxu0 %v8386
        %8654 = vmatpush1.bf16.msra.mxu0 %v8385
        %8655 = vmatprep.subr.bf16.mxu0 %v8390
        %8656 = vmatpush1.bf16.msra.mxu0 %v8389
        %8657 = vmatprep.mubr.bf16.mxu0 %v4729
        %8658 = vmatmul.mubr.bf16.gmra.mrb[0].mxu0 %v4728
        %v8659 = vpop.f32.mrb[0].mxu0
        %v8660 = vadd.f32 0.0, %v8659
        %v8661 = vpop.f32.mrb[0].mxu0
        %v8662 = vadd.f32 0.0, %v8661
        %v8663 = vpop.f32.mrb[0].mxu0
        %v8664 = vadd.f32 0.0, %v8663
        %v8665 = vpop.f32.mrb[0].mxu0
        %v8666 = vadd.f32 0.0, %v8665
        %8667 = vmatprep.mubr.bf16.mxu0 %v4738
        %8668 = vmatmul.mubr.bf16.gmra.mrb[0].mxu0 %v4737
        %v8669 = vpop.f32.mrb[0].mxu0
        %v8670 = vadd.f32 0.0, %v8669
        %v8671 = vpop.f32.mrb[0].mxu0
        %v8672 = vadd.f32 0.0, %v8671
        %v8673 = vpop.f32.mrb[0].mxu0
        %v8674 = vadd.f32 0.0, %v8673
        %v8675 = vpop.f32.mrb[0].mxu0
        %v8676 = vadd.f32 0.0, %v8675
        %8677 = vdwg.mxu0
        %8678 = vmatprep.subr.bf16.mxu0 %v8394
        %8679 = vmatpush1.bf16.msra.mxu0 %v8393
        %8680 = vmatprep.subr.bf16.mxu0 %v8398
        %8681 = vmatpush1.bf16.msra.mxu0 %v8397
        %8682 = vmatprep.subr.bf16.mxu0 %v8402
        %8683 = vmatpush1.bf16.msra.mxu0 %v8401
        %8684 = vmatprep.subr.bf16.mxu0 %v8406
        %8685 = vmatpush1.bf16.msra.mxu0 %v8405
        %8686 = vmatprep.subr.bf16.mxu0 %v8410
        %8687 = vmatpush1.bf16.msra.mxu0 %v8409
        %8688 = vmatprep.subr.bf16.mxu0 %v8414
        %8689 = vmatpush1.bf16.msra.mxu0 %v8413
        %8690 = vmatprep.subr.bf16.mxu0 %v8418
        %8691 = vmatpush1.bf16.msra.mxu0 %v8417
        %8692 = vmatprep.subr.bf16.mxu0 %v8422
        %8693 = vmatpush1.bf16.msra.mxu0 %v8421
        %8694 = vmatprep.subr.bf16.mxu0 0
        %8695 = vmatpush1.bf16.msra.mxu0 0
        %8696 = vmatprep.subr.bf16.mxu0 0
        %8697 = vmatpush1.bf16.msra.mxu0 0
        %8698 = vmatprep.subr.bf16.mxu0 0
        %8699 = vmatpush1.bf16.msra.mxu0 0
        %8700 = vmatprep.subr.bf16.mxu0 0
        %8701 = vmatpush1.bf16.msra.mxu0 0
        %8702 = vmatprep.subr.bf16.mxu0 0
        %8703 = vmatpush1.bf16.msra.mxu0 0
        %8704 = vmatprep.subr.bf16.mxu0 0
        %8705 = vmatpush1.bf16.msra.mxu0 0
        %8706 = vmatprep.subr.bf16.mxu0 0
        %8707 = vmatpush1.bf16.msra.mxu0 0
        %8708 = vmatprep.subr.bf16.mxu0 0
        %8709 = vmatpush1.bf16.msra.mxu0 0
        %8710 = vmatprep.mubr.bf16.mxu0 0
        %8711 = vmatmul.mubr.bf16.gmra.mrb[0].mxu0 %v4730
        %v8712 = vpop.f32.mrb[0].mxu0
        %v8713 = vadd.f32 %v8660, %v8712
        %v8714 = vpop.f32.mrb[0].mxu0
        %v8715 = vadd.f32 %v8662, %v8714
        %v8716 = vpop.f32.mrb[0].mxu0
        %v8717 = vadd.f32 %v8664, %v8716
        %v8718 = vpop.f32.mrb[0].mxu0
        %v8719 = vadd.f32 %v8666, %v8718
        %8720 = vmatprep.mubr.bf16.mxu0 0
        %8721 = vmatmul.mubr.bf16.gmra.mrb[0].mxu0 %v4739
        %v8722 = vpop.f32.mrb[0].mxu0
        %v8723 = vadd.f32 %v8670, %v8722
        %v8724 = vpop.f32.mrb[0].mxu0
        %v8725 = vadd.f32 %v8672, %v8724
        %v8726 = vpop.f32.mrb[0].mxu0
        %v8727 = vadd.f32 %v8674, %v8726
        %v8728 = vpop.f32.mrb[0].mxu0
        %v8729 = vadd.f32 %v8676, %v8728
        %8730 = vdwg.mxu0
        %v8731 = vadd.f32 %v8023, %v8607
        %v8732 = vadd.f32 %v8024, %v8609
        %v8733 = vadd.f32 %v8025, %v8713
        %v8734 = vadd.f32 %v8026, %v8715
        %v8735 = vadd.f32 %v8027, %v8611
        %v8736 = vadd.f32 %v8028, %v8613
        %v8737 = vadd.f32 %v8029, %v8717
        %v8738 = vadd.f32 %v8030, %v8719
        %v8739 = vadd.f32 %v8031, %v8617
        %v8740 = vadd.f32 %v8032, %v8619
        %v8741 = vadd.f32 %v8033, %v8723
        %v8742 = vadd.f32 %v8034, %v8725
        %v8743 = vadd.f32 %v8035, %v8621
        %v8744 = vadd.f32 %v8036, %v8623
        %v8745 = vadd.f32 %v8037, %v8727
        %v8746 = vadd.f32 %v8038, %v8729
        %8747 = vmatprep.subr.bf16.mxu0 %v5528
        %8748 = vmatpush1.bf16.msra.mxu0 %v5527
        %8749 = vmatprep.subr.bf16.mxu0 %v5532
        %8750 = vmatpush1.bf16.msra.mxu0 %v5531
        %8751 = vmatprep.subr.bf16.mxu0 %v5536
        %8752 = vmatpush1.bf16.msra.mxu0 %v5535
        %8753 = vmatprep.subr.bf16.mxu0 %v5540
        %8754 = vmatpush1.bf16.msra.mxu0 %v5539
        %8755 = vmatprep.subr.bf16.mxu0 %v5544
        %8756 = vmatpush1.bf16.msra.mxu0 %v5543
        %8757 = vmatprep.subr.bf16.mxu0 %v5548
        %8758 = vmatpush1.bf16.msra.mxu0 %v5547
        %8759 = vmatprep.subr.bf16.mxu0 %v5552
        %8760 = vmatpush1.bf16.msra.mxu0 %v5551
        %8761 = vmatprep.subr.bf16.mxu0 %v5556
        %8762 = vmatpush1.bf16.msra.mxu0 %v5555
        %8763 = vmatprep.subr.bf16.mxu0 %v5560
        %8764 = vmatpush1.bf16.msra.mxu0 %v5559
        %8765 = vmatprep.subr.bf16.mxu0 %v5564
        %8766 = vmatpush1.bf16.msra.mxu0 %v5563
        %8767 = vmatprep.subr.bf16.mxu0 %v5568
        %8768 = vmatpush1.bf16.msra.mxu0 %v5567
        %8769 = vmatprep.subr.bf16.mxu0 %v5572
        %8770 = vmatpush1.bf16.msra.mxu0 %v5571
        %8771 = vmatprep.subr.bf16.mxu0 %v5576
        %8772 = vmatpush1.bf16.msra.mxu0 %v5575
        %8773 = vmatprep.subr.bf16.mxu0 %v5580
        %8774 = vmatpush1.bf16.msra.mxu0 %v5579
        %8775 = vmatprep.subr.bf16.mxu0 %v5584
        %8776 = vmatpush1.bf16.msra.mxu0 %v5583
        %8777 = vmatprep.subr.bf16.mxu0 %v5588
        %8778 = vmatpush1.bf16.msra.mxu0 %v5587
        %8779 = vmatprep.mubr.bf16.mxu0 %v4732
        %8780 = vmatmul.mubr.bf16.gmra.mrb[0].mxu0 %v4731
        %v8781 = vpop.f32.mrb[0].mxu0
        %v8782 = vadd.f32 0.0, %v8781
        %v8783 = vpop.f32.mrb[0].mxu0
        %v8784 = vadd.f32 0.0, %v8783
        %v8785 = vpop.f32.mrb[0].mxu0
        %v8786 = vadd.f32 0.0, %v8785
        %v8787 = vpop.f32.mrb[0].mxu0
        %v8788 = vadd.f32 0.0, %v8787
        %8789 = vmatprep.mubr.bf16.mxu0 %v4735
        %8790 = vmatmul.mubr.bf16.gmra.mrb[0].mxu0 %v4734
        %v8791 = vpop.f32.mrb[0].mxu0
        %v8792 = vadd.f32 0.0, %v8791
        %v8793 = vpop.f32.mrb[0].mxu0
        %v8794 = vadd.f32 0.0, %v8793
        %v8795 = vpop.f32.mrb[0].mxu0
        %v8796 = vadd.f32 0.0, %v8795
        %v8797 = vpop.f32.mrb[0].mxu0
        %v8798 = vadd.f32 0.0, %v8797
        %8799 = vdwg.mxu0
        %8800 = vmatprep.subr.bf16.mxu0 %v5592
        %8801 = vmatpush1.bf16.msra.mxu0 %v5591
        %8802 = vmatprep.subr.bf16.mxu0 %v5596
        %8803 = vmatpush1.bf16.msra.mxu0 %v5595
        %8804 = vmatprep.subr.bf16.mxu0 %v5600
        %8805 = vmatpush1.bf16.msra.mxu0 %v5599
        %8806 = vmatprep.subr.bf16.mxu0 %v5604
        %8807 = vmatpush1.bf16.msra.mxu0 %v5603
        %8808 = vmatprep.subr.bf16.mxu0 %v5608
        %8809 = vmatpush1.bf16.msra.mxu0 %v5607
        %8810 = vmatprep.subr.bf16.mxu0 %v5612
        %8811 = vmatpush1.bf16.msra.mxu0 %v5611
        %8812 = vmatprep.subr.bf16.mxu0 %v5616
        %8813 = vmatpush1.bf16.msra.mxu0 %v5615
        %8814 = vmatprep.subr.bf16.mxu0 %v5620
        %8815 = vmatpush1.bf16.msra.mxu0 %v5619
        %8816 = vmatprep.subr.bf16.mxu0 0
        %8817 = vmatpush1.bf16.msra.mxu0 0
        %8818 = vmatprep.subr.bf16.mxu0 0
        %8819 = vmatpush1.bf16.msra.mxu0 0
        %8820 = vmatprep.subr.bf16.mxu0 0
        %8821 = vmatpush1.bf16.msra.mxu0 0
        %8822 = vmatprep.subr.bf16.mxu0 0
        %8823 = vmatpush1.bf16.msra.mxu0 0
        %8824 = vmatprep.subr.bf16.mxu0 0
        %8825 = vmatpush1.bf16.msra.mxu0 0
        %8826 = vmatprep.subr.bf16.mxu0 0
        %8827 = vmatpush1.bf16.msra.mxu0 0
        %8828 = vmatprep.subr.bf16.mxu0 0
        %8829 = vmatpush1.bf16.msra.mxu0 0
        %8830 = vmatprep.subr.bf16.mxu0 0
        %8831 = vmatpush1.bf16.msra.mxu0 0
        %8832 = vmatprep.mubr.bf16.mxu0 0
        %8833 = vmatmul.mubr.bf16.gmra.mrb[0].mxu0 %v4733
        %v8834 = vpop.f32.mrb[0].mxu0
        %v8835 = vadd.f32 %v8782, %v8834
        %v8836 = vpop.f32.mrb[0].mxu0
        %v8837 = vadd.f32 %v8784, %v8836
        %v8838 = vpop.f32.mrb[0].mxu0
        %v8839 = vadd.f32 %v8786, %v8838
        %v8840 = vpop.f32.mrb[0].mxu0
        %v8841 = vadd.f32 %v8788, %v8840
        %8842 = vmatprep.mubr.bf16.mxu0 0
        %8843 = vmatmul.mubr.bf16.gmra.mrb[0].mxu0 %v4736
        %v8844 = vpop.f32.mrb[0].mxu0
        %v8845 = vadd.f32 %v8792, %v8844
        %v8846 = vpop.f32.mrb[0].mxu0
        %v8847 = vadd.f32 %v8794, %v8846
        %v8848 = vpop.f32.mrb[0].mxu0
        %v8849 = vadd.f32 %v8796, %v8848
        %v8850 = vpop.f32.mrb[0].mxu0
        %v8851 = vadd.f32 %v8798, %v8850
        %8852 = vdwg.mxu0
        %8853 = vmatprep.subr.bf16.mxu0 %v5530
        %8854 = vmatpush1.bf16.msra.mxu0 %v5529
        %8855 = vmatprep.subr.bf16.mxu0 %v5534
        %8856 = vmatpush1.bf16.msra.mxu0 %v5533
        %8857 = vmatprep.subr.bf16.mxu0 %v5538
        %8858 = vmatpush1.bf16.msra.mxu0 %v5537
        %8859 = vmatprep.subr.bf16.mxu0 %v5542
        %8860 = vmatpush1.bf16.msra.mxu0 %v5541
        %8861 = vmatprep.subr.bf16.mxu0 %v5546
        %8862 = vmatpush1.bf16.msra.mxu0 %v5545
        %8863 = vmatprep.subr.bf16.mxu0 %v5550
        %8864 = vmatpush1.bf16.msra.mxu0 %v5549
        %8865 = vmatprep.subr.bf16.mxu0 %v5554
        %8866 = vmatpush1.bf16.msra.mxu0 %v5553
        %8867 = vmatprep.subr.bf16.mxu0 %v5558
        %8868 = vmatpush1.bf16.msra.mxu0 %v5557
        %8869 = vmatprep.subr.bf16.mxu0 %v5562
        %8870 = vmatpush1.bf16.msra.mxu0 %v5561
        %8871 = vmatprep.subr.bf16.mxu0 %v5566
        %8872 = vmatpush1.bf16.msra.mxu0 %v5565
        %8873 = vmatprep.subr.bf16.mxu0 %v5570
        %8874 = vmatpush1.bf16.msra.mxu0 %v5569
        %8875 = vmatprep.subr.bf16.mxu0 %v5574
        %8876 = vmatpush1.bf16.msra.mxu0 %v5573
        %8877 = vmatprep.subr.bf16.mxu0 %v5578
        %8878 = vmatpush1.bf16.msra.mxu0 %v5577
        %8879 = vmatprep.subr.bf16.mxu0 %v5582
        %8880 = vmatpush1.bf16.msra.mxu0 %v5581
        %8881 = vmatprep.subr.bf16.mxu0 %v5586
        %8882 = vmatpush1.bf16.msra.mxu0 %v5585
        %8883 = vmatprep.subr.bf16.mxu0 %v5590
        %8884 = vmatpush1.bf16.msra.mxu0 %v5589
        %8885 = vmatprep.mubr.bf16.mxu0 %v4732
        %8886 = vmatmul.mubr.bf16.gmra.mrb[0].mxu0 %v4731
        %v8887 = vpop.f32.mrb[0].mxu0
        %v8888 = vadd.f32 0.0, %v8887
        %v8889 = vpop.f32.mrb[0].mxu0
        %v8890 = vadd.f32 0.0, %v8889
        %v8891 = vpop.f32.mrb[0].mxu0
        %v8892 = vadd.f32 0.0, %v8891
        %v8893 = vpop.f32.mrb[0].mxu0
        %v8894 = vadd.f32 0.0, %v8893
        %8895 = vmatprep.mubr.bf16.mxu0 %v4735
        %8896 = vmatmul.mubr.bf16.gmra.mrb[0].mxu0 %v4734
        %v8897 = vpop.f32.mrb[0].mxu0
        %v8898 = vadd.f32 0.0, %v8897
        %v8899 = vpop.f32.mrb[0].mxu0
        %v8900 = vadd.f32 0.0, %v8899
        %v8901 = vpop.f32.mrb[0].mxu0
        %v8902 = vadd.f32 0.0, %v8901
        %v8903 = vpop.f32.mrb[0].mxu0
        %v8904 = vadd.f32 0.0, %v8903
        %8905 = vdwg.mxu0
        %8906 = vmatprep.subr.bf16.mxu0 %v5594
        %8907 = vmatpush1.bf16.msra.mxu0 %v5593
        %8908 = vmatprep.subr.bf16.mxu0 %v5598
        %8909 = vmatpush1.bf16.msra.mxu0 %v5597
        %8910 = vmatprep.subr.bf16.mxu0 %v5602
        %8911 = vmatpush1.bf16.msra.mxu0 %v5601
        %8912 = vmatprep.subr.bf16.mxu0 %v5606
        %8913 = vmatpush1.bf16.msra.mxu0 %v5605
        %8914 = vmatprep.subr.bf16.mxu0 %v5610
        %8915 = vmatpush1.bf16.msra.mxu0 %v5609
        %8916 = vmatprep.subr.bf16.mxu0 %v5614
        %8917 = vmatpush1.bf16.msra.mxu0 %v5613
        %8918 = vmatprep.subr.bf16.mxu0 %v5618
        %8919 = vmatpush1.bf16.msra.mxu0 %v5617
        %8920 = vmatprep.subr.bf16.mxu0 %v5622
        %8921 = vmatpush1.bf16.msra.mxu0 %v5621
        %8922 = vmatprep.subr.bf16.mxu0 0
        %8923 = vmatpush1.bf16.msra.mxu0 0
        %8924 = vmatprep.subr.bf16.mxu0 0
        %8925 = vmatpush1.bf16.msra.mxu0 0
        %8926 = vmatprep.subr.bf16.mxu0 0
        %8927 = vmatpush1.bf16.msra.mxu0 0
        %8928 = vmatprep.subr.bf16.mxu0 0
        %8929 = vmatpush1.bf16.msra.mxu0 0
        %8930 = vmatprep.subr.bf16.mxu0 0
        %8931 = vmatpush1.bf16.msra.mxu0 0
        %8932 = vmatprep.subr.bf16.mxu0 0
        %8933 = vmatpush1.bf16.msra.mxu0 0
        %8934 = vmatprep.subr.bf16.mxu0 0
        %8935 = vmatpush1.bf16.msra.mxu0 0
        %8936 = vmatprep.subr.bf16.mxu0 0
        %8937 = vmatpush1.bf16.msra.mxu0 0
        %8938 = vmatprep.mubr.bf16.mxu0 0
        %8939 = vmatmul.mubr.bf16.gmra.mrb[0].mxu0 %v4733
        %v8940 = vpop.f32.mrb[0].mxu0
        %v8941 = vadd.f32 %v8888, %v8940
        %v8942 = vpop.f32.mrb[0].mxu0
        %v8943 = vadd.f32 %v8890, %v8942
        %v8944 = vpop.f32.mrb[0].mxu0
        %v8945 = vadd.f32 %v8892, %v8944
        %v8946 = vpop.f32.mrb[0].mxu0
        %v8947 = vadd.f32 %v8894, %v8946
        %8948 = vmatprep.mubr.bf16.mxu0 0
        %8949 = vmatmul.mubr.bf16.gmra.mrb[0].mxu0 %v4736
        %v8950 = vpop.f32.mrb[0].mxu0
        %v8951 = vadd.f32 %v8898, %v8950
        %v8952 = vpop.f32.mrb[0].mxu0
        %v8953 = vadd.f32 %v8900, %v8952
        %v8954 = vpop.f32.mrb[0].mxu0
        %v8955 = vadd.f32 %v8902, %v8954
        %v8956 = vpop.f32.mrb[0].mxu0
        %v8957 = vadd.f32 %v8904, %v8956
        %8958 = vdwg.mxu0
        %8959 = vmatprep.subr.bf16.mxu0 %v6220
        %8960 = vmatpush1.bf16.msra.mxu0 %v6219
        %8961 = vmatprep.subr.bf16.mxu0 %v6224
        %8962 = vmatpush1.bf16.msra.mxu0 %v6223
        %8963 = vmatprep.subr.bf16.mxu0 %v6228
        %8964 = vmatpush1.bf16.msra.mxu0 %v6227
        %8965 = vmatprep.subr.bf16.mxu0 %v6232
        %8966 = vmatpush1.bf16.msra.mxu0 %v6231
        %8967 = vmatprep.subr.bf16.mxu0 %v6236
        %8968 = vmatpush1.bf16.msra.mxu0 %v6235
        %8969 = vmatprep.subr.bf16.mxu0 %v6240
        %8970 = vmatpush1.bf16.msra.mxu0 %v6239
        %8971 = vmatprep.subr.bf16.mxu0 %v6244
        %8972 = vmatpush1.bf16.msra.mxu0 %v6243
        %8973 = vmatprep.subr.bf16.mxu0 %v6248
        %8974 = vmatpush1.bf16.msra.mxu0 %v6247
        %8975 = vmatprep.subr.bf16.mxu0 %v6252
        %8976 = vmatpush1.bf16.msra.mxu0 %v6251
        %8977 = vmatprep.subr.bf16.mxu0 %v6256
        %8978 = vmatpush1.bf16.msra.mxu0 %v6255
        %8979 = vmatprep.subr.bf16.mxu0 %v6260
        %8980 = vmatpush1.bf16.msra.mxu0 %v6259
        %8981 = vmatprep.subr.bf16.mxu0 %v6264
        %8982 = vmatpush1.bf16.msra.mxu0 %v6263
        %8983 = vmatprep.subr.bf16.mxu0 %v6268
        %8984 = vmatpush1.bf16.msra.mxu0 %v6267
        %8985 = vmatprep.subr.bf16.mxu0 %v6272
        %8986 = vmatpush1.bf16.msra.mxu0 %v6271
        %8987 = vmatprep.subr.bf16.mxu0 %v6276
        %8988 = vmatpush1.bf16.msra.mxu0 %v6275
        %8989 = vmatprep.subr.bf16.mxu0 %v6280
        %8990 = vmatpush1.bf16.msra.mxu0 %v6279
        %8991 = vmatprep.mubr.bf16.mxu0 %v4741
        %8992 = vmatmul.mubr.bf16.gmra.mrb[0].mxu0 %v4740
        %v8993 = vpop.f32.mrb[0].mxu0
        %v8994 = vadd.f32 %v8835, %v8993
        %v8995 = vpop.f32.mrb[0].mxu0
        %v8996 = vadd.f32 %v8837, %v8995
        %v8997 = vpop.f32.mrb[0].mxu0
        %v8998 = vadd.f32 %v8839, %v8997
        %v8999 = vpop.f32.mrb[0].mxu0
        %v9000 = vadd.f32 %v8841, %v8999
        %9001 = vmatprep.mubr.bf16.mxu0 %v4744
        %9002 = vmatmul.mubr.bf16.gmra.mrb[0].mxu0 %v4743
        %v9003 = vpop.f32.mrb[0].mxu0
        %v9004 = vadd.f32 %v8845, %v9003
        %v9005 = vpop.f32.mrb[0].mxu0
        %v9006 = vadd.f32 %v8847, %v9005
        %v9007 = vpop.f32.mrb[0].mxu0
        %v9008 = vadd.f32 %v8849, %v9007
        %v9009 = vpop.f32.mrb[0].mxu0
        %v9010 = vadd.f32 %v8851, %v9009
        %9011 = vdwg.mxu0
        %9012 = vmatprep.subr.bf16.mxu0 %v6284
        %9013 = vmatpush1.bf16.msra.mxu0 %v6283
        %9014 = vmatprep.subr.bf16.mxu0 %v6288
        %9015 = vmatpush1.bf16.msra.mxu0 %v6287
        %9016 = vmatprep.subr.bf16.mxu0 %v6292
        %9017 = vmatpush1.bf16.msra.mxu0 %v6291
        %9018 = vmatprep.subr.bf16.mxu0 %v6296
        %9019 = vmatpush1.bf16.msra.mxu0 %v6295
        %9020 = vmatprep.subr.bf16.mxu0 %v6300
        %9021 = vmatpush1.bf16.msra.mxu0 %v6299
        %9022 = vmatprep.subr.bf16.mxu0 %v6304
        %9023 = vmatpush1.bf16.msra.mxu0 %v6303
        %9024 = vmatprep.subr.bf16.mxu0 %v6308
        %9025 = vmatpush1.bf16.msra.mxu0 %v6307
        %9026 = vmatprep.subr.bf16.mxu0 %v6312
        %9027 = vmatpush1.bf16.msra.mxu0 %v6311
        %9028 = vmatprep.subr.bf16.mxu0 0
        %9029 = vmatpush1.bf16.msra.mxu0 0
        %9030 = vmatprep.subr.bf16.mxu0 0
        %9031 = vmatpush1.bf16.msra.mxu0 0
        %9032 = vmatprep.subr.bf16.mxu0 0
        %9033 = vmatpush1.bf16.msra.mxu0 0
        %9034 = vmatprep.subr.bf16.mxu0 0
        %9035 = vmatpush1.bf16.msra.mxu0 0
        %9036 = vmatprep.subr.bf16.mxu0 0
        %9037 = vmatpush1.bf16.msra.mxu0 0
        %9038 = vmatprep.subr.bf16.mxu0 0
        %9039 = vmatpush1.bf16.msra.mxu0 0
        %9040 = vmatprep.subr.bf16.mxu0 0
        %9041 = vmatpush1.bf16.msra.mxu0 0
        %9042 = vmatprep.subr.bf16.mxu0 0
        %9043 = vmatpush1.bf16.msra.mxu0 0
        %9044 = vmatprep.mubr.bf16.mxu0 0
        %9045 = vmatmul.mubr.bf16.gmra.mrb[0].mxu0 %v4742
        %v9046 = vpop.f32.mrb[0].mxu0
        %v9047 = vadd.f32 %v8994, %v9046
        %v9048 = vpop.f32.mrb[0].mxu0
        %v9049 = vadd.f32 %v8996, %v9048
        %v9050 = vpop.f32.mrb[0].mxu0
        %v9051 = vadd.f32 %v8998, %v9050
        %v9052 = vpop.f32.mrb[0].mxu0
        %v9053 = vadd.f32 %v9000, %v9052
        %9054 = vmatprep.mubr.bf16.mxu0 0
        %9055 = vmatmul.mubr.bf16.gmra.mrb[0].mxu0 %v4745
        %v9056 = vpop.f32.mrb[0].mxu0
        %v9057 = vadd.f32 %v9004, %v9056
        %v9058 = vpop.f32.mrb[0].mxu0
        %v9059 = vadd.f32 %v9006, %v9058
        %v9060 = vpop.f32.mrb[0].mxu0
        %v9061 = vadd.f32 %v9008, %v9060
        %v9062 = vpop.f32.mrb[0].mxu0
        %v9063 = vadd.f32 %v9010, %v9062
        %9064 = vdwg.mxu0
        %9065 = vmatprep.subr.bf16.mxu0 %v6222
        %9066 = vmatpush1.bf16.msra.mxu0 %v6221
        %9067 = vmatprep.subr.bf16.mxu0 %v6226
        %9068 = vmatpush1.bf16.msra.mxu0 %v6225
        %9069 = vmatprep.subr.bf16.mxu0 %v6230
        %9070 = vmatpush1.bf16.msra.mxu0 %v6229
        %9071 = vmatprep.subr.bf16.mxu0 %v6234
        %9072 = vmatpush1.bf16.msra.mxu0 %v6233
        %9073 = vmatprep.subr.bf16.mxu0 %v6238
        %9074 = vmatpush1.bf16.msra.mxu0 %v6237
        %9075 = vmatprep.subr.bf16.mxu0 %v6242
        %9076 = vmatpush1.bf16.msra.mxu0 %v6241
        %9077 = vmatprep.subr.bf16.mxu0 %v6246
        %9078 = vmatpush1.bf16.msra.mxu0 %v6245
        %9079 = vmatprep.subr.bf16.mxu0 %v6250
        %9080 = vmatpush1.bf16.msra.mxu0 %v6249
        %9081 = vmatprep.subr.bf16.mxu0 %v6254
        %9082 = vmatpush1.bf16.msra.mxu0 %v6253
        %9083 = vmatprep.subr.bf16.mxu0 %v6258
        %9084 = vmatpush1.bf16.msra.mxu0 %v6257
        %9085 = vmatprep.subr.bf16.mxu0 %v6262
        %9086 = vmatpush1.bf16.msra.mxu0 %v6261
        %9087 = vmatprep.subr.bf16.mxu0 %v6266
        %9088 = vmatpush1.bf16.msra.mxu0 %v6265
        %9089 = vmatprep.subr.bf16.mxu0 %v6270
        %9090 = vmatpush1.bf16.msra.mxu0 %v6269
        %9091 = vmatprep.subr.bf16.mxu0 %v6274
        %9092 = vmatpush1.bf16.msra.mxu0 %v6273
        %9093 = vmatprep.subr.bf16.mxu0 %v6278
        %9094 = vmatpush1.bf16.msra.mxu0 %v6277
        %9095 = vmatprep.subr.bf16.mxu0 %v6282
        %9096 = vmatpush1.bf16.msra.mxu0 %v6281
        %9097 = vmatprep.mubr.bf16.mxu0 %v4741
        %9098 = vmatmul.mubr.bf16.gmra.mrb[0].mxu0 %v4740
        %v9099 = vpop.f32.mrb[0].mxu0
        %v9100 = vadd.f32 %v8941, %v9099
        %v9101 = vpop.f32.mrb[0].mxu0
        %v9102 = vadd.f32 %v8943, %v9101
        %v9103 = vpop.f32.mrb[0].mxu0
        %v9104 = vadd.f32 %v8945, %v9103
        %v9105 = vpop.f32.mrb[0].mxu0
        %v9106 = vadd.f32 %v8947, %v9105
        %9107 = vmatprep.mubr.bf16.mxu0 %v4744
        %9108 = vmatmul.mubr.bf16.gmra.mrb[0].mxu0 %v4743
        %v9109 = vpop.f32.mrb[0].mxu0
        %v9110 = vadd.f32 %v8951, %v9109
        %v9111 = vpop.f32.mrb[0].mxu0
        %v9112 = vadd.f32 %v8953, %v9111
        %v9113 = vpop.f32.mrb[0].mxu0
        %v9114 = vadd.f32 %v8955, %v9113
        %v9115 = vpop.f32.mrb[0].mxu0
        %v9116 = vadd.f32 %v8957, %v9115
        %9117 = vdwg.mxu0
        %9118 = vmatprep.subr.bf16.mxu0 %v6286
        %9119 = vmatpush1.bf16.msra.mxu0 %v6285
        %9120 = vmatprep.subr.bf16.mxu0 %v6290
        %9121 = vmatpush1.bf16.msra.mxu0 %v6289
        %9122 = vmatprep.subr.bf16.mxu0 %v6294
        %9123 = vmatpush1.bf16.msra.mxu0 %v6293
        %9124 = vmatprep.subr.bf16.mxu0 %v6298
        %9125 = vmatpush1.bf16.msra.mxu0 %v6297
        %9126 = vmatprep.subr.bf16.mxu0 %v6302
        %9127 = vmatpush1.bf16.msra.mxu0 %v6301
        %9128 = vmatprep.subr.bf16.mxu0 %v6306
        %9129 = vmatpush1.bf16.msra.mxu0 %v6305
        %9130 = vmatprep.subr.bf16.mxu0 %v6310
        %9131 = vmatpush1.bf16.msra.mxu0 %v6309
        %9132 = vmatprep.subr.bf16.mxu0 %v6314
        %9133 = vmatpush1.bf16.msra.mxu0 %v6313
        %9134 = vmatprep.subr.bf16.mxu0 0
        %9135 = vmatpush1.bf16.msra.mxu0 0
        %9136 = vmatprep.subr.bf16.mxu0 0
        %9137 = vmatpush1.bf16.msra.mxu0 0
        %9138 = vmatprep.subr.bf16.mxu0 0
        %9139 = vmatpush1.bf16.msra.mxu0 0
        %9140 = vmatprep.subr.bf16.mxu0 0
        %9141 = vmatpush1.bf16.msra.mxu0 0
        %9142 = vmatprep.subr.bf16.mxu0 0
        %9143 = vmatpush1.bf16.msra.mxu0 0
        %9144 = vmatprep.subr.bf16.mxu0 0
        %9145 = vmatpush1.bf16.msra.mxu0 0
        %9146 = vmatprep.subr.bf16.mxu0 0
        %9147 = vmatpush1.bf16.msra.mxu0 0
        %9148 = vmatprep.subr.bf16.mxu0 0
        %9149 = vmatpush1.bf16.msra.mxu0 0
        %9150 = vmatprep.mubr.bf16.mxu0 0
        %9151 = vmatmul.mubr.bf16.gmra.mrb[0].mxu0 %v4742
        %v9152 = vpop.f32.mrb[0].mxu0
        %v9153 = vadd.f32 %v9100, %v9152
        %v9154 = vpop.f32.mrb[0].mxu0
        %v9155 = vadd.f32 %v9102, %v9154
        %v9156 = vpop.f32.mrb[0].mxu0
        %v9157 = vadd.f32 %v9104, %v9156
        %v9158 = vpop.f32.mrb[0].mxu0
        %v9159 = vadd.f32 %v9106, %v9158
        %9160 = vmatprep.mubr.bf16.mxu0 0
        %9161 = vmatmul.mubr.bf16.gmra.mrb[0].mxu0 %v4745
        %v9162 = vpop.f32.mrb[0].mxu0
        %v9163 = vadd.f32 %v9110, %v9162
        %v9164 = vpop.f32.mrb[0].mxu0
        %v9165 = vadd.f32 %v9112, %v9164
        %v9166 = vpop.f32.mrb[0].mxu0
        %v9167 = vadd.f32 %v9114, %v9166
        %v9168 = vpop.f32.mrb[0].mxu0
        %v9169 = vadd.f32 %v9116, %v9168
        %9170 = vdwg.mxu0
        %9171 = vmatprep.subr.bf16.mxu0 %v6912
        %9172 = vmatpush1.bf16.msra.mxu0 %v6911
        %9173 = vmatprep.subr.bf16.mxu0 %v6916
        %9174 = vmatpush1.bf16.msra.mxu0 %v6915
        %9175 = vmatprep.subr.bf16.mxu0 %v6920
        %9176 = vmatpush1.bf16.msra.mxu0 %v6919
        %9177 = vmatprep.subr.bf16.mxu0 %v6924
        %9178 = vmatpush1.bf16.msra.mxu0 %v6923
        %9179 = vmatprep.subr.bf16.mxu0 %v6928
        %9180 = vmatpush1.bf16.msra.mxu0 %v6927
        %9181 = vmatprep.subr.bf16.mxu0 %v6932
        %9182 = vmatpush1.bf16.msra.mxu0 %v6931
        %9183 = vmatprep.subr.bf16.mxu0 %v6936
        %9184 = vmatpush1.bf16.msra.mxu0 %v6935
        %9185 = vmatprep.subr.bf16.mxu0 %v6940
        %9186 = vmatpush1.bf16.msra.mxu0 %v6939
        %9187 = vmatprep.subr.bf16.mxu0 %v6944
        %9188 = vmatpush1.bf16.msra.mxu0 %v6943
        %9189 = vmatprep.subr.bf16.mxu0 %v6948
        %9190 = vmatpush1.bf16.msra.mxu0 %v6947
        %9191 = vmatprep.subr.bf16.mxu0 %v6952
        %9192 = vmatpush1.bf16.msra.mxu0 %v6951
        %9193 = vmatprep.subr.bf16.mxu0 %v6956
        %9194 = vmatpush1.bf16.msra.mxu0 %v6955
        %9195 = vmatprep.subr.bf16.mxu0 %v6960
        %9196 = vmatpush1.bf16.msra.mxu0 %v6959
        %9197 = vmatprep.subr.bf16.mxu0 %v6964
        %9198 = vmatpush1.bf16.msra.mxu0 %v6963
        %9199 = vmatprep.subr.bf16.mxu0 %v6968
        %9200 = vmatpush1.bf16.msra.mxu0 %v6967
        %9201 = vmatprep.subr.bf16.mxu0 %v6972
        %9202 = vmatpush1.bf16.msra.mxu0 %v6971
        %9203 = vmatprep.mubr.bf16.mxu0 %v4747
        %9204 = vmatmul.mubr.bf16.gmra.mrb[0].mxu0 %v4746
        %v9205 = vpop.f32.mrb[0].mxu0
        %v9206 = vadd.f32 0.0, %v9205
        %v9207 = vpop.f32.mrb[0].mxu0
        %v9208 = vadd.f32 0.0, %v9207
        %v9209 = vpop.f32.mrb[0].mxu0
        %v9210 = vadd.f32 0.0, %v9209
        %v9211 = vpop.f32.mrb[0].mxu0
        %v9212 = vadd.f32 0.0, %v9211
        %9213 = vmatprep.mubr.bf16.mxu0 %v4750
        %9214 = vmatmul.mubr.bf16.gmra.mrb[0].mxu0 %v4749
        %v9215 = vpop.f32.mrb[0].mxu0
        %v9216 = vadd.f32 0.0, %v9215
        %v9217 = vpop.f32.mrb[0].mxu0
        %v9218 = vadd.f32 0.0, %v9217
        %v9219 = vpop.f32.mrb[0].mxu0
        %v9220 = vadd.f32 0.0, %v9219
        %v9221 = vpop.f32.mrb[0].mxu0
        %v9222 = vadd.f32 0.0, %v9221
        %9223 = vdwg.mxu0
        %9224 = vmatprep.subr.bf16.mxu0 %v6976
        %9225 = vmatpush1.bf16.msra.mxu0 %v6975
        %9226 = vmatprep.subr.bf16.mxu0 %v6980
        %9227 = vmatpush1.bf16.msra.mxu0 %v6979
        %9228 = vmatprep.subr.bf16.mxu0 %v6984
        %9229 = vmatpush1.bf16.msra.mxu0 %v6983
        %9230 = vmatprep.subr.bf16.mxu0 %v6988
        %9231 = vmatpush1.bf16.msra.mxu0 %v6987
        %9232 = vmatprep.subr.bf16.mxu0 %v6992
        %9233 = vmatpush1.bf16.msra.mxu0 %v6991
        %9234 = vmatprep.subr.bf16.mxu0 %v6996
        %9235 = vmatpush1.bf16.msra.mxu0 %v6995
        %9236 = vmatprep.subr.bf16.mxu0 %v7000
        %9237 = vmatpush1.bf16.msra.mxu0 %v6999
        %9238 = vmatprep.subr.bf16.mxu0 %v7004
        %9239 = vmatpush1.bf16.msra.mxu0 %v7003
        %9240 = vmatprep.subr.bf16.mxu0 0
        %9241 = vmatpush1.bf16.msra.mxu0 0
        %9242 = vmatprep.subr.bf16.mxu0 0
        %9243 = vmatpush1.bf16.msra.mxu0 0
        %9244 = vmatprep.subr.bf16.mxu0 0
        %9245 = vmatpush1.bf16.msra.mxu0 0
        %9246 = vmatprep.subr.bf16.mxu0 0
        %9247 = vmatpush1.bf16.msra.mxu0 0
        %9248 = vmatprep.subr.bf16.mxu0 0
        %9249 = vmatpush1.bf16.msra.mxu0 0
        %9250 = vmatprep.subr.bf16.mxu0 0
        %9251 = vmatpush1.bf16.msra.mxu0 0
        %9252 = vmatprep.subr.bf16.mxu0 0
        %9253 = vmatpush1.bf16.msra.mxu0 0
        %9254 = vmatprep.subr.bf16.mxu0 0
        %9255 = vmatpush1.bf16.msra.mxu0 0
        %9256 = vmatprep.mubr.bf16.mxu0 0
        %9257 = vmatmul.mubr.bf16.gmra.mrb[0].mxu0 %v4748
        %v9258 = vpop.f32.mrb[0].mxu0
        %v9259 = vadd.f32 %v9206, %v9258
        %v9260 = vpop.f32.mrb[0].mxu0
        %v9261 = vadd.f32 %v9208, %v9260
        %v9262 = vpop.f32.mrb[0].mxu0
        %v9263 = vadd.f32 %v9210, %v9262
        %v9264 = vpop.f32.mrb[0].mxu0
        %v9265 = vadd.f32 %v9212, %v9264
        %9266 = vmatprep.mubr.bf16.mxu0 0
        %9267 = vmatmul.mubr.bf16.gmra.mrb[0].mxu0 %v4751
        %v9268 = vpop.f32.mrb[0].mxu0
        %v9269 = vadd.f32 %v9216, %v9268
        %v9270 = vpop.f32.mrb[0].mxu0
        %v9271 = vadd.f32 %v9218, %v9270
        %v9272 = vpop.f32.mrb[0].mxu0
        %v9273 = vadd.f32 %v9220, %v9272
        %v9274 = vpop.f32.mrb[0].mxu0
        %v9275 = vadd.f32 %v9222, %v9274
        %9276 = vdwg.mxu0
        %9277 = vmatprep.subr.bf16.mxu0 %v6914
        %9278 = vmatpush1.bf16.msra.mxu0 %v6913
        %9279 = vmatprep.subr.bf16.mxu0 %v6918
        %9280 = vmatpush1.bf16.msra.mxu0 %v6917
        %9281 = vmatprep.subr.bf16.mxu0 %v6922
        %9282 = vmatpush1.bf16.msra.mxu0 %v6921
        %9283 = vmatprep.subr.bf16.mxu0 %v6926
        %9284 = vmatpush1.bf16.msra.mxu0 %v6925
        %9285 = vmatprep.subr.bf16.mxu0 %v6930
        %9286 = vmatpush1.bf16.msra.mxu0 %v6929
        %9287 = vmatprep.subr.bf16.mxu0 %v6934
        %9288 = vmatpush1.bf16.msra.mxu0 %v6933
        %9289 = vmatprep.subr.bf16.mxu0 %v6938
        %9290 = vmatpush1.bf16.msra.mxu0 %v6937
        %9291 = vmatprep.subr.bf16.mxu0 %v6942
        %9292 = vmatpush1.bf16.msra.mxu0 %v6941
        %9293 = vmatprep.subr.bf16.mxu0 %v6946
        %9294 = vmatpush1.bf16.msra.mxu0 %v6945
        %9295 = vmatprep.subr.bf16.mxu0 %v6950
        %9296 = vmatpush1.bf16.msra.mxu0 %v6949
        %9297 = vmatprep.subr.bf16.mxu0 %v6954
        %9298 = vmatpush1.bf16.msra.mxu0 %v6953
        %9299 = vmatprep.subr.bf16.mxu0 %v6958
        %9300 = vmatpush1.bf16.msra.mxu0 %v6957
        %9301 = vmatprep.subr.bf16.mxu0 %v6962
        %9302 = vmatpush1.bf16.msra.mxu0 %v6961
        %9303 = vmatprep.subr.bf16.mxu0 %v6966
        %9304 = vmatpush1.bf16.msra.mxu0 %v6965
        %9305 = vmatprep.subr.bf16.mxu0 %v6970
        %9306 = vmatpush1.bf16.msra.mxu0 %v6969
        %9307 = vmatprep.subr.bf16.mxu0 %v6974
        %9308 = vmatpush1.bf16.msra.mxu0 %v6973
        %9309 = vmatprep.mubr.bf16.mxu0 %v4747
        %9310 = vmatmul.mubr.bf16.gmra.mrb[0].mxu0 %v4746
        %v9311 = vpop.f32.mrb[0].mxu0
        %v9312 = vadd.f32 0.0, %v9311
        %v9313 = vpop.f32.mrb[0].mxu0
        %v9314 = vadd.f32 0.0, %v9313
        %v9315 = vpop.f32.mrb[0].mxu0
        %v9316 = vadd.f32 0.0, %v9315
        %v9317 = vpop.f32.mrb[0].mxu0
        %v9318 = vadd.f32 0.0, %v9317
        %9319 = vmatprep.mubr.bf16.mxu0 %v4750
        %9320 = vmatmul.mubr.bf16.gmra.mrb[0].mxu0 %v4749
        %v9321 = vpop.f32.mrb[0].mxu0
        %v9322 = vadd.f32 0.0, %v9321
        %v9323 = vpop.f32.mrb[0].mxu0
        %v9324 = vadd.f32 0.0, %v9323
        %v9325 = vpop.f32.mrb[0].mxu0
        %v9326 = vadd.f32 0.0, %v9325
        %v9327 = vpop.f32.mrb[0].mxu0
        %v9328 = vadd.f32 0.0, %v9327
        %9329 = vdwg.mxu0
        %9330 = vmatprep.subr.bf16.mxu0 %v6978
        %9331 = vmatpush1.bf16.msra.mxu0 %v6977
        %9332 = vmatprep.subr.bf16.mxu0 %v6982
        %9333 = vmatpush1.bf16.msra.mxu0 %v6981
        %9334 = vmatprep.subr.bf16.mxu0 %v6986
        %9335 = vmatpush1.bf16.msra.mxu0 %v6985
        %9336 = vmatprep.subr.bf16.mxu0 %v6990
        %9337 = vmatpush1.bf16.msra.mxu0 %v6989
        %9338 = vmatprep.subr.bf16.mxu0 %v6994
        %9339 = vmatpush1.bf16.msra.mxu0 %v6993
        %9340 = vmatprep.subr.bf16.mxu0 %v6998
        %9341 = vmatpush1.bf16.msra.mxu0 %v6997
        %9342 = vmatprep.subr.bf16.mxu0 %v7002
        %9343 = vmatpush1.bf16.msra.mxu0 %v7001
        %9344 = vmatprep.subr.bf16.mxu0 %v7006
        %9345 = vmatpush1.bf16.msra.mxu0 %v7005
        %9346 = vmatprep.subr.bf16.mxu0 0
        %9347 = vmatpush1.bf16.msra.mxu0 0
        %9348 = vmatprep.subr.bf16.mxu0 0
        %9349 = vmatpush1.bf16.msra.mxu0 0
        %9350 = vmatprep.subr.bf16.mxu0 0
        %9351 = vmatpush1.bf16.msra.mxu0 0
        %9352 = vmatprep.subr.bf16.mxu0 0
        %9353 = vmatpush1.bf16.msra.mxu0 0
        %9354 = vmatprep.subr.bf16.mxu0 0
        %9355 = vmatpush1.bf16.msra.mxu0 0
        %9356 = vmatprep.subr.bf16.mxu0 0
        %9357 = vmatpush1.bf16.msra.mxu0 0
        %9358 = vmatprep.subr.bf16.mxu0 0
        %9359 = vmatpush1.bf16.msra.mxu0 0
        %9360 = vmatprep.subr.bf16.mxu0 0
        %9361 = vmatpush1.bf16.msra.mxu0 0
        %9362 = vmatprep.mubr.bf16.mxu0 0
        %9363 = vmatmul.mubr.bf16.gmra.mrb[0].mxu0 %v4748
        %v9364 = vpop.f32.mrb[0].mxu0
        %v9365 = vadd.f32 %v9312, %v9364
        %v9366 = vpop.f32.mrb[0].mxu0
        %v9367 = vadd.f32 %v9314, %v9366
        %v9368 = vpop.f32.mrb[0].mxu0
        %v9369 = vadd.f32 %v9316, %v9368
        %v9370 = vpop.f32.mrb[0].mxu0
        %v9371 = vadd.f32 %v9318, %v9370
        %9372 = vmatprep.mubr.bf16.mxu0 0
        %9373 = vmatmul.mubr.bf16.gmra.mrb[0].mxu0 %v4751
        %v9374 = vpop.f32.mrb[0].mxu0
        %v9375 = vadd.f32 %v9322, %v9374
        %v9376 = vpop.f32.mrb[0].mxu0
        %v9377 = vadd.f32 %v9324, %v9376
        %v9378 = vpop.f32.mrb[0].mxu0
        %v9379 = vadd.f32 %v9326, %v9378
        %v9380 = vpop.f32.mrb[0].mxu0
        %v9381 = vadd.f32 %v9328, %v9380
        %9382 = vdwg.mxu0
        %v9383 = vadd.f32 %v9047, %v9259
        %v9384 = vadd.f32 %v9049, %v9261
        %v9385 = vadd.f32 %v9153, %v9365
        %v9386 = vadd.f32 %v9155, %v9367
        %v9387 = vadd.f32 %v9051, %v9263
        %v9388 = vadd.f32 %v9053, %v9265
        %v9389 = vadd.f32 %v9157, %v9369
        %v9390 = vadd.f32 %v9159, %v9371
        %v9391 = vadd.f32 %v9057, %v9269
        %v9392 = vadd.f32 %v9059, %v9271
        %v9393 = vadd.f32 %v9163, %v9375
        %v9394 = vadd.f32 %v9165, %v9377
        %v9395 = vadd.f32 %v9061, %v9273
        %v9396 = vadd.f32 %v9063, %v9275
        %v9397 = vadd.f32 %v9167, %v9379
        %v9398 = vadd.f32 %v9169, %v9381
        %9399 = vmatprep.subr.bf16.mxu0 %v7620
        %9400 = vmatpush1.bf16.msra.mxu0 %v7619
        %9401 = vmatprep.subr.bf16.mxu0 %v7624
        %9402 = vmatpush1.bf16.msra.mxu0 %v7623
        %9403 = vmatprep.subr.bf16.mxu0 %v7628
        %9404 = vmatpush1.bf16.msra.mxu0 %v7627
        %9405 = vmatprep.subr.bf16.mxu0 %v7632
        %9406 = vmatpush1.bf16.msra.mxu0 %v7631
        %9407 = vmatprep.subr.bf16.mxu0 %v7636
        %9408 = vmatpush1.bf16.msra.mxu0 %v7635
        %9409 = vmatprep.subr.bf16.mxu0 %v7640
        %9410 = vmatpush1.bf16.msra.mxu0 %v7639
        %9411 = vmatprep.subr.bf16.mxu0 %v7644
        %9412 = vmatpush1.bf16.msra.mxu0 %v7643
        %9413 = vmatprep.subr.bf16.mxu0 %v7648
        %9414 = vmatpush1.bf16.msra.mxu0 %v7647
        %9415 = vmatprep.subr.bf16.mxu0 %v7652
        %9416 = vmatpush1.bf16.msra.mxu0 %v7651
        %9417 = vmatprep.subr.bf16.mxu0 %v7656
        %9418 = vmatpush1.bf16.msra.mxu0 %v7655
        %9419 = vmatprep.subr.bf16.mxu0 %v7660
        %9420 = vmatpush1.bf16.msra.mxu0 %v7659
        %9421 = vmatprep.subr.bf16.mxu0 %v7664
        %9422 = vmatpush1.bf16.msra.mxu0 %v7663
        %9423 = vmatprep.subr.bf16.mxu0 %v7668
        %9424 = vmatpush1.bf16.msra.mxu0 %v7667
        %9425 = vmatprep.subr.bf16.mxu0 %v7672
        %9426 = vmatpush1.bf16.msra.mxu0 %v7671
        %9427 = vmatprep.subr.bf16.mxu0 %v7676
        %9428 = vmatpush1.bf16.msra.mxu0 %v7675
        %9429 = vmatprep.subr.bf16.mxu0 %v7680
        %9430 = vmatpush1.bf16.msra.mxu0 %v7679
        %9431 = vmatprep.mubr.bf16.mxu0 %v4729
        %9432 = vmatmul.mubr.bf16.gmra.mrb[0].mxu0 %v4728
        %v9433 = vpop.f32.mrb[0].mxu0
        %v9434 = vadd.f32 0.0, %v9433
        %v9435 = vpop.f32.mrb[0].mxu0
        %v9436 = vadd.f32 0.0, %v9435
        %v9437 = vpop.f32.mrb[0].mxu0
        %v9438 = vadd.f32 0.0, %v9437
        %v9439 = vpop.f32.mrb[0].mxu0
        %v9440 = vadd.f32 0.0, %v9439
        %9441 = vmatprep.mubr.bf16.mxu0 %v4738
        %9442 = vmatmul.mubr.bf16.gmra.mrb[0].mxu0 %v4737
        %v9443 = vpop.f32.mrb[0].mxu0
        %v9444 = vadd.f32 0.0, %v9443
        %v9445 = vpop.f32.mrb[0].mxu0
        %v9446 = vadd.f32 0.0, %v9445
        %v9447 = vpop.f32.mrb[0].mxu0
        %v9448 = vadd.f32 0.0, %v9447
        %v9449 = vpop.f32.mrb[0].mxu0
        %v9450 = vadd.f32 0.0, %v9449
        %9451 = vdwg.mxu0
        %9452 = vmatprep.subr.bf16.mxu0 %v7684
        %9453 = vmatpush1.bf16.msra.mxu0 %v7683
        %9454 = vmatprep.subr.bf16.mxu0 %v7688
        %9455 = vmatpush1.bf16.msra.mxu0 %v7687
        %9456 = vmatprep.subr.bf16.mxu0 %v7692
        %9457 = vmatpush1.bf16.msra.mxu0 %v7691
        %9458 = vmatprep.subr.bf16.mxu0 %v7696
        %9459 = vmatpush1.bf16.msra.mxu0 %v7695
        %9460 = vmatprep.subr.bf16.mxu0 %v7700
        %9461 = vmatpush1.bf16.msra.mxu0 %v7699
        %9462 = vmatprep.subr.bf16.mxu0 %v7704
        %9463 = vmatpush1.bf16.msra.mxu0 %v7703
        %9464 = vmatprep.subr.bf16.mxu0 %v7708
        %9465 = vmatpush1.bf16.msra.mxu0 %v7707
        %9466 = vmatprep.subr.bf16.mxu0 %v7712
        %9467 = vmatpush1.bf16.msra.mxu0 %v7711
        %9468 = vmatprep.subr.bf16.mxu0 0
        %9469 = vmatpush1.bf16.msra.mxu0 0
        %9470 = vmatprep.subr.bf16.mxu0 0
        %9471 = vmatpush1.bf16.msra.mxu0 0
        %9472 = vmatprep.subr.bf16.mxu0 0
        %9473 = vmatpush1.bf16.msra.mxu0 0
        %9474 = vmatprep.subr.bf16.mxu0 0
        %9475 = vmatpush1.bf16.msra.mxu0 0
        %9476 = vmatprep.subr.bf16.mxu0 0
        %9477 = vmatpush1.bf16.msra.mxu0 0
        %9478 = vmatprep.subr.bf16.mxu0 0
        %9479 = vmatpush1.bf16.msra.mxu0 0
        %9480 = vmatprep.subr.bf16.mxu0 0
        %9481 = vmatpush1.bf16.msra.mxu0 0
        %9482 = vmatprep.subr.bf16.mxu0 0
        %9483 = vmatpush1.bf16.msra.mxu0 0
        %9484 = vmatprep.mubr.bf16.mxu0 0
        %9485 = vmatmul.mubr.bf16.gmra.mrb[0].mxu0 %v4730
        %v9486 = vpop.f32.mrb[0].mxu0
        %v9487 = vadd.f32 %v9434, %v9486
        %v9488 = vpop.f32.mrb[0].mxu0
        %v9489 = vadd.f32 %v9436, %v9488
        %v9490 = vpop.f32.mrb[0].mxu0
        %v9491 = vadd.f32 %v9438, %v9490
        %v9492 = vpop.f32.mrb[0].mxu0
        %v9493 = vadd.f32 %v9440, %v9492
        %9494 = vmatprep.mubr.bf16.mxu0 0
        %9495 = vmatmul.mubr.bf16.gmra.mrb[0].mxu0 %v4739
        %v9496 = vpop.f32.mrb[0].mxu0
        %v9497 = vadd.f32 %v9444, %v9496
        %v9498 = vpop.f32.mrb[0].mxu0
        %v9499 = vadd.f32 %v9446, %v9498
        %v9500 = vpop.f32.mrb[0].mxu0
        %v9501 = vadd.f32 %v9448, %v9500
        %v9502 = vpop.f32.mrb[0].mxu0
        %v9503 = vadd.f32 %v9450, %v9502
        %9504 = vdwg.mxu0
        %9505 = vmatprep.subr.bf16.mxu0 %v7622
        %9506 = vmatpush1.bf16.msra.mxu0 %v7621
        %9507 = vmatprep.subr.bf16.mxu0 %v7626
        %9508 = vmatpush1.bf16.msra.mxu0 %v7625
        %9509 = vmatprep.subr.bf16.mxu0 %v7630
        %9510 = vmatpush1.bf16.msra.mxu0 %v7629
        %9511 = vmatprep.subr.bf16.mxu0 %v7634
        %9512 = vmatpush1.bf16.msra.mxu0 %v7633
        %9513 = vmatprep.subr.bf16.mxu0 %v7638
        %9514 = vmatpush1.bf16.msra.mxu0 %v7637
        %9515 = vmatprep.subr.bf16.mxu0 %v7642
        %9516 = vmatpush1.bf16.msra.mxu0 %v7641
        %9517 = vmatprep.subr.bf16.mxu0 %v7646
        %9518 = vmatpush1.bf16.msra.mxu0 %v7645
        %9519 = vmatprep.subr.bf16.mxu0 %v7650
        %9520 = vmatpush1.bf16.msra.mxu0 %v7649
        %9521 = vmatprep.subr.bf16.mxu0 %v7654
        %9522 = vmatpush1.bf16.msra.mxu0 %v7653
        %9523 = vmatprep.subr.bf16.mxu0 %v7658
        %9524 = vmatpush1.bf16.msra.mxu0 %v7657
        %9525 = vmatprep.subr.bf16.mxu0 %v7662
        %9526 = vmatpush1.bf16.msra.mxu0 %v7661
        %9527 = vmatprep.subr.bf16.mxu0 %v7666
        %9528 = vmatpush1.bf16.msra.mxu0 %v7665
        %9529 = vmatprep.subr.bf16.mxu0 %v7670
        %9530 = vmatpush1.bf16.msra.mxu0 %v7669
        %9531 = vmatprep.subr.bf16.mxu0 %v7674
        %9532 = vmatpush1.bf16.msra.mxu0 %v7673
        %9533 = vmatprep.subr.bf16.mxu0 %v7678
        %9534 = vmatpush1.bf16.msra.mxu0 %v7677
        %9535 = vmatprep.subr.bf16.mxu0 %v7682
        %9536 = vmatpush1.bf16.msra.mxu0 %v7681
        %9537 = vmatprep.mubr.bf16.mxu0 %v4729
        %9538 = vmatmul.mubr.bf16.gmra.mrb[0].mxu0 %v4728
        %v9539 = vpop.f32.mrb[0].mxu0
        %v9540 = vadd.f32 0.0, %v9539
        %v9541 = vpop.f32.mrb[0].mxu0
        %v9542 = vadd.f32 0.0, %v9541
        %v9543 = vpop.f32.mrb[0].mxu0
        %v9544 = vadd.f32 0.0, %v9543
        %v9545 = vpop.f32.mrb[0].mxu0
        %v9546 = vadd.f32 0.0, %v9545
        %9547 = vmatprep.mubr.bf16.mxu0 %v4738
        %9548 = vmatmul.mubr.bf16.gmra.mrb[0].mxu0 %v4737
        %v9549 = vpop.f32.mrb[0].mxu0
        %v9550 = vadd.f32 0.0, %v9549
        %v9551 = vpop.f32.mrb[0].mxu0
        %v9552 = vadd.f32 0.0, %v9551
        %v9553 = vpop.f32.mrb[0].mxu0
        %v9554 = vadd.f32 0.0, %v9553
        %v9555 = vpop.f32.mrb[0].mxu0
        %v9556 = vadd.f32 0.0, %v9555
        %9557 = vdwg.mxu0
        %9558 = vmatprep.subr.bf16.mxu0 %v7686
        %9559 = vmatpush1.bf16.msra.mxu0 %v7685
        %9560 = vmatprep.subr.bf16.mxu0 %v7690
        %9561 = vmatpush1.bf16.msra.mxu0 %v7689
        %9562 = vmatprep.subr.bf16.mxu0 %v7694
        %9563 = vmatpush1.bf16.msra.mxu0 %v7693
        %9564 = vmatprep.subr.bf16.mxu0 %v7698
        %9565 = vmatpush1.bf16.msra.mxu0 %v7697
        %9566 = vmatprep.subr.bf16.mxu0 %v7702
        %9567 = vmatpush1.bf16.msra.mxu0 %v7701
        %9568 = vmatprep.subr.bf16.mxu0 %v7706
        %9569 = vmatpush1.bf16.msra.mxu0 %v7705
        %9570 = vmatprep.subr.bf16.mxu0 %v7710
        %9571 = vmatpush1.bf16.msra.mxu0 %v7709
        %9572 = vmatprep.subr.bf16.mxu0 %v7714
        %9573 = vmatpush1.bf16.msra.mxu0 %v7713
        %9574 = vmatprep.subr.bf16.mxu0 0
        %9575 = vmatpush1.bf16.msra.mxu0 0
        %9576 = vmatprep.subr.bf16.mxu0 0
        %9577 = vmatpush1.bf16.msra.mxu0 0
        %9578 = vmatprep.subr.bf16.mxu0 0
        %9579 = vmatpush1.bf16.msra.mxu0 0
        %9580 = vmatprep.subr.bf16.mxu0 0
        %9581 = vmatpush1.bf16.msra.mxu0 0
        %9582 = vmatprep.subr.bf16.mxu0 0
        %9583 = vmatpush1.bf16.msra.mxu0 0
        %9584 = vmatprep.subr.bf16.mxu0 0
        %9585 = vmatpush1.bf16.msra.mxu0 0
        %9586 = vmatprep.subr.bf16.mxu0 0
        %9587 = vmatpush1.bf16.msra.mxu0 0
        %9588 = vmatprep.subr.bf16.mxu0 0
        %9589 = vmatpush1.bf16.msra.mxu0 0
        %9590 = vmatprep.mubr.bf16.mxu0 0
        %9591 = vmatmul.mubr.bf16.gmra.mrb[0].mxu0 %v4730
        %v9592 = vpop.f32.mrb[0].mxu0
        %v9593 = vadd.f32 %v9540, %v9592
        %v9594 = vpop.f32.mrb[0].mxu0
        %v9595 = vadd.f32 %v9542, %v9594
        %v9596 = vpop.f32.mrb[0].mxu0
        %v9597 = vadd.f32 %v9544, %v9596
        %v9598 = vpop.f32.mrb[0].mxu0
        %v9599 = vadd.f32 %v9546, %v9598
        %9600 = vmatprep.mubr.bf16.mxu0 0
        %9601 = vmatmul.mubr.bf16.gmra.mrb[0].mxu0 %v4739
        %v9602 = vpop.f32.mrb[0].mxu0
        %v9603 = vadd.f32 %v9550, %v9602
        %v9604 = vpop.f32.mrb[0].mxu0
        %v9605 = vadd.f32 %v9552, %v9604
        %v9606 = vpop.f32.mrb[0].mxu0
        %v9607 = vadd.f32 %v9554, %v9606
        %v9608 = vpop.f32.mrb[0].mxu0
        %v9609 = vadd.f32 %v9556, %v9608
        %9610 = vdwg.mxu0
        %v9611 = vadd.f32 %v9383, %v9487
        %v9612 = vadd.f32 %v9384, %v9489
        %v9613 = vadd.f32 %v9385, %v9593
        %v9614 = vadd.f32 %v9386, %v9595
        %v9615 = vadd.f32 %v9387, %v9491
        %v9616 = vadd.f32 %v9388, %v9493
        %v9617 = vadd.f32 %v9389, %v9597
        %v9618 = vadd.f32 %v9390, %v9599
        %v9619 = vadd.f32 %v9391, %v9497
        %v9620 = vadd.f32 %v9392, %v9499
        %v9621 = vadd.f32 %v9393, %v9603
        %v9622 = vadd.f32 %v9394, %v9605
        %v9623 = vadd.f32 %v9395, %v9501
        %v9624 = vadd.f32 %v9396, %v9503
        %v9625 = vadd.f32 %v9397, %v9607
        %v9626 = vadd.f32 %v9398, %v9609
        %9627 = vmatprep.subr.bf16.mxu0 %v8328
        %9628 = vmatpush1.bf16.msra.mxu0 %v8327
        %9629 = vmatprep.subr.bf16.mxu0 %v8332
        %9630 = vmatpush1.bf16.msra.mxu0 %v8331
        %9631 = vmatprep.subr.bf16.mxu0 %v8336
        %9632 = vmatpush1.bf16.msra.mxu0 %v8335
        %9633 = vmatprep.subr.bf16.mxu0 %v8340
        %9634 = vmatpush1.bf16.msra.mxu0 %v8339
        %9635 = vmatprep.subr.bf16.mxu0 %v8344
        %9636 = vmatpush1.bf16.msra.mxu0 %v8343
        %9637 = vmatprep.subr.bf16.mxu0 %v8348
        %9638 = vmatpush1.bf16.msra.mxu0 %v8347
        %9639 = vmatprep.subr.bf16.mxu0 %v8352
        %9640 = vmatpush1.bf16.msra.mxu0 %v8351
        %9641 = vmatprep.subr.bf16.mxu0 %v8356
        %9642 = vmatpush1.bf16.msra.mxu0 %v8355
        %9643 = vmatprep.subr.bf16.mxu0 %v8360
        %9644 = vmatpush1.bf16.msra.mxu0 %v8359
        %9645 = vmatprep.subr.bf16.mxu0 %v8364
        %9646 = vmatpush1.bf16.msra.mxu0 %v8363
        %9647 = vmatprep.subr.bf16.mxu0 %v8368
        %9648 = vmatpush1.bf16.msra.mxu0 %v8367
        %9649 = vmatprep.subr.bf16.mxu0 %v8372
        %9650 = vmatpush1.bf16.msra.mxu0 %v8371
        %9651 = vmatprep.subr.bf16.mxu0 %v8376
        %9652 = vmatpush1.bf16.msra.mxu0 %v8375
        %9653 = vmatprep.subr.bf16.mxu0 %v8380
        %9654 = vmatpush1.bf16.msra.mxu0 %v8379
        %9655 = vmatprep.subr.bf16.mxu0 %v8384
        %9656 = vmatpush1.bf16.msra.mxu0 %v8383
        %9657 = vmatprep.subr.bf16.mxu0 %v8388
        %9658 = vmatpush1.bf16.msra.mxu0 %v8387
        %9659 = vmatprep.mubr.bf16.mxu0 %v4744
        %9660 = vmatmul.mubr.bf16.gmra.mrb[0].mxu0 %v4743
        %v9661 = vpop.f32.mrb[0].mxu0
        %v9662 = vadd.f32 0.0, %v9661
        %v9663 = vpop.f32.mrb[0].mxu0
        %v9664 = vadd.f32 0.0, %v9663
        %v9665 = vpop.f32.mrb[0].mxu0
        %v9666 = vadd.f32 0.0, %v9665
        %v9667 = vpop.f32.mrb[0].mxu0
        %v9668 = vadd.f32 0.0, %v9667
        %9669 = vmatprep.mubr.bf16.mxu0 %v4753
        %9670 = vmatmul.mubr.bf16.gmra.mrb[0].mxu0 %v4752
        %v9671 = vpop.f32.mrb[0].mxu0
        %v9672 = vadd.f32 0.0, %v9671
        %v9673 = vpop.f32.mrb[0].mxu0
        %v9674 = vadd.f32 0.0, %v9673
        %v9675 = vpop.f32.mrb[0].mxu0
        %v9676 = vadd.f32 0.0, %v9675
        %v9677 = vpop.f32.mrb[0].mxu0
        %v9678 = vadd.f32 0.0, %v9677
        %9679 = vdwg.mxu0
        %9680 = vmatprep.subr.bf16.mxu0 %v8392
        %9681 = vmatpush1.bf16.msra.mxu0 %v8391
        %9682 = vmatprep.subr.bf16.mxu0 %v8396
        %9683 = vmatpush1.bf16.msra.mxu0 %v8395
        %9684 = vmatprep.subr.bf16.mxu0 %v8400
        %9685 = vmatpush1.bf16.msra.mxu0 %v8399
        %9686 = vmatprep.subr.bf16.mxu0 %v8404
        %9687 = vmatpush1.bf16.msra.mxu0 %v8403
        %9688 = vmatprep.subr.bf16.mxu0 %v8408
        %9689 = vmatpush1.bf16.msra.mxu0 %v8407
        %9690 = vmatprep.subr.bf16.mxu0 %v8412
        %9691 = vmatpush1.bf16.msra.mxu0 %v8411
        %9692 = vmatprep.subr.bf16.mxu0 %v8416
        %9693 = vmatpush1.bf16.msra.mxu0 %v8415
        %9694 = vmatprep.subr.bf16.mxu0 %v8420
        %9695 = vmatpush1.bf16.msra.mxu0 %v8419
        %9696 = vmatprep.subr.bf16.mxu0 0
        %9697 = vmatpush1.bf16.msra.mxu0 0
        %9698 = vmatprep.subr.bf16.mxu0 0
        %9699 = vmatpush1.bf16.msra.mxu0 0
        %9700 = vmatprep.subr.bf16.mxu0 0
        %9701 = vmatpush1.bf16.msra.mxu0 0
        %9702 = vmatprep.subr.bf16.mxu0 0
        %9703 = vmatpush1.bf16.msra.mxu0 0
        %9704 = vmatprep.subr.bf16.mxu0 0
        %9705 = vmatpush1.bf16.msra.mxu0 0
        %9706 = vmatprep.subr.bf16.mxu0 0
        %9707 = vmatpush1.bf16.msra.mxu0 0
        %9708 = vmatprep.subr.bf16.mxu0 0
        %9709 = vmatpush1.bf16.msra.mxu0 0
        %9710 = vmatprep.subr.bf16.mxu0 0
        %9711 = vmatpush1.bf16.msra.mxu0 0
        %9712 = vmatprep.mubr.bf16.mxu0 0
        %9713 = vmatmul.mubr.bf16.gmra.mrb[0].mxu0 %v4745
        %v9714 = vpop.f32.mrb[0].mxu0
        %v9715 = vadd.f32 %v9662, %v9714
        %v9716 = vpop.f32.mrb[0].mxu0
        %v9717 = vadd.f32 %v9664, %v9716
        %v9718 = vpop.f32.mrb[0].mxu0
        %v9719 = vadd.f32 %v9666, %v9718
        %v9720 = vpop.f32.mrb[0].mxu0
        %v9721 = vadd.f32 %v9668, %v9720
        %9722 = vmatprep.mubr.bf16.mxu0 0
        %9723 = vmatmul.mubr.bf16.gmra.mrb[0].mxu0 %v4754
        %v9724 = vpop.f32.mrb[0].mxu0
        %v9725 = vadd.f32 %v9672, %v9724
        %v9726 = vpop.f32.mrb[0].mxu0
        %v9727 = vadd.f32 %v9674, %v9726
        %v9728 = vpop.f32.mrb[0].mxu0
        %v9729 = vadd.f32 %v9676, %v9728
        %v9730 = vpop.f32.mrb[0].mxu0
        %v9731 = vadd.f32 %v9678, %v9730
        %9732 = vdwg.mxu0
        %9733 = vmatprep.subr.bf16.mxu0 %v8330
        %9734 = vmatpush1.bf16.msra.mxu0 %v8329
        %9735 = vmatprep.subr.bf16.mxu0 %v8334
        %9736 = vmatpush1.bf16.msra.mxu0 %v8333
        %9737 = vmatprep.subr.bf16.mxu0 %v8338
        %9738 = vmatpush1.bf16.msra.mxu0 %v8337
        %9739 = vmatprep.subr.bf16.mxu0 %v8342
        %9740 = vmatpush1.bf16.msra.mxu0 %v8341
        %9741 = vmatprep.subr.bf16.mxu0 %v8346
        %9742 = vmatpush1.bf16.msra.mxu0 %v8345
        %9743 = vmatprep.subr.bf16.mxu0 %v8350
        %9744 = vmatpush1.bf16.msra.mxu0 %v8349
        %9745 = vmatprep.subr.bf16.mxu0 %v8354
        %9746 = vmatpush1.bf16.msra.mxu0 %v8353
        %9747 = vmatprep.subr.bf16.mxu0 %v8358
        %9748 = vmatpush1.bf16.msra.mxu0 %v8357
        %9749 = vmatprep.subr.bf16.mxu0 %v8362
        %9750 = vmatpush1.bf16.msra.mxu0 %v8361
        %9751 = vmatprep.subr.bf16.mxu0 %v8366
        %9752 = vmatpush1.bf16.msra.mxu0 %v8365
        %9753 = vmatprep.subr.bf16.mxu0 %v8370
        %9754 = vmatpush1.bf16.msra.mxu0 %v8369
        %9755 = vmatprep.subr.bf16.mxu0 %v8374
        %9756 = vmatpush1.bf16.msra.mxu0 %v8373
        %9757 = vmatprep.subr.bf16.mxu0 %v8378
        %9758 = vmatpush1.bf16.msra.mxu0 %v8377
        %9759 = vmatprep.subr.bf16.mxu0 %v8382
        %9760 = vmatpush1.bf16.msra.mxu0 %v8381
        %9761 = vmatprep.subr.bf16.mxu0 %v8386
        %9762 = vmatpush1.bf16.msra.mxu0 %v8385
        %9763 = vmatprep.subr.bf16.mxu0 %v8390
        %9764 = vmatpush1.bf16.msra.mxu0 %v8389
        %9765 = vmatprep.mubr.bf16.mxu0 %v4744
        %9766 = vmatmul.mubr.bf16.gmra.mrb[0].mxu0 %v4743
        %v9767 = vpop.f32.mrb[0].mxu0
        %v9768 = vadd.f32 0.0, %v9767
        %v9769 = vpop.f32.mrb[0].mxu0
        %v9770 = vadd.f32 0.0, %v9769
        %v9771 = vpop.f32.mrb[0].mxu0
        %v9772 = vadd.f32 0.0, %v9771
        %v9773 = vpop.f32.mrb[0].mxu0
        %v9774 = vadd.f32 0.0, %v9773
        %9775 = vmatprep.mubr.bf16.mxu0 %v4753
        %9776 = vmatmul.mubr.bf16.gmra.mrb[0].mxu0 %v4752
        %v9777 = vpop.f32.mrb[0].mxu0
        %v9778 = vadd.f32 0.0, %v9777
        %v9779 = vpop.f32.mrb[0].mxu0
        %v9780 = vadd.f32 0.0, %v9779
        %v9781 = vpop.f32.mrb[0].mxu0
        %v9782 = vadd.f32 0.0, %v9781
        %v9783 = vpop.f32.mrb[0].mxu0
        %v9784 = vadd.f32 0.0, %v9783
        %9785 = vdwg.mxu0
        %9786 = vmatprep.subr.bf16.mxu0 %v8394
        %9787 = vmatpush1.bf16.msra.mxu0 %v8393
        %9788 = vmatprep.subr.bf16.mxu0 %v8398
        %9789 = vmatpush1.bf16.msra.mxu0 %v8397
        %9790 = vmatprep.subr.bf16.mxu0 %v8402
        %9791 = vmatpush1.bf16.msra.mxu0 %v8401
        %9792 = vmatprep.subr.bf16.mxu0 %v8406
        %9793 = vmatpush1.bf16.msra.mxu0 %v8405
        %9794 = vmatprep.subr.bf16.mxu0 %v8410
        %9795 = vmatpush1.bf16.msra.mxu0 %v8409
        %9796 = vmatprep.subr.bf16.mxu0 %v8414
        %9797 = vmatpush1.bf16.msra.mxu0 %v8413
        %9798 = vmatprep.subr.bf16.mxu0 %v8418
        %9799 = vmatpush1.bf16.msra.mxu0 %v8417
        %9800 = vmatprep.subr.bf16.mxu0 %v8422
        %9801 = vmatpush1.bf16.msra.mxu0 %v8421
        %9802 = vmatprep.subr.bf16.mxu0 0
        %9803 = vmatpush1.bf16.msra.mxu0 0
        %9804 = vmatprep.subr.bf16.mxu0 0
        %9805 = vmatpush1.bf16.msra.mxu0 0
        %9806 = vmatprep.subr.bf16.mxu0 0
        %9807 = vmatpush1.bf16.msra.mxu0 0
        %9808 = vmatprep.subr.bf16.mxu0 0
        %9809 = vmatpush1.bf16.msra.mxu0 0
        %9810 = vmatprep.subr.bf16.mxu0 0
        %9811 = vmatpush1.bf16.msra.mxu0 0
        %9812 = vmatprep.subr.bf16.mxu0 0
        %9813 = vmatpush1.bf16.msra.mxu0 0
        %9814 = vmatprep.subr.bf16.mxu0 0
        %9815 = vmatpush1.bf16.msra.mxu0 0
        %9816 = vmatprep.subr.bf16.mxu0 0
        %9817 = vmatpush1.bf16.msra.mxu0 0
        %9818 = vmatprep.mubr.bf16.mxu0 0
        %9819 = vmatmul.mubr.bf16.gmra.mrb[0].mxu0 %v4745
        %v9820 = vpop.f32.mrb[0].mxu0
        %v9821 = vadd.f32 %v9768, %v9820
        %v9822 = vpop.f32.mrb[0].mxu0
        %v9823 = vadd.f32 %v9770, %v9822
        %v9824 = vpop.f32.mrb[0].mxu0
        %v9825 = vadd.f32 %v9772, %v9824
        %v9826 = vpop.f32.mrb[0].mxu0
        %v9827 = vadd.f32 %v9774, %v9826
        %9828 = vmatprep.mubr.bf16.mxu0 0
        %9829 = vmatmul.mubr.bf16.gmra.mrb[0].mxu0 %v4754
        %v9830 = vpop.f32.mrb[0].mxu0
        %v9831 = vadd.f32 %v9778, %v9830
        %v9832 = vpop.f32.mrb[0].mxu0
        %v9833 = vadd.f32 %v9780, %v9832
        %v9834 = vpop.f32.mrb[0].mxu0
        %v9835 = vadd.f32 %v9782, %v9834
        %v9836 = vpop.f32.mrb[0].mxu0
        %v9837 = vadd.f32 %v9784, %v9836
        %9838 = vdwg.mxu0
        %v9839 = vadd.f32 %v9611, %v9715
        %v9840 = vadd.f32 %v9612, %v9717
        %v9841 = vadd.f32 %v9613, %v9821
        %v9842 = vadd.f32 %v9614, %v9823
        %v9843 = vadd.f32 %v9615, %v9719
        %v9844 = vadd.f32 %v9616, %v9721
        %v9845 = vadd.f32 %v9617, %v9825
        %v9846 = vadd.f32 %v9618, %v9827
        %v9847 = vadd.f32 %v9619, %v9725
        %v9848 = vadd.f32 %v9620, %v9727
        %v9849 = vadd.f32 %v9621, %v9831
        %v9850 = vadd.f32 %v9622, %v9833
        %v9851 = vadd.f32 %v9623, %v9729
        %v9852 = vadd.f32 %v9624, %v9731
        %v9853 = vadd.f32 %v9625, %v9835
        %v9854 = vadd.f32 %v9626, %v9837
        %v9855 = vmax.f32 %v8731, %v8733
        %v9856 = vmax.f32 %v8732, %v8734
        %v9857 = vmax.f32 %v8735, %v8737
        %v9858 = vmax.f32 %v8736, %v8738
        %v9859 = vmax.f32 %v8739, %v8741
        %v9860 = vmax.f32 %v8740, %v8742
        %v9861 = vmax.f32 %v8743, %v8745
        %v9862 = vmax.f32 %v8744, %v8746
        %v9863 = vmax.f32 %v9839, %v9841
        %v9864 = vmax.f32 %v9840, %v9842
        %v9865 = vmax.f32 %v9843, %v9845
        %v9866 = vmax.f32 %v9844, %v9846
        %v9867 = vmax.f32 %v9847, %v9849
        %v9868 = vmax.f32 %v9848, %v9850
        %v9869 = vmax.f32 %v9851, %v9853
        %v9870 = vmax.f32 %v9852, %v9854
        %v9871 = vmax.f32 %v9855, %v9863
        %v9872 = vmax.f32 %v9856, %v9864
        %v9873 = vmax.f32 %v9857, %v9865
        %v9874 = vmax.f32 %v9858, %v9866
        %v9875 = vmax.f32 %v9859, %v9867
        %v9876 = vmax.f32 %v9860, %v9868
        %v9877 = vmax.f32 %v9861, %v9869
        %v9878 = vmax.f32 %v9862, %v9870
        %v9879 = vld [vmem:[#allocation10] sm:$0x3]
        %v9881 = vlaneseq
        %v9882 = vshrl.u32 %v9881, 7
        %v9883 = vsub.s32 0, %v9882
        %v9884 = vrot.slane %v9879, %v9883
        %v9885 = vlaneseq
        %v9886 = vshrl.u32 %v9885, 7
        %v9887 = vsub.s32 1, %v9886
        %v9888 = vrot.slane %v9879, %v9887
        %v9891 = vadd.f32 %v9871, %v9884
        %v9892 = vadd.f32 %v9872, %v9888
        %v9893 = vadd.f32 %v9873, %v9884
        %v9894 = vadd.f32 %v9874, %v9888
        %v9895 = vadd.f32 %v9875, %v9884
        %v9896 = vadd.f32 %v9876, %v9888
        %v9897 = vadd.f32 %v9877, %v9884
        %v9898 = vadd.f32 %v9878, %v9888
        %v9899 = vmax.f32 %v9891, 0.0
        %v9900 = vmax.f32 %v9892, 0.0
        %v9901 = vmax.f32 %v9893, 0.0
        %v9902 = vmax.f32 %v9894, 0.0
        %v9903 = vmax.f32 %v9895, 0.0
        %v9904 = vmax.f32 %v9896, 0.0
        %v9905 = vmax.f32 %v9897, 0.0
        %v9906 = vmax.f32 %v9898, 0.0
        %v9907 = vpack.c.bf16 %v9899, %v9899
        %v9908 = vpack.c.bf16 %v9900, %v9900
        %v9909 = vld [vmem:[#allocation12] sm:$0xff]
        %v9910 = vld [vmem:[#allocation12 + $0x8] sm:$0xff]
        %v9911 = vld [vmem:[#allocation12 + $0x10] sm:$0xff]
        %v9912 = vld [vmem:[#allocation12 + $0x18] sm:$0xff]
        %v9913 = vld [vmem:[#allocation12 + $0x20] sm:$0xff]
        %v9914 = vld [vmem:[#allocation12 + $0x28] sm:$0xff]
        %v9915 = vld [vmem:[#allocation12 + $0x30] sm:$0xff]
        %v9916 = vld [vmem:[#allocation12 + $0x38] sm:$0xff]
        %v9917 = vld [vmem:[#allocation12 + $0x40] sm:$0xff]
        %v9918 = vld [vmem:[#allocation12 + $0x48] sm:$0xff]
        %v9919 = vld [vmem:[#allocation12 + $0x50] sm:$0xff]
        %v9920 = vld [vmem:[#allocation12 + $0x58] sm:$0xff]
        %v9921 = vld [vmem:[#allocation12 + $0x60] sm:$0xff]
        %v9922 = vld [vmem:[#allocation12 + $0x68] sm:$0xff]
        %v9923 = vld [vmem:[#allocation12 + $0x70] sm:$0xff]
        %v9924 = vld [vmem:[#allocation12 + $0x78] sm:$0xff]
        %v9925 = vld [vmem:[#allocation12 + $0x80] sm:$0xff]
        %v9926 = vld [vmem:[#allocation12 + $0x88] sm:$0xff]
        %v9927 = vld [vmem:[#allocation12 + $0x90] sm:$0xff]
        %v9928 = vld [vmem:[#allocation12 + $0x98] sm:$0xff]
        %v9929 = vld [vmem:[#allocation12 + $0xa0] sm:$0xff]
        %v9930 = vld [vmem:[#allocation12 + $0xa8] sm:$0xff]
        %v9931 = vld [vmem:[#allocation12 + $0xb0] sm:$0xff]
        %v9932 = vld [vmem:[#allocation12 + $0xb8] sm:$0xff]
        %v9933 = vld [vmem:[#allocation12 + $0xc0] sm:$0xff]
        %v9934 = vld [vmem:[#allocation12 + $0xc8] sm:$0xff]
        %v9935 = vld [vmem:[#allocation12 + $0xd0] sm:$0xff]
        %v9936 = vld [vmem:[#allocation12 + $0xd8] sm:$0xff]
        %v9937 = vld [vmem:[#allocation12 + $0xe0] sm:$0xff]
        %v9938 = vld [vmem:[#allocation12 + $0xe8] sm:$0xff]
        %v9939 = vld [vmem:[#allocation12 + $0xf0] sm:$0xff]
        %v9940 = vld [vmem:[#allocation12 + $0xf8] sm:$0xff]
        %v9941 = vpack.c.bf16 %v9901, %v9901
        %v9942 = vpack.c.bf16 %v9902, %v9902
        %s9943 = scalar_lea.vmem [#allocation12], 256
        %v9944 = vld [vmem:[%s9943] sm:$0xff]
        %v9945 = vld [vmem:[%s9943 + $0x8] sm:$0xff]
        %v9946 = vld [vmem:[%s9943 + $0x10] sm:$0xff]
        %v9947 = vld [vmem:[%s9943 + $0x18] sm:$0xff]
        %v9948 = vld [vmem:[%s9943 + $0x20] sm:$0xff]
        %v9949 = vld [vmem:[%s9943 + $0x28] sm:$0xff]
        %v9950 = vld [vmem:[%s9943 + $0x30] sm:$0xff]
        %v9951 = vld [vmem:[%s9943 + $0x38] sm:$0xff]
        %v9952 = vld [vmem:[%s9943 + $0x40] sm:$0xff]
        %v9953 = vld [vmem:[%s9943 + $0x48] sm:$0xff]
        %v9954 = vld [vmem:[%s9943 + $0x50] sm:$0xff]
        %v9955 = vld [vmem:[%s9943 + $0x58] sm:$0xff]
        %v9956 = vld [vmem:[%s9943 + $0x60] sm:$0xff]
        %v9957 = vld [vmem:[%s9943 + $0x68] sm:$0xff]
        %v9958 = vld [vmem:[%s9943 + $0x70] sm:$0xff]
        %v9959 = vld [vmem:[%s9943 + $0x78] sm:$0xff]
        %v9960 = vld [vmem:[%s9943 + $0x80] sm:$0xff]
        %v9961 = vld [vmem:[%s9943 + $0x88] sm:$0xff]
        %v9962 = vld [vmem:[%s9943 + $0x90] sm:$0xff]
        %v9963 = vld [vmem:[%s9943 + $0x98] sm:$0xff]
        %v9964 = vld [vmem:[%s9943 + $0xa0] sm:$0xff]
        %v9965 = vld [vmem:[%s9943 + $0xa8] sm:$0xff]
        %v9966 = vld [vmem:[%s9943 + $0xb0] sm:$0xff]
        %v9967 = vld [vmem:[%s9943 + $0xb8] sm:$0xff]
        %v9968 = vld [vmem:[%s9943 + $0xc0] sm:$0xff]
        %v9969 = vld [vmem:[%s9943 + $0xc8] sm:$0xff]
        %v9970 = vld [vmem:[%s9943 + $0xd0] sm:$0xff]
        %v9971 = vld [vmem:[%s9943 + $0xd8] sm:$0xff]
        %v9972 = vld [vmem:[%s9943 + $0xe0] sm:$0xff]
        %v9973 = vld [vmem:[%s9943 + $0xe8] sm:$0xff]
        %v9974 = vld [vmem:[%s9943 + $0xf0] sm:$0xff]
        %v9975 = vld [vmem:[%s9943 + $0xf8] sm:$0xff]
        %v10008 = vunpack.c.l.b16 %v9944
        %v10009 = vunpack.c.h.b16 %v9944
        %v10010 = vunpack.c.l.b16 %v9945
        %v10011 = vunpack.c.h.b16 %v9945
        %v10012 = vunpack.c.l.b16 %v9946
        %v10013 = vunpack.c.h.b16 %v9946
        %v10014 = vunpack.c.l.b16 %v9947
        %v10015 = vunpack.c.h.b16 %v9947
        %v10016 = vunpack.c.l.b16 %v9948
        %v10017 = vunpack.c.h.b16 %v9948
        %v10018 = vunpack.c.l.b16 %v9949
        %v10019 = vunpack.c.h.b16 %v9949
        %v10020 = vunpack.c.l.b16 %v9950
        %v10021 = vunpack.c.h.b16 %v9950
        %v10022 = vunpack.c.l.b16 %v9951
        %v10023 = vunpack.c.h.b16 %v9951
        %v10024 = vunpack.c.l.b16 %v9952
        %v10025 = vunpack.c.h.b16 %v9952
        %v10026 = vunpack.c.l.b16 %v9953
        %v10027 = vunpack.c.h.b16 %v9953
        %v10028 = vunpack.c.l.b16 %v9954
        %v10029 = vunpack.c.h.b16 %v9954
        %v10030 = vunpack.c.l.b16 %v9955
        %v10031 = vunpack.c.h.b16 %v9955
        %v10032 = vunpack.c.l.b16 %v9956
        %v10033 = vunpack.c.h.b16 %v9956
        %v10034 = vunpack.c.l.b16 %v9957
        %v10035 = vunpack.c.h.b16 %v9957
        %v10036 = vunpack.c.l.b16 %v9958
        %v10037 = vunpack.c.h.b16 %v9958
        %v10038 = vunpack.c.l.b16 %v9959
        %v10039 = vunpack.c.h.b16 %v9959
        %v10040 = vunpack.c.l.b16 %v9960
        %v10041 = vunpack.c.h.b16 %v9960
        %v10042 = vunpack.c.l.b16 %v9961
        %v10043 = vunpack.c.h.b16 %v9961
        %v10044 = vunpack.c.l.b16 %v9962
        %v10045 = vunpack.c.h.b16 %v9962
        %v10046 = vunpack.c.l.b16 %v9963
        %v10047 = vunpack.c.h.b16 %v9963
        %v10048 = vunpack.c.l.b16 %v9964
        %v10049 = vunpack.c.h.b16 %v9964
        %v10050 = vunpack.c.l.b16 %v9965
        %v10051 = vunpack.c.h.b16 %v9965
        %v10052 = vunpack.c.l.b16 %v9966
        %v10053 = vunpack.c.h.b16 %v9966
        %v10054 = vunpack.c.l.b16 %v9967
        %v10055 = vunpack.c.h.b16 %v9967
        %v10056 = vunpack.c.l.b16 %v9968
        %v10057 = vunpack.c.h.b16 %v9968
        %v10058 = vunpack.c.l.b16 %v9969
        %v10059 = vunpack.c.h.b16 %v9969
        %v10060 = vunpack.c.l.b16 %v9970
        %v10061 = vunpack.c.h.b16 %v9970
        %v10062 = vunpack.c.l.b16 %v9971
        %v10063 = vunpack.c.h.b16 %v9971
        %v10064 = vunpack.c.l.b16 %v9972
        %v10065 = vunpack.c.h.b16 %v9972
        %v10066 = vunpack.c.l.b16 %v9973
        %v10067 = vunpack.c.h.b16 %v9973
        %v10068 = vunpack.c.l.b16 %v9974
        %v10069 = vunpack.c.h.b16 %v9974
        %v10070 = vunpack.c.l.b16 %v9975
        %v10071 = vunpack.c.h.b16 %v9975
        %v10072 = vpack.c.b16 %v10010, %v10008
        %v10073 = vpack.c.b16 %v10011, %v10009
        %v10074 = vpack.c.b16 %v10014, %v10012
        %v10075 = vpack.c.b16 %v10015, %v10013
        %v10076 = vpack.c.b16 %v10018, %v10016
        %v10077 = vpack.c.b16 %v10019, %v10017
        %v10078 = vpack.c.b16 %v10022, %v10020
        %v10079 = vpack.c.b16 %v10023, %v10021
        %v10080 = vpack.c.b16 %v10026, %v10024
        %v10081 = vpack.c.b16 %v10027, %v10025
        %v10082 = vpack.c.b16 %v10030, %v10028
        %v10083 = vpack.c.b16 %v10031, %v10029
        %v10084 = vpack.c.b16 %v10034, %v10032
        %v10085 = vpack.c.b16 %v10035, %v10033
        %v10086 = vpack.c.b16 %v10038, %v10036
        %v10087 = vpack.c.b16 %v10039, %v10037
        %v10088 = vpack.c.b16 %v10042, %v10040
        %v10089 = vpack.c.b16 %v10043, %v10041
        %v10090 = vpack.c.b16 %v10046, %v10044
        %v10091 = vpack.c.b16 %v10047, %v10045
        %v10092 = vpack.c.b16 %v10050, %v10048
        %v10093 = vpack.c.b16 %v10051, %v10049
        %v10094 = vpack.c.b16 %v10054, %v10052
        %v10095 = vpack.c.b16 %v10055, %v10053
        %v10096 = vpack.c.b16 %v10058, %v10056
        %v10097 = vpack.c.b16 %v10059, %v10057
        %v10098 = vpack.c.b16 %v10062, %v10060
        %v10099 = vpack.c.b16 %v10063, %v10061
        %v10100 = vpack.c.b16 %v10066, %v10064
        %v10101 = vpack.c.b16 %v10067, %v10065
        %v10102 = vpack.c.b16 %v10070, %v10068
        %v10103 = vpack.c.b16 %v10071, %v10069
        %10136 = vmatprep.subr.bf16.mxu0 %v10073
        %10137 = vmatpush1.bf16.msra.mxu0 %v10072
        %10138 = vmatprep.subr.bf16.mxu0 %v10075
        %10139 = vmatpush1.bf16.msra.mxu0 %v10074
        %10140 = vmatprep.subr.bf16.mxu0 %v10077
        %10141 = vmatpush1.bf16.msra.mxu0 %v10076
        %10142 = vmatprep.subr.bf16.mxu0 %v10079
        %10143 = vmatpush1.bf16.msra.mxu0 %v10078
        %10144 = vmatprep.subr.bf16.mxu0 %v10081
        %10145 = vmatpush1.bf16.msra.mxu0 %v10080
        %10146 = vmatprep.subr.bf16.mxu0 %v10083
        %10147 = vmatpush1.bf16.msra.mxu0 %v10082
        %10148 = vmatprep.subr.bf16.mxu0 %v10085
        %10149 = vmatpush1.bf16.msra.mxu0 %v10084
        %10150 = vmatprep.subr.bf16.mxu0 %v10087
        %10151 = vmatpush1.bf16.msra.mxu0 %v10086
        %10152 = vmatprep.subr.bf16.mxu0 %v10089
        %10153 = vmatpush1.bf16.msra.mxu0 %v10088
        %10154 = vmatprep.subr.bf16.mxu0 %v10091
        %10155 = vmatpush1.bf16.msra.mxu0 %v10090
        %10156 = vmatprep.subr.bf16.mxu0 %v10093
        %10157 = vmatpush1.bf16.msra.mxu0 %v10092
        %10158 = vmatprep.subr.bf16.mxu0 %v10095
        %10159 = vmatpush1.bf16.msra.mxu0 %v10094
        %10160 = vmatprep.subr.bf16.mxu0 %v10097
        %10161 = vmatpush1.bf16.msra.mxu0 %v10096
        %10162 = vmatprep.subr.bf16.mxu0 %v10099
        %10163 = vmatpush1.bf16.msra.mxu0 %v10098
        %10164 = vmatprep.subr.bf16.mxu0 %v10101
        %10165 = vmatpush1.bf16.msra.mxu0 %v10100
        %10166 = vmatprep.subr.bf16.mxu0 %v10103
        %10167 = vmatpush1.bf16.msra.mxu0 %v10102
        %10168 = vmatprep.mubr.bf16.mxu0 %v9942
        %10169 = vmatmul.mubr.bf16.gmra.mrb[0].mxu0 %v9941
        %v10170 = vpop.f32.mrb[0].mxu0
        %v10171 = vadd.f32 0.0, %v10170
        %v10172 = vpop.f32.mrb[0].mxu0
        %v10173 = vadd.f32 0.0, %v10172
        %v10174 = vpop.f32.mrb[0].mxu0
        %v10175 = vpop.f32.mrb[0].mxu0
        %10176 = vdwg.mxu0
        %v10209 = vunpack.c.l.b16 %v9909
        %v10210 = vunpack.c.h.b16 %v9909
        %v10211 = vunpack.c.l.b16 %v9910
        %v10212 = vunpack.c.h.b16 %v9910
        %v10213 = vunpack.c.l.b16 %v9911
        %v10214 = vunpack.c.h.b16 %v9911
        %v10215 = vunpack.c.l.b16 %v9912
        %v10216 = vunpack.c.h.b16 %v9912
        %v10217 = vunpack.c.l.b16 %v9913
        %v10218 = vunpack.c.h.b16 %v9913
        %v10219 = vunpack.c.l.b16 %v9914
        %v10220 = vunpack.c.h.b16 %v9914
        %v10221 = vunpack.c.l.b16 %v9915
        %v10222 = vunpack.c.h.b16 %v9915
        %v10223 = vunpack.c.l.b16 %v9916
        %v10224 = vunpack.c.h.b16 %v9916
        %v10225 = vunpack.c.l.b16 %v9917
        %v10226 = vunpack.c.h.b16 %v9917
        %v10227 = vunpack.c.l.b16 %v9918
        %v10228 = vunpack.c.h.b16 %v9918
        %v10229 = vunpack.c.l.b16 %v9919
        %v10230 = vunpack.c.h.b16 %v9919
        %v10231 = vunpack.c.l.b16 %v9920
        %v10232 = vunpack.c.h.b16 %v9920
        %v10233 = vunpack.c.l.b16 %v9921
        %v10234 = vunpack.c.h.b16 %v9921
        %v10235 = vunpack.c.l.b16 %v9922
        %v10236 = vunpack.c.h.b16 %v9922
        %v10237 = vunpack.c.l.b16 %v9923
        %v10238 = vunpack.c.h.b16 %v9923
        %v10239 = vunpack.c.l.b16 %v9924
        %v10240 = vunpack.c.h.b16 %v9924
        %v10241 = vunpack.c.l.b16 %v9925
        %v10242 = vunpack.c.h.b16 %v9925
        %v10243 = vunpack.c.l.b16 %v9926
        %v10244 = vunpack.c.h.b16 %v9926
        %v10245 = vunpack.c.l.b16 %v9927
        %v10246 = vunpack.c.h.b16 %v9927
        %v10247 = vunpack.c.l.b16 %v9928
        %v10248 = vunpack.c.h.b16 %v9928
        %v10249 = vunpack.c.l.b16 %v9929
        %v10250 = vunpack.c.h.b16 %v9929
        %v10251 = vunpack.c.l.b16 %v9930
        %v10252 = vunpack.c.h.b16 %v9930
        %v10253 = vunpack.c.l.b16 %v9931
        %v10254 = vunpack.c.h.b16 %v9931
        %v10255 = vunpack.c.l.b16 %v9932
        %v10256 = vunpack.c.h.b16 %v9932
        %v10257 = vunpack.c.l.b16 %v9933
        %v10258 = vunpack.c.h.b16 %v9933
        %v10259 = vunpack.c.l.b16 %v9934
        %v10260 = vunpack.c.h.b16 %v9934
        %v10261 = vunpack.c.l.b16 %v9935
        %v10262 = vunpack.c.h.b16 %v9935
        %v10263 = vunpack.c.l.b16 %v9936
        %v10264 = vunpack.c.h.b16 %v9936
        %v10265 = vunpack.c.l.b16 %v9937
        %v10266 = vunpack.c.h.b16 %v9937
        %v10267 = vunpack.c.l.b16 %v9938
        %v10268 = vunpack.c.h.b16 %v9938
        %v10269 = vunpack.c.l.b16 %v9939
        %v10270 = vunpack.c.h.b16 %v9939
        %v10271 = vunpack.c.l.b16 %v9940
        %v10272 = vunpack.c.h.b16 %v9940
        %v10273 = vpack.c.b16 %v10211, %v10209
        %v10274 = vpack.c.b16 %v10212, %v10210
        %v10275 = vpack.c.b16 %v10215, %v10213
        %v10276 = vpack.c.b16 %v10216, %v10214
        %v10277 = vpack.c.b16 %v10219, %v10217
        %v10278 = vpack.c.b16 %v10220, %v10218
        %v10279 = vpack.c.b16 %v10223, %v10221
        %v10280 = vpack.c.b16 %v10224, %v10222
        %v10281 = vpack.c.b16 %v10227, %v10225
        %v10282 = vpack.c.b16 %v10228, %v10226
        %v10283 = vpack.c.b16 %v10231, %v10229
        %v10284 = vpack.c.b16 %v10232, %v10230
        %v10285 = vpack.c.b16 %v10235, %v10233
        %v10286 = vpack.c.b16 %v10236, %v10234
        %v10287 = vpack.c.b16 %v10239, %v10237
        %v10288 = vpack.c.b16 %v10240, %v10238
        %v10289 = vpack.c.b16 %v10243, %v10241
        %v10290 = vpack.c.b16 %v10244, %v10242
        %v10291 = vpack.c.b16 %v10247, %v10245
        %v10292 = vpack.c.b16 %v10248, %v10246
        %v10293 = vpack.c.b16 %v10251, %v10249
        %v10294 = vpack.c.b16 %v10252, %v10250
        %v10295 = vpack.c.b16 %v10255, %v10253
        %v10296 = vpack.c.b16 %v10256, %v10254
        %v10297 = vpack.c.b16 %v10259, %v10257
        %v10298 = vpack.c.b16 %v10260, %v10258
        %v10299 = vpack.c.b16 %v10263, %v10261
        %v10300 = vpack.c.b16 %v10264, %v10262
        %v10301 = vpack.c.b16 %v10267, %v10265
        %v10302 = vpack.c.b16 %v10268, %v10266
        %v10303 = vpack.c.b16 %v10271, %v10269
        %v10304 = vpack.c.b16 %v10272, %v10270
        %10337 = vmatprep.subr.bf16.mxu0 %v10274
        %10338 = vmatpush1.bf16.msra.mxu0 %v10273
        %10339 = vmatprep.subr.bf16.mxu0 %v10276
        %10340 = vmatpush1.bf16.msra.mxu0 %v10275
        %10341 = vmatprep.subr.bf16.mxu0 %v10278
        %10342 = vmatpush1.bf16.msra.mxu0 %v10277
        %10343 = vmatprep.subr.bf16.mxu0 %v10280
        %10344 = vmatpush1.bf16.msra.mxu0 %v10279
        %10345 = vmatprep.subr.bf16.mxu0 %v10282
        %10346 = vmatpush1.bf16.msra.mxu0 %v10281
        %10347 = vmatprep.subr.bf16.mxu0 %v10284
        %10348 = vmatpush1.bf16.msra.mxu0 %v10283
        %10349 = vmatprep.subr.bf16.mxu0 %v10286
        %10350 = vmatpush1.bf16.msra.mxu0 %v10285
        %10351 = vmatprep.subr.bf16.mxu0 %v10288
        %10352 = vmatpush1.bf16.msra.mxu0 %v10287
        %10353 = vmatprep.subr.bf16.mxu0 %v10290
        %10354 = vmatpush1.bf16.msra.mxu0 %v10289
        %10355 = vmatprep.subr.bf16.mxu0 %v10292
        %10356 = vmatpush1.bf16.msra.mxu0 %v10291
        %10357 = vmatprep.subr.bf16.mxu0 %v10294
        %10358 = vmatpush1.bf16.msra.mxu0 %v10293
        %10359 = vmatprep.subr.bf16.mxu0 %v10296
        %10360 = vmatpush1.bf16.msra.mxu0 %v10295
        %10361 = vmatprep.subr.bf16.mxu0 %v10298
        %10362 = vmatpush1.bf16.msra.mxu0 %v10297
        %10363 = vmatprep.subr.bf16.mxu0 %v10300
        %10364 = vmatpush1.bf16.msra.mxu0 %v10299
        %10365 = vmatprep.subr.bf16.mxu0 %v10302
        %10366 = vmatpush1.bf16.msra.mxu0 %v10301
        %10367 = vmatprep.subr.bf16.mxu0 %v10304
        %10368 = vmatpush1.bf16.msra.mxu0 %v10303
        %10369 = vmatprep.mubr.bf16.mxu0 %v9908
        %10370 = vmatmul.mubr.bf16.gmra.mrb[0].mxu0 %v9907
        %v10371 = vpop.f32.mrb[0].mxu0
        %v10372 = vadd.f32 %v10171, %v10371
        %v10373 = vpop.f32.mrb[0].mxu0
        %v10374 = vadd.f32 %v10173, %v10373
        %v10375 = vpop.f32.mrb[0].mxu0
        %v10376 = vpop.f32.mrb[0].mxu0
        %10377 = vdwg.mxu0
        %v10378 = vpack.c.bf16 %v9903, %v9903
        %v10379 = vpack.c.bf16 %v9904, %v9904
        %s10380 = scalar_lea.vmem [#allocation12], 512
        %v10381 = vld [vmem:[%s10380] sm:$0xff]
        %v10382 = vld [vmem:[%s10380 + $0x8] sm:$0xff]
        %v10383 = vld [vmem:[%s10380 + $0x10] sm:$0xff]
        %v10384 = vld [vmem:[%s10380 + $0x18] sm:$0xff]
        %v10385 = vld [vmem:[%s10380 + $0x20] sm:$0xff]
        %v10386 = vld [vmem:[%s10380 + $0x28] sm:$0xff]
        %v10387 = vld [vmem:[%s10380 + $0x30] sm:$0xff]
        %v10388 = vld [vmem:[%s10380 + $0x38] sm:$0xff]
        %v10389 = vld [vmem:[%s10380 + $0x40] sm:$0xff]
        %v10390 = vld [vmem:[%s10380 + $0x48] sm:$0xff]
        %v10391 = vld [vmem:[%s10380 + $0x50] sm:$0xff]
        %v10392 = vld [vmem:[%s10380 + $0x58] sm:$0xff]
        %v10393 = vld [vmem:[%s10380 + $0x60] sm:$0xff]
        %v10394 = vld [vmem:[%s10380 + $0x68] sm:$0xff]
        %v10395 = vld [vmem:[%s10380 + $0x70] sm:$0xff]
        %v10396 = vld [vmem:[%s10380 + $0x78] sm:$0xff]
        %v10397 = vld [vmem:[%s10380 + $0x80] sm:$0xff]
        %v10398 = vld [vmem:[%s10380 + $0x88] sm:$0xff]
        %v10399 = vld [vmem:[%s10380 + $0x90] sm:$0xff]
        %v10400 = vld [vmem:[%s10380 + $0x98] sm:$0xff]
        %v10401 = vld [vmem:[%s10380 + $0xa0] sm:$0xff]
        %v10402 = vld [vmem:[%s10380 + $0xa8] sm:$0xff]
        %v10403 = vld [vmem:[%s10380 + $0xb0] sm:$0xff]
        %v10404 = vld [vmem:[%s10380 + $0xb8] sm:$0xff]
        %v10405 = vld [vmem:[%s10380 + $0xc0] sm:$0xff]
        %v10406 = vld [vmem:[%s10380 + $0xc8] sm:$0xff]
        %v10407 = vld [vmem:[%s10380 + $0xd0] sm:$0xff]
        %v10408 = vld [vmem:[%s10380 + $0xd8] sm:$0xff]
        %v10409 = vld [vmem:[%s10380 + $0xe0] sm:$0xff]
        %v10410 = vld [vmem:[%s10380 + $0xe8] sm:$0xff]
        %v10411 = vld [vmem:[%s10380 + $0xf0] sm:$0xff]
        %v10412 = vld [vmem:[%s10380 + $0xf8] sm:$0xff]
        %v10445 = vunpack.c.l.b16 %v10381
        %v10446 = vunpack.c.h.b16 %v10381
        %v10447 = vunpack.c.l.b16 %v10382
        %v10448 = vunpack.c.h.b16 %v10382
        %v10449 = vunpack.c.l.b16 %v10383
        %v10450 = vunpack.c.h.b16 %v10383
        %v10451 = vunpack.c.l.b16 %v10384
        %v10452 = vunpack.c.h.b16 %v10384
        %v10453 = vunpack.c.l.b16 %v10385
        %v10454 = vunpack.c.h.b16 %v10385
        %v10455 = vunpack.c.l.b16 %v10386
        %v10456 = vunpack.c.h.b16 %v10386
        %v10457 = vunpack.c.l.b16 %v10387
        %v10458 = vunpack.c.h.b16 %v10387
        %v10459 = vunpack.c.l.b16 %v10388
        %v10460 = vunpack.c.h.b16 %v10388
        %v10461 = vunpack.c.l.b16 %v10389
        %v10462 = vunpack.c.h.b16 %v10389
        %v10463 = vunpack.c.l.b16 %v10390
        %v10464 = vunpack.c.h.b16 %v10390
        %v10465 = vunpack.c.l.b16 %v10391
        %v10466 = vunpack.c.h.b16 %v10391
        %v10467 = vunpack.c.l.b16 %v10392
        %v10468 = vunpack.c.h.b16 %v10392
        %v10469 = vunpack.c.l.b16 %v10393
        %v10470 = vunpack.c.h.b16 %v10393
        %v10471 = vunpack.c.l.b16 %v10394
        %v10472 = vunpack.c.h.b16 %v10394
        %v10473 = vunpack.c.l.b16 %v10395
        %v10474 = vunpack.c.h.b16 %v10395
        %v10475 = vunpack.c.l.b16 %v10396
        %v10476 = vunpack.c.h.b16 %v10396
        %v10477 = vunpack.c.l.b16 %v10397
        %v10478 = vunpack.c.h.b16 %v10397
        %v10479 = vunpack.c.l.b16 %v10398
        %v10480 = vunpack.c.h.b16 %v10398
        %v10481 = vunpack.c.l.b16 %v10399
        %v10482 = vunpack.c.h.b16 %v10399
        %v10483 = vunpack.c.l.b16 %v10400
        %v10484 = vunpack.c.h.b16 %v10400
        %v10485 = vunpack.c.l.b16 %v10401
        %v10486 = vunpack.c.h.b16 %v10401
        %v10487 = vunpack.c.l.b16 %v10402
        %v10488 = vunpack.c.h.b16 %v10402
        %v10489 = vunpack.c.l.b16 %v10403
        %v10490 = vunpack.c.h.b16 %v10403
        %v10491 = vunpack.c.l.b16 %v10404
        %v10492 = vunpack.c.h.b16 %v10404
        %v10493 = vunpack.c.l.b16 %v10405
        %v10494 = vunpack.c.h.b16 %v10405
        %v10495 = vunpack.c.l.b16 %v10406
        %v10496 = vunpack.c.h.b16 %v10406
        %v10497 = vunpack.c.l.b16 %v10407
        %v10498 = vunpack.c.h.b16 %v10407
        %v10499 = vunpack.c.l.b16 %v10408
        %v10500 = vunpack.c.h.b16 %v10408
        %v10501 = vunpack.c.l.b16 %v10409
        %v10502 = vunpack.c.h.b16 %v10409
        %v10503 = vunpack.c.l.b16 %v10410
        %v10504 = vunpack.c.h.b16 %v10410
        %v10505 = vunpack.c.l.b16 %v10411
        %v10506 = vunpack.c.h.b16 %v10411
        %v10507 = vunpack.c.l.b16 %v10412
        %v10508 = vunpack.c.h.b16 %v10412
        %v10509 = vpack.c.b16 %v10447, %v10445
        %v10510 = vpack.c.b16 %v10448, %v10446
        %v10511 = vpack.c.b16 %v10451, %v10449
        %v10512 = vpack.c.b16 %v10452, %v10450
        %v10513 = vpack.c.b16 %v10455, %v10453
        %v10514 = vpack.c.b16 %v10456, %v10454
        %v10515 = vpack.c.b16 %v10459, %v10457
        %v10516 = vpack.c.b16 %v10460, %v10458
        %v10517 = vpack.c.b16 %v10463, %v10461
        %v10518 = vpack.c.b16 %v10464, %v10462
        %v10519 = vpack.c.b16 %v10467, %v10465
        %v10520 = vpack.c.b16 %v10468, %v10466
        %v10521 = vpack.c.b16 %v10471, %v10469
        %v10522 = vpack.c.b16 %v10472, %v10470
        %v10523 = vpack.c.b16 %v10475, %v10473
        %v10524 = vpack.c.b16 %v10476, %v10474
        %v10525 = vpack.c.b16 %v10479, %v10477
        %v10526 = vpack.c.b16 %v10480, %v10478
        %v10527 = vpack.c.b16 %v10483, %v10481
        %v10528 = vpack.c.b16 %v10484, %v10482
        %v10529 = vpack.c.b16 %v10487, %v10485
        %v10530 = vpack.c.b16 %v10488, %v10486
        %v10531 = vpack.c.b16 %v10491, %v10489
        %v10532 = vpack.c.b16 %v10492, %v10490
        %v10533 = vpack.c.b16 %v10495, %v10493
        %v10534 = vpack.c.b16 %v10496, %v10494
        %v10535 = vpack.c.b16 %v10499, %v10497
        %v10536 = vpack.c.b16 %v10500, %v10498
        %v10537 = vpack.c.b16 %v10503, %v10501
        %v10538 = vpack.c.b16 %v10504, %v10502
        %v10539 = vpack.c.b16 %v10507, %v10505
        %v10540 = vpack.c.b16 %v10508, %v10506
        %10573 = vmatprep.subr.bf16.mxu0 %v10510
        %10574 = vmatpush1.bf16.msra.mxu0 %v10509
        %10575 = vmatprep.subr.bf16.mxu0 %v10512
        %10576 = vmatpush1.bf16.msra.mxu0 %v10511
        %10577 = vmatprep.subr.bf16.mxu0 %v10514
        %10578 = vmatpush1.bf16.msra.mxu0 %v10513
        %10579 = vmatprep.subr.bf16.mxu0 %v10516
        %10580 = vmatpush1.bf16.msra.mxu0 %v10515
        %10581 = vmatprep.subr.bf16.mxu0 %v10518
        %10582 = vmatpush1.bf16.msra.mxu0 %v10517
        %10583 = vmatprep.subr.bf16.mxu0 %v10520
        %10584 = vmatpush1.bf16.msra.mxu0 %v10519
        %10585 = vmatprep.subr.bf16.mxu0 %v10522
        %10586 = vmatpush1.bf16.msra.mxu0 %v10521
        %10587 = vmatprep.subr.bf16.mxu0 %v10524
        %10588 = vmatpush1.bf16.msra.mxu0 %v10523
        %10589 = vmatprep.subr.bf16.mxu0 %v10526
        %10590 = vmatpush1.bf16.msra.mxu0 %v10525
        %10591 = vmatprep.subr.bf16.mxu0 %v10528
        %10592 = vmatpush1.bf16.msra.mxu0 %v10527
        %10593 = vmatprep.subr.bf16.mxu0 %v10530
        %10594 = vmatpush1.bf16.msra.mxu0 %v10529
        %10595 = vmatprep.subr.bf16.mxu0 %v10532
        %10596 = vmatpush1.bf16.msra.mxu0 %v10531
        %10597 = vmatprep.subr.bf16.mxu0 %v10534
        %10598 = vmatpush1.bf16.msra.mxu0 %v10533
        %10599 = vmatprep.subr.bf16.mxu0 %v10536
        %10600 = vmatpush1.bf16.msra.mxu0 %v10535
        %10601 = vmatprep.subr.bf16.mxu0 %v10538
        %10602 = vmatpush1.bf16.msra.mxu0 %v10537
        %10603 = vmatprep.subr.bf16.mxu0 %v10540
        %10604 = vmatpush1.bf16.msra.mxu0 %v10539
        %10605 = vmatprep.mubr.bf16.mxu0 %v10379
        %10606 = vmatmul.mubr.bf16.gmra.mrb[0].mxu0 %v10378
        %v10607 = vpop.f32.mrb[0].mxu0
        %v10608 = vadd.f32 0.0, %v10607
        %v10609 = vpop.f32.mrb[0].mxu0
        %v10610 = vadd.f32 0.0, %v10609
        %v10611 = vpop.f32.mrb[0].mxu0
        %v10612 = vpop.f32.mrb[0].mxu0
        %10613 = vdwg.mxu0
        %v10614 = vadd.f32 %v10372, %v10608
        %v10615 = vadd.f32 %v10374, %v10610
        %v10616 = vpack.c.bf16 %v9905, %v9905
        %v10617 = vpack.c.bf16 %v9906, %v9906
        %s10618 = scalar_lea.vmem [#allocation12], 768
        %v10619 = vld [vmem:[%s10618] sm:$0xff]
        %v10620 = vld [vmem:[%s10618 + $0x8] sm:$0xff]
        %v10621 = vld [vmem:[%s10618 + $0x10] sm:$0xff]
        %v10622 = vld [vmem:[%s10618 + $0x18] sm:$0xff]
        %v10623 = vld [vmem:[%s10618 + $0x20] sm:$0xff]
        %v10624 = vld [vmem:[%s10618 + $0x28] sm:$0xff]
        %v10625 = vld [vmem:[%s10618 + $0x30] sm:$0xff]
        %v10626 = vld [vmem:[%s10618 + $0x38] sm:$0xff]
        %v10627 = vld [vmem:[%s10618 + $0x40] sm:$0xff]
        %v10628 = vld [vmem:[%s10618 + $0x48] sm:$0xff]
        %v10629 = vld [vmem:[%s10618 + $0x50] sm:$0xff]
        %v10630 = vld [vmem:[%s10618 + $0x58] sm:$0xff]
        %v10631 = vld [vmem:[%s10618 + $0x60] sm:$0xff]
        %v10632 = vld [vmem:[%s10618 + $0x68] sm:$0xff]
        %v10633 = vld [vmem:[%s10618 + $0x70] sm:$0xff]
        %v10634 = vld [vmem:[%s10618 + $0x78] sm:$0xff]
        %v10635 = vld [vmem:[%s10618 + $0x80] sm:$0xff]
        %v10636 = vld [vmem:[%s10618 + $0x88] sm:$0xff]
        %v10637 = vld [vmem:[%s10618 + $0x90] sm:$0xff]
        %v10638 = vld [vmem:[%s10618 + $0x98] sm:$0xff]
        %v10639 = vld [vmem:[%s10618 + $0xa0] sm:$0xff]
        %v10640 = vld [vmem:[%s10618 + $0xa8] sm:$0xff]
        %v10641 = vld [vmem:[%s10618 + $0xb0] sm:$0xff]
        %v10642 = vld [vmem:[%s10618 + $0xb8] sm:$0xff]
        %v10643 = vld [vmem:[%s10618 + $0xc0] sm:$0xff]
        %v10644 = vld [vmem:[%s10618 + $0xc8] sm:$0xff]
        %v10645 = vld [vmem:[%s10618 + $0xd0] sm:$0xff]
        %v10646 = vld [vmem:[%s10618 + $0xd8] sm:$0xff]
        %v10647 = vld [vmem:[%s10618 + $0xe0] sm:$0xff]
        %v10648 = vld [vmem:[%s10618 + $0xe8] sm:$0xff]
        %v10649 = vld [vmem:[%s10618 + $0xf0] sm:$0xff]
        %v10650 = vld [vmem:[%s10618 + $0xf8] sm:$0xff]
        %v10683 = vunpack.c.l.b16 %v10619
        %v10684 = vunpack.c.h.b16 %v10619
        %v10685 = vunpack.c.l.b16 %v10620
        %v10686 = vunpack.c.h.b16 %v10620
        %v10687 = vunpack.c.l.b16 %v10621
        %v10688 = vunpack.c.h.b16 %v10621
        %v10689 = vunpack.c.l.b16 %v10622
        %v10690 = vunpack.c.h.b16 %v10622
        %v10691 = vunpack.c.l.b16 %v10623
        %v10692 = vunpack.c.h.b16 %v10623
        %v10693 = vunpack.c.l.b16 %v10624
        %v10694 = vunpack.c.h.b16 %v10624
        %v10695 = vunpack.c.l.b16 %v10625
        %v10696 = vunpack.c.h.b16 %v10625
        %v10697 = vunpack.c.l.b16 %v10626
        %v10698 = vunpack.c.h.b16 %v10626
        %v10699 = vunpack.c.l.b16 %v10627
        %v10700 = vunpack.c.h.b16 %v10627
        %v10701 = vunpack.c.l.b16 %v10628
        %v10702 = vunpack.c.h.b16 %v10628
        %v10703 = vunpack.c.l.b16 %v10629
        %v10704 = vunpack.c.h.b16 %v10629
        %v10705 = vunpack.c.l.b16 %v10630
        %v10706 = vunpack.c.h.b16 %v10630
        %v10707 = vunpack.c.l.b16 %v10631
        %v10708 = vunpack.c.h.b16 %v10631
        %v10709 = vunpack.c.l.b16 %v10632
        %v10710 = vunpack.c.h.b16 %v10632
        %v10711 = vunpack.c.l.b16 %v10633
        %v10712 = vunpack.c.h.b16 %v10633
        %v10713 = vunpack.c.l.b16 %v10634
        %v10714 = vunpack.c.h.b16 %v10634
        %v10715 = vunpack.c.l.b16 %v10635
        %v10716 = vunpack.c.h.b16 %v10635
        %v10717 = vunpack.c.l.b16 %v10636
        %v10718 = vunpack.c.h.b16 %v10636
        %v10719 = vunpack.c.l.b16 %v10637
        %v10720 = vunpack.c.h.b16 %v10637
        %v10721 = vunpack.c.l.b16 %v10638
        %v10722 = vunpack.c.h.b16 %v10638
        %v10723 = vunpack.c.l.b16 %v10639
        %v10724 = vunpack.c.h.b16 %v10639
        %v10725 = vunpack.c.l.b16 %v10640
        %v10726 = vunpack.c.h.b16 %v10640
        %v10727 = vunpack.c.l.b16 %v10641
        %v10728 = vunpack.c.h.b16 %v10641
        %v10729 = vunpack.c.l.b16 %v10642
        %v10730 = vunpack.c.h.b16 %v10642
        %v10731 = vunpack.c.l.b16 %v10643
        %v10732 = vunpack.c.h.b16 %v10643
        %v10733 = vunpack.c.l.b16 %v10644
        %v10734 = vunpack.c.h.b16 %v10644
        %v10735 = vunpack.c.l.b16 %v10645
        %v10736 = vunpack.c.h.b16 %v10645
        %v10737 = vunpack.c.l.b16 %v10646
        %v10738 = vunpack.c.h.b16 %v10646
        %v10739 = vunpack.c.l.b16 %v10647
        %v10740 = vunpack.c.h.b16 %v10647
        %v10741 = vunpack.c.l.b16 %v10648
        %v10742 = vunpack.c.h.b16 %v10648
        %v10743 = vunpack.c.l.b16 %v10649
        %v10744 = vunpack.c.h.b16 %v10649
        %v10745 = vunpack.c.l.b16 %v10650
        %v10746 = vunpack.c.h.b16 %v10650
        %v10747 = vpack.c.b16 %v10685, %v10683
        %v10748 = vpack.c.b16 %v10686, %v10684
        %v10749 = vpack.c.b16 %v10689, %v10687
        %v10750 = vpack.c.b16 %v10690, %v10688
        %v10751 = vpack.c.b16 %v10693, %v10691
        %v10752 = vpack.c.b16 %v10694, %v10692
        %v10753 = vpack.c.b16 %v10697, %v10695
        %v10754 = vpack.c.b16 %v10698, %v10696
        %v10755 = vpack.c.b16 %v10701, %v10699
        %v10756 = vpack.c.b16 %v10702, %v10700
        %v10757 = vpack.c.b16 %v10705, %v10703
        %v10758 = vpack.c.b16 %v10706, %v10704
        %v10759 = vpack.c.b16 %v10709, %v10707
        %v10760 = vpack.c.b16 %v10710, %v10708
        %v10761 = vpack.c.b16 %v10713, %v10711
        %v10762 = vpack.c.b16 %v10714, %v10712
        %v10763 = vpack.c.b16 %v10717, %v10715
        %v10764 = vpack.c.b16 %v10718, %v10716
        %v10765 = vpack.c.b16 %v10721, %v10719
        %v10766 = vpack.c.b16 %v10722, %v10720
        %v10767 = vpack.c.b16 %v10725, %v10723
        %v10768 = vpack.c.b16 %v10726, %v10724
        %v10769 = vpack.c.b16 %v10729, %v10727
        %v10770 = vpack.c.b16 %v10730, %v10728
        %v10771 = vpack.c.b16 %v10733, %v10731
        %v10772 = vpack.c.b16 %v10734, %v10732
        %v10773 = vpack.c.b16 %v10737, %v10735
        %v10774 = vpack.c.b16 %v10738, %v10736
        %v10775 = vpack.c.b16 %v10741, %v10739
        %v10776 = vpack.c.b16 %v10742, %v10740
        %v10777 = vpack.c.b16 %v10745, %v10743
        %v10778 = vpack.c.b16 %v10746, %v10744
        %10811 = vmatprep.subr.bf16.mxu0 %v10748
        %10812 = vmatpush1.bf16.msra.mxu0 %v10747
        %10813 = vmatprep.subr.bf16.mxu0 %v10750
        %10814 = vmatpush1.bf16.msra.mxu0 %v10749
        %10815 = vmatprep.subr.bf16.mxu0 %v10752
        %10816 = vmatpush1.bf16.msra.mxu0 %v10751
        %10817 = vmatprep.subr.bf16.mxu0 %v10754
        %10818 = vmatpush1.bf16.msra.mxu0 %v10753
        %10819 = vmatprep.subr.bf16.mxu0 %v10756
        %10820 = vmatpush1.bf16.msra.mxu0 %v10755
        %10821 = vmatprep.subr.bf16.mxu0 %v10758
        %10822 = vmatpush1.bf16.msra.mxu0 %v10757
        %10823 = vmatprep.subr.bf16.mxu0 %v10760
        %10824 = vmatpush1.bf16.msra.mxu0 %v10759
        %10825 = vmatprep.subr.bf16.mxu0 %v10762
        %10826 = vmatpush1.bf16.msra.mxu0 %v10761
        %10827 = vmatprep.subr.bf16.mxu0 %v10764
        %10828 = vmatpush1.bf16.msra.mxu0 %v10763
        %10829 = vmatprep.subr.bf16.mxu0 %v10766
        %10830 = vmatpush1.bf16.msra.mxu0 %v10765
        %10831 = vmatprep.subr.bf16.mxu0 %v10768
        %10832 = vmatpush1.bf16.msra.mxu0 %v10767
        %10833 = vmatprep.subr.bf16.mxu0 %v10770
        %10834 = vmatpush1.bf16.msra.mxu0 %v10769
        %10835 = vmatprep.subr.bf16.mxu0 %v10772
        %10836 = vmatpush1.bf16.msra.mxu0 %v10771
        %10837 = vmatprep.subr.bf16.mxu0 %v10774
        %10838 = vmatpush1.bf16.msra.mxu0 %v10773
        %10839 = vmatprep.subr.bf16.mxu0 %v10776
        %10840 = vmatpush1.bf16.msra.mxu0 %v10775
        %10841 = vmatprep.subr.bf16.mxu0 %v10778
        %10842 = vmatpush1.bf16.msra.mxu0 %v10777
        %10843 = vmatprep.mubr.bf16.mxu0 %v10617
        %10844 = vmatmul.mubr.bf16.gmra.mrb[0].mxu0 %v10616
        %v10845 = vpop.f32.mrb[0].mxu0
        %v10846 = vadd.f32 0.0, %v10845
        %v10847 = vpop.f32.mrb[0].mxu0
        %v10848 = vadd.f32 0.0, %v10847
        %v10849 = vpop.f32.mrb[0].mxu0
        %v10850 = vpop.f32.mrb[0].mxu0
        %10851 = vdwg.mxu0
        %v10852 = vadd.f32 %v10614, %v10846
        %v10853 = vadd.f32 %v10615, %v10848
        %v10854 = vld [vmem:[#allocation13] sm:$0x3]
        %v10856 = vlaneseq
        %v10857 = vshrl.u32 %v10856, 7
        %v10858 = vsub.s32 0, %v10857
        %v10859 = vrot.slane %v10854, %v10858
        %v10860 = vlaneseq
        %v10861 = vshrl.u32 %v10860, 7
        %v10862 = vsub.s32 1, %v10861
        %v10863 = vrot.slane %v10854, %v10862
        %v10866 = vadd.f32 %v10852, %v10859
        %v10867 = vadd.f32 %v10853, %v10863
        %v10868 = vmax.f32 %v10866, 0.0
        %v10869 = vmax.f32 %v10867, 0.0
        %v10870 = vpack.c.bf16 %v10868, %v10868
        %v10871 = vpack.c.bf16 %v10869, %v10869
        %v10872 = vld [vmem:[#allocation15] sm:$0xf]
        %v10873 = vld [vmem:[#allocation15 + $0x4] sm:$0xf]
        %v10874 = vld [vmem:[#allocation15 + $0x8] sm:$0xf]
        %v10875 = vld [vmem:[#allocation15 + $0xc] sm:$0xf]
        %v10876 = vld [vmem:[#allocation15 + $0x10] sm:$0xf]
        %v10877 = vld [vmem:[#allocation15 + $0x14] sm:$0xf]
        %v10878 = vld [vmem:[#allocation15 + $0x18] sm:$0xf]
        %v10879 = vld [vmem:[#allocation15 + $0x1c] sm:$0xf]
        %v10880 = vld [vmem:[#allocation15 + $0x20] sm:$0xf]
        %v10881 = vld [vmem:[#allocation15 + $0x24] sm:$0xf]
        %v10882 = vld [vmem:[#allocation15 + $0x28] sm:$0xf]
        %v10883 = vld [vmem:[#allocation15 + $0x2c] sm:$0xf]
        %v10884 = vld [vmem:[#allocation15 + $0x30] sm:$0xf]
        %v10885 = vld [vmem:[#allocation15 + $0x34] sm:$0xf]
        %v10886 = vld [vmem:[#allocation15 + $0x38] sm:$0xf]
        %v10887 = vld [vmem:[#allocation15 + $0x3c] sm:$0xf]
        %v10888 = vld [vmem:[#allocation15 + $0x40] sm:$0xf]
        %v10889 = vld [vmem:[#allocation15 + $0x44] sm:$0xf]
        %v10890 = vld [vmem:[#allocation15 + $0x48] sm:$0xf]
        %v10891 = vld [vmem:[#allocation15 + $0x4c] sm:$0xf]
        %v10892 = vld [vmem:[#allocation15 + $0x50] sm:$0xf]
        %v10893 = vld [vmem:[#allocation15 + $0x54] sm:$0xf]
        %v10894 = vld [vmem:[#allocation15 + $0x58] sm:$0xf]
        %v10895 = vld [vmem:[#allocation15 + $0x5c] sm:$0xf]
        %v10896 = vld [vmem:[#allocation15 + $0x60] sm:$0xf]
        %v10897 = vld [vmem:[#allocation15 + $0x64] sm:$0xf]
        %v10898 = vld [vmem:[#allocation15 + $0x68] sm:$0xf]
        %v10899 = vld [vmem:[#allocation15 + $0x6c] sm:$0xf]
        %v10900 = vld [vmem:[#allocation15 + $0x70] sm:$0xf]
        %v10901 = vld [vmem:[#allocation15 + $0x74] sm:$0xf]
        %v10902 = vld [vmem:[#allocation15 + $0x78] sm:$0xf]
        %v10903 = vld [vmem:[#allocation15 + $0x7c] sm:$0xf]
        %v10904 = vld [vmem:[#allocation16] sm:$0x1]
        %v10906 = vlaneseq
        %v10907 = vshrl.u32 %v10906, 7
        %v10908 = vsub.s32 0, %v10907
        %v10909 = vrot.slane %v10904, %v10908
        %v10943 = vunpack.c.l.b16 %v10872
        %v10944 = vunpack.c.l.b16 %v10873
        %v10945 = vunpack.c.l.b16 %v10874
        %v10946 = vunpack.c.l.b16 %v10875
        %v10947 = vunpack.c.l.b16 %v10876
        %v10948 = vunpack.c.l.b16 %v10877
        %v10949 = vunpack.c.l.b16 %v10878
        %v10950 = vunpack.c.l.b16 %v10879
        %v10951 = vunpack.c.l.b16 %v10880
        %v10952 = vunpack.c.l.b16 %v10881
        %v10953 = vunpack.c.l.b16 %v10882
        %v10954 = vunpack.c.l.b16 %v10883
        %v10955 = vunpack.c.l.b16 %v10884
        %v10956 = vunpack.c.l.b16 %v10885
        %v10957 = vunpack.c.l.b16 %v10886
        %v10958 = vunpack.c.l.b16 %v10887
        %v10959 = vunpack.c.l.b16 %v10888
        %v10960 = vunpack.c.l.b16 %v10889
        %v10961 = vunpack.c.l.b16 %v10890
        %v10962 = vunpack.c.l.b16 %v10891
        %v10963 = vunpack.c.l.b16 %v10892
        %v10964 = vunpack.c.l.b16 %v10893
        %v10965 = vunpack.c.l.b16 %v10894
        %v10966 = vunpack.c.l.b16 %v10895
        %v10967 = vunpack.c.l.b16 %v10896
        %v10968 = vunpack.c.l.b16 %v10897
        %v10969 = vunpack.c.l.b16 %v10898
        %v10970 = vunpack.c.l.b16 %v10899
        %v10971 = vunpack.c.l.b16 %v10900
        %v10972 = vunpack.c.l.b16 %v10901
        %v10973 = vunpack.c.l.b16 %v10902
        %v10974 = vunpack.c.l.b16 %v10903
        %v10975 = vpack.c.b16 %v10944, %v10943
        %v10976 = vpack.c.b16 %v10946, %v10945
        %v10977 = vpack.c.b16 %v10948, %v10947
        %v10978 = vpack.c.b16 %v10950, %v10949
        %v10979 = vpack.c.b16 %v10952, %v10951
        %v10980 = vpack.c.b16 %v10954, %v10953
        %v10981 = vpack.c.b16 %v10956, %v10955
        %v10982 = vpack.c.b16 %v10958, %v10957
        %v10983 = vpack.c.b16 %v10960, %v10959
        %v10984 = vpack.c.b16 %v10962, %v10961
        %v10985 = vpack.c.b16 %v10964, %v10963
        %v10986 = vpack.c.b16 %v10966, %v10965
        %v10987 = vpack.c.b16 %v10968, %v10967
        %v10988 = vpack.c.b16 %v10970, %v10969
        %v10989 = vpack.c.b16 %v10972, %v10971
        %v10990 = vpack.c.b16 %v10974, %v10973
        %11007 = vmatprep.subr.bf16.mxu0 0
        %11008 = vmatpush1.bf16.msra.mxu0 %v10975
        %11009 = vmatprep.subr.bf16.mxu0 0
        %11010 = vmatpush1.bf16.msra.mxu0 %v10976
        %11011 = vmatprep.subr.bf16.mxu0 0
        %11012 = vmatpush1.bf16.msra.mxu0 %v10977
        %11013 = vmatprep.subr.bf16.mxu0 0
        %11014 = vmatpush1.bf16.msra.mxu0 %v10978
        %11015 = vmatprep.subr.bf16.mxu0 0
        %11016 = vmatpush1.bf16.msra.mxu0 %v10979
        %11017 = vmatprep.subr.bf16.mxu0 0
        %11018 = vmatpush1.bf16.msra.mxu0 %v10980
        %11019 = vmatprep.subr.bf16.mxu0 0
        %11020 = vmatpush1.bf16.msra.mxu0 %v10981
        %11021 = vmatprep.subr.bf16.mxu0 0
        %11022 = vmatpush1.bf16.msra.mxu0 %v10982
        %11023 = vmatprep.subr.bf16.mxu0 0
        %11024 = vmatpush1.bf16.msra.mxu0 %v10983
        %11025 = vmatprep.subr.bf16.mxu0 0
        %11026 = vmatpush1.bf16.msra.mxu0 %v10984
        %11027 = vmatprep.subr.bf16.mxu0 0
        %11028 = vmatpush1.bf16.msra.mxu0 %v10985
        %11029 = vmatprep.subr.bf16.mxu0 0
        %11030 = vmatpush1.bf16.msra.mxu0 %v10986
        %11031 = vmatprep.subr.bf16.mxu0 0
        %11032 = vmatpush1.bf16.msra.mxu0 %v10987
        %11033 = vmatprep.subr.bf16.mxu0 0
        %11034 = vmatpush1.bf16.msra.mxu0 %v10988
        %11035 = vmatprep.subr.bf16.mxu0 0
        %11036 = vmatpush1.bf16.msra.mxu0 %v10989
        %11037 = vmatprep.subr.bf16.mxu0 0
        %11038 = vmatpush1.bf16.msra.mxu0 %v10990
        %11039 = vmatprep.mubr.bf16.mxu0 %v10871
        %11040 = vmatmul.mubr.bf16.gmra.mrb[0].mxu0 %v10870
        %v11041 = vpop.f32.mrb[0].mxu0
        %v11042 = vadd.f32 %v10909, %v11041
        %v11043 = vpop.f32.mrb[0].mxu0
        %v11044 = vpop.f32.mrb[0].mxu0
        %v11045 = vpop.f32.mrb[0].mxu0
        %11046 = vdwg.mxu0
        %11047 = vst [vmem:[%s658] sm:$0xff] %v11042
        %s11048 = sand.u32 %s257, 1
        %s11049 = scalar_lea.sflag [#allocation6], %s11048
        %s11050 = sand.u32 %s257, 1
        %s11051 = smul.addr %s11050, 8
        %s11052 = scalar_lea.vmem [#allocation18], %s11051
        // Predicated region
        $region169: #{cnn_forward.1} parent=127 // pred_check
          %p11053 = pneg %p267
        $region170: #{cnn_forward.1} parent=127 // pred_check_branch
          %11055 = sbr.rel (%p11053) target = $region172
        $region171: #{cnn_forward.1} parent=127 // pred_region
          %s11057 = ssub.s32 128, 128
          %11058 = vsyncadd %s11049, %s11057
          %s11059 = smul.addr %s29, 128
          %s11060 = scalar_lea.hbm %s10, %s11059
          %s11062 = sshll.u32 %s11052, 4
          %s11063 = int_to_ptr.vmem [resolvable:$true] %s11062
          %11065 = dma.vmem_to_hbm [thread:$0]  %s11063, 128, %s11060, %s11049
        $region172: #{cnn_forward.1} parent=127 // pred_fallthru
          _
      $region128: #{cnn_forward.1} parent=5 // pred_fallthru
        _
      %p11066 = scmp.le.s32.totalorder 2, %s24
      // Predicated region
      $region173: #{cnn_forward.1} parent=5 // pred_check
        %p11067 = pneg %p11066
      $region174: #{cnn_forward.1} parent=5 // pred_check_branch
        %11069 = sbr.rel (%p11067) target = $region176
      $region175: #{cnn_forward.1} parent=5 // pred_region
        %s11070 = ssub.s32 %s24, 2
        // Predicated region
        $region177: #{cnn_forward.1} parent=175 // pred_check
          %p11071 = pneg %p273
        $region178: #{cnn_forward.1} parent=175 // pred_check_branch
          %11073 = sbr.rel (%p11071) target = $region180
        $region179: #{cnn_forward.1} parent=175 // pred_region
          %s11074 = sand.u32 %s258, 1
          %s11075 = scalar_lea.sflag [#allocation6], %s11074
          %s11076 = sand.u32 %s258, 1
          %s11077 = smul.addr %s11076, 8
          %s11078 = scalar_lea.vmem [#allocation18], %s11077
          %11079 = dma.done %s11075, 128
        $region180: #{cnn_forward.1} parent=175 // pred_fallthru
          _
      $region176: #{cnn_forward.1} parent=5 // pred_fallthru
        _
    $region6: #{cnn_forward.1} parent=1 // loop_footer
      %s28 = sadd.s32 1, %s24
    $region7: #{cnn_forward.1} parent=1 // loop_footer_branch
      %23 = sbr.rel target = $region3
    $region8: #{cnn_forward.1} parent=1 // loop_exit
      _
    %11080 = vsyncpa [#allocation5], 1
    %s11081 = scalar_lea.sflag [#allocation5], 1
    %11082 = vsyncpa %s11081, 1
    %11083 = vsyncpa [#allocation8], 1
    %11084 = vsyncpa [#allocation11], 1
    %11085 = vsyncpa [#allocation14], 1
    %11086 = vsyncpa [#allocation17], 1
    %11087 = vsyncpa [#allocation6], 1
    %s11088 = scalar_lea.sflag [#allocation6], 1
    %11089 = vsyncpa %s11088, 1

</llo_original>
